<compile_context>
chip_gen: v7x
topology: tpu7x:2x2x1
jax: 0.10.0
libtpu: 0.0.40
codegen_flags: <defaults>
</compile_context>

<pallas_src>
import numpy as np

import jax
import jax.numpy as jnp
from jax import lax
from jax.experimental import pallas as pl
from jax.experimental.pallas import tpu as pltpu


def _round_up(x, m):
    return (x + m - 1) // m * m


# ----------------------------------------------------------------------------
# Static layer geometry (MNIST 28x28, 5x5 "same" convs, two 2x2 max-pools).
# Activations are channel-on-sublane / flattened-padded-spatial-on-lane: the
# value of output pixel (i, j) of a stage with padded width WP sits at lane
# i*WP + j; the zero-padding ring lives in the same buffer, so every 5x5 tap
# is a single static lane offset di*WP + dj.
# ----------------------------------------------------------------------------
K = 5
H1 = W1 = 28
WP1 = W1 + 4                                   # 32
LA1 = _round_up(H1 * WP1, 128)                 # 896   conv1 output lanes
LBUF1 = _round_up(4 * WP1 + 4 + LA1, 128)      # 1152  conv1 input buffer
CBUF1 = LA1 + 128                              # 1024  pool-candidate buffer

H2 = W2 = 14
WP2 = W2 + 4                                   # 18
LA2 = _round_up(H2 * WP2, 128)                 # 256
LBUF2 = _round_up(4 * WP2 + 4 + LA2, 128)      # 384
CBUF2 = LA2 + 128                              # 384

H3 = W3 = 7
WP3 = W3 + 4                                   # 11
LA3 = _round_up(H3 * WP3, 128)                 # 128
LBUF3 = _round_up(4 * WP3 + 4 + LA3, 128)      # 256

P1_ROWS = 32                                   # conv1 taps (25) padded to 32

SHIFTS1 = tuple(di * WP1 + dj for di in range(K) for dj in range(K))
SHIFTS2 = tuple(di * WP2 + dj for di in range(K) for dj in range(K))
SHIFTS3 = tuple(di * WP3 + dj for di in range(K) for dj in range(K))


# ----------------------------------------------------------------------------
# Kernel helpers (traced inline; all offsets are static Python ints).
# ----------------------------------------------------------------------------
def _im2col_conv_relu(a_ref, patch_ref, w_ref, b_ref, cin, shifts, la):
    """5x5 'same' conv + bias + ReLU: build the in-VMEM im2col patch with one
    static-offset bf16 slice per kernel tap, then one MXU matmul (f32 acc)."""
    for k, off in enumerate(shifts):
        patch_ref[k * cin:(k + 1) * cin, :] = a_ref[:, off:off + la]
    acc = jnp.dot(w_ref[...], patch_ref[...],
                  preferred_element_type=jnp.float32)
    return jnp.maximum(acc + b_ref[...], 0.0)


def _fused_net_kernel(x_ref, w1_ref, b1_ref, s1_ref,
                      w2a_ref, b2a_ref, s2a_ref,
                      w2b_ref, b2b_ref, s2b_ref,
                      w3_ref, b3_ref,
                      o_ref,
                      patch1_ref, c1_ref, a2_ref, patch2a_ref, a2b_ref,
                      patch2b_ref, c2b_ref, a3_ref, patch3_ref):
    bf16 = jnp.bfloat16
    f32 = jnp.float32

    # ------------- conv1 (Cin=1, 25 taps on sublanes) + ReLU ----------------
    patch1_ref[K * K:P1_ROWS, :] = jnp.zeros((P1_ROWS - K * K, LA1), bf16)
    acc1 = _im2col_conv_relu(x_ref, patch1_ref, w1_ref, b1_ref, 1, SHIFTS1, LA1)
    # stash bf16 activations (zeroed tail) for the in-VMEM 2x2 maxpool
    c1_ref[:, :LA1] = acc1.astype(bf16)
    c1_ref[:, LA1:CBUF1] = jnp.zeros((16, CBUF1 - LA1), bf16)
    cand1 = jnp.maximum(
        jnp.maximum(c1_ref[:, 0:LA1], c1_ref[:, 1:1 + LA1]),
        jnp.maximum(c1_ref[:, WP1:WP1 + LA1], c1_ref[:, WP1 + 1:WP1 + 1 + LA1]))
    # scatter pooled pixels into conv2a's zero-padded flattened input layout
    a2_ref[...] = jnp.dot(cand1, s1_ref[...],
                          preferred_element_type=f32).astype(bf16)

    # ------------- conv2a + ReLU -> re-pad for conv2b -----------------------
    acc2a = _im2col_conv_relu(a2_ref, patch2a_ref, w2a_ref, b2a_ref, 16,
                              SHIFTS2, LA2)
    a2b_ref[...] = jnp.dot(acc2a.astype(bf16), s2a_ref[...],
                           preferred_element_type=f32).astype(bf16)

    # ------------- conv2b + ReLU -> maxpool -> re-pad for conv3 -------------
    acc2b = _im2col_conv_relu(a2b_ref, patch2b_ref, w2b_ref, b2b_ref, 32,
                              SHIFTS2, LA2)
    c2b_ref[:, :LA2] = acc2b.astype(bf16)
    c2b_ref[:, LA2:CBUF2] = jnp.zeros((32, CBUF2 - LA2), bf16)
    cand2 = jnp.maximum(
        jnp.maximum(c2b_ref[:, 0:LA2], c2b_ref[:, 1:1 + LA2]),
        jnp.maximum(c2b_ref[:, WP2:WP2 + LA2], c2b_ref[:, WP2 + 1:WP2 + 1 + LA2]))
    a3_ref[...] = jnp.dot(cand2, s2b_ref[...],
                          preferred_element_type=f32).astype(bf16)

    # ------------- conv3 + ReLU -> lane-dense (64, 128) output --------------
    acc3 = _im2col_conv_relu(a3_ref, patch3_ref, w3_ref, b3_ref, 32,
                             SHIFTS3, LA3)
    o_ref[...] = acc3.astype(o_ref.dtype)


# ----------------------------------------------------------------------------
# Wrapper-side constant prep.
# ----------------------------------------------------------------------------
def _relayout_matrix(h, w, wp_in, wp_out, l_in, l_out, pool):
    """0/1 matrix scattering stage outputs (optionally 2x2-pool roots) into the
    next stage's zero-padded, row-flattened input layout (zeros elsewhere)."""
    s = np.zeros((l_in, l_out), np.float32)
    step = 2 if pool else 1
    for i in range(h):
        for j in range(w):
            s[step * i * wp_in + step * j, (i + 2) * wp_out + (j + 2)] = 1.0
    return jnp.asarray(s, jnp.bfloat16)


def _prep_conv_w(w, cin):
    """(Cout, Cin, 5, 5) -> (Cout, 25*Cin), tap-major / channel-minor, bf16."""
    cout = w.shape[0]
    return jnp.transpose(w, (0, 2, 3, 1)).reshape(cout, K * K * cin).astype(jnp.bfloat16)


def _prep_linear_w(w_out):
    """(10, 64*7*7) torch NCHW-flatten order -> (64*LA3, 10) aligned to the
    kernel's (channel, i*WP3+j) output layout; zero rows kill garbage lanes so
    no un-pad slice is needed in XLA."""
    idx = np.zeros((64 * LA3,), np.int32)
    valid = np.zeros((64 * LA3,), bool)
    for c in range(64):
        for i in range(H3):
            for j in range(W3):
                r = c * LA3 + i * WP3 + j
                idx[r] = c * (H3 * W3) + i * W3 + j
                valid[r] = True
    wt = jnp.take(w_out.T, jnp.asarray(idx), axis=0)        # (64*LA3, 10)
    return jnp.where(jnp.asarray(valid)[:, None], wt, 0.0)


def net_forward(params, x):
    B = x.shape[0]
    bf16 = jnp.bfloat16

    # Input: zero-pad borders, flatten rows of the padded image, zero tail.
    xp = jnp.pad(x, ((0, 0), (0, 0), (2, 2), (2, 2)))                 # (B,1,32,32)
    xf = xp.reshape(B, 1, (H1 + 4) * WP1)
    xf = jnp.pad(xf, ((0, 0), (0, 0), (0, LBUF1 - (H1 + 4) * WP1))).astype(bf16)

    w1, b1 = params["conv1"]
    w2a, b2a = params["conv2a"]
    w2b, b2b = params["conv2b"]
    w3, b3 = params["conv3"]
    w_out, b_out = params["out"]

    # conv1 weight: (16,1,5,5) -> (16, 25) -> pad taps to 32 sublane slots.
    w1p = jnp.pad(w1.reshape(16, K * K),
                  ((0, 0), (0, P1_ROWS - K * K))).astype(bf16)
    w2ap = _prep_conv_w(w2a, 16)
    w2bp = _prep_conv_w(w2b, 32)
    w3p = _prep_conv_w(w3, 32)
    b1p = b1.reshape(-1, 1).astype(jnp.float32)
    b2ap = b2a.reshape(-1, 1).astype(jnp.float32)
    b2bp = b2b.reshape(-1, 1).astype(jnp.float32)
    b3p = b3.reshape(-1, 1).astype(jnp.float32)

    s1 = _relayout_matrix(14, 14, WP1, WP2, LA1, LBUF2, True)    # (896, 384)
    s2a = _relayout_matrix(14, 14, WP2, WP2, LA2, LBUF2, False)  # (256, 384)
    s2b = _relayout_matrix(7, 7, WP2, WP3, LA2, LBUF3, True)     # (256, 256)

    operands = (xf, w1p, b1p, s1, w2ap, b2ap, s2a, w2bp, b2bp, s2b, w3p, b3p)

    mac_per_image = (16 * P1_ROWS * LA1          # conv1
                     + 16 * LA1 * LBUF2          # pool1 scatter
                     + 32 * (K * K * 16) * LA2   # conv2a
                     + 32 * LA2 * LBUF2          # conv2a re-pad scatter
                     + 32 * (K * K * 32) * LA2   # conv2b
                     + 32 * LA2 * LBUF3          # pool2 scatter
                     + 64 * (K * K * 32) * LA3)  # conv3
    bytes_accessed = sum(int(np.prod(a.shape)) * a.dtype.itemsize
                         for a in operands) + B * 64 * LA3 * 4
    cost = pl.CostEstimate(flops=int(2 * B * mac_per_image),
                           transcendentals=0,
                           bytes_accessed=int(bytes_accessed))

    out = pl.pallas_call(
        _fused_net_kernel,
        out_shape=jax.ShapeDtypeStruct((B, 64, LA3), jnp.float32),
        grid=(B,),
        in_specs=[
            pl.BlockSpec((None, 1, LBUF1), lambda b: (b, 0, 0)),       # image
            pl.BlockSpec((16, P1_ROWS), lambda b: (0, 0)),             # w1
            pl.BlockSpec((16, 1), lambda b: (0, 0)),                   # b1
            pl.BlockSpec((LA1, LBUF2), lambda b: (0, 0)),              # s1
            pl.BlockSpec((32, K * K * 16), lambda b: (0, 0)),          # w2a
            pl.BlockSpec((32, 1), lambda b: (0, 0)),                   # b2a
            pl.BlockSpec((LA2, LBUF2), lambda b: (0, 0)),              # s2a
            pl.BlockSpec((32, K * K * 32), lambda b: (0, 0)),          # w2b
            pl.BlockSpec((32, 1), lambda b: (0, 0)),                   # b2b
            pl.BlockSpec((LA2, LBUF3), lambda b: (0, 0)),              # s2b
            pl.BlockSpec((64, K * K * 32), lambda b: (0, 0)),          # w3
            pl.BlockSpec((64, 1), lambda b: (0, 0)),                   # b3
        ],
        out_specs=pl.BlockSpec((None, 64, LA3), lambda b: (b, 0, 0)),
        scratch_shapes=[
            pltpu.VMEM((P1_ROWS, LA1), jnp.bfloat16),        # patch1
            pltpu.VMEM((16, CBUF1), jnp.bfloat16),           # c1 (pool cand)
            pltpu.VMEM((16, LBUF2), jnp.bfloat16),           # a2
            pltpu.VMEM((K * K * 16, LA2), jnp.bfloat16),     # patch2a
            pltpu.VMEM((32, LBUF2), jnp.bfloat16),           # a2b
            pltpu.VMEM((K * K * 32, LA2), jnp.bfloat16),     # patch2b
            pltpu.VMEM((32, CBUF2), jnp.bfloat16),           # c2b (pool cand)
            pltpu.VMEM((32, LBUF3), jnp.bfloat16),           # a3
            pltpu.VMEM((K * K * 32, LA3), jnp.bfloat16),     # patch3
        ],
        compiler_params=pltpu.CompilerParams(
            dimension_semantics=("parallel",)),
        cost_estimate=cost,
    )(*operands)

    # Tiny Linear(64*7*7 -> 10): a (B, 8192) x (8192, 10) XLA dot; the padded
    # weight's zero rows discard the kernel output's non-valid lanes.
    wlp = _prep_linear_w(w_out)
    logits = jnp.dot(out.reshape(B, 64 * LA3), wlp,
                     preferred_element_type=jnp.float32,
                     precision=lax.Precision.HIGHEST) + b_out
    return logits


# ----------------------------------------------------------------------------
# Parameter init (matches torch defaults' shapes) and pure-XLA f32 reference.
# ----------------------------------------------------------------------------
def init_params(key):
    def conv_init(k, cout, cin, ksz):
        fan_in = cin * ksz * ksz
        bound = 1.0 / jnp.sqrt(fan_in)
        kw, kb = jax.random.split(k)
        w = jax.random.uniform(kw, (cout, cin, ksz, ksz), jnp.float32, -bound, bound)
        b = jax.random.uniform(kb, (cout,), jnp.float32, -bound, bound)
        return w, b

    def linear_init(k, cout, cin):
        bound = 1.0 / jnp.sqrt(cin)
        kw, kb = jax.random.split(k)
        w = jax.random.uniform(kw, (cout, cin), jnp.float32, -bound, bound)
        b = jax.random.uniform(kb, (cout,), jnp.float32, -bound, bound)
        return w, b

    ks = jax.random.split(key, 5)
    return {
        "conv1": conv_init(ks[0], 16, 1, 5),
        "conv2a": conv_init(ks[1], 32, 16, 5),
        "conv2b": conv_init(ks[2], 32, 32, 5),
        "conv3": conv_init(ks[3], 64, 32, 5),
        "out": linear_init(ks[4], 10, 64 * 7 * 7),
    }


def _reference_forward(params, x):
    def conv(x, w, b):
        y = lax.conv_general_dilated(
            x, w, (1, 1), "SAME",
            dimension_numbers=("NCHW", "OIHW", "NCHW"),
            precision=lax.Precision.HIGHEST)
        return jax.nn.relu(y + b[None, :, None, None])

    def pool(x):
        b, c, h, w = x.shape
        return x.reshape(b, c, h // 2, 2, w // 2, 2).max(axis=(3, 5))

    x = pool(conv(x, *params["conv1"]))
    x = conv(x, *params["conv2a"])
    x = pool(conv(x, *params["conv2b"]))
    x = conv(x, *params["conv3"])
    w_out, b_out = params["out"]
    return jnp.dot(x.reshape(x.shape[0], -1), w_out.T,
                   precision=lax.Precision.HIGHEST) + b_out


if __name__ == "__main__":
    key = jax.random.PRNGKey(0)
    k_param, k_data = jax.random.split(key)
    params = init_params(k_param)
    # MNIST-shaped input (batch=2, NCHW); 28x28 is required by the 64*7*7 Linear.
    x = jax.random.normal(k_data, (2, 1, 28, 28), dtype=jnp.float32)

    logits = jax.jit(net_forward)(params, x)
    jax.block_until_ready(logits)
    assert logits.shape == (2, 10), logits.shape

    # Correctness check vs. f32 XLA reference (generous tolerance for the
    # bf16 activation/weight path inside the kernel).
    ref = jax.jit(_reference_forward)(params, x)
    jax.block_until_ready(ref)
    scale = jnp.max(jnp.abs(ref)) + 1e-6
    rel_err = float(jnp.max(jnp.abs(logits - ref)) / scale)
    assert rel_err < 0.1, f"kernel/reference mismatch: rel_err={rel_err:.4f}"

    print("KERNEL_OK")
</pallas_src>

<mosaic_0001>
module attributes {stable_mosaic.version = 11 : i64} {
  func.func @_fused_net_kernel(%arg0: i32, %arg1: memref<1x1x1152xbf16, #tpu.memory_space<vmem>>, %arg2: memref<16x32xbf16, #tpu.memory_space<vmem>>, %arg3: memref<16x1xf32, #tpu.memory_space<vmem>>, %arg4: memref<896x384xbf16, #tpu.memory_space<vmem>>, %arg5: memref<32x400xbf16, #tpu.memory_space<vmem>>, %arg6: memref<32x1xf32, #tpu.memory_space<vmem>>, %arg7: memref<256x384xbf16, #tpu.memory_space<vmem>>, %arg8: memref<32x800xbf16, #tpu.memory_space<vmem>>, %arg9: memref<32x1xf32, #tpu.memory_space<vmem>>, %arg10: memref<256x256xbf16, #tpu.memory_space<vmem>>, %arg11: memref<64x800xbf16, #tpu.memory_space<vmem>>, %arg12: memref<64x1xf32, #tpu.memory_space<vmem>>, %arg13: memref<1x64x128xf32, #tpu.memory_space<vmem>>, %arg14: memref<32x896xbf16, #tpu.memory_space<vmem>>, %arg15: memref<16x1024xbf16, #tpu.memory_space<vmem>>, %arg16: memref<16x384xbf16, #tpu.memory_space<vmem>>, %arg17: memref<400x256xbf16, #tpu.memory_space<vmem>>, %arg18: memref<32x384xbf16, #tpu.memory_space<vmem>>, %arg19: memref<800x256xbf16, #tpu.memory_space<vmem>>, %arg20: memref<32x384xbf16, #tpu.memory_space<vmem>>, %arg21: memref<32x256xbf16, #tpu.memory_space<vmem>>, %arg22: memref<800x128xbf16, #tpu.memory_space<vmem>>) attributes {dimension_semantics = [#tpu.dimension_semantics<parallel>], iteration_bounds = array<i64: 2>, scalar_prefetch = 0 : i64, scratch_operands = 9 : i64, tpu.core_type = #tpu.core_type<tc>, window_params = [{transform_indices = @transform_0, window_bounds = array<i64: 1, 1, 1152>}, {pipeline_mode = #tpu.pipeline_mode<synchronous>, transform_indices = @transform_1, window_bounds = array<i64: 16, 32>}, {pipeline_mode = #tpu.pipeline_mode<synchronous>, transform_indices = @transform_2, window_bounds = array<i64: 16, 1>}, {pipeline_mode = #tpu.pipeline_mode<synchronous>, transform_indices = @transform_3, window_bounds = array<i64: 896, 384>}, {pipeline_mode = #tpu.pipeline_mode<synchronous>, transform_indices = @transform_4, window_bounds = array<i64: 32, 400>}, {pipeline_mode = #tpu.pipeline_mode<synchronous>, transform_indices = @transform_5, window_bounds = array<i64: 32, 1>}, {pipeline_mode = #tpu.pipeline_mode<synchronous>, transform_indices = @transform_6, window_bounds = array<i64: 256, 384>}, {pipeline_mode = #tpu.pipeline_mode<synchronous>, transform_indices = @transform_7, window_bounds = array<i64: 32, 800>}, {pipeline_mode = #tpu.pipeline_mode<synchronous>, transform_indices = @transform_8, window_bounds = array<i64: 32, 1>}, {pipeline_mode = #tpu.pipeline_mode<synchronous>, transform_indices = @transform_9, window_bounds = array<i64: 256, 256>}, {pipeline_mode = #tpu.pipeline_mode<synchronous>, transform_indices = @transform_10, window_bounds = array<i64: 64, 800>}, {pipeline_mode = #tpu.pipeline_mode<synchronous>, transform_indices = @transform_11, window_bounds = array<i64: 64, 1>}, {transform_indices = @transform_12, window_bounds = array<i64: 1, 64, 128>}]} {
    %cst = arith.constant 0.000000e+00 : bf16
    %0 = vector.broadcast %cst : bf16 to vector<7x896xbf16>
    %c25 = arith.constant 25 : index
    %c0 = arith.constant 0 : index
    %1 = vector.load %arg14[%c25, %c0] : memref<32x896xbf16, #tpu.memory_space<vmem>>, vector<7x896xbf16>
    tpu.vector_store %arg14[%c25, %c0], %0 {strides = array<i32>} : memref<32x896xbf16, #tpu.memory_space<vmem>>, vector<7x896xbf16>,
    %c0_0 = arith.constant 0 : index
    %c0_1 = arith.constant 0 : index
    %c0_2 = arith.constant 0 : index
    %2 = vector.load %arg1[%c0_0, %c0_1, %c0_2] : memref<1x1x1152xbf16, #tpu.memory_space<vmem>>, vector<1x1x896xbf16>
    %3 = vector.shape_cast %2 : vector<1x1x896xbf16> to vector<1x896xbf16>
    %c0_3 = arith.constant 0 : index
    %c0_4 = arith.constant 0 : index
    %4 = vector.load %arg14[%c0_3, %c0_4] : memref<32x896xbf16, #tpu.memory_space<vmem>>, vector<1x896xbf16>
    tpu.vector_store %arg14[%c0_3, %c0_4], %3 {strides = array<i32>} : memref<32x896xbf16, #tpu.memory_space<vmem>>, vector<1x896xbf16>,
    %c0_5 = arith.constant 0 : index
    %c0_6 = arith.constant 0 : index
    %c1 = arith.constant 1 : index
    %5 = vector.load %arg1[%c0_5, %c0_6, %c1] : memref<1x1x1152xbf16, #tpu.memory_space<vmem>>, vector<1x1x896xbf16>
    %6 = vector.shape_cast %5 : vector<1x1x896xbf16> to vector<1x896xbf16>
    %c1_7 = arith.constant 1 : index
    %c0_8 = arith.constant 0 : index
    %7 = vector.load %arg14[%c1_7, %c0_8] : memref<32x896xbf16, #tpu.memory_space<vmem>>, vector<1x896xbf16>
    tpu.vector_store %arg14[%c1_7, %c0_8], %6 {strides = array<i32>} : memref<32x896xbf16, #tpu.memory_space<vmem>>, vector<1x896xbf16>,
    %c0_9 = arith.constant 0 : index
    %c0_10 = arith.constant 0 : index
    %c2 = arith.constant 2 : index
    %8 = vector.load %arg1[%c0_9, %c0_10, %c2] : memref<1x1x1152xbf16, #tpu.memory_space<vmem>>, vector<1x1x896xbf16>
    %9 = vector.shape_cast %8 : vector<1x1x896xbf16> to vector<1x896xbf16>
    %c2_11 = arith.constant 2 : index
    %c0_12 = arith.constant 0 : index
    %10 = vector.load %arg14[%c2_11, %c0_12] : memref<32x896xbf16, #tpu.memory_space<vmem>>, vector<1x896xbf16>
    tpu.vector_store %arg14[%c2_11, %c0_12], %9 {strides = array<i32>} : memref<32x896xbf16, #tpu.memory_space<vmem>>, vector<1x896xbf16>,
    %c0_13 = arith.constant 0 : index
    %c0_14 = arith.constant 0 : index
    %c3 = arith.constant 3 : index
    %11 = vector.load %arg1[%c0_13, %c0_14, %c3] : memref<1x1x1152xbf16, #tpu.memory_space<vmem>>, vector<1x1x896xbf16>
    %12 = vector.shape_cast %11 : vector<1x1x896xbf16> to vector<1x896xbf16>
    %c3_15 = arith.constant 3 : index
    %c0_16 = arith.constant 0 : index
    %13 = vector.load %arg14[%c3_15, %c0_16] : memref<32x896xbf16, #tpu.memory_space<vmem>>, vector<1x896xbf16>
    tpu.vector_store %arg14[%c3_15, %c0_16], %12 {strides = array<i32>} : memref<32x896xbf16, #tpu.memory_space<vmem>>, vector<1x896xbf16>,
    %c0_17 = arith.constant 0 : index
    %c0_18 = arith.constant 0 : index
    %c4 = arith.constant 4 : index
    %14 = vector.load %arg1[%c0_17, %c0_18, %c4] : memref<1x1x1152xbf16, #tpu.memory_space<vmem>>, vector<1x1x896xbf16>
    %15 = vector.shape_cast %14 : vector<1x1x896xbf16> to vector<1x896xbf16>
    %c4_19 = arith.constant 4 : index
    %c0_20 = arith.constant 0 : index
    %16 = vector.load %arg14[%c4_19, %c0_20] : memref<32x896xbf16, #tpu.memory_space<vmem>>, vector<1x896xbf16>
    tpu.vector_store %arg14[%c4_19, %c0_20], %15 {strides = array<i32>} : memref<32x896xbf16, #tpu.memory_space<vmem>>, vector<1x896xbf16>,
    %c0_21 = arith.constant 0 : index
    %c0_22 = arith.constant 0 : index
    %c32 = arith.constant 32 : index
    %17 = vector.load %arg1[%c0_21, %c0_22, %c32] : memref<1x1x1152xbf16, #tpu.memory_space<vmem>>, vector<1x1x896xbf16>
    %18 = vector.shape_cast %17 : vector<1x1x896xbf16> to vector<1x896xbf16>
    %c5 = arith.constant 5 : index
    %c0_23 = arith.constant 0 : index
    %19 = vector.load %arg14[%c5, %c0_23] : memref<32x896xbf16, #tpu.memory_space<vmem>>, vector<1x896xbf16>
    tpu.vector_store %arg14[%c5, %c0_23], %18 {strides = array<i32>} : memref<32x896xbf16, #tpu.memory_space<vmem>>, vector<1x896xbf16>,
    %c0_24 = arith.constant 0 : index
    %c0_25 = arith.constant 0 : index
    %c33 = arith.constant 33 : index
    %20 = vector.load %arg1[%c0_24, %c0_25, %c33] : memref<1x1x1152xbf16, #tpu.memory_space<vmem>>, vector<1x1x896xbf16>
    %21 = vector.shape_cast %20 : vector<1x1x896xbf16> to vector<1x896xbf16>
    %c6 = arith.constant 6 : index
    %c0_26 = arith.constant 0 : index
    %22 = vector.load %arg14[%c6, %c0_26] : memref<32x896xbf16, #tpu.memory_space<vmem>>, vector<1x896xbf16>
    tpu.vector_store %arg14[%c6, %c0_26], %21 {strides = array<i32>} : memref<32x896xbf16, #tpu.memory_space<vmem>>, vector<1x896xbf16>,
    %c0_27 = arith.constant 0 : index
    %c0_28 = arith.constant 0 : index
    %c34 = arith.constant 34 : index
    %23 = vector.load %arg1[%c0_27, %c0_28, %c34] : memref<1x1x1152xbf16, #tpu.memory_space<vmem>>, vector<1x1x896xbf16>
    %24 = vector.shape_cast %23 : vector<1x1x896xbf16> to vector<1x896xbf16>
    %c7 = arith.constant 7 : index
    %c0_29 = arith.constant 0 : index
    %25 = vector.load %arg14[%c7, %c0_29] : memref<32x896xbf16, #tpu.memory_space<vmem>>, vector<1x896xbf16>
    tpu.vector_store %arg14[%c7, %c0_29], %24 {strides = array<i32>} : memref<32x896xbf16, #tpu.memory_space<vmem>>, vector<1x896xbf16>,
    %c0_30 = arith.constant 0 : index
    %c0_31 = arith.constant 0 : index
    %c35 = arith.constant 35 : index
    %26 = vector.load %arg1[%c0_30, %c0_31, %c35] : memref<1x1x1152xbf16, #tpu.memory_space<vmem>>, vector<1x1x896xbf16>
    %27 = vector.shape_cast %26 : vector<1x1x896xbf16> to vector<1x896xbf16>
    %c8 = arith.constant 8 : index
    %c0_32 = arith.constant 0 : index
    %28 = vector.load %arg14[%c8, %c0_32] : memref<32x896xbf16, #tpu.memory_space<vmem>>, vector<1x896xbf16>
    tpu.vector_store %arg14[%c8, %c0_32], %27 {strides = array<i32>} : memref<32x896xbf16, #tpu.memory_space<vmem>>, vector<1x896xbf16>,
    %c0_33 = arith.constant 0 : index
    %c0_34 = arith.constant 0 : index
    %c36 = arith.constant 36 : index
    %29 = vector.load %arg1[%c0_33, %c0_34, %c36] : memref<1x1x1152xbf16, #tpu.memory_space<vmem>>, vector<1x1x896xbf16>
    %30 = vector.shape_cast %29 : vector<1x1x896xbf16> to vector<1x896xbf16>
    %c9 = arith.constant 9 : index
    %c0_35 = arith.constant 0 : index
    %31 = vector.load %arg14[%c9, %c0_35] : memref<32x896xbf16, #tpu.memory_space<vmem>>, vector<1x896xbf16>
    tpu.vector_store %arg14[%c9, %c0_35], %30 {strides = array<i32>} : memref<32x896xbf16, #tpu.memory_space<vmem>>, vector<1x896xbf16>,
    %c0_36 = arith.constant 0 : index
    %c0_37 = arith.constant 0 : index
    %c64 = arith.constant 64 : index
    %32 = vector.load %arg1[%c0_36, %c0_37, %c64] : memref<1x1x1152xbf16, #tpu.memory_space<vmem>>, vector<1x1x896xbf16>
    %33 = vector.shape_cast %32 : vector<1x1x896xbf16> to vector<1x896xbf16>
    %c10 = arith.constant 10 : index
    %c0_38 = arith.constant 0 : index
    %34 = vector.load %arg14[%c10, %c0_38] : memref<32x896xbf16, #tpu.memory_space<vmem>>, vector<1x896xbf16>
    tpu.vector_store %arg14[%c10, %c0_38], %33 {strides = array<i32>} : memref<32x896xbf16, #tpu.memory_space<vmem>>, vector<1x896xbf16>,
    %c0_39 = arith.constant 0 : index
    %c0_40 = arith.constant 0 : index
    %c65 = arith.constant 65 : index
    %35 = vector.load %arg1[%c0_39, %c0_40, %c65] : memref<1x1x1152xbf16, #tpu.memory_space<vmem>>, vector<1x1x896xbf16>
    %36 = vector.shape_cast %35 : vector<1x1x896xbf16> to vector<1x896xbf16>
    %c11 = arith.constant 11 : index
    %c0_41 = arith.constant 0 : index
    %37 = vector.load %arg14[%c11, %c0_41] : memref<32x896xbf16, #tpu.memory_space<vmem>>, vector<1x896xbf16>
    tpu.vector_store %arg14[%c11, %c0_41], %36 {strides = array<i32>} : memref<32x896xbf16, #tpu.memory_space<vmem>>, vector<1x896xbf16>,
    %c0_42 = arith.constant 0 : index
    %c0_43 = arith.constant 0 : index
    %c66 = arith.constant 66 : index
    %38 = vector.load %arg1[%c0_42, %c0_43, %c66] : memref<1x1x1152xbf16, #tpu.memory_space<vmem>>, vector<1x1x896xbf16>
    %39 = vector.shape_cast %38 : vector<1x1x896xbf16> to vector<1x896xbf16>
    %c12 = arith.constant 12 : index
    %c0_44 = arith.constant 0 : index
    %40 = vector.load %arg14[%c12, %c0_44] : memref<32x896xbf16, #tpu.memory_space<vmem>>, vector<1x896xbf16>
    tpu.vector_store %arg14[%c12, %c0_44], %39 {strides = array<i32>} : memref<32x896xbf16, #tpu.memory_space<vmem>>, vector<1x896xbf16>,
    %c0_45 = arith.constant 0 : index
    %c0_46 = arith.constant 0 : index
    %c67 = arith.constant 67 : index
    %41 = vector.load %arg1[%c0_45, %c0_46, %c67] : memref<1x1x1152xbf16, #tpu.memory_space<vmem>>, vector<1x1x896xbf16>
    %42 = vector.shape_cast %41 : vector<1x1x896xbf16> to vector<1x896xbf16>
    %c13 = arith.constant 13 : index
    %c0_47 = arith.constant 0 : index
    %43 = vector.load %arg14[%c13, %c0_47] : memref<32x896xbf16, #tpu.memory_space<vmem>>, vector<1x896xbf16>
    tpu.vector_store %arg14[%c13, %c0_47], %42 {strides = array<i32>} : memref<32x896xbf16, #tpu.memory_space<vmem>>, vector<1x896xbf16>,
    %c0_48 = arith.constant 0 : index
    %c0_49 = arith.constant 0 : index
    %c68 = arith.constant 68 : index
    %44 = vector.load %arg1[%c0_48, %c0_49, %c68] : memref<1x1x1152xbf16, #tpu.memory_space<vmem>>, vector<1x1x896xbf16>
    %45 = vector.shape_cast %44 : vector<1x1x896xbf16> to vector<1x896xbf16>
    %c14 = arith.constant 14 : index
    %c0_50 = arith.constant 0 : index
    %46 = vector.load %arg14[%c14, %c0_50] : memref<32x896xbf16, #tpu.memory_space<vmem>>, vector<1x896xbf16>
    tpu.vector_store %arg14[%c14, %c0_50], %45 {strides = array<i32>} : memref<32x896xbf16, #tpu.memory_space<vmem>>, vector<1x896xbf16>,
    %c0_51 = arith.constant 0 : index
    %c0_52 = arith.constant 0 : index
    %c96 = arith.constant 96 : index
    %47 = vector.load %arg1[%c0_51, %c0_52, %c96] : memref<1x1x1152xbf16, #tpu.memory_space<vmem>>, vector<1x1x896xbf16>
    %48 = vector.shape_cast %47 : vector<1x1x896xbf16> to vector<1x896xbf16>
    %c15 = arith.constant 15 : index
    %c0_53 = arith.constant 0 : index
    %49 = vector.load %arg14[%c15, %c0_53] : memref<32x896xbf16, #tpu.memory_space<vmem>>, vector<1x896xbf16>
    tpu.vector_store %arg14[%c15, %c0_53], %48 {strides = array<i32>} : memref<32x896xbf16, #tpu.memory_space<vmem>>, vector<1x896xbf16>,
    %c0_54 = arith.constant 0 : index
    %c0_55 = arith.constant 0 : index
    %c97 = arith.constant 97 : index
    %50 = vector.load %arg1[%c0_54, %c0_55, %c97] : memref<1x1x1152xbf16, #tpu.memory_space<vmem>>, vector<1x1x896xbf16>
    %51 = vector.shape_cast %50 : vector<1x1x896xbf16> to vector<1x896xbf16>
    %c16 = arith.constant 16 : index
    %c0_56 = arith.constant 0 : index
    %52 = vector.load %arg14[%c16, %c0_56] : memref<32x896xbf16, #tpu.memory_space<vmem>>, vector<1x896xbf16>
    tpu.vector_store %arg14[%c16, %c0_56], %51 {strides = array<i32>} : memref<32x896xbf16, #tpu.memory_space<vmem>>, vector<1x896xbf16>,
    %c0_57 = arith.constant 0 : index
    %c0_58 = arith.constant 0 : index
    %c98 = arith.constant 98 : index
    %53 = vector.load %arg1[%c0_57, %c0_58, %c98] : memref<1x1x1152xbf16, #tpu.memory_space<vmem>>, vector<1x1x896xbf16>
    %54 = vector.shape_cast %53 : vector<1x1x896xbf16> to vector<1x896xbf16>
    %c17 = arith.constant 17 : index
    %c0_59 = arith.constant 0 : index
    %55 = vector.load %arg14[%c17, %c0_59] : memref<32x896xbf16, #tpu.memory_space<vmem>>, vector<1x896xbf16>
    tpu.vector_store %arg14[%c17, %c0_59], %54 {strides = array<i32>} : memref<32x896xbf16, #tpu.memory_space<vmem>>, vector<1x896xbf16>,
    %c0_60 = arith.constant 0 : index
    %c0_61 = arith.constant 0 : index
    %c99 = arith.constant 99 : index
    %56 = vector.load %arg1[%c0_60, %c0_61, %c99] : memref<1x1x1152xbf16, #tpu.memory_space<vmem>>, vector<1x1x896xbf16>
    %57 = vector.shape_cast %56 : vector<1x1x896xbf16> to vector<1x896xbf16>
    %c18 = arith.constant 18 : index
    %c0_62 = arith.constant 0 : index
    %58 = vector.load %arg14[%c18, %c0_62] : memref<32x896xbf16, #tpu.memory_space<vmem>>, vector<1x896xbf16>
    tpu.vector_store %arg14[%c18, %c0_62], %57 {strides = array<i32>} : memref<32x896xbf16, #tpu.memory_space<vmem>>, vector<1x896xbf16>,
    %c0_63 = arith.constant 0 : index
    %c0_64 = arith.constant 0 : index
    %c100 = arith.constant 100 : index
    %59 = vector.load %arg1[%c0_63, %c0_64, %c100] : memref<1x1x1152xbf16, #tpu.memory_space<vmem>>, vector<1x1x896xbf16>
    %60 = vector.shape_cast %59 : vector<1x1x896xbf16> to vector<1x896xbf16>
    %c19 = arith.constant 19 : index
    %c0_65 = arith.constant 0 : index
    %61 = vector.load %arg14[%c19, %c0_65] : memref<32x896xbf16, #tpu.memory_space<vmem>>, vector<1x896xbf16>
    tpu.vector_store %arg14[%c19, %c0_65], %60 {strides = array<i32>} : memref<32x896xbf16, #tpu.memory_space<vmem>>, vector<1x896xbf16>,
    %c0_66 = arith.constant 0 : index
    %c0_67 = arith.constant 0 : index
    %c128 = arith.constant 128 : index
    %62 = vector.load %arg1[%c0_66, %c0_67, %c128] : memref<1x1x1152xbf16, #tpu.memory_space<vmem>>, vector<1x1x896xbf16>
    %63 = vector.shape_cast %62 : vector<1x1x896xbf16> to vector<1x896xbf16>
    %c20 = arith.constant 20 : index
    %c0_68 = arith.constant 0 : index
    %64 = vector.load %arg14[%c20, %c0_68] : memref<32x896xbf16, #tpu.memory_space<vmem>>, vector<1x896xbf16>
    tpu.vector_store %arg14[%c20, %c0_68], %63 {strides = array<i32>} : memref<32x896xbf16, #tpu.memory_space<vmem>>, vector<1x896xbf16>,
    %c0_69 = arith.constant 0 : index
    %c0_70 = arith.constant 0 : index
    %c129 = arith.constant 129 : index
    %65 = vector.load %arg1[%c0_69, %c0_70, %c129] : memref<1x1x1152xbf16, #tpu.memory_space<vmem>>, vector<1x1x896xbf16>
    %66 = vector.shape_cast %65 : vector<1x1x896xbf16> to vector<1x896xbf16>
    %c21 = arith.constant 21 : index
    %c0_71 = arith.constant 0 : index
    %67 = vector.load %arg14[%c21, %c0_71] : memref<32x896xbf16, #tpu.memory_space<vmem>>, vector<1x896xbf16>
    tpu.vector_store %arg14[%c21, %c0_71], %66 {strides = array<i32>} : memref<32x896xbf16, #tpu.memory_space<vmem>>, vector<1x896xbf16>,
    %c0_72 = arith.constant 0 : index
    %c0_73 = arith.constant 0 : index
    %c130 = arith.constant 130 : index
    %68 = vector.load %arg1[%c0_72, %c0_73, %c130] : memref<1x1x1152xbf16, #tpu.memory_space<vmem>>, vector<1x1x896xbf16>
    %69 = vector.shape_cast %68 : vector<1x1x896xbf16> to vector<1x896xbf16>
    %c22 = arith.constant 22 : index
    %c0_74 = arith.constant 0 : index
    %70 = vector.load %arg14[%c22, %c0_74] : memref<32x896xbf16, #tpu.memory_space<vmem>>, vector<1x896xbf16>
    tpu.vector_store %arg14[%c22, %c0_74], %69 {strides = array<i32>} : memref<32x896xbf16, #tpu.memory_space<vmem>>, vector<1x896xbf16>,
    %c0_75 = arith.constant 0 : index
    %c0_76 = arith.constant 0 : index
    %c131 = arith.constant 131 : index
    %71 = vector.load %arg1[%c0_75, %c0_76, %c131] : memref<1x1x1152xbf16, #tpu.memory_space<vmem>>, vector<1x1x896xbf16>
    %72 = vector.shape_cast %71 : vector<1x1x896xbf16> to vector<1x896xbf16>
    %c23 = arith.constant 23 : index
    %c0_77 = arith.constant 0 : index
    %73 = vector.load %arg14[%c23, %c0_77] : memref<32x896xbf16, #tpu.memory_space<vmem>>, vector<1x896xbf16>
    tpu.vector_store %arg14[%c23, %c0_77], %72 {strides = array<i32>} : memref<32x896xbf16, #tpu.memory_space<vmem>>, vector<1x896xbf16>,
    %c0_78 = arith.constant 0 : index
    %c0_79 = arith.constant 0 : index
    %c132 = arith.constant 132 : index
    %74 = vector.load %arg1[%c0_78, %c0_79, %c132] : memref<1x1x1152xbf16, #tpu.memory_space<vmem>>, vector<1x1x896xbf16>
    %75 = vector.shape_cast %74 : vector<1x1x896xbf16> to vector<1x896xbf16>
    %c24 = arith.constant 24 : index
    %c0_80 = arith.constant 0 : index
    %76 = vector.load %arg14[%c24, %c0_80] : memref<32x896xbf16, #tpu.memory_space<vmem>>, vector<1x896xbf16>
    tpu.vector_store %arg14[%c24, %c0_80], %75 {strides = array<i32>} : memref<32x896xbf16, #tpu.memory_space<vmem>>, vector<1x896xbf16>,
    %c0_81 = arith.constant 0 : index
    %c0_82 = arith.constant 0 : index
    %77 = vector.load %arg2[%c0_81, %c0_82] : memref<16x32xbf16, #tpu.memory_space<vmem>>, vector<16x32xbf16>
    %c0_83 = arith.constant 0 : index
    %c0_84 = arith.constant 0 : index
    %78 = vector.load %arg14[%c0_83, %c0_84] : memref<32x896xbf16, #tpu.memory_space<vmem>>, vector<32x896xbf16>
    %cst_85 = arith.constant dense<0.000000e+00> : vector<16x896xf32>
    %79 = tpu.matmul %77, %78, %cst_85 {dimension_numbers = #tpu.dot_dimension_numbers<[1], [0], [0], [1], [0, 0, 1, 1], [], []>} : vector<16x32xbf16>, vector<32x896xbf16>, vector<16x896xf32> -> vector<16x896xf32>
    %c0_86 = arith.constant 0 : index
    %c0_87 = arith.constant 0 : index
    %80 = vector.load %arg3[%c0_86, %c0_87] : memref<16x1xf32, #tpu.memory_space<vmem>>, vector<16x1xf32>
    %81 = vector.broadcast %80 : vector<16x1xf32> to vector<16x896xf32>
    %82 = arith.addf %79, %81 : vector<16x896xf32>
    %cst_88 = arith.constant 0.000000e+00 : f32
    %83 = vector.broadcast %cst_88 : f32 to vector<16x896xf32>
    %84 = arith.maximumf %82, %83 : vector<16x896xf32>
    %85 = arith.truncf %84 : vector<16x896xf32> to vector<16x896xbf16>
    %c0_89 = arith.constant 0 : index
    %c0_90 = arith.constant 0 : index
    %86 = vector.load %arg15[%c0_89, %c0_90] : memref<16x1024xbf16, #tpu.memory_space<vmem>>, vector<16x896xbf16>
    tpu.vector_store %arg15[%c0_89, %c0_90], %85 {strides = array<i32>} : memref<16x1024xbf16, #tpu.memory_space<vmem>>, vector<16x896xbf16>,
    %cst_91 = arith.constant 0.000000e+00 : bf16
    %87 = vector.broadcast %cst_91 : bf16 to vector<16x128xbf16>
    %c0_92 = arith.constant 0 : index
    %c896 = arith.constant 896 : index
    %88 = vector.load %arg15[%c0_92, %c896] : memref<16x1024xbf16, #tpu.memory_space<vmem>>, vector<16x128xbf16>
    tpu.vector_store %arg15[%c0_92, %c896], %87 {strides = array<i32>} : memref<16x1024xbf16, #tpu.memory_space<vmem>>, vector<16x128xbf16>,
    %c0_93 = arith.constant 0 : index
    %c0_94 = arith.constant 0 : index
    %89 = vector.load %arg15[%c0_93, %c0_94] : memref<16x1024xbf16, #tpu.memory_space<vmem>>, vector<16x896xbf16>
    %c0_95 = arith.constant 0 : index
    %c1_96 = arith.constant 1 : index
    %90 = vector.load %arg15[%c0_95, %c1_96] : memref<16x1024xbf16, #tpu.memory_space<vmem>>, vector<16x896xbf16>
    %91 = arith.maximumf %89, %90 : vector<16x896xbf16>
    %c0_97 = arith.constant 0 : index
    %c32_98 = arith.constant 32 : index
    %92 = vector.load %arg15[%c0_97, %c32_98] : memref<16x1024xbf16, #tpu.memory_space<vmem>>, vector<16x896xbf16>
    %c0_99 = arith.constant 0 : index
    %c33_100 = arith.constant 33 : index
    %93 = vector.load %arg15[%c0_99, %c33_100] : memref<16x1024xbf16, #tpu.memory_space<vmem>>, vector<16x896xbf16>
    %94 = arith.maximumf %92, %93 : vector<16x896xbf16>
    %95 = arith.maximumf %91, %94 : vector<16x896xbf16>
    %c0_101 = arith.constant 0 : index
    %c0_102 = arith.constant 0 : index
    %96 = vector.load %arg4[%c0_101, %c0_102] : memref<896x384xbf16, #tpu.memory_space<vmem>>, vector<896x384xbf16>
    %cst_103 = arith.constant dense<0.000000e+00> : vector<16x384xf32>
    %97 = tpu.matmul %95, %96, %cst_103 {dimension_numbers = #tpu.dot_dimension_numbers<[1], [0], [0], [1], [0, 0, 1, 1], [], []>} : vector<16x896xbf16>, vector<896x384xbf16>, vector<16x384xf32> -> vector<16x384xf32>
    %98 = arith.truncf %97 : vector<16x384xf32> to vector<16x384xbf16>
    %c0_104 = arith.constant 0 : index
    %c0_105 = arith.constant 0 : index
    %99 = vector.load %arg16[%c0_104, %c0_105] : memref<16x384xbf16, #tpu.memory_space<vmem>>, vector<16x384xbf16>
    tpu.vector_store %arg16[%c0_104, %c0_105], %98 {strides = array<i32>} : memref<16x384xbf16, #tpu.memory_space<vmem>>, vector<16x384xbf16>,
    %c0_106 = arith.constant 0 : index
    %c0_107 = arith.constant 0 : index
    %100 = vector.load %arg16[%c0_106, %c0_107] : memref<16x384xbf16, #tpu.memory_space<vmem>>, vector<16x256xbf16>
    %c0_108 = arith.constant 0 : index
    %c0_109 = arith.constant 0 : index
    %101 = vector.load %arg17[%c0_108, %c0_109] : memref<400x256xbf16, #tpu.memory_space<vmem>>, vector<16x256xbf16>
    tpu.vector_store %arg17[%c0_108, %c0_109], %100 {strides = array<i32>} : memref<400x256xbf16, #tpu.memory_space<vmem>>, vector<16x256xbf16>,
    %c0_110 = arith.constant 0 : index
    %c1_111 = arith.constant 1 : index
    %102 = vector.load %arg16[%c0_110, %c1_111] : memref<16x384xbf16, #tpu.memory_space<vmem>>, vector<16x256xbf16>
    %c16_112 = arith.constant 16 : index
    %c0_113 = arith.constant 0 : index
    %103 = vector.load %arg17[%c16_112, %c0_113] : memref<400x256xbf16, #tpu.memory_space<vmem>>, vector<16x256xbf16>
    tpu.vector_store %arg17[%c16_112, %c0_113], %102 {strides = array<i32>} : memref<400x256xbf16, #tpu.memory_space<vmem>>, vector<16x256xbf16>,
    %c0_114 = arith.constant 0 : index
    %c2_115 = arith.constant 2 : index
    %104 = vector.load %arg16[%c0_114, %c2_115] : memref<16x384xbf16, #tpu.memory_space<vmem>>, vector<16x256xbf16>
    %c32_116 = arith.constant 32 : index
    %c0_117 = arith.constant 0 : index
    %105 = vector.load %arg17[%c32_116, %c0_117] : memref<400x256xbf16, #tpu.memory_space<vmem>>, vector<16x256xbf16>
    tpu.vector_store %arg17[%c32_116, %c0_117], %104 {strides = array<i32>} : memref<400x256xbf16, #tpu.memory_space<vmem>>, vector<16x256xbf16>,
    %c0_118 = arith.constant 0 : index
    %c3_119 = arith.constant 3 : index
    %106 = vector.load %arg16[%c0_118, %c3_119] : memref<16x384xbf16, #tpu.memory_space<vmem>>, vector<16x256xbf16>
    %c48 = arith.constant 48 : index
    %c0_120 = arith.constant 0 : index
    %107 = vector.load %arg17[%c48, %c0_120] : memref<400x256xbf16, #tpu.memory_space<vmem>>, vector<16x256xbf16>
    tpu.vector_store %arg17[%c48, %c0_120], %106 {strides = array<i32>} : memref<400x256xbf16, #tpu.memory_space<vmem>>, vector<16x256xbf16>,
    %c0_121 = arith.constant 0 : index
    %c4_122 = arith.constant 4 : index
    %108 = vector.load %arg16[%c0_121, %c4_122] : memref<16x384xbf16, #tpu.memory_space<vmem>>, vector<16x256xbf16>
    %c64_123 = arith.constant 64 : index
    %c0_124 = arith.constant 0 : index
    %109 = vector.load %arg17[%c64_123, %c0_124] : memref<400x256xbf16, #tpu.memory_space<vmem>>, vector<16x256xbf16>
    tpu.vector_store %arg17[%c64_123, %c0_124], %108 {strides = array<i32>} : memref<400x256xbf16, #tpu.memory_space<vmem>>, vector<16x256xbf16>,
    %c0_125 = arith.constant 0 : index
    %c18_126 = arith.constant 18 : index
    %110 = vector.load %arg16[%c0_125, %c18_126] : memref<16x384xbf16, #tpu.memory_space<vmem>>, vector<16x256xbf16>
    %c80 = arith.constant 80 : index
    %c0_127 = arith.constant 0 : index
    %111 = vector.load %arg17[%c80, %c0_127] : memref<400x256xbf16, #tpu.memory_space<vmem>>, vector<16x256xbf16>
    tpu.vector_store %arg17[%c80, %c0_127], %110 {strides = array<i32>} : memref<400x256xbf16, #tpu.memory_space<vmem>>, vector<16x256xbf16>,
    %c0_128 = arith.constant 0 : index
    %c19_129 = arith.constant 19 : index
    %112 = vector.load %arg16[%c0_128, %c19_129] : memref<16x384xbf16, #tpu.memory_space<vmem>>, vector<16x256xbf16>
    %c96_130 = arith.constant 96 : index
    %c0_131 = arith.constant 0 : index
    %113 = vector.load %arg17[%c96_130, %c0_131] : memref<400x256xbf16, #tpu.memory_space<vmem>>, vector<16x256xbf16>
    tpu.vector_store %arg17[%c96_130, %c0_131], %112 {strides = array<i32>} : memref<400x256xbf16, #tpu.memory_space<vmem>>, vector<16x256xbf16>,
    %c0_132 = arith.constant 0 : index
    %c20_133 = arith.constant 20 : index
    %114 = vector.load %arg16[%c0_132, %c20_133] : memref<16x384xbf16, #tpu.memory_space<vmem>>, vector<16x256xbf16>
    %c112 = arith.constant 112 : index
    %c0_134 = arith.constant 0 : index
    %115 = vector.load %arg17[%c112, %c0_134] : memref<400x256xbf16, #tpu.memory_space<vmem>>, vector<16x256xbf16>
    tpu.vector_store %arg17[%c112, %c0_134], %114 {strides = array<i32>} : memref<400x256xbf16, #tpu.memory_space<vmem>>, vector<16x256xbf16>,
    %c0_135 = arith.constant 0 : index
    %c21_136 = arith.constant 21 : index
    %116 = vector.load %arg16[%c0_135, %c21_136] : memref<16x384xbf16, #tpu.memory_space<vmem>>, vector<16x256xbf16>
    %c128_137 = arith.constant 128 : index
    %c0_138 = arith.constant 0 : index
    %117 = vector.load %arg17[%c128_137, %c0_138] : memref<400x256xbf16, #tpu.memory_space<vmem>>, vector<16x256xbf16>
    tpu.vector_store %arg17[%c128_137, %c0_138], %116 {strides = array<i32>} : memref<400x256xbf16, #tpu.memory_space<vmem>>, vector<16x256xbf16>,
    %c0_139 = arith.constant 0 : index
    %c22_140 = arith.constant 22 : index
    %118 = vector.load %arg16[%c0_139, %c22_140] : memref<16x384xbf16, #tpu.memory_space<vmem>>, vector<16x256xbf16>
    %c144 = arith.constant 144 : index
    %c0_141 = arith.constant 0 : index
    %119 = vector.load %arg17[%c144, %c0_141] : memref<400x256xbf16, #tpu.memory_space<vmem>>, vector<16x256xbf16>
    tpu.vector_store %arg17[%c144, %c0_141], %118 {strides = array<i32>} : memref<400x256xbf16, #tpu.memory_space<vmem>>, vector<16x256xbf16>,
    %c0_142 = arith.constant 0 : index
    %c36_143 = arith.constant 36 : index
    %120 = vector.load %arg16[%c0_142, %c36_143] : memref<16x384xbf16, #tpu.memory_space<vmem>>, vector<16x256xbf16>
    %c160 = arith.constant 160 : index
    %c0_144 = arith.constant 0 : index
    %121 = vector.load %arg17[%c160, %c0_144] : memref<400x256xbf16, #tpu.memory_space<vmem>>, vector<16x256xbf16>
    tpu.vector_store %arg17[%c160, %c0_144], %120 {strides = array<i32>} : memref<400x256xbf16, #tpu.memory_space<vmem>>, vector<16x256xbf16>,
    %c0_145 = arith.constant 0 : index
    %c37 = arith.constant 37 : index
    %122 = vector.load %arg16[%c0_145, %c37] : memref<16x384xbf16, #tpu.memory_space<vmem>>, vector<16x256xbf16>
    %c176 = arith.constant 176 : index
    %c0_146 = arith.constant 0 : index
    %123 = vector.load %arg17[%c176, %c0_146] : memref<400x256xbf16, #tpu.memory_space<vmem>>, vector<16x256xbf16>
    tpu.vector_store %arg17[%c176, %c0_146], %122 {strides = array<i32>} : memref<400x256xbf16, #tpu.memory_space<vmem>>, vector<16x256xbf16>,
    %c0_147 = arith.constant 0 : index
    %c38 = arith.constant 38 : index
    %124 = vector.load %arg16[%c0_147, %c38] : memref<16x384xbf16, #tpu.memory_space<vmem>>, vector<16x256xbf16>
    %c192 = arith.constant 192 : index
    %c0_148 = arith.constant 0 : index
    %125 = vector.load %arg17[%c192, %c0_148] : memref<400x256xbf16, #tpu.memory_space<vmem>>, vector<16x256xbf16>
    tpu.vector_store %arg17[%c192, %c0_148], %124 {strides = array<i32>} : memref<400x256xbf16, #tpu.memory_space<vmem>>, vector<16x256xbf16>,
    %c0_149 = arith.constant 0 : index
    %c39 = arith.constant 39 : index
    %126 = vector.load %arg16[%c0_149, %c39] : memref<16x384xbf16, #tpu.memory_space<vmem>>, vector<16x256xbf16>
    %c208 = arith.constant 208 : index
    %c0_150 = arith.constant 0 : index
    %127 = vector.load %arg17[%c208, %c0_150] : memref<400x256xbf16, #tpu.memory_space<vmem>>, vector<16x256xbf16>
    tpu.vector_store %arg17[%c208, %c0_150], %126 {strides = array<i32>} : memref<400x256xbf16, #tpu.memory_space<vmem>>, vector<16x256xbf16>,
    %c0_151 = arith.constant 0 : index
    %c40 = arith.constant 40 : index
    %128 = vector.load %arg16[%c0_151, %c40] : memref<16x384xbf16, #tpu.memory_space<vmem>>, vector<16x256xbf16>
    %c224 = arith.constant 224 : index
    %c0_152 = arith.constant 0 : index
    %129 = vector.load %arg17[%c224, %c0_152] : memref<400x256xbf16, #tpu.memory_space<vmem>>, vector<16x256xbf16>
    tpu.vector_store %arg17[%c224, %c0_152], %128 {strides = array<i32>} : memref<400x256xbf16, #tpu.memory_space<vmem>>, vector<16x256xbf16>,
    %c0_153 = arith.constant 0 : index
    %c54 = arith.constant 54 : index
    %130 = vector.load %arg16[%c0_153, %c54] : memref<16x384xbf16, #tpu.memory_space<vmem>>, vector<16x256xbf16>
    %c240 = arith.constant 240 : index
    %c0_154 = arith.constant 0 : index
    %131 = vector.load %arg17[%c240, %c0_154] : memref<400x256xbf16, #tpu.memory_space<vmem>>, vector<16x256xbf16>
    tpu.vector_store %arg17[%c240, %c0_154], %130 {strides = array<i32>} : memref<400x256xbf16, #tpu.memory_space<vmem>>, vector<16x256xbf16>,
    %c0_155 = arith.constant 0 : index
    %c55 = arith.constant 55 : index
    %132 = vector.load %arg16[%c0_155, %c55] : memref<16x384xbf16, #tpu.memory_space<vmem>>, vector<16x256xbf16>
    %c256 = arith.constant 256 : index
    %c0_156 = arith.constant 0 : index
    %133 = vector.load %arg17[%c256, %c0_156] : memref<400x256xbf16, #tpu.memory_space<vmem>>, vector<16x256xbf16>
    tpu.vector_store %arg17[%c256, %c0_156], %132 {strides = array<i32>} : memref<400x256xbf16, #tpu.memory_space<vmem>>, vector<16x256xbf16>,
    %c0_157 = arith.constant 0 : index
    %c56 = arith.constant 56 : index
    %134 = vector.load %arg16[%c0_157, %c56] : memref<16x384xbf16, #tpu.memory_space<vmem>>, vector<16x256xbf16>
    %c272 = arith.constant 272 : index
    %c0_158 = arith.constant 0 : index
    %135 = vector.load %arg17[%c272, %c0_158] : memref<400x256xbf16, #tpu.memory_space<vmem>>, vector<16x256xbf16>
    tpu.vector_store %arg17[%c272, %c0_158], %134 {strides = array<i32>} : memref<400x256xbf16, #tpu.memory_space<vmem>>, vector<16x256xbf16>,
    %c0_159 = arith.constant 0 : index
    %c57 = arith.constant 57 : index
    %136 = vector.load %arg16[%c0_159, %c57] : memref<16x384xbf16, #tpu.memory_space<vmem>>, vector<16x256xbf16>
    %c288 = arith.constant 288 : index
    %c0_160 = arith.constant 0 : index
    %137 = vector.load %arg17[%c288, %c0_160] : memref<400x256xbf16, #tpu.memory_space<vmem>>, vector<16x256xbf16>
    tpu.vector_store %arg17[%c288, %c0_160], %136 {strides = array<i32>} : memref<400x256xbf16, #tpu.memory_space<vmem>>, vector<16x256xbf16>,
    %c0_161 = arith.constant 0 : index
    %c58 = arith.constant 58 : index
    %138 = vector.load %arg16[%c0_161, %c58] : memref<16x384xbf16, #tpu.memory_space<vmem>>, vector<16x256xbf16>
    %c304 = arith.constant 304 : index
    %c0_162 = arith.constant 0 : index
    %139 = vector.load %arg17[%c304, %c0_162] : memref<400x256xbf16, #tpu.memory_space<vmem>>, vector<16x256xbf16>
    tpu.vector_store %arg17[%c304, %c0_162], %138 {strides = array<i32>} : memref<400x256xbf16, #tpu.memory_space<vmem>>, vector<16x256xbf16>,
    %c0_163 = arith.constant 0 : index
    %c72 = arith.constant 72 : index
    %140 = vector.load %arg16[%c0_163, %c72] : memref<16x384xbf16, #tpu.memory_space<vmem>>, vector<16x256xbf16>
    %c320 = arith.constant 320 : index
    %c0_164 = arith.constant 0 : index
    %141 = vector.load %arg17[%c320, %c0_164] : memref<400x256xbf16, #tpu.memory_space<vmem>>, vector<16x256xbf16>
    tpu.vector_store %arg17[%c320, %c0_164], %140 {strides = array<i32>} : memref<400x256xbf16, #tpu.memory_space<vmem>>, vector<16x256xbf16>,
    %c0_165 = arith.constant 0 : index
    %c73 = arith.constant 73 : index
    %142 = vector.load %arg16[%c0_165, %c73] : memref<16x384xbf16, #tpu.memory_space<vmem>>, vector<16x256xbf16>
    %c336 = arith.constant 336 : index
    %c0_166 = arith.constant 0 : index
    %143 = vector.load %arg17[%c336, %c0_166] : memref<400x256xbf16, #tpu.memory_space<vmem>>, vector<16x256xbf16>
    tpu.vector_store %arg17[%c336, %c0_166], %142 {strides = array<i32>} : memref<400x256xbf16, #tpu.memory_space<vmem>>, vector<16x256xbf16>,
    %c0_167 = arith.constant 0 : index
    %c74 = arith.constant 74 : index
    %144 = vector.load %arg16[%c0_167, %c74] : memref<16x384xbf16, #tpu.memory_space<vmem>>, vector<16x256xbf16>
    %c352 = arith.constant 352 : index
    %c0_168 = arith.constant 0 : index
    %145 = vector.load %arg17[%c352, %c0_168] : memref<400x256xbf16, #tpu.memory_space<vmem>>, vector<16x256xbf16>
    tpu.vector_store %arg17[%c352, %c0_168], %144 {strides = array<i32>} : memref<400x256xbf16, #tpu.memory_space<vmem>>, vector<16x256xbf16>,
    %c0_169 = arith.constant 0 : index
    %c75 = arith.constant 75 : index
    %146 = vector.load %arg16[%c0_169, %c75] : memref<16x384xbf16, #tpu.memory_space<vmem>>, vector<16x256xbf16>
    %c368 = arith.constant 368 : index
    %c0_170 = arith.constant 0 : index
    %147 = vector.load %arg17[%c368, %c0_170] : memref<400x256xbf16, #tpu.memory_space<vmem>>, vector<16x256xbf16>
    tpu.vector_store %arg17[%c368, %c0_170], %146 {strides = array<i32>} : memref<400x256xbf16, #tpu.memory_space<vmem>>, vector<16x256xbf16>,
    %c0_171 = arith.constant 0 : index
    %c76 = arith.constant 76 : index
    %148 = vector.load %arg16[%c0_171, %c76] : memref<16x384xbf16, #tpu.memory_space<vmem>>, vector<16x256xbf16>
    %c384 = arith.constant 384 : index
    %c0_172 = arith.constant 0 : index
    %149 = vector.load %arg17[%c384, %c0_172] : memref<400x256xbf16, #tpu.memory_space<vmem>>, vector<16x256xbf16>
    tpu.vector_store %arg17[%c384, %c0_172], %148 {strides = array<i32>} : memref<400x256xbf16, #tpu.memory_space<vmem>>, vector<16x256xbf16>,
    %c0_173 = arith.constant 0 : index
    %c0_174 = arith.constant 0 : index
    %150 = vector.load %arg5[%c0_173, %c0_174] : memref<32x400xbf16, #tpu.memory_space<vmem>>, vector<32x400xbf16>
    %c0_175 = arith.constant 0 : index
    %c0_176 = arith.constant 0 : index
    %151 = vector.load %arg17[%c0_175, %c0_176] : memref<400x256xbf16, #tpu.memory_space<vmem>>, vector<400x256xbf16>
    %cst_177 = arith.constant dense<0.000000e+00> : vector<32x256xf32>
    %152 = tpu.matmul %150, %151, %cst_177 {dimension_numbers = #tpu.dot_dimension_numbers<[1], [0], [0], [1], [0, 0, 1, 1], [], []>} : vector<32x400xbf16>, vector<400x256xbf16>, vector<32x256xf32> -> vector<32x256xf32>
    %c0_178 = arith.constant 0 : index
    %c0_179 = arith.constant 0 : index
    %153 = vector.load %arg6[%c0_178, %c0_179] : memref<32x1xf32, #tpu.memory_space<vmem>>, vector<32x1xf32>
    %154 = vector.broadcast %153 : vector<32x1xf32> to vector<32x256xf32>
    %155 = arith.addf %152, %154 : vector<32x256xf32>
    %cst_180 = arith.constant 0.000000e+00 : f32
    %156 = vector.broadcast %cst_180 : f32 to vector<32x256xf32>
    %157 = arith.maximumf %155, %156 : vector<32x256xf32>
    %158 = arith.truncf %157 : vector<32x256xf32> to vector<32x256xbf16>
    %c0_181 = arith.constant 0 : index
    %c0_182 = arith.constant 0 : index
    %159 = vector.load %arg7[%c0_181, %c0_182] : memref<256x384xbf16, #tpu.memory_space<vmem>>, vector<256x384xbf16>
    %cst_183 = arith.constant dense<0.000000e+00> : vector<32x384xf32>
    %160 = tpu.matmul %158, %159, %cst_183 {dimension_numbers = #tpu.dot_dimension_numbers<[1], [0], [0], [1], [0, 0, 1, 1], [], []>} : vector<32x256xbf16>, vector<256x384xbf16>, vector<32x384xf32> -> vector<32x384xf32>
    %161 = arith.truncf %160 : vector<32x384xf32> to vector<32x384xbf16>
    %c0_184 = arith.constant 0 : index
    %c0_185 = arith.constant 0 : index
    %162 = vector.load %arg18[%c0_184, %c0_185] : memref<32x384xbf16, #tpu.memory_space<vmem>>, vector<32x384xbf16>
    tpu.vector_store %arg18[%c0_184, %c0_185], %161 {strides = array<i32>} : memref<32x384xbf16, #tpu.memory_space<vmem>>, vector<32x384xbf16>,
    %c0_186 = arith.constant 0 : index
    %c0_187 = arith.constant 0 : index
    %163 = vector.load %arg18[%c0_186, %c0_187] : memref<32x384xbf16, #tpu.memory_space<vmem>>, vector<32x256xbf16>
    %c0_188 = arith.constant 0 : index
    %c0_189 = arith.constant 0 : index
    %164 = vector.load %arg19[%c0_188, %c0_189] : memref<800x256xbf16, #tpu.memory_space<vmem>>, vector<32x256xbf16>
    tpu.vector_store %arg19[%c0_188, %c0_189], %163 {strides = array<i32>} : memref<800x256xbf16, #tpu.memory_space<vmem>>, vector<32x256xbf16>,
    %c0_190 = arith.constant 0 : index
    %c1_191 = arith.constant 1 : index
    %165 = vector.load %arg18[%c0_190, %c1_191] : memref<32x384xbf16, #tpu.memory_space<vmem>>, vector<32x256xbf16>
    %c32_192 = arith.constant 32 : index
    %c0_193 = arith.constant 0 : index
    %166 = vector.load %arg19[%c32_192, %c0_193] : memref<800x256xbf16, #tpu.memory_space<vmem>>, vector<32x256xbf16>
    tpu.vector_store %arg19[%c32_192, %c0_193], %165 {strides = array<i32>} : memref<800x256xbf16, #tpu.memory_space<vmem>>, vector<32x256xbf16>,
    %c0_194 = arith.constant 0 : index
    %c2_195 = arith.constant 2 : index
    %167 = vector.load %arg18[%c0_194, %c2_195] : memref<32x384xbf16, #tpu.memory_space<vmem>>, vector<32x256xbf16>
    %c64_196 = arith.constant 64 : index
    %c0_197 = arith.constant 0 : index
    %168 = vector.load %arg19[%c64_196, %c0_197] : memref<800x256xbf16, #tpu.memory_space<vmem>>, vector<32x256xbf16>
    tpu.vector_store %arg19[%c64_196, %c0_197], %167 {strides = array<i32>} : memref<800x256xbf16, #tpu.memory_space<vmem>>, vector<32x256xbf16>,
    %c0_198 = arith.constant 0 : index
    %c3_199 = arith.constant 3 : index
    %169 = vector.load %arg18[%c0_198, %c3_199] : memref<32x384xbf16, #tpu.memory_space<vmem>>, vector<32x256xbf16>
    %c96_200 = arith.constant 96 : index
    %c0_201 = arith.constant 0 : index
    %170 = vector.load %arg19[%c96_200, %c0_201] : memref<800x256xbf16, #tpu.memory_space<vmem>>, vector<32x256xbf16>
    tpu.vector_store %arg19[%c96_200, %c0_201], %169 {strides = array<i32>} : memref<800x256xbf16, #tpu.memory_space<vmem>>, vector<32x256xbf16>,
    %c0_202 = arith.constant 0 : index
    %c4_203 = arith.constant 4 : index
    %171 = vector.load %arg18[%c0_202, %c4_203] : memref<32x384xbf16, #tpu.memory_space<vmem>>, vector<32x256xbf16>
    %c128_204 = arith.constant 128 : index
    %c0_205 = arith.constant 0 : index
    %172 = vector.load %arg19[%c128_204, %c0_205] : memref<800x256xbf16, #tpu.memory_space<vmem>>, vector<32x256xbf16>
    tpu.vector_store %arg19[%c128_204, %c0_205], %171 {strides = array<i32>} : memref<800x256xbf16, #tpu.memory_space<vmem>>, vector<32x256xbf16>,
    %c0_206 = arith.constant 0 : index
    %c18_207 = arith.constant 18 : index
    %173 = vector.load %arg18[%c0_206, %c18_207] : memref<32x384xbf16, #tpu.memory_space<vmem>>, vector<32x256xbf16>
    %c160_208 = arith.constant 160 : index
    %c0_209 = arith.constant 0 : index
    %174 = vector.load %arg19[%c160_208, %c0_209] : memref<800x256xbf16, #tpu.memory_space<vmem>>, vector<32x256xbf16>
    tpu.vector_store %arg19[%c160_208, %c0_209], %173 {strides = array<i32>} : memref<800x256xbf16, #tpu.memory_space<vmem>>, vector<32x256xbf16>,
    %c0_210 = arith.constant 0 : index
    %c19_211 = arith.constant 19 : index
    %175 = vector.load %arg18[%c0_210, %c19_211] : memref<32x384xbf16, #tpu.memory_space<vmem>>, vector<32x256xbf16>
    %c192_212 = arith.constant 192 : index
    %c0_213 = arith.constant 0 : index
    %176 = vector.load %arg19[%c192_212, %c0_213] : memref<800x256xbf16, #tpu.memory_space<vmem>>, vector<32x256xbf16>
    tpu.vector_store %arg19[%c192_212, %c0_213], %175 {strides = array<i32>} : memref<800x256xbf16, #tpu.memory_space<vmem>>, vector<32x256xbf16>,
    %c0_214 = arith.constant 0 : index
    %c20_215 = arith.constant 20 : index
    %177 = vector.load %arg18[%c0_214, %c20_215] : memref<32x384xbf16, #tpu.memory_space<vmem>>, vector<32x256xbf16>
    %c224_216 = arith.constant 224 : index
    %c0_217 = arith.constant 0 : index
    %178 = vector.load %arg19[%c224_216, %c0_217] : memref<800x256xbf16, #tpu.memory_space<vmem>>, vector<32x256xbf16>
    tpu.vector_store %arg19[%c224_216, %c0_217], %177 {strides = array<i32>} : memref<800x256xbf16, #tpu.memory_space<vmem>>, vector<32x256xbf16>,
    %c0_218 = arith.constant 0 : index
    %c21_219 = arith.constant 21 : index
    %179 = vector.load %arg18[%c0_218, %c21_219] : memref<32x384xbf16, #tpu.memory_space<vmem>>, vector<32x256xbf16>
    %c256_220 = arith.constant 256 : index
    %c0_221 = arith.constant 0 : index
    %180 = vector.load %arg19[%c256_220, %c0_221] : memref<800x256xbf16, #tpu.memory_space<vmem>>, vector<32x256xbf16>
    tpu.vector_store %arg19[%c256_220, %c0_221], %179 {strides = array<i32>} : memref<800x256xbf16, #tpu.memory_space<vmem>>, vector<32x256xbf16>,
    %c0_222 = arith.constant 0 : index
    %c22_223 = arith.constant 22 : index
    %181 = vector.load %arg18[%c0_222, %c22_223] : memref<32x384xbf16, #tpu.memory_space<vmem>>, vector<32x256xbf16>
    %c288_224 = arith.constant 288 : index
    %c0_225 = arith.constant 0 : index
    %182 = vector.load %arg19[%c288_224, %c0_225] : memref<800x256xbf16, #tpu.memory_space<vmem>>, vector<32x256xbf16>
    tpu.vector_store %arg19[%c288_224, %c0_225], %181 {strides = array<i32>} : memref<800x256xbf16, #tpu.memory_space<vmem>>, vector<32x256xbf16>,
    %c0_226 = arith.constant 0 : index
    %c36_227 = arith.constant 36 : index
    %183 = vector.load %arg18[%c0_226, %c36_227] : memref<32x384xbf16, #tpu.memory_space<vmem>>, vector<32x256xbf16>
    %c320_228 = arith.constant 320 : index
    %c0_229 = arith.constant 0 : index
    %184 = vector.load %arg19[%c320_228, %c0_229] : memref<800x256xbf16, #tpu.memory_space<vmem>>, vector<32x256xbf16>
    tpu.vector_store %arg19[%c320_228, %c0_229], %183 {strides = array<i32>} : memref<800x256xbf16, #tpu.memory_space<vmem>>, vector<32x256xbf16>,
    %c0_230 = arith.constant 0 : index
    %c37_231 = arith.constant 37 : index
    %185 = vector.load %arg18[%c0_230, %c37_231] : memref<32x384xbf16, #tpu.memory_space<vmem>>, vector<32x256xbf16>
    %c352_232 = arith.constant 352 : index
    %c0_233 = arith.constant 0 : index
    %186 = vector.load %arg19[%c352_232, %c0_233] : memref<800x256xbf16, #tpu.memory_space<vmem>>, vector<32x256xbf16>
    tpu.vector_store %arg19[%c352_232, %c0_233], %185 {strides = array<i32>} : memref<800x256xbf16, #tpu.memory_space<vmem>>, vector<32x256xbf16>,
    %c0_234 = arith.constant 0 : index
    %c38_235 = arith.constant 38 : index
    %187 = vector.load %arg18[%c0_234, %c38_235] : memref<32x384xbf16, #tpu.memory_space<vmem>>, vector<32x256xbf16>
    %c384_236 = arith.constant 384 : index
    %c0_237 = arith.constant 0 : index
    %188 = vector.load %arg19[%c384_236, %c0_237] : memref<800x256xbf16, #tpu.memory_space<vmem>>, vector<32x256xbf16>
    tpu.vector_store %arg19[%c384_236, %c0_237], %187 {strides = array<i32>} : memref<800x256xbf16, #tpu.memory_space<vmem>>, vector<32x256xbf16>,
    %c0_238 = arith.constant 0 : index
    %c39_239 = arith.constant 39 : index
    %189 = vector.load %arg18[%c0_238, %c39_239] : memref<32x384xbf16, #tpu.memory_space<vmem>>, vector<32x256xbf16>
    %c416 = arith.constant 416 : index
    %c0_240 = arith.constant 0 : index
    %190 = vector.load %arg19[%c416, %c0_240] : memref<800x256xbf16, #tpu.memory_space<vmem>>, vector<32x256xbf16>
    tpu.vector_store %arg19[%c416, %c0_240], %189 {strides = array<i32>} : memref<800x256xbf16, #tpu.memory_space<vmem>>, vector<32x256xbf16>,
    %c0_241 = arith.constant 0 : index
    %c40_242 = arith.constant 40 : index
    %191 = vector.load %arg18[%c0_241, %c40_242] : memref<32x384xbf16, #tpu.memory_space<vmem>>, vector<32x256xbf16>
    %c448 = arith.constant 448 : index
    %c0_243 = arith.constant 0 : index
    %192 = vector.load %arg19[%c448, %c0_243] : memref<800x256xbf16, #tpu.memory_space<vmem>>, vector<32x256xbf16>
    tpu.vector_store %arg19[%c448, %c0_243], %191 {strides = array<i32>} : memref<800x256xbf16, #tpu.memory_space<vmem>>, vector<32x256xbf16>,
    %c0_244 = arith.constant 0 : index
    %c54_245 = arith.constant 54 : index
    %193 = vector.load %arg18[%c0_244, %c54_245] : memref<32x384xbf16, #tpu.memory_space<vmem>>, vector<32x256xbf16>
    %c480 = arith.constant 480 : index
    %c0_246 = arith.constant 0 : index
    %194 = vector.load %arg19[%c480, %c0_246] : memref<800x256xbf16, #tpu.memory_space<vmem>>, vector<32x256xbf16>
    tpu.vector_store %arg19[%c480, %c0_246], %193 {strides = array<i32>} : memref<800x256xbf16, #tpu.memory_space<vmem>>, vector<32x256xbf16>,
    %c0_247 = arith.constant 0 : index
    %c55_248 = arith.constant 55 : index
    %195 = vector.load %arg18[%c0_247, %c55_248] : memref<32x384xbf16, #tpu.memory_space<vmem>>, vector<32x256xbf16>
    %c512 = arith.constant 512 : index
    %c0_249 = arith.constant 0 : index
    %196 = vector.load %arg19[%c512, %c0_249] : memref<800x256xbf16, #tpu.memory_space<vmem>>, vector<32x256xbf16>
    tpu.vector_store %arg19[%c512, %c0_249], %195 {strides = array<i32>} : memref<800x256xbf16, #tpu.memory_space<vmem>>, vector<32x256xbf16>,
    %c0_250 = arith.constant 0 : index
    %c56_251 = arith.constant 56 : index
    %197 = vector.load %arg18[%c0_250, %c56_251] : memref<32x384xbf16, #tpu.memory_space<vmem>>, vector<32x256xbf16>
    %c544 = arith.constant 544 : index
    %c0_252 = arith.constant 0 : index
    %198 = vector.load %arg19[%c544, %c0_252] : memref<800x256xbf16, #tpu.memory_space<vmem>>, vector<32x256xbf16>
    tpu.vector_store %arg19[%c544, %c0_252], %197 {strides = array<i32>} : memref<800x256xbf16, #tpu.memory_space<vmem>>, vector<32x256xbf16>,
    %c0_253 = arith.constant 0 : index
    %c57_254 = arith.constant 57 : index
    %199 = vector.load %arg18[%c0_253, %c57_254] : memref<32x384xbf16, #tpu.memory_space<vmem>>, vector<32x256xbf16>
    %c576 = arith.constant 576 : index
    %c0_255 = arith.constant 0 : index
    %200 = vector.load %arg19[%c576, %c0_255] : memref<800x256xbf16, #tpu.memory_space<vmem>>, vector<32x256xbf16>
    tpu.vector_store %arg19[%c576, %c0_255], %199 {strides = array<i32>} : memref<800x256xbf16, #tpu.memory_space<vmem>>, vector<32x256xbf16>,
    %c0_256 = arith.constant 0 : index
    %c58_257 = arith.constant 58 : index
    %201 = vector.load %arg18[%c0_256, %c58_257] : memref<32x384xbf16, #tpu.memory_space<vmem>>, vector<32x256xbf16>
    %c608 = arith.constant 608 : index
    %c0_258 = arith.constant 0 : index
    %202 = vector.load %arg19[%c608, %c0_258] : memref<800x256xbf16, #tpu.memory_space<vmem>>, vector<32x256xbf16>
    tpu.vector_store %arg19[%c608, %c0_258], %201 {strides = array<i32>} : memref<800x256xbf16, #tpu.memory_space<vmem>>, vector<32x256xbf16>,
    %c0_259 = arith.constant 0 : index
    %c72_260 = arith.constant 72 : index
    %203 = vector.load %arg18[%c0_259, %c72_260] : memref<32x384xbf16, #tpu.memory_space<vmem>>, vector<32x256xbf16>
    %c640 = arith.constant 640 : index
    %c0_261 = arith.constant 0 : index
    %204 = vector.load %arg19[%c640, %c0_261] : memref<800x256xbf16, #tpu.memory_space<vmem>>, vector<32x256xbf16>
    tpu.vector_store %arg19[%c640, %c0_261], %203 {strides = array<i32>} : memref<800x256xbf16, #tpu.memory_space<vmem>>, vector<32x256xbf16>,
    %c0_262 = arith.constant 0 : index
    %c73_263 = arith.constant 73 : index
    %205 = vector.load %arg18[%c0_262, %c73_263] : memref<32x384xbf16, #tpu.memory_space<vmem>>, vector<32x256xbf16>
    %c672 = arith.constant 672 : index
    %c0_264 = arith.constant 0 : index
    %206 = vector.load %arg19[%c672, %c0_264] : memref<800x256xbf16, #tpu.memory_space<vmem>>, vector<32x256xbf16>
    tpu.vector_store %arg19[%c672, %c0_264], %205 {strides = array<i32>} : memref<800x256xbf16, #tpu.memory_space<vmem>>, vector<32x256xbf16>,
    %c0_265 = arith.constant 0 : index
    %c74_266 = arith.constant 74 : index
    %207 = vector.load %arg18[%c0_265, %c74_266] : memref<32x384xbf16, #tpu.memory_space<vmem>>, vector<32x256xbf16>
    %c704 = arith.constant 704 : index
    %c0_267 = arith.constant 0 : index
    %208 = vector.load %arg19[%c704, %c0_267] : memref<800x256xbf16, #tpu.memory_space<vmem>>, vector<32x256xbf16>
    tpu.vector_store %arg19[%c704, %c0_267], %207 {strides = array<i32>} : memref<800x256xbf16, #tpu.memory_space<vmem>>, vector<32x256xbf16>,
    %c0_268 = arith.constant 0 : index
    %c75_269 = arith.constant 75 : index
    %209 = vector.load %arg18[%c0_268, %c75_269] : memref<32x384xbf16, #tpu.memory_space<vmem>>, vector<32x256xbf16>
    %c736 = arith.constant 736 : index
    %c0_270 = arith.constant 0 : index
    %210 = vector.load %arg19[%c736, %c0_270] : memref<800x256xbf16, #tpu.memory_space<vmem>>, vector<32x256xbf16>
    tpu.vector_store %arg19[%c736, %c0_270], %209 {strides = array<i32>} : memref<800x256xbf16, #tpu.memory_space<vmem>>, vector<32x256xbf16>,
    %c0_271 = arith.constant 0 : index
    %c76_272 = arith.constant 76 : index
    %211 = vector.load %arg18[%c0_271, %c76_272] : memref<32x384xbf16, #tpu.memory_space<vmem>>, vector<32x256xbf16>
    %c768 = arith.constant 768 : index
    %c0_273 = arith.constant 0 : index
    %212 = vector.load %arg19[%c768, %c0_273] : memref<800x256xbf16, #tpu.memory_space<vmem>>, vector<32x256xbf16>
    tpu.vector_store %arg19[%c768, %c0_273], %211 {strides = array<i32>} : memref<800x256xbf16, #tpu.memory_space<vmem>>, vector<32x256xbf16>,
    %c0_274 = arith.constant 0 : index
    %c0_275 = arith.constant 0 : index
    %213 = vector.load %arg8[%c0_274, %c0_275] : memref<32x800xbf16, #tpu.memory_space<vmem>>, vector<32x800xbf16>
    %c0_276 = arith.constant 0 : index
    %c0_277 = arith.constant 0 : index
    %214 = vector.load %arg19[%c0_276, %c0_277] : memref<800x256xbf16, #tpu.memory_space<vmem>>, vector<800x256xbf16>
    %cst_278 = arith.constant dense<0.000000e+00> : vector<32x256xf32>
    %215 = tpu.matmul %213, %214, %cst_278 {dimension_numbers = #tpu.dot_dimension_numbers<[1], [0], [0], [1], [0, 0, 1, 1], [], []>} : vector<32x800xbf16>, vector<800x256xbf16>, vector<32x256xf32> -> vector<32x256xf32>
    %c0_279 = arith.constant 0 : index
    %c0_280 = arith.constant 0 : index
    %216 = vector.load %arg9[%c0_279, %c0_280] : memref<32x1xf32, #tpu.memory_space<vmem>>, vector<32x1xf32>
    %217 = vector.broadcast %216 : vector<32x1xf32> to vector<32x256xf32>
    %218 = arith.addf %215, %217 : vector<32x256xf32>
    %cst_281 = arith.constant 0.000000e+00 : f32
    %219 = vector.broadcast %cst_281 : f32 to vector<32x256xf32>
    %220 = arith.maximumf %218, %219 : vector<32x256xf32>
    %221 = arith.truncf %220 : vector<32x256xf32> to vector<32x256xbf16>
    %c0_282 = arith.constant 0 : index
    %c0_283 = arith.constant 0 : index
    %222 = vector.load %arg20[%c0_282, %c0_283] : memref<32x384xbf16, #tpu.memory_space<vmem>>, vector<32x256xbf16>
    tpu.vector_store %arg20[%c0_282, %c0_283], %221 {strides = array<i32>} : memref<32x384xbf16, #tpu.memory_space<vmem>>, vector<32x256xbf16>,
    %cst_284 = arith.constant 0.000000e+00 : bf16
    %223 = vector.broadcast %cst_284 : bf16 to vector<32x128xbf16>
    %c0_285 = arith.constant 0 : index
    %c256_286 = arith.constant 256 : index
    %224 = vector.load %arg20[%c0_285, %c256_286] : memref<32x384xbf16, #tpu.memory_space<vmem>>, vector<32x128xbf16>
    tpu.vector_store %arg20[%c0_285, %c256_286], %223 {strides = array<i32>} : memref<32x384xbf16, #tpu.memory_space<vmem>>, vector<32x128xbf16>,
    %c0_287 = arith.constant 0 : index
    %c0_288 = arith.constant 0 : index
    %225 = vector.load %arg20[%c0_287, %c0_288] : memref<32x384xbf16, #tpu.memory_space<vmem>>, vector<32x256xbf16>
    %c0_289 = arith.constant 0 : index
    %c1_290 = arith.constant 1 : index
    %226 = vector.load %arg20[%c0_289, %c1_290] : memref<32x384xbf16, #tpu.memory_space<vmem>>, vector<32x256xbf16>
    %227 = arith.maximumf %225, %226 : vector<32x256xbf16>
    %c0_291 = arith.constant 0 : index
    %c18_292 = arith.constant 18 : index
    %228 = vector.load %arg20[%c0_291, %c18_292] : memref<32x384xbf16, #tpu.memory_space<vmem>>, vector<32x256xbf16>
    %c0_293 = arith.constant 0 : index
    %c19_294 = arith.constant 19 : index
    %229 = vector.load %arg20[%c0_293, %c19_294] : memref<32x384xbf16, #tpu.memory_space<vmem>>, vector<32x256xbf16>
    %230 = arith.maximumf %228, %229 : vector<32x256xbf16>
    %231 = arith.maximumf %227, %230 : vector<32x256xbf16>
    %c0_295 = arith.constant 0 : index
    %c0_296 = arith.constant 0 : index
    %232 = vector.load %arg10[%c0_295, %c0_296] : memref<256x256xbf16, #tpu.memory_space<vmem>>, vector<256x256xbf16>
    %cst_297 = arith.constant dense<0.000000e+00> : vector<32x256xf32>
    %233 = tpu.matmul %231, %232, %cst_297 {dimension_numbers = #tpu.dot_dimension_numbers<[1], [0], [0], [1], [0, 0, 1, 1], [], []>} : vector<32x256xbf16>, vector<256x256xbf16>, vector<32x256xf32> -> vector<32x256xf32>
    %234 = arith.truncf %233 : vector<32x256xf32> to vector<32x256xbf16>
    %c0_298 = arith.constant 0 : index
    %c0_299 = arith.constant 0 : index
    %235 = vector.load %arg21[%c0_298, %c0_299] : memref<32x256xbf16, #tpu.memory_space<vmem>>, vector<32x256xbf16>
    tpu.vector_store %arg21[%c0_298, %c0_299], %234 {strides = array<i32>} : memref<32x256xbf16, #tpu.memory_space<vmem>>, vector<32x256xbf16>,
    %c0_300 = arith.constant 0 : index
    %c0_301 = arith.constant 0 : index
    %236 = vector.load %arg21[%c0_300, %c0_301] : memref<32x256xbf16, #tpu.memory_space<vmem>>, vector<32x128xbf16>
    %c0_302 = arith.constant 0 : index
    %c0_303 = arith.constant 0 : index
    %237 = vector.load %arg22[%c0_302, %c0_303] : memref<800x128xbf16, #tpu.memory_space<vmem>>, vector<32x128xbf16>
    tpu.vector_store %arg22[%c0_302, %c0_303], %236 {strides = array<i32>} : memref<800x128xbf16, #tpu.memory_space<vmem>>, vector<32x128xbf16>,
    %c0_304 = arith.constant 0 : index
    %c1_305 = arith.constant 1 : index
    %238 = vector.load %arg21[%c0_304, %c1_305] : memref<32x256xbf16, #tpu.memory_space<vmem>>, vector<32x128xbf16>
    %c32_306 = arith.constant 32 : index
    %c0_307 = arith.constant 0 : index
    %239 = vector.load %arg22[%c32_306, %c0_307] : memref<800x128xbf16, #tpu.memory_space<vmem>>, vector<32x128xbf16>
    tpu.vector_store %arg22[%c32_306, %c0_307], %238 {strides = array<i32>} : memref<800x128xbf16, #tpu.memory_space<vmem>>, vector<32x128xbf16>,
    %c0_308 = arith.constant 0 : index
    %c2_309 = arith.constant 2 : index
    %240 = vector.load %arg21[%c0_308, %c2_309] : memref<32x256xbf16, #tpu.memory_space<vmem>>, vector<32x128xbf16>
    %c64_310 = arith.constant 64 : index
    %c0_311 = arith.constant 0 : index
    %241 = vector.load %arg22[%c64_310, %c0_311] : memref<800x128xbf16, #tpu.memory_space<vmem>>, vector<32x128xbf16>
    tpu.vector_store %arg22[%c64_310, %c0_311], %240 {strides = array<i32>} : memref<800x128xbf16, #tpu.memory_space<vmem>>, vector<32x128xbf16>,
    %c0_312 = arith.constant 0 : index
    %c3_313 = arith.constant 3 : index
    %242 = vector.load %arg21[%c0_312, %c3_313] : memref<32x256xbf16, #tpu.memory_space<vmem>>, vector<32x128xbf16>
    %c96_314 = arith.constant 96 : index
    %c0_315 = arith.constant 0 : index
    %243 = vector.load %arg22[%c96_314, %c0_315] : memref<800x128xbf16, #tpu.memory_space<vmem>>, vector<32x128xbf16>
    tpu.vector_store %arg22[%c96_314, %c0_315], %242 {strides = array<i32>} : memref<800x128xbf16, #tpu.memory_space<vmem>>, vector<32x128xbf16>,
    %c0_316 = arith.constant 0 : index
    %c4_317 = arith.constant 4 : index
    %244 = vector.load %arg21[%c0_316, %c4_317] : memref<32x256xbf16, #tpu.memory_space<vmem>>, vector<32x128xbf16>
    %c128_318 = arith.constant 128 : index
    %c0_319 = arith.constant 0 : index
    %245 = vector.load %arg22[%c128_318, %c0_319] : memref<800x128xbf16, #tpu.memory_space<vmem>>, vector<32x128xbf16>
    tpu.vector_store %arg22[%c128_318, %c0_319], %244 {strides = array<i32>} : memref<800x128xbf16, #tpu.memory_space<vmem>>, vector<32x128xbf16>,
    %c0_320 = arith.constant 0 : index
    %c11_321 = arith.constant 11 : index
    %246 = vector.load %arg21[%c0_320, %c11_321] : memref<32x256xbf16, #tpu.memory_space<vmem>>, vector<32x128xbf16>
    %c160_322 = arith.constant 160 : index
    %c0_323 = arith.constant 0 : index
    %247 = vector.load %arg22[%c160_322, %c0_323] : memref<800x128xbf16, #tpu.memory_space<vmem>>, vector<32x128xbf16>
    tpu.vector_store %arg22[%c160_322, %c0_323], %246 {strides = array<i32>} : memref<800x128xbf16, #tpu.memory_space<vmem>>, vector<32x128xbf16>,
    %c0_324 = arith.constant 0 : index
    %c12_325 = arith.constant 12 : index
    %248 = vector.load %arg21[%c0_324, %c12_325] : memref<32x256xbf16, #tpu.memory_space<vmem>>, vector<32x128xbf16>
    %c192_326 = arith.constant 192 : index
    %c0_327 = arith.constant 0 : index
    %249 = vector.load %arg22[%c192_326, %c0_327] : memref<800x128xbf16, #tpu.memory_space<vmem>>, vector<32x128xbf16>
    tpu.vector_store %arg22[%c192_326, %c0_327], %248 {strides = array<i32>} : memref<800x128xbf16, #tpu.memory_space<vmem>>, vector<32x128xbf16>,
    %c0_328 = arith.constant 0 : index
    %c13_329 = arith.constant 13 : index
    %250 = vector.load %arg21[%c0_328, %c13_329] : memref<32x256xbf16, #tpu.memory_space<vmem>>, vector<32x128xbf16>
    %c224_330 = arith.constant 224 : index
    %c0_331 = arith.constant 0 : index
    %251 = vector.load %arg22[%c224_330, %c0_331] : memref<800x128xbf16, #tpu.memory_space<vmem>>, vector<32x128xbf16>
    tpu.vector_store %arg22[%c224_330, %c0_331], %250 {strides = array<i32>} : memref<800x128xbf16, #tpu.memory_space<vmem>>, vector<32x128xbf16>,
    %c0_332 = arith.constant 0 : index
    %c14_333 = arith.constant 14 : index
    %252 = vector.load %arg21[%c0_332, %c14_333] : memref<32x256xbf16, #tpu.memory_space<vmem>>, vector<32x128xbf16>
    %c256_334 = arith.constant 256 : index
    %c0_335 = arith.constant 0 : index
    %253 = vector.load %arg22[%c256_334, %c0_335] : memref<800x128xbf16, #tpu.memory_space<vmem>>, vector<32x128xbf16>
    tpu.vector_store %arg22[%c256_334, %c0_335], %252 {strides = array<i32>} : memref<800x128xbf16, #tpu.memory_space<vmem>>, vector<32x128xbf16>,
    %c0_336 = arith.constant 0 : index
    %c15_337 = arith.constant 15 : index
    %254 = vector.load %arg21[%c0_336, %c15_337] : memref<32x256xbf16, #tpu.memory_space<vmem>>, vector<32x128xbf16>
    %c288_338 = arith.constant 288 : index
    %c0_339 = arith.constant 0 : index
    %255 = vector.load %arg22[%c288_338, %c0_339] : memref<800x128xbf16, #tpu.memory_space<vmem>>, vector<32x128xbf16>
    tpu.vector_store %arg22[%c288_338, %c0_339], %254 {strides = array<i32>} : memref<800x128xbf16, #tpu.memory_space<vmem>>, vector<32x128xbf16>,
    %c0_340 = arith.constant 0 : index
    %c22_341 = arith.constant 22 : index
    %256 = vector.load %arg21[%c0_340, %c22_341] : memref<32x256xbf16, #tpu.memory_space<vmem>>, vector<32x128xbf16>
    %c320_342 = arith.constant 320 : index
    %c0_343 = arith.constant 0 : index
    %257 = vector.load %arg22[%c320_342, %c0_343] : memref<800x128xbf16, #tpu.memory_space<vmem>>, vector<32x128xbf16>
    tpu.vector_store %arg22[%c320_342, %c0_343], %256 {strides = array<i32>} : memref<800x128xbf16, #tpu.memory_space<vmem>>, vector<32x128xbf16>,
    %c0_344 = arith.constant 0 : index
    %c23_345 = arith.constant 23 : index
    %258 = vector.load %arg21[%c0_344, %c23_345] : memref<32x256xbf16, #tpu.memory_space<vmem>>, vector<32x128xbf16>
    %c352_346 = arith.constant 352 : index
    %c0_347 = arith.constant 0 : index
    %259 = vector.load %arg22[%c352_346, %c0_347] : memref<800x128xbf16, #tpu.memory_space<vmem>>, vector<32x128xbf16>
    tpu.vector_store %arg22[%c352_346, %c0_347], %258 {strides = array<i32>} : memref<800x128xbf16, #tpu.memory_space<vmem>>, vector<32x128xbf16>,
    %c0_348 = arith.constant 0 : index
    %c24_349 = arith.constant 24 : index
    %260 = vector.load %arg21[%c0_348, %c24_349] : memref<32x256xbf16, #tpu.memory_space<vmem>>, vector<32x128xbf16>
    %c384_350 = arith.constant 384 : index
    %c0_351 = arith.constant 0 : index
    %261 = vector.load %arg22[%c384_350, %c0_351] : memref<800x128xbf16, #tpu.memory_space<vmem>>, vector<32x128xbf16>
    tpu.vector_store %arg22[%c384_350, %c0_351], %260 {strides = array<i32>} : memref<800x128xbf16, #tpu.memory_space<vmem>>, vector<32x128xbf16>,
    %c0_352 = arith.constant 0 : index
    %c25_353 = arith.constant 25 : index
    %262 = vector.load %arg21[%c0_352, %c25_353] : memref<32x256xbf16, #tpu.memory_space<vmem>>, vector<32x128xbf16>
    %c416_354 = arith.constant 416 : index
    %c0_355 = arith.constant 0 : index
    %263 = vector.load %arg22[%c416_354, %c0_355] : memref<800x128xbf16, #tpu.memory_space<vmem>>, vector<32x128xbf16>
    tpu.vector_store %arg22[%c416_354, %c0_355], %262 {strides = array<i32>} : memref<800x128xbf16, #tpu.memory_space<vmem>>, vector<32x128xbf16>,
    %c0_356 = arith.constant 0 : index
    %c26 = arith.constant 26 : index
    %264 = vector.load %arg21[%c0_356, %c26] : memref<32x256xbf16, #tpu.memory_space<vmem>>, vector<32x128xbf16>
    %c448_357 = arith.constant 448 : index
    %c0_358 = arith.constant 0 : index
    %265 = vector.load %arg22[%c448_357, %c0_358] : memref<800x128xbf16, #tpu.memory_space<vmem>>, vector<32x128xbf16>
    tpu.vector_store %arg22[%c448_357, %c0_358], %264 {strides = array<i32>} : memref<800x128xbf16, #tpu.memory_space<vmem>>, vector<32x128xbf16>,
    %c0_359 = arith.constant 0 : index
    %c33_360 = arith.constant 33 : index
    %266 = vector.load %arg21[%c0_359, %c33_360] : memref<32x256xbf16, #tpu.memory_space<vmem>>, vector<32x128xbf16>
    %c480_361 = arith.constant 480 : index
    %c0_362 = arith.constant 0 : index
    %267 = vector.load %arg22[%c480_361, %c0_362] : memref<800x128xbf16, #tpu.memory_space<vmem>>, vector<32x128xbf16>
    tpu.vector_store %arg22[%c480_361, %c0_362], %266 {strides = array<i32>} : memref<800x128xbf16, #tpu.memory_space<vmem>>, vector<32x128xbf16>,
    %c0_363 = arith.constant 0 : index
    %c34_364 = arith.constant 34 : index
    %268 = vector.load %arg21[%c0_363, %c34_364] : memref<32x256xbf16, #tpu.memory_space<vmem>>, vector<32x128xbf16>
    %c512_365 = arith.constant 512 : index
    %c0_366 = arith.constant 0 : index
    %269 = vector.load %arg22[%c512_365, %c0_366] : memref<800x128xbf16, #tpu.memory_space<vmem>>, vector<32x128xbf16>
    tpu.vector_store %arg22[%c512_365, %c0_366], %268 {strides = array<i32>} : memref<800x128xbf16, #tpu.memory_space<vmem>>, vector<32x128xbf16>,
    %c0_367 = arith.constant 0 : index
    %c35_368 = arith.constant 35 : index
    %270 = vector.load %arg21[%c0_367, %c35_368] : memref<32x256xbf16, #tpu.memory_space<vmem>>, vector<32x128xbf16>
    %c544_369 = arith.constant 544 : index
    %c0_370 = arith.constant 0 : index
    %271 = vector.load %arg22[%c544_369, %c0_370] : memref<800x128xbf16, #tpu.memory_space<vmem>>, vector<32x128xbf16>
    tpu.vector_store %arg22[%c544_369, %c0_370], %270 {strides = array<i32>} : memref<800x128xbf16, #tpu.memory_space<vmem>>, vector<32x128xbf16>,
    %c0_371 = arith.constant 0 : index
    %c36_372 = arith.constant 36 : index
    %272 = vector.load %arg21[%c0_371, %c36_372] : memref<32x256xbf16, #tpu.memory_space<vmem>>, vector<32x128xbf16>
    %c576_373 = arith.constant 576 : index
    %c0_374 = arith.constant 0 : index
    %273 = vector.load %arg22[%c576_373, %c0_374] : memref<800x128xbf16, #tpu.memory_space<vmem>>, vector<32x128xbf16>
    tpu.vector_store %arg22[%c576_373, %c0_374], %272 {strides = array<i32>} : memref<800x128xbf16, #tpu.memory_space<vmem>>, vector<32x128xbf16>,
    %c0_375 = arith.constant 0 : index
    %c37_376 = arith.constant 37 : index
    %274 = vector.load %arg21[%c0_375, %c37_376] : memref<32x256xbf16, #tpu.memory_space<vmem>>, vector<32x128xbf16>
    %c608_377 = arith.constant 608 : index
    %c0_378 = arith.constant 0 : index
    %275 = vector.load %arg22[%c608_377, %c0_378] : memref<800x128xbf16, #tpu.memory_space<vmem>>, vector<32x128xbf16>
    tpu.vector_store %arg22[%c608_377, %c0_378], %274 {strides = array<i32>} : memref<800x128xbf16, #tpu.memory_space<vmem>>, vector<32x128xbf16>,
    %c0_379 = arith.constant 0 : index
    %c44 = arith.constant 44 : index
    %276 = vector.load %arg21[%c0_379, %c44] : memref<32x256xbf16, #tpu.memory_space<vmem>>, vector<32x128xbf16>
    %c640_380 = arith.constant 640 : index
    %c0_381 = arith.constant 0 : index
    %277 = vector.load %arg22[%c640_380, %c0_381] : memref<800x128xbf16, #tpu.memory_space<vmem>>, vector<32x128xbf16>
    tpu.vector_store %arg22[%c640_380, %c0_381], %276 {strides = array<i32>} : memref<800x128xbf16, #tpu.memory_space<vmem>>, vector<32x128xbf16>,
    %c0_382 = arith.constant 0 : index
    %c45 = arith.constant 45 : index
    %278 = vector.load %arg21[%c0_382, %c45] : memref<32x256xbf16, #tpu.memory_space<vmem>>, vector<32x128xbf16>
    %c672_383 = arith.constant 672 : index
    %c0_384 = arith.constant 0 : index
    %279 = vector.load %arg22[%c672_383, %c0_384] : memref<800x128xbf16, #tpu.memory_space<vmem>>, vector<32x128xbf16>
    tpu.vector_store %arg22[%c672_383, %c0_384], %278 {strides = array<i32>} : memref<800x128xbf16, #tpu.memory_space<vmem>>, vector<32x128xbf16>,
    %c0_385 = arith.constant 0 : index
    %c46 = arith.constant 46 : index
    %280 = vector.load %arg21[%c0_385, %c46] : memref<32x256xbf16, #tpu.memory_space<vmem>>, vector<32x128xbf16>
    %c704_386 = arith.constant 704 : index
    %c0_387 = arith.constant 0 : index
    %281 = vector.load %arg22[%c704_386, %c0_387] : memref<800x128xbf16, #tpu.memory_space<vmem>>, vector<32x128xbf16>
    tpu.vector_store %arg22[%c704_386, %c0_387], %280 {strides = array<i32>} : memref<800x128xbf16, #tpu.memory_space<vmem>>, vector<32x128xbf16>,
    %c0_388 = arith.constant 0 : index
    %c47 = arith.constant 47 : index
    %282 = vector.load %arg21[%c0_388, %c47] : memref<32x256xbf16, #tpu.memory_space<vmem>>, vector<32x128xbf16>
    %c736_389 = arith.constant 736 : index
    %c0_390 = arith.constant 0 : index
    %283 = vector.load %arg22[%c736_389, %c0_390] : memref<800x128xbf16, #tpu.memory_space<vmem>>, vector<32x128xbf16>
    tpu.vector_store %arg22[%c736_389, %c0_390], %282 {strides = array<i32>} : memref<800x128xbf16, #tpu.memory_space<vmem>>, vector<32x128xbf16>,
    %c0_391 = arith.constant 0 : index
    %c48_392 = arith.constant 48 : index
    %284 = vector.load %arg21[%c0_391, %c48_392] : memref<32x256xbf16, #tpu.memory_space<vmem>>, vector<32x128xbf16>
    %c768_393 = arith.constant 768 : index
    %c0_394 = arith.constant 0 : index
    %285 = vector.load %arg22[%c768_393, %c0_394] : memref<800x128xbf16, #tpu.memory_space<vmem>>, vector<32x128xbf16>
    tpu.vector_store %arg22[%c768_393, %c0_394], %284 {strides = array<i32>} : memref<800x128xbf16, #tpu.memory_space<vmem>>, vector<32x128xbf16>,
    %c0_395 = arith.constant 0 : index
    %c0_396 = arith.constant 0 : index
    %286 = vector.load %arg11[%c0_395, %c0_396] : memref<64x800xbf16, #tpu.memory_space<vmem>>, vector<64x800xbf16>
    %c0_397 = arith.constant 0 : index
    %c0_398 = arith.constant 0 : index
    %287 = vector.load %arg22[%c0_397, %c0_398] : memref<800x128xbf16, #tpu.memory_space<vmem>>, vector<800x128xbf16>
    %cst_399 = arith.constant dense<0.000000e+00> : vector<64x128xf32>
    %288 = tpu.matmul %286, %287, %cst_399 {dimension_numbers = #tpu.dot_dimension_numbers<[1], [0], [0], [1], [0, 0, 1, 1], [], []>} : vector<64x800xbf16>, vector<800x128xbf16>, vector<64x128xf32> -> vector<64x128xf32>
    %c0_400 = arith.constant 0 : index
    %c0_401 = arith.constant 0 : index
    %289 = vector.load %arg12[%c0_400, %c0_401] : memref<64x1xf32, #tpu.memory_space<vmem>>, vector<64x1xf32>
    %290 = vector.broadcast %289 : vector<64x1xf32> to vector<64x128xf32>
    %291 = arith.addf %288, %290 : vector<64x128xf32>
    %cst_402 = arith.constant 0.000000e+00 : f32
    %292 = vector.broadcast %cst_402 : f32 to vector<64x128xf32>
    %293 = arith.maximumf %291, %292 : vector<64x128xf32>
    %c0_403 = arith.constant 0 : index
    %c0_404 = arith.constant 0 : index
    %c0_405 = arith.constant 0 : index
    %294 = vector.load %arg13[%c0_403, %c0_404, %c0_405] : memref<1x64x128xf32, #tpu.memory_space<vmem>>, vector<1x64x128xf32>
    %295 = vector.shape_cast %294 : vector<1x64x128xf32> to vector<64x128xf32>
    %296 = vector.shape_cast %293 : vector<64x128xf32> to vector<1x64x128xf32>
    tpu.vector_store %arg13[%c0_403, %c0_404, %c0_405], %296 {strides = array<i32>} : memref<1x64x128xf32, #tpu.memory_space<vmem>>, vector<1x64x128xf32>,
    return
  }
  func.func @transform_0(%arg0: i32) -> (i32, i32, i32) {
    %c0_i32 = arith.constant 0 : i32
    %c0_i32_0 = arith.constant 0 : i32
    %c0_i32_1 = arith.constant 0 : i32
    return %arg0, %c0_i32, %c0_i32_0 : i32, i32, i32
  }
  func.func @transform_1(%arg0: i32) -> (i32, i32) {
    %c0_i32 = arith.constant 0 : i32
    %c0_i32_0 = arith.constant 0 : i32
    %c0_i32_1 = arith.constant 0 : i32
    return %c0_i32, %c0_i32_0 : i32, i32
  }
  func.func @transform_2(%arg0: i32) -> (i32, i32) {
    %c0_i32 = arith.constant 0 : i32
    %c0_i32_0 = arith.constant 0 : i32
    %c0_i32_1 = arith.constant 0 : i32
    return %c0_i32, %c0_i32_0 : i32, i32
  }
  func.func @transform_3(%arg0: i32) -> (i32, i32) {
    %c0_i32 = arith.constant 0 : i32
    %c0_i32_0 = arith.constant 0 : i32
    %c0_i32_1 = arith.constant 0 : i32
    return %c0_i32, %c0_i32_0 : i32, i32
  }
  func.func @transform_4(%arg0: i32) -> (i32, i32) {
    %c0_i32 = arith.constant 0 : i32
    %c0_i32_0 = arith.constant 0 : i32
    %c0_i32_1 = arith.constant 0 : i32
    return %c0_i32, %c0_i32_0 : i32, i32
  }
  func.func @transform_5(%arg0: i32) -> (i32, i32) {
    %c0_i32 = arith.constant 0 : i32
    %c0_i32_0 = arith.constant 0 : i32
    %c0_i32_1 = arith.constant 0 : i32
    return %c0_i32, %c0_i32_0 : i32, i32
  }
  func.func @transform_6(%arg0: i32) -> (i32, i32) {
    %c0_i32 = arith.constant 0 : i32
    %c0_i32_0 = arith.constant 0 : i32
    %c0_i32_1 = arith.constant 0 : i32
    return %c0_i32, %c0_i32_0 : i32, i32
  }
  func.func @transform_7(%arg0: i32) -> (i32, i32) {
    %c0_i32 = arith.constant 0 : i32
    %c0_i32_0 = arith.constant 0 : i32
    %c0_i32_1 = arith.constant 0 : i32
    return %c0_i32, %c0_i32_0 : i32, i32
  }
  func.func @transform_8(%arg0: i32) -> (i32, i32) {
    %c0_i32 = arith.constant 0 : i32
    %c0_i32_0 = arith.constant 0 : i32
    %c0_i32_1 = arith.constant 0 : i32
    return %c0_i32, %c0_i32_0 : i32, i32
  }
  func.func @transform_9(%arg0: i32) -> (i32, i32) {
    %c0_i32 = arith.constant 0 : i32
    %c0_i32_0 = arith.constant 0 : i32
    %c0_i32_1 = arith.constant 0 : i32
    return %c0_i32, %c0_i32_0 : i32, i32
  }
  func.func @transform_10(%arg0: i32) -> (i32, i32) {
    %c0_i32 = arith.constant 0 : i32
    %c0_i32_0 = arith.constant 0 : i32
    %c0_i32_1 = arith.constant 0 : i32
    return %c0_i32, %c0_i32_0 : i32, i32
  }
  func.func @transform_11(%arg0: i32) -> (i32, i32) {
    %c0_i32 = arith.constant 0 : i32
    %c0_i32_0 = arith.constant 0 : i32
    %c0_i32_1 = arith.constant 0 : i32
    return %c0_i32, %c0_i32_0 : i32, i32
  }
  func.func @transform_12(%arg0: i32) -> (i32, i32, i32) {
    %c0_i32 = arith.constant 0 : i32
    %c0_i32_0 = arith.constant 0 : i32
    %c0_i32_1 = arith.constant 0 : i32
    return %arg0, %c0_i32, %c0_i32_0 : i32, i32, i32
  }
}

</mosaic_0001>

<llo_original>
// kernel: net_forward.1
$region0: #{net_forward.1}
  #allocation0 [shape = 'u32[]', space=smem, size = 0x4, offset = 0x4, fixed_abs, tag = 'smem constant byte address 0x4 - core index']
  #allocation1 [shape = 'u32[144,128]{1,0:T(1,128)}', space=vmem, size = 0x12000, scoped, tag = 'internal scratch']
  #allocation2 [shape = 'bf16[32,896]{1,0:T(16,128)(2,1)}', space=vmem, size = 0xe000, scoped, tag = 'scratch operand']
  #allocation3 [shape = 'bf16[16,1024]{1,0:T(16,128)(2,1)}', space=vmem, size = 0x8000, scoped, tag = 'scratch operand']
  #allocation4 [shape = 'bf16[16,384]{1,0:T(16,128)(2,1)}', space=vmem, size = 0x3000, scoped, tag = 'scratch operand']
  #allocation5 [shape = 'bf16[400,256]{1,0:T(16,128)(2,1)}', space=vmem, size = 0x32000, scoped, tag = 'scratch operand']
  #allocation6 [shape = 'bf16[32,384]{1,0:T(16,128)(2,1)}', space=vmem, size = 0x6000, scoped, tag = 'scratch operand']
  #allocation7 [shape = 'bf16[800,256]{1,0:T(16,128)(2,1)}', space=vmem, size = 0x64000, scoped, tag = 'scratch operand']
  #allocation8 [shape = 'bf16[32,384]{1,0:T(16,128)(2,1)}', space=vmem, size = 0x6000, scoped, tag = 'scratch operand']
  #allocation9 [shape = 'bf16[32,256]{1,0:T(16,128)(2,1)}', space=vmem, size = 0x4000, scoped, tag = 'scratch operand']
  #allocation10 [shape = 'bf16[800,128]{1,0:T(16,128)(2,1)}', space=vmem, size = 0x32000, scoped, tag = 'scratch operand']
  %s0 = inlined_call_operand.vmem [shape: bf16[2,1,1152], index: 0, kind: input, shape index: {}]
  %s1 = inlined_call_operand.vmem [shape: bf16[16,32], index: 1, kind: input, shape index: {}]
  %s2 = inlined_call_operand.vmem [shape: f32[16,1], index: 2, kind: input, shape index: {}]
  %s3 = inlined_call_operand.vmem [shape: bf16[896,384], index: 3, kind: input, shape index: {}]
  %s4 = inlined_call_operand.vmem [shape: bf16[32,400], index: 4, kind: input, shape index: {}]
  %s5 = inlined_call_operand.vmem [shape: f32[32,1], index: 5, kind: input, shape index: {}]
  %s6 = inlined_call_operand.vmem [shape: bf16[256,384], index: 6, kind: input, shape index: {}]
  %s7 = inlined_call_operand.vmem [shape: bf16[32,800], index: 7, kind: input, shape index: {}]
  %s8 = inlined_call_operand.vmem [shape: f32[32,1], index: 8, kind: input, shape index: {}]
  %s9 = inlined_call_operand.vmem [shape: bf16[256,256], index: 9, kind: input, shape index: {}]
  %s10 = inlined_call_operand.vmem [shape: bf16[64,800], index: 10, kind: input, shape index: {}]
  %s11 = inlined_call_operand.vmem [shape: f32[64,1], index: 11, kind: input, shape index: {}]
  %s12 = inlined_call_operand.vmem [shape: f32[2,64,128], index: 12, kind: output, shape index: {}]
  %s13 = sld [smem:[#allocation0]]
  $region81: #{net_forward.1} parent=0
    _
  %s15 = ssub.s32 1, %s13
  %s16 = scalar_select 0, %s15, %s13
  loop: start=0, step=1, limit=4
  $region2: #{net_forward.1} parent=0 // loop_pre_header
    _
  $region3: #{net_forward.1} parent=0 // loop_header
    %s18 = sphi 0, %s22
    %p19 = scmp.ge.s32.totalorder %s18, 4
    %s28 = sphi 0, %s30
    %s31 = sphi 0, %s28
    %s32 = sphi 0, %s31
    %s48 = sphi 0, %s32
    %s52 = sphi 0, %s52
    %s54 = sphi 0, %s52
    %s55 = sphi 0, %s54
    %s69 = sphi 0, %s55
    %s73 = sphi 0, %s73
    %s75 = sphi 0, %s73
    %s76 = sphi 0, %s75
    %s90 = sphi 0, %s76
    %s94 = sphi 0, %s94
    %s96 = sphi 0, %s94
    %s97 = sphi 0, %s96
    %s111 = sphi 0, %s97
    %s115 = sphi 0, %s115
    %s117 = sphi 0, %s115
    %s118 = sphi 0, %s117
    %s132 = sphi 0, %s118
    %s136 = sphi 0, %s136
    %s138 = sphi 0, %s136
    %s139 = sphi 0, %s138
    %s153 = sphi 0, %s139
    %s157 = sphi 0, %s157
    %s159 = sphi 0, %s157
    %s160 = sphi 0, %s159
    %s174 = sphi 0, %s160
    %s178 = sphi 0, %s178
    %s180 = sphi 0, %s178
    %s181 = sphi 0, %s180
    %s195 = sphi 0, %s181
    %s199 = sphi 0, %s199
    %s201 = sphi 0, %s199
    %s202 = sphi 0, %s201
    %s216 = sphi 0, %s202
    %s220 = sphi 0, %s220
    %s222 = sphi 0, %s220
    %s223 = sphi 0, %s222
    %s237 = sphi 0, %s223
    %s241 = sphi 0, %s241
    %s243 = sphi 0, %s241
    %s244 = sphi 0, %s243
    %s258 = sphi 0, %s244
    %s262 = sphi 0, %s262
    %s264 = sphi 0, %s262
    %s265 = sphi 0, %s264
    %s279 = sphi 0, %s265
    %s285 = sphi 0, %s287
    %s288 = sphi 0, %s285
    %s289 = sphi 0, %s288
    %s305 = sphi 0, %s289
  $region4: #{net_forward.1} parent=0 // loop_header_branch
    %21 = sbr.rel (%p19) target = $region8
  $region5: #{net_forward.1} parent=0 // loop_body
    %s23 = ssub.s32 %s18, 1
    %s24 = ssub.s32 %s18, 2
    %s25 = sadd.s32 %s18, 1
    %s26 = ssub.s32 %s18, %s25
    %p27 = scmp.eq.s32.totalorder %s26, 0
    %s29 = sadd.s32 %s28, 1
    %s30 = scalar_select %p27, %s28, %s29
    %p33 = pneg %p27
    %p34 = scmp.eq.s32.totalorder %s18, 1
    %p35 = por %p33, %p34
    %p36 = scmp.ne.s32.totalorder %s28, %s31
    %p37 = scmp.eq.s32.totalorder %s18, 0
    %p38 = por %p36, %p37
    %p39 = scmp.ne.s32.totalorder %s28, %s31
    %p40 = scmp.eq.s32.totalorder %s23, 1
    %p41 = por %p39, %p40
    %p42 = scmp.ne.s32.totalorder %s31, %s32
    %p43 = scmp.eq.s32.totalorder %s23, 0
    %p44 = por %p42, %p43
    %p45 = scmp.ne.s32.totalorder %s31, %s32
    %p46 = scmp.eq.s32.totalorder %s24, 1
    %p47 = por %p45, %p46
    %p49 = scmp.ne.s32.totalorder %s32, %s48
    %p50 = scmp.eq.s32.totalorder %s24, 0
    %p51 = por %p49, %p50
    %s53 = sadd.s32 %s52, 1
    %p56 = scmp.eq.s32.totalorder %s18, 1
    %p57 = scmp.ne.s32.totalorder %s52, %s54
    %p58 = scmp.eq.s32.totalorder %s18, 0
    %p59 = por %p57, %p58
    %p60 = scmp.ne.s32.totalorder %s52, %s54
    %p61 = scmp.eq.s32.totalorder %s23, 1
    %p62 = por %p60, %p61
    %p63 = scmp.ne.s32.totalorder %s54, %s55
    %p64 = scmp.eq.s32.totalorder %s23, 0
    %p65 = por %p63, %p64
    %p66 = scmp.ne.s32.totalorder %s54, %s55
    %p67 = scmp.eq.s32.totalorder %s24, 1
    %p68 = por %p66, %p67
    %p70 = scmp.ne.s32.totalorder %s55, %s69
    %p71 = scmp.eq.s32.totalorder %s24, 0
    %p72 = por %p70, %p71
    %s74 = sadd.s32 %s73, 1
    %p77 = scmp.eq.s32.totalorder %s18, 1
    %p78 = scmp.ne.s32.totalorder %s73, %s75
    %p79 = scmp.eq.s32.totalorder %s18, 0
    %p80 = por %p78, %p79
    %p81 = scmp.ne.s32.totalorder %s73, %s75
    %p82 = scmp.eq.s32.totalorder %s23, 1
    %p83 = por %p81, %p82
    %p84 = scmp.ne.s32.totalorder %s75, %s76
    %p85 = scmp.eq.s32.totalorder %s23, 0
    %p86 = por %p84, %p85
    %p87 = scmp.ne.s32.totalorder %s75, %s76
    %p88 = scmp.eq.s32.totalorder %s24, 1
    %p89 = por %p87, %p88
    %p91 = scmp.ne.s32.totalorder %s76, %s90
    %p92 = scmp.eq.s32.totalorder %s24, 0
    %p93 = por %p91, %p92
    %s95 = sadd.s32 %s94, 1
    %p98 = scmp.eq.s32.totalorder %s18, 1
    %p99 = scmp.ne.s32.totalorder %s94, %s96
    %p100 = scmp.eq.s32.totalorder %s18, 0
    %p101 = por %p99, %p100
    %p102 = scmp.ne.s32.totalorder %s94, %s96
    %p103 = scmp.eq.s32.totalorder %s23, 1
    %p104 = por %p102, %p103
    %p105 = scmp.ne.s32.totalorder %s96, %s97
    %p106 = scmp.eq.s32.totalorder %s23, 0
    %p107 = por %p105, %p106
    %p108 = scmp.ne.s32.totalorder %s96, %s97
    %p109 = scmp.eq.s32.totalorder %s24, 1
    %p110 = por %p108, %p109
    %p112 = scmp.ne.s32.totalorder %s97, %s111
    %p113 = scmp.eq.s32.totalorder %s24, 0
    %p114 = por %p112, %p113
    %s116 = sadd.s32 %s115, 1
    %p119 = scmp.eq.s32.totalorder %s18, 1
    %p120 = scmp.ne.s32.totalorder %s115, %s117
    %p121 = scmp.eq.s32.totalorder %s18, 0
    %p122 = por %p120, %p121
    %p123 = scmp.ne.s32.totalorder %s115, %s117
    %p124 = scmp.eq.s32.totalorder %s23, 1
    %p125 = por %p123, %p124
    %p126 = scmp.ne.s32.totalorder %s117, %s118
    %p127 = scmp.eq.s32.totalorder %s23, 0
    %p128 = por %p126, %p127
    %p129 = scmp.ne.s32.totalorder %s117, %s118
    %p130 = scmp.eq.s32.totalorder %s24, 1
    %p131 = por %p129, %p130
    %p133 = scmp.ne.s32.totalorder %s118, %s132
    %p134 = scmp.eq.s32.totalorder %s24, 0
    %p135 = por %p133, %p134
    %s137 = sadd.s32 %s136, 1
    %p140 = scmp.eq.s32.totalorder %s18, 1
    %p141 = scmp.ne.s32.totalorder %s136, %s138
    %p142 = scmp.eq.s32.totalorder %s18, 0
    %p143 = por %p141, %p142
    %p144 = scmp.ne.s32.totalorder %s136, %s138
    %p145 = scmp.eq.s32.totalorder %s23, 1
    %p146 = por %p144, %p145
    %p147 = scmp.ne.s32.totalorder %s138, %s139
    %p148 = scmp.eq.s32.totalorder %s23, 0
    %p149 = por %p147, %p148
    %p150 = scmp.ne.s32.totalorder %s138, %s139
    %p151 = scmp.eq.s32.totalorder %s24, 1
    %p152 = por %p150, %p151
    %p154 = scmp.ne.s32.totalorder %s139, %s153
    %p155 = scmp.eq.s32.totalorder %s24, 0
    %p156 = por %p154, %p155
    %s158 = sadd.s32 %s157, 1
    %p161 = scmp.eq.s32.totalorder %s18, 1
    %p162 = scmp.ne.s32.totalorder %s157, %s159
    %p163 = scmp.eq.s32.totalorder %s18, 0
    %p164 = por %p162, %p163
    %p165 = scmp.ne.s32.totalorder %s157, %s159
    %p166 = scmp.eq.s32.totalorder %s23, 1
    %p167 = por %p165, %p166
    %p168 = scmp.ne.s32.totalorder %s159, %s160
    %p169 = scmp.eq.s32.totalorder %s23, 0
    %p170 = por %p168, %p169
    %p171 = scmp.ne.s32.totalorder %s159, %s160
    %p172 = scmp.eq.s32.totalorder %s24, 1
    %p173 = por %p171, %p172
    %p175 = scmp.ne.s32.totalorder %s160, %s174
    %p176 = scmp.eq.s32.totalorder %s24, 0
    %p177 = por %p175, %p176
    %s179 = sadd.s32 %s178, 1
    %p182 = scmp.eq.s32.totalorder %s18, 1
    %p183 = scmp.ne.s32.totalorder %s178, %s180
    %p184 = scmp.eq.s32.totalorder %s18, 0
    %p185 = por %p183, %p184
    %p186 = scmp.ne.s32.totalorder %s178, %s180
    %p187 = scmp.eq.s32.totalorder %s23, 1
    %p188 = por %p186, %p187
    %p189 = scmp.ne.s32.totalorder %s180, %s181
    %p190 = scmp.eq.s32.totalorder %s23, 0
    %p191 = por %p189, %p190
    %p192 = scmp.ne.s32.totalorder %s180, %s181
    %p193 = scmp.eq.s32.totalorder %s24, 1
    %p194 = por %p192, %p193
    %p196 = scmp.ne.s32.totalorder %s181, %s195
    %p197 = scmp.eq.s32.totalorder %s24, 0
    %p198 = por %p196, %p197
    %s200 = sadd.s32 %s199, 1
    %p203 = scmp.eq.s32.totalorder %s18, 1
    %p204 = scmp.ne.s32.totalorder %s199, %s201
    %p205 = scmp.eq.s32.totalorder %s18, 0
    %p206 = por %p204, %p205
    %p207 = scmp.ne.s32.totalorder %s199, %s201
    %p208 = scmp.eq.s32.totalorder %s23, 1
    %p209 = por %p207, %p208
    %p210 = scmp.ne.s32.totalorder %s201, %s202
    %p211 = scmp.eq.s32.totalorder %s23, 0
    %p212 = por %p210, %p211
    %p213 = scmp.ne.s32.totalorder %s201, %s202
    %p214 = scmp.eq.s32.totalorder %s24, 1
    %p215 = por %p213, %p214
    %p217 = scmp.ne.s32.totalorder %s202, %s216
    %p218 = scmp.eq.s32.totalorder %s24, 0
    %p219 = por %p217, %p218
    %s221 = sadd.s32 %s220, 1
    %p224 = scmp.eq.s32.totalorder %s18, 1
    %p225 = scmp.ne.s32.totalorder %s220, %s222
    %p226 = scmp.eq.s32.totalorder %s18, 0
    %p227 = por %p225, %p226
    %p228 = scmp.ne.s32.totalorder %s220, %s222
    %p229 = scmp.eq.s32.totalorder %s23, 1
    %p230 = por %p228, %p229
    %p231 = scmp.ne.s32.totalorder %s222, %s223
    %p232 = scmp.eq.s32.totalorder %s23, 0
    %p233 = por %p231, %p232
    %p234 = scmp.ne.s32.totalorder %s222, %s223
    %p235 = scmp.eq.s32.totalorder %s24, 1
    %p236 = por %p234, %p235
    %p238 = scmp.ne.s32.totalorder %s223, %s237
    %p239 = scmp.eq.s32.totalorder %s24, 0
    %p240 = por %p238, %p239
    %s242 = sadd.s32 %s241, 1
    %p245 = scmp.eq.s32.totalorder %s18, 1
    %p246 = scmp.ne.s32.totalorder %s241, %s243
    %p247 = scmp.eq.s32.totalorder %s18, 0
    %p248 = por %p246, %p247
    %p249 = scmp.ne.s32.totalorder %s241, %s243
    %p250 = scmp.eq.s32.totalorder %s23, 1
    %p251 = por %p249, %p250
    %p252 = scmp.ne.s32.totalorder %s243, %s244
    %p253 = scmp.eq.s32.totalorder %s23, 0
    %p254 = por %p252, %p253
    %p255 = scmp.ne.s32.totalorder %s243, %s244
    %p256 = scmp.eq.s32.totalorder %s24, 1
    %p257 = por %p255, %p256
    %p259 = scmp.ne.s32.totalorder %s244, %s258
    %p260 = scmp.eq.s32.totalorder %s24, 0
    %p261 = por %p259, %p260
    %s263 = sadd.s32 %s262, 1
    %p266 = scmp.eq.s32.totalorder %s18, 1
    %p267 = scmp.ne.s32.totalorder %s262, %s264
    %p268 = scmp.eq.s32.totalorder %s18, 0
    %p269 = por %p267, %p268
    %p270 = scmp.ne.s32.totalorder %s262, %s264
    %p271 = scmp.eq.s32.totalorder %s23, 1
    %p272 = por %p270, %p271
    %p273 = scmp.ne.s32.totalorder %s264, %s265
    %p274 = scmp.eq.s32.totalorder %s23, 0
    %p275 = por %p273, %p274
    %p276 = scmp.ne.s32.totalorder %s264, %s265
    %p277 = scmp.eq.s32.totalorder %s24, 1
    %p278 = por %p276, %p277
    %p280 = scmp.ne.s32.totalorder %s265, %s279
    %p281 = scmp.eq.s32.totalorder %s24, 0
    %p282 = por %p280, %p281
    %s283 = ssub.s32 %s18, %s25
    %p284 = scmp.eq.s32.totalorder %s283, 0
    %s286 = sadd.s32 %s285, 1
    %s287 = scalar_select %p284, %s285, %s286
    %p290 = pneg %p284
    %p291 = scmp.eq.s32.totalorder %s18, 1
    %p292 = por %p290, %p291
    %p293 = scmp.ne.s32.totalorder %s285, %s288
    %p294 = scmp.eq.s32.totalorder %s18, 0
    %p295 = por %p293, %p294
    %p296 = scmp.ne.s32.totalorder %s285, %s288
    %p297 = scmp.eq.s32.totalorder %s23, 1
    %p298 = por %p296, %p297
    %p299 = scmp.ne.s32.totalorder %s288, %s289
    %p300 = scmp.eq.s32.totalorder %s23, 0
    %p301 = por %p299, %p300
    %p302 = scmp.ne.s32.totalorder %s288, %s289
    %p303 = scmp.eq.s32.totalorder %s24, 1
    %p304 = por %p302, %p303
    %p306 = scmp.ne.s32.totalorder %s289, %s305
    %p307 = scmp.eq.s32.totalorder %s24, 0
    %p308 = por %p306, %p307
    %p309 = scmp.le.s32.totalorder 1, %s18
    %p310 = scmp.lt.s32.totalorder %s18, 3
    %p311 = pnand %p309, %p310
    %p312 = pneg %p311
    // Predicated region
    $region9: #{net_forward.1} parent=5 // pred_check
      _
    $region10: #{net_forward.1} parent=5 // pred_check_branch
      %314 = sbr.rel (%p311) target = $region12
    $region11: #{net_forward.1} parent=5 // pred_region
      %s315 = ssub.s32 %s18, 1
      // Predicated region
      $region13: #{net_forward.1} parent=11 // pred_check
        %p316 = pneg %p65
      $region14: #{net_forward.1} parent=11 // pred_check_branch
        %318 = sbr.rel (%p316) target = $region16
      $region15: #{net_forward.1} parent=11 // pred_region
        _
      $region16: #{net_forward.1} parent=11 // pred_fallthru
        _
      // Predicated region
      $region17: #{net_forward.1} parent=11 // pred_check
        %p319 = pneg %p86
      $region18: #{net_forward.1} parent=11 // pred_check_branch
        %321 = sbr.rel (%p319) target = $region20
      $region19: #{net_forward.1} parent=11 // pred_region
        _
      $region20: #{net_forward.1} parent=11 // pred_fallthru
        _
      // Predicated region
      $region21: #{net_forward.1} parent=11 // pred_check
        %p322 = pneg %p107
      $region22: #{net_forward.1} parent=11 // pred_check_branch
        %324 = sbr.rel (%p322) target = $region24
      $region23: #{net_forward.1} parent=11 // pred_region
        _
      $region24: #{net_forward.1} parent=11 // pred_fallthru
        _
      // Predicated region
      $region25: #{net_forward.1} parent=11 // pred_check
        %p325 = pneg %p128
      $region26: #{net_forward.1} parent=11 // pred_check_branch
        %327 = sbr.rel (%p325) target = $region28
      $region27: #{net_forward.1} parent=11 // pred_region
        _
      $region28: #{net_forward.1} parent=11 // pred_fallthru
        _
      // Predicated region
      $region29: #{net_forward.1} parent=11 // pred_check
        %p328 = pneg %p149
      $region30: #{net_forward.1} parent=11 // pred_check_branch
        %330 = sbr.rel (%p328) target = $region32
      $region31: #{net_forward.1} parent=11 // pred_region
        _
      $region32: #{net_forward.1} parent=11 // pred_fallthru
        _
      // Predicated region
      $region33: #{net_forward.1} parent=11 // pred_check
        %p331 = pneg %p170
      $region34: #{net_forward.1} parent=11 // pred_check_branch
        %333 = sbr.rel (%p331) target = $region36
      $region35: #{net_forward.1} parent=11 // pred_region
        _
      $region36: #{net_forward.1} parent=11 // pred_fallthru
        _
      // Predicated region
      $region37: #{net_forward.1} parent=11 // pred_check
        %p334 = pneg %p191
      $region38: #{net_forward.1} parent=11 // pred_check_branch
        %336 = sbr.rel (%p334) target = $region40
      $region39: #{net_forward.1} parent=11 // pred_region
        _
      $region40: #{net_forward.1} parent=11 // pred_fallthru
        _
      // Predicated region
      $region41: #{net_forward.1} parent=11 // pred_check
        %p337 = pneg %p212
      $region42: #{net_forward.1} parent=11 // pred_check_branch
        %339 = sbr.rel (%p337) target = $region44
      $region43: #{net_forward.1} parent=11 // pred_region
        _
      $region44: #{net_forward.1} parent=11 // pred_fallthru
        _
      // Predicated region
      $region45: #{net_forward.1} parent=11 // pred_check
        %p340 = pneg %p233
      $region46: #{net_forward.1} parent=11 // pred_check_branch
        %342 = sbr.rel (%p340) target = $region48
      $region47: #{net_forward.1} parent=11 // pred_region
        _
      $region48: #{net_forward.1} parent=11 // pred_fallthru
        _
      // Predicated region
      $region49: #{net_forward.1} parent=11 // pred_check
        %p343 = pneg %p254
      $region50: #{net_forward.1} parent=11 // pred_check_branch
        %345 = sbr.rel (%p343) target = $region52
      $region51: #{net_forward.1} parent=11 // pred_region
        _
      $region52: #{net_forward.1} parent=11 // pred_fallthru
        _
      // Predicated region
      $region53: #{net_forward.1} parent=11 // pred_check
        %p346 = pneg %p275
      $region54: #{net_forward.1} parent=11 // pred_check_branch
        %348 = sbr.rel (%p346) target = $region56
      $region55: #{net_forward.1} parent=11 // pred_region
        _
      $region56: #{net_forward.1} parent=11 // pred_fallthru
        _
    $region12: #{net_forward.1} parent=5 // pred_fallthru
      _
    %p349 = scmp.lt.s32.totalorder %s18, 2
    // Predicated region
    $region57: #{net_forward.1} parent=5 // pred_check
      %p350 = pneg %p349
    $region58: #{net_forward.1} parent=5 // pred_check_branch
      %352 = sbr.rel (%p350) target = $region60
    $region59: #{net_forward.1} parent=5 // pred_region
      // Predicated region
      $region61: #{net_forward.1} parent=59 // pred_check
        %p353 = pneg %p38
      $region62: #{net_forward.1} parent=59 // pred_check_branch
        %355 = sbr.rel (%p353) target = $region64
      $region63: #{net_forward.1} parent=59 // pred_region
        %p356 = scmp.lt.s32.totalorder %s18, 1
        %s357 = scalar_select %p356, %s18, 1
        %s358 = smul.addr %s357, 9
        %s359 = scalar_lea.vmem %s0, %s358
      $region64: #{net_forward.1} parent=59 // pred_fallthru
        _
    $region60: #{net_forward.1} parent=5 // pred_fallthru
      _
    %p360 = scmp.le.s32.totalorder 1, %s18
    %p361 = scmp.lt.s32.totalorder %s18, 3
    %p362 = pnand %p360, %p361
    %p363 = pneg %p362
    // Predicated region
    $region65: #{net_forward.1} parent=5 // pred_check
      _
    $region66: #{net_forward.1} parent=5 // pred_check_branch
      %365 = sbr.rel (%p362) target = $region68
    $region67: #{net_forward.1} parent=5 // pred_region
      %s366 = ssub.s32 %s18, 1
      %p367 = scmp.lt.s32.totalorder %s23, 1
      %s368 = scalar_select %p367, %s23, 1
      %s369 = smul.addr %s368, 9
      %s370 = scalar_lea.vmem %s0, %s369
      %p371 = pneg %p44
      %p372 = pneg %p41
      %p373 = pneg %p65
      %p374 = pneg %p62
      %p375 = pneg %p86
      %p376 = pneg %p83
      %p377 = pneg %p107
      %p378 = pneg %p104
      %p379 = pneg %p128
      %p380 = pneg %p125
      %p381 = pneg %p149
      %p382 = pneg %p146
      %p383 = pneg %p170
      %p384 = pneg %p167
      %p385 = pneg %p191
      %p386 = pneg %p188
      %p387 = pneg %p212
      %p388 = pneg %p209
      %p389 = pneg %p233
      %p390 = pneg %p230
      %p391 = pneg %p254
      %p392 = pneg %p251
      %p393 = pneg %p275
      %p394 = pneg %p272
      %p395 = pneg %p301
      %p396 = pneg %p298
      %p397 = scmp.lt.s32.totalorder %s23, 1
      %s398 = scalar_select %p397, %s23, 1
      %s399 = smul.addr %s398, 8
      %s400 = smul.addr %s399, 8
      %s401 = scalar_lea.vmem %s12, %s400
      %p402 = scmp.lt.s32.totalorder %s23, 1
      %s403 = scalar_select %p402, %s23, 1
      %s404 = smul.addr %s403, 9
      %s405 = scalar_lea.vmem %s0, %s404
      %p406 = scmp.lt.s32.totalorder %s23, 1
      %s407 = scalar_select %p406, %s23, 1
      %s408 = smul.addr %s407, 8
      %s409 = smul.addr %s408, 8
      %s410 = scalar_lea.vmem %s12, %s409
      %vm412 = vcmask 1047556
      %vm413 = vsmask.f32 7954
      %vm414 = vmand %vm412, %vm413
      %v415 = vld [vmem:[#allocation2 + $0x38] sm:$0xf0]
      %v416 = vsel %vm414, 0, %v415
      %417 = vst [vmem:[#allocation2 + $0x38] sm:$0xf0] %v416
      %v418 = vld [vmem:[#allocation2 + $0x40] sm:$0xf0]
      %v419 = vsel %vm414, 0, %v418
      %420 = vst [vmem:[#allocation2 + $0x40] sm:$0xf0] %v419
      %v421 = vld [vmem:[#allocation2 + $0x48] sm:$0xf0]
      %v422 = vsel %vm414, 0, %v421
      %423 = vst [vmem:[#allocation2 + $0x48] sm:$0xf0] %v422
      %v424 = vld [vmem:[#allocation2 + $0x50] sm:$0xf0]
      %v425 = vsel %vm414, 0, %v424
      %426 = vst [vmem:[#allocation2 + $0x50] sm:$0xf0] %v425
      %v427 = vld [vmem:[#allocation2 + $0x58] sm:$0xf0]
      %v428 = vsel %vm414, 0, %v427
      %429 = vst [vmem:[#allocation2 + $0x58] sm:$0xf0] %v428
      %v430 = vld [vmem:[#allocation2 + $0x60] sm:$0xf0]
      %v431 = vsel %vm414, 0, %v430
      %432 = vst [vmem:[#allocation2 + $0x60] sm:$0xf0] %v431
      %v433 = vld [vmem:[#allocation2 + $0x68] sm:$0xf0]
      %v434 = vsel %vm414, 0, %v433
      %435 = vst [vmem:[#allocation2 + $0x68] sm:$0xf0] %v434
      %v436 = vld [vmem:[%s405] sm:$0x7f]
      %v438 = vcombine.high %v436, %v436
      %v440 = vunpack.c.l.s4 1966171168
      %v441 = vunpack.c.0.s8 %v440
      %v442 = vlaneseq
      %v443 = vshrl.u32 %v442, 7
      %v444 = vsub.s32 %v441, %v443
      %v445 = vrot.slane %v436, %v444
      %v447 = vunpack.c.l.s4 1966171168
      %v448 = vunpack.c.0.s8 %v447
      %v449 = vlaneseq
      %v450 = vshrl.u32 %v449, 7
      %v451 = vsub.s32 %v448, %v450
      %v452 = vrot.slane %v438, %v451
      %v453 = vcombine.high %v445, %v445
      %v454 = vcombine.high %v452, %v452
      %v456 = vunpack.c.l.s4 1966171168
      %v457 = vunpack.c.0.s8 %v456
      %v458 = vlaneseq
      %v459 = vshrl.u32 %v458, 7
      %v460 = vsub.s32 %v457, %v459
      %v461 = vrot.slane %v445, %v460
      %v463 = vunpack.c.l.s4 1966171168
      %v464 = vunpack.c.0.s8 %v463
      %v465 = vlaneseq
      %v466 = vshrl.u32 %v465, 7
      %v467 = vsub.s32 %v464, %v466
      %v468 = vrot.slane %v452, %v467
      %v470 = vunpack.c.l.s4 1966171168
      %v471 = vunpack.c.0.s8 %v470
      %v472 = vlaneseq
      %v473 = vshrl.u32 %v472, 7
      %v474 = vsub.s32 %v471, %v473
      %v475 = vrot.slane %v453, %v474
      %v477 = vunpack.c.l.s4 1966171168
      %v478 = vunpack.c.0.s8 %v477
      %v479 = vlaneseq
      %v480 = vshrl.u32 %v479, 7
      %v481 = vsub.s32 %v478, %v480
      %v482 = vrot.slane %v454, %v481
      %v483 = vcombine.high %v461, %v461
      %v484 = vcombine.high %v468, %v468
      %v485 = vcombine.high %v475, %v475
      %vm493 = vcmask 1040384
      %vm494 = vsmask.f32 256
      %vm495 = vmand %vm493, %vm494
      %v496 = vld [vmem:[#allocation2] sm:$0x1]
      %v497 = vsel %vm495, %v461, %v496
      %498 = vst [vmem:[#allocation2] sm:$0x1] %v497
      %v499 = vld [vmem:[#allocation2 + $0x8] sm:$0x1]
      %v500 = vsel %vm495, %v475, %v499
      %501 = vst [vmem:[#allocation2 + $0x8] sm:$0x1] %v500
      %v502 = vld [vmem:[#allocation2 + $0x10] sm:$0x1]
      %v503 = vsel %vm495, %v483, %v502
      %504 = vst [vmem:[#allocation2 + $0x10] sm:$0x1] %v503
      %v505 = vld [vmem:[#allocation2 + $0x18] sm:$0x1]
      %v506 = vsel %vm495, %v485, %v505
      %507 = vst [vmem:[#allocation2 + $0x18] sm:$0x1] %v506
      %v508 = vld [vmem:[#allocation2 + $0x20] sm:$0x1]
      %v509 = vsel %vm495, %v468, %v508
      %510 = vst [vmem:[#allocation2 + $0x20] sm:$0x1] %v509
      %v511 = vld [vmem:[#allocation2 + $0x28] sm:$0x1]
      %v512 = vsel %vm495, %v482, %v511
      %513 = vst [vmem:[#allocation2 + $0x28] sm:$0x1] %v512
      %v514 = vld [vmem:[#allocation2 + $0x30] sm:$0x1]
      %v515 = vsel %vm495, %v484, %v514
      %516 = vst [vmem:[#allocation2 + $0x30] sm:$0x1] %v515
      %v517 = vld [vmem:[%s405] sm:$0xff]
      %v519 = vcombine.high %v517, %v517
      %v521 = vunpack.c.l.s4 1966171168
      %v522 = vunpack.c.0.s8 %v521
      %v523 = vlaneseq
      %v524 = vshrl.u32 %v523, 7
      %v525 = vsub.s32 %v522, %v524
      %v526 = vrot.slane %v517, %v525
      %v528 = vunpack.c.l.s4 1966171168
      %v529 = vunpack.c.0.s8 %v528
      %v530 = vlaneseq
      %v531 = vshrl.u32 %v530, 7
      %v532 = vsub.s32 %v529, %v531
      %v533 = vrot.slane %v519, %v532
      %v534 = vcombine.high %v526, %v526
      %v535 = vcombine.high %v533, %v533
      %v537 = vunpack.c.l.s4 1966171168
      %v538 = vunpack.c.0.s8 %v537
      %v539 = vlaneseq
      %v540 = vshrl.u32 %v539, 7
      %v541 = vsub.s32 %v538, %v540
      %v542 = vrot.slane %v526, %v541
      %v544 = vunpack.c.l.s4 1966171168
      %v545 = vunpack.c.0.s8 %v544
      %v546 = vlaneseq
      %v547 = vshrl.u32 %v546, 7
      %v548 = vsub.s32 %v545, %v547
      %v549 = vrot.slane %v533, %v548
      %v551 = vunpack.c.l.s4 1966171168
      %v552 = vunpack.c.0.s8 %v551
      %v553 = vlaneseq
      %v554 = vshrl.u32 %v553, 7
      %v555 = vsub.s32 %v552, %v554
      %v556 = vrot.slane %v534, %v555
      %v558 = vunpack.c.l.s4 1966171168
      %v559 = vunpack.c.0.s8 %v558
      %v560 = vlaneseq
      %v561 = vshrl.u32 %v560, 7
      %v562 = vsub.s32 %v559, %v561
      %v563 = vrot.slane %v535, %v562
      %v564 = vcombine.high %v542, %v542
      %v565 = vcombine.high %v549, %v549
      %v566 = vcombine.high %v556, %v556
      %v567 = vcombine.high %v563, %v563
      %v569 = vshll.u32 %v542, 16
      %v572 = vshll.u32 %v556, 16
      %v575 = vshll.u32 %v564, 16
      %v578 = vshll.u32 %v566, 16
      %v581 = vshll.u32 %v549, 16
      %v584 = vshll.u32 %v563, 16
      %v587 = vshll.u32 %v565, 16
      %v590 = vshll.u32 %v567, 16
      %592 = vrot.lane.b32.xlu0 %v569, 127
      %v593 = vpop.permute.xlu0 %592
      %594 = vrot.lane.b32.xlu0 %v572, 127
      %v595 = vpop.permute.xlu0 %594
      %596 = vrot.lane.b32.xlu0 %v575, 127
      %v597 = vpop.permute.xlu0 %596
      %598 = vrot.lane.b32.xlu0 %v578, 127
      %v599 = vpop.permute.xlu0 %598
      %600 = vrot.lane.b32.xlu0 %v581, 127
      %v601 = vpop.permute.xlu0 %600
      %602 = vrot.lane.b32.xlu0 %v584, 127
      %v603 = vpop.permute.xlu0 %602
      %604 = vrot.lane.b32.xlu0 %v587, 127
      %v605 = vpop.permute.xlu0 %604
      %606 = vrot.lane.b32.xlu0 %v590, 127
      %v607 = vpop.permute.xlu0 %606
      %vm608 = vcmask 1039360
      %v609 = vsel %vm608, %v593, %v595
      %v610 = vsel %vm608, %v595, %v597
      %v611 = vsel %vm608, %v597, %v599
      %v612 = vsel %vm608, %v599, %v601
      %v613 = vsel %vm608, %v601, %v603
      %v614 = vsel %vm608, %v603, %v605
      %v615 = vsel %vm608, %v605, %v607
      %vm623 = vsmask.f32 7938
      %vm624 = vmand %vm493, %vm623
      %v625 = vld [vmem:[#allocation2] sm:$0x1]
      %v626 = vsel %vm624, %v609, %v625
      %627 = vst [vmem:[#allocation2] sm:$0x1] %v626
      %v628 = vld [vmem:[#allocation2 + $0x8] sm:$0x1]
      %v629 = vsel %vm624, %v610, %v628
      %630 = vst [vmem:[#allocation2 + $0x8] sm:$0x1] %v629
      %v631 = vld [vmem:[#allocation2 + $0x10] sm:$0x1]
      %v632 = vsel %vm624, %v611, %v631
      %633 = vst [vmem:[#allocation2 + $0x10] sm:$0x1] %v632
      %v634 = vld [vmem:[#allocation2 + $0x18] sm:$0x1]
      %v635 = vsel %vm624, %v612, %v634
      %636 = vst [vmem:[#allocation2 + $0x18] sm:$0x1] %v635
      %v637 = vld [vmem:[#allocation2 + $0x20] sm:$0x1]
      %v638 = vsel %vm624, %v613, %v637
      %639 = vst [vmem:[#allocation2 + $0x20] sm:$0x1] %v638
      %v640 = vld [vmem:[#allocation2 + $0x28] sm:$0x1]
      %v641 = vsel %vm624, %v614, %v640
      %642 = vst [vmem:[#allocation2 + $0x28] sm:$0x1] %v641
      %v643 = vld [vmem:[#allocation2 + $0x30] sm:$0x1]
      %v644 = vsel %vm624, %v615, %v643
      %645 = vst [vmem:[#allocation2 + $0x30] sm:$0x1] %v644
      %v646 = vld [vmem:[%s405] sm:$0xff]
      %v648 = vcombine.low %v646, %v646
      %v650 = vunpack.c.l.s4 1966171168
      %v651 = vunpack.c.0.s8 %v650
      %v652 = vlaneseq
      %v653 = vshrl.u32 %v652, 7
      %v654 = vsub.s32 %v651, %v653
      %v655 = vrot.slane %v648, %v654
      %v657 = vunpack.c.l.s4 1966171168
      %v658 = vunpack.c.0.s8 %v657
      %v659 = vlaneseq
      %v660 = vshrl.u32 %v659, 7
      %v661 = vsub.s32 %v658, %v660
      %v662 = vrot.slane %v646, %v661
      %v663 = vcombine.high %v655, %v655
      %v664 = vcombine.high %v662, %v662
      %v666 = vunpack.c.l.s4 1966171168
      %v667 = vunpack.c.0.s8 %v666
      %v668 = vlaneseq
      %v669 = vshrl.u32 %v668, 7
      %v670 = vsub.s32 %v667, %v669
      %v671 = vrot.slane %v655, %v670
      %v673 = vunpack.c.l.s4 1966171168
      %v674 = vunpack.c.0.s8 %v673
      %v675 = vlaneseq
      %v676 = vshrl.u32 %v675, 7
      %v677 = vsub.s32 %v674, %v676
      %v678 = vrot.slane %v662, %v677
      %v680 = vunpack.c.l.s4 1966171168
      %v681 = vunpack.c.0.s8 %v680
      %v682 = vlaneseq
      %v683 = vshrl.u32 %v682, 7
      %v684 = vsub.s32 %v681, %v683
      %v685 = vrot.slane %v663, %v684
      %v687 = vunpack.c.l.s4 1966171168
      %v688 = vunpack.c.0.s8 %v687
      %v689 = vlaneseq
      %v690 = vshrl.u32 %v689, 7
      %v691 = vsub.s32 %v688, %v690
      %v692 = vrot.slane %v664, %v691
      %v693 = vcombine.high %v671, %v671
      %v694 = vcombine.high %v678, %v678
      %v695 = vcombine.high %v685, %v685
      %v696 = vcombine.high %v692, %v692
      %697 = vrot.lane.b32.xlu0 %v671, 126
      %v698 = vpop.permute.xlu0 %697
      %699 = vrot.lane.b32.xlu0 %v685, 126
      %v700 = vpop.permute.xlu0 %699
      %701 = vrot.lane.b32.xlu0 %v693, 126
      %v702 = vpop.permute.xlu0 %701
      %703 = vrot.lane.b32.xlu0 %v695, 126
      %v704 = vpop.permute.xlu0 %703
      %705 = vrot.lane.b32.xlu0 %v678, 126
      %v706 = vpop.permute.xlu0 %705
      %707 = vrot.lane.b32.xlu0 %v692, 126
      %v708 = vpop.permute.xlu0 %707
      %709 = vrot.lane.b32.xlu0 %v694, 126
      %v710 = vpop.permute.xlu0 %709
      %711 = vrot.lane.b32.xlu0 %v696, 126
      %v712 = vpop.permute.xlu0 %711
      %vm713 = vcmask 1031168
      %v714 = vsel %vm713, %v698, %v700
      %v715 = vsel %vm713, %v700, %v702
      %v716 = vsel %vm713, %v702, %v704
      %v717 = vsel %vm713, %v704, %v706
      %v718 = vsel %vm713, %v706, %v708
      %v719 = vsel %vm713, %v708, %v710
      %v720 = vsel %vm713, %v710, %v712
      %vm728 = vcmask 1041409
      %vm729 = vsmask.f32 1280
      %vm730 = vmand %vm728, %vm729
      %v731 = vld [vmem:[#allocation2] sm:$0x2]
      %v732 = vsel %vm730, %v714, %v731
      %733 = vst [vmem:[#allocation2] sm:$0x2] %v732
      %v734 = vld [vmem:[#allocation2 + $0x8] sm:$0x2]
      %v735 = vsel %vm730, %v715, %v734
      %736 = vst [vmem:[#allocation2 + $0x8] sm:$0x2] %v735
      %v737 = vld [vmem:[#allocation2 + $0x10] sm:$0x2]
      %v738 = vsel %vm730, %v716, %v737
      %739 = vst [vmem:[#allocation2 + $0x10] sm:$0x2] %v738
      %v740 = vld [vmem:[#allocation2 + $0x18] sm:$0x2]
      %v741 = vsel %vm730, %v717, %v740
      %742 = vst [vmem:[#allocation2 + $0x18] sm:$0x2] %v741
      %v743 = vld [vmem:[#allocation2 + $0x20] sm:$0x2]
      %v744 = vsel %vm730, %v718, %v743
      %745 = vst [vmem:[#allocation2 + $0x20] sm:$0x2] %v744
      %v746 = vld [vmem:[#allocation2 + $0x28] sm:$0x2]
      %v747 = vsel %vm730, %v719, %v746
      %748 = vst [vmem:[#allocation2 + $0x28] sm:$0x2] %v747
      %v749 = vld [vmem:[#allocation2 + $0x30] sm:$0x2]
      %v750 = vsel %vm730, %v720, %v749
      %751 = vst [vmem:[#allocation2 + $0x30] sm:$0x2] %v750
      %v752 = vld [vmem:[%s405] sm:$0xff]
      %v754 = vcombine.high %v752, %v752
      %v756 = vunpack.c.l.s4 1966171168
      %v757 = vunpack.c.0.s8 %v756
      %v758 = vlaneseq
      %v759 = vshrl.u32 %v758, 7
      %v760 = vsub.s32 %v757, %v759
      %v761 = vrot.slane %v752, %v760
      %v763 = vunpack.c.l.s4 1966171168
      %v764 = vunpack.c.0.s8 %v763
      %v765 = vlaneseq
      %v766 = vshrl.u32 %v765, 7
      %v767 = vsub.s32 %v764, %v766
      %v768 = vrot.slane %v754, %v767
      %v769 = vcombine.high %v761, %v761
      %v770 = vcombine.high %v768, %v768
      %v772 = vunpack.c.l.s4 1966171168
      %v773 = vunpack.c.0.s8 %v772
      %v774 = vlaneseq
      %v775 = vshrl.u32 %v774, 7
      %v776 = vsub.s32 %v773, %v775
      %v777 = vrot.slane %v761, %v776
      %v779 = vunpack.c.l.s4 1966171168
      %v780 = vunpack.c.0.s8 %v779
      %v781 = vlaneseq
      %v782 = vshrl.u32 %v781, 7
      %v783 = vsub.s32 %v780, %v782
      %v784 = vrot.slane %v768, %v783
      %v786 = vunpack.c.l.s4 1966171168
      %v787 = vunpack.c.0.s8 %v786
      %v788 = vlaneseq
      %v789 = vshrl.u32 %v788, 7
      %v790 = vsub.s32 %v787, %v789
      %v791 = vrot.slane %v769, %v790
      %v793 = vunpack.c.l.s4 1966171168
      %v794 = vunpack.c.0.s8 %v793
      %v795 = vlaneseq
      %v796 = vshrl.u32 %v795, 7
      %v797 = vsub.s32 %v794, %v796
      %v798 = vrot.slane %v770, %v797
      %v799 = vcombine.high %v777, %v777
      %v800 = vcombine.high %v784, %v784
      %v801 = vcombine.high %v791, %v791
      %v802 = vcombine.high %v798, %v798
      %v804 = vshll.u32 %v777, 16
      %v806 = vrot.slane %v804, 7
      %v808 = vshll.u32 %v791, 16
      %v810 = vrot.slane %v808, 7
      %v812 = vshll.u32 %v799, 16
      %v814 = vrot.slane %v812, 7
      %v816 = vshll.u32 %v801, 16
      %v818 = vrot.slane %v816, 7
      %v820 = vshll.u32 %v784, 16
      %v822 = vrot.slane %v820, 7
      %v824 = vshll.u32 %v798, 16
      %v826 = vrot.slane %v824, 7
      %v828 = vshll.u32 %v800, 16
      %v830 = vrot.slane %v828, 7
      %v832 = vshll.u32 %v802, 16
      %v834 = vrot.slane %v832, 7
      %835 = vrot.lane.b32.xlu0 %v806, 125
      %v836 = vpop.permute.xlu0 %835
      %837 = vrot.lane.b32.xlu0 %v810, 125
      %v838 = vpop.permute.xlu0 %837
      %839 = vrot.lane.b32.xlu0 %v814, 125
      %v840 = vpop.permute.xlu0 %839
      %841 = vrot.lane.b32.xlu0 %v818, 125
      %v842 = vpop.permute.xlu0 %841
      %843 = vrot.lane.b32.xlu0 %v822, 125
      %v844 = vpop.permute.xlu0 %843
      %845 = vrot.lane.b32.xlu0 %v826, 125
      %v846 = vpop.permute.xlu0 %845
      %847 = vrot.lane.b32.xlu0 %v830, 125
      %v848 = vpop.permute.xlu0 %847
      %849 = vrot.lane.b32.xlu0 %v834, 125
      %v850 = vpop.permute.xlu0 %849
      %vm851 = vcmask 1022976
      %v852 = vsel %vm851, %v836, %v838
      %v853 = vsel %vm851, %v838, %v840
      %v854 = vsel %vm851, %v840, %v842
      %v855 = vsel %vm851, %v842, %v844
      %v856 = vsel %vm851, %v844, %v846
      %v857 = vsel %vm851, %v846, %v848
      %v858 = vsel %vm851, %v848, %v850
      %vm866 = vsmask.f32 7942
      %vm867 = vmand %vm728, %vm866
      %v868 = vld [vmem:[#allocation2] sm:$0x2]
      %v869 = vsel %vm867, %v852, %v868
      %870 = vst [vmem:[#allocation2] sm:$0x2] %v869
      %v871 = vld [vmem:[#allocation2 + $0x8] sm:$0x2]
      %v872 = vsel %vm867, %v853, %v871
      %873 = vst [vmem:[#allocation2 + $0x8] sm:$0x2] %v872
      %v874 = vld [vmem:[#allocation2 + $0x10] sm:$0x2]
      %v875 = vsel %vm867, %v854, %v874
      %876 = vst [vmem:[#allocation2 + $0x10] sm:$0x2] %v875
      %v877 = vld [vmem:[#allocation2 + $0x18] sm:$0x2]
      %v878 = vsel %vm867, %v855, %v877
      %879 = vst [vmem:[#allocation2 + $0x18] sm:$0x2] %v878
      %v880 = vld [vmem:[#allocation2 + $0x20] sm:$0x2]
      %v881 = vsel %vm867, %v856, %v880
      %882 = vst [vmem:[#allocation2 + $0x20] sm:$0x2] %v881
      %v883 = vld [vmem:[#allocation2 + $0x28] sm:$0x2]
      %v884 = vsel %vm867, %v857, %v883
      %885 = vst [vmem:[#allocation2 + $0x28] sm:$0x2] %v884
      %v886 = vld [vmem:[#allocation2 + $0x30] sm:$0x2]
      %v887 = vsel %vm867, %v858, %v886
      %888 = vst [vmem:[#allocation2 + $0x30] sm:$0x2] %v887
      %v889 = vld [vmem:[%s405] sm:$0xff]
      %v891 = vcombine.high %v889, %v889
      %v893 = vunpack.c.l.s4 1966171168
      %v894 = vunpack.c.0.s8 %v893
      %v895 = vlaneseq
      %v896 = vshrl.u32 %v895, 7
      %v897 = vsub.s32 %v894, %v896
      %v898 = vrot.slane %v889, %v897
      %v900 = vunpack.c.l.s4 1966171168
      %v901 = vunpack.c.0.s8 %v900
      %v902 = vlaneseq
      %v903 = vshrl.u32 %v902, 7
      %v904 = vsub.s32 %v901, %v903
      %v905 = vrot.slane %v891, %v904
      %v906 = vcombine.low %v898, %v898
      %v907 = vcombine.low %v905, %v905
      %v909 = vunpack.c.l.s4 1966171168
      %v910 = vunpack.c.0.s8 %v909
      %v911 = vlaneseq
      %v912 = vshrl.u32 %v911, 7
      %v913 = vsub.s32 %v910, %v912
      %v914 = vrot.slane %v906, %v913
      %v916 = vunpack.c.l.s4 1966171168
      %v917 = vunpack.c.0.s8 %v916
      %v918 = vlaneseq
      %v919 = vshrl.u32 %v918, 7
      %v920 = vsub.s32 %v917, %v919
      %v921 = vrot.slane %v907, %v920
      %v923 = vunpack.c.l.s4 1966171168
      %v924 = vunpack.c.0.s8 %v923
      %v925 = vlaneseq
      %v926 = vshrl.u32 %v925, 7
      %v927 = vsub.s32 %v924, %v926
      %v928 = vrot.slane %v898, %v927
      %v930 = vunpack.c.l.s4 1966171168
      %v931 = vunpack.c.0.s8 %v930
      %v932 = vlaneseq
      %v933 = vshrl.u32 %v932, 7
      %v934 = vsub.s32 %v931, %v933
      %v935 = vrot.slane %v905, %v934
      %v936 = vcombine.high %v914, %v914
      %v937 = vcombine.high %v921, %v921
      %v938 = vcombine.high %v928, %v928
      %v939 = vcombine.high %v935, %v935
      %940 = vrot.lane.b32.xlu0 %v914, 124
      %v941 = vpop.permute.xlu0 %940
      %942 = vrot.lane.b32.xlu0 %v928, 124
      %v943 = vpop.permute.xlu0 %942
      %944 = vrot.lane.b32.xlu0 %v936, 124
      %v945 = vpop.permute.xlu0 %944
      %946 = vrot.lane.b32.xlu0 %v938, 124
      %v947 = vpop.permute.xlu0 %946
      %948 = vrot.lane.b32.xlu0 %v921, 124
      %v949 = vpop.permute.xlu0 %948
      %950 = vrot.lane.b32.xlu0 %v935, 124
      %v951 = vpop.permute.xlu0 %950
      %952 = vrot.lane.b32.xlu0 %v937, 124
      %v953 = vpop.permute.xlu0 %952
      %954 = vrot.lane.b32.xlu0 %v939, 124
      %v955 = vpop.permute.xlu0 %954
      %vm956 = vcmask 1014784
      %v957 = vsel %vm956, %v941, %v943
      %v958 = vsel %vm956, %v943, %v945
      %v959 = vsel %vm956, %v945, %v947
      %v960 = vsel %vm956, %v947, %v949
      %v961 = vsel %vm956, %v949, %v951
      %v962 = vsel %vm956, %v951, %v953
      %v963 = vsel %vm956, %v953, %v955
      %vm971 = vcmask 1042434
      %vm972 = vsmask.f32 2304
      %vm973 = vmand %vm971, %vm972
      %v974 = vld [vmem:[#allocation2] sm:$0x4]
      %v975 = vsel %vm973, %v957, %v974
      %976 = vst [vmem:[#allocation2] sm:$0x4] %v975
      %v977 = vld [vmem:[#allocation2 + $0x8] sm:$0x4]
      %v978 = vsel %vm973, %v958, %v977
      %979 = vst [vmem:[#allocation2 + $0x8] sm:$0x4] %v978
      %v980 = vld [vmem:[#allocation2 + $0x10] sm:$0x4]
      %v981 = vsel %vm973, %v959, %v980
      %982 = vst [vmem:[#allocation2 + $0x10] sm:$0x4] %v981
      %v983 = vld [vmem:[#allocation2 + $0x18] sm:$0x4]
      %v984 = vsel %vm973, %v960, %v983
      %985 = vst [vmem:[#allocation2 + $0x18] sm:$0x4] %v984
      %v986 = vld [vmem:[#allocation2 + $0x20] sm:$0x4]
      %v987 = vsel %vm973, %v961, %v986
      %988 = vst [vmem:[#allocation2 + $0x20] sm:$0x4] %v987
      %v989 = vld [vmem:[#allocation2 + $0x28] sm:$0x4]
      %v990 = vsel %vm973, %v962, %v989
      %991 = vst [vmem:[#allocation2 + $0x28] sm:$0x4] %v990
      %v992 = vld [vmem:[#allocation2 + $0x30] sm:$0x4]
      %v993 = vsel %vm973, %v963, %v992
      %994 = vst [vmem:[#allocation2 + $0x30] sm:$0x4] %v993
      %v995 = vld [vmem:[%s405] sm:$0xff]
      %v997 = vcombine.high %v995, %v995
      %v999 = vunpack.c.l.s4 1966171168
      %v1000 = vunpack.c.0.s8 %v999
      %v1001 = vlaneseq
      %v1002 = vshrl.u32 %v1001, 7
      %v1003 = vsub.s32 %v1000, %v1002
      %v1004 = vrot.slane %v995, %v1003
      %v1006 = vunpack.c.l.s4 1966171168
      %v1007 = vunpack.c.0.s8 %v1006
      %v1008 = vlaneseq
      %v1009 = vshrl.u32 %v1008, 7
      %v1010 = vsub.s32 %v1007, %v1009
      %v1011 = vrot.slane %v997, %v1010
      %v1012 = vcombine.high %v1004, %v1004
      %v1013 = vcombine.high %v1011, %v1011
      %v1015 = vunpack.c.l.s4 1966171168
      %v1016 = vunpack.c.0.s8 %v1015
      %v1017 = vlaneseq
      %v1018 = vshrl.u32 %v1017, 7
      %v1019 = vsub.s32 %v1016, %v1018
      %v1020 = vrot.slane %v1004, %v1019
      %v1022 = vunpack.c.l.s4 1966171168
      %v1023 = vunpack.c.0.s8 %v1022
      %v1024 = vlaneseq
      %v1025 = vshrl.u32 %v1024, 7
      %v1026 = vsub.s32 %v1023, %v1025
      %v1027 = vrot.slane %v1011, %v1026
      %v1029 = vunpack.c.l.s4 1966171168
      %v1030 = vunpack.c.0.s8 %v1029
      %v1031 = vlaneseq
      %v1032 = vshrl.u32 %v1031, 7
      %v1033 = vsub.s32 %v1030, %v1032
      %v1034 = vrot.slane %v1012, %v1033
      %v1036 = vunpack.c.l.s4 1966171168
      %v1037 = vunpack.c.0.s8 %v1036
      %v1038 = vlaneseq
      %v1039 = vshrl.u32 %v1038, 7
      %v1040 = vsub.s32 %v1037, %v1039
      %v1041 = vrot.slane %v1013, %v1040
      %v1042 = vcombine.high %v1020, %v1020
      %v1043 = vcombine.high %v1027, %v1027
      %v1044 = vcombine.high %v1034, %v1034
      %v1045 = vcombine.high %v1041, %v1041
      %v1047 = vshll.u32 %v1020, 16
      %v1049 = vrot.slane %v1047, 6
      %v1051 = vshll.u32 %v1034, 16
      %v1053 = vrot.slane %v1051, 6
      %v1055 = vshll.u32 %v1042, 16
      %v1057 = vrot.slane %v1055, 6
      %v1059 = vshll.u32 %v1044, 16
      %v1061 = vrot.slane %v1059, 6
      %v1063 = vshll.u32 %v1027, 16
      %v1065 = vrot.slane %v1063, 6
      %v1067 = vshll.u32 %v1041, 16
      %v1069 = vrot.slane %v1067, 6
      %v1071 = vshll.u32 %v1043, 16
      %v1073 = vrot.slane %v1071, 6
      %v1075 = vshll.u32 %v1045, 16
      %v1077 = vrot.slane %v1075, 6
      %1078 = vrot.lane.b32.xlu0 %v1049, 96
      %v1079 = vpop.permute.xlu0 %1078
      %1080 = vrot.lane.b32.xlu0 %v1053, 96
      %v1081 = vpop.permute.xlu0 %1080
      %1082 = vrot.lane.b32.xlu0 %v1057, 96
      %v1083 = vpop.permute.xlu0 %1082
      %1084 = vrot.lane.b32.xlu0 %v1061, 96
      %v1085 = vpop.permute.xlu0 %1084
      %1086 = vrot.lane.b32.xlu0 %v1065, 96
      %v1087 = vpop.permute.xlu0 %1086
      %1088 = vrot.lane.b32.xlu0 %v1069, 96
      %v1089 = vpop.permute.xlu0 %1088
      %1090 = vrot.lane.b32.xlu0 %v1073, 96
      %v1091 = vpop.permute.xlu0 %1090
      %1092 = vrot.lane.b32.xlu0 %v1077, 96
      %v1093 = vpop.permute.xlu0 %1092
      %vm1094 = vcmask 785408
      %v1095 = vsel %vm1094, %v1079, %v1081
      %v1096 = vsel %vm1094, %v1081, %v1083
      %v1097 = vsel %vm1094, %v1083, %v1085
      %v1098 = vsel %vm1094, %v1085, %v1087
      %v1099 = vsel %vm1094, %v1087, %v1089
      %v1100 = vsel %vm1094, %v1089, %v1091
      %v1101 = vsel %vm1094, %v1091, %v1093
      %vm1109 = vsmask.f32 7946
      %vm1110 = vmand %vm971, %vm1109
      %v1111 = vld [vmem:[#allocation2] sm:$0x4]
      %v1112 = vsel %vm1110, %v1095, %v1111
      %1113 = vst [vmem:[#allocation2] sm:$0x4] %v1112
      %v1114 = vld [vmem:[#allocation2 + $0x8] sm:$0x4]
      %v1115 = vsel %vm1110, %v1096, %v1114
      %1116 = vst [vmem:[#allocation2 + $0x8] sm:$0x4] %v1115
      %v1117 = vld [vmem:[#allocation2 + $0x10] sm:$0x4]
      %v1118 = vsel %vm1110, %v1097, %v1117
      %1119 = vst [vmem:[#allocation2 + $0x10] sm:$0x4] %v1118
      %v1120 = vld [vmem:[#allocation2 + $0x18] sm:$0x4]
      %v1121 = vsel %vm1110, %v1098, %v1120
      %1122 = vst [vmem:[#allocation2 + $0x18] sm:$0x4] %v1121
      %v1123 = vld [vmem:[#allocation2 + $0x20] sm:$0x4]
      %v1124 = vsel %vm1110, %v1099, %v1123
      %1125 = vst [vmem:[#allocation2 + $0x20] sm:$0x4] %v1124
      %v1126 = vld [vmem:[#allocation2 + $0x28] sm:$0x4]
      %v1127 = vsel %vm1110, %v1100, %v1126
      %1128 = vst [vmem:[#allocation2 + $0x28] sm:$0x4] %v1127
      %v1129 = vld [vmem:[#allocation2 + $0x30] sm:$0x4]
      %v1130 = vsel %vm1110, %v1101, %v1129
      %1131 = vst [vmem:[#allocation2 + $0x30] sm:$0x4] %v1130
      %v1132 = vld [vmem:[%s405] sm:$0xff]
      %v1134 = vcombine.low %v1132, %v1132
      %v1136 = vunpack.c.l.s4 1966171168
      %v1137 = vunpack.c.0.s8 %v1136
      %v1138 = vlaneseq
      %v1139 = vshrl.u32 %v1138, 7
      %v1140 = vsub.s32 %v1137, %v1139
      %v1141 = vrot.slane %v1134, %v1140
      %v1143 = vunpack.c.l.s4 1966171168
      %v1144 = vunpack.c.0.s8 %v1143
      %v1145 = vlaneseq
      %v1146 = vshrl.u32 %v1145, 7
      %v1147 = vsub.s32 %v1144, %v1146
      %v1148 = vrot.slane %v1132, %v1147
      %v1149 = vcombine.low %v1141, %v1141
      %v1150 = vcombine.low %v1148, %v1148
      %v1152 = vunpack.c.l.s4 1966171168
      %v1153 = vunpack.c.0.s8 %v1152
      %v1154 = vlaneseq
      %v1155 = vshrl.u32 %v1154, 7
      %v1156 = vsub.s32 %v1153, %v1155
      %v1157 = vrot.slane %v1149, %v1156
      %v1159 = vunpack.c.l.s4 1966171168
      %v1160 = vunpack.c.0.s8 %v1159
      %v1161 = vlaneseq
      %v1162 = vshrl.u32 %v1161, 7
      %v1163 = vsub.s32 %v1160, %v1162
      %v1164 = vrot.slane %v1150, %v1163
      %v1166 = vunpack.c.l.s4 1966171168
      %v1167 = vunpack.c.0.s8 %v1166
      %v1168 = vlaneseq
      %v1169 = vshrl.u32 %v1168, 7
      %v1170 = vsub.s32 %v1167, %v1169
      %v1171 = vrot.slane %v1141, %v1170
      %v1173 = vunpack.c.l.s4 1966171168
      %v1174 = vunpack.c.0.s8 %v1173
      %v1175 = vlaneseq
      %v1176 = vshrl.u32 %v1175, 7
      %v1177 = vsub.s32 %v1174, %v1176
      %v1178 = vrot.slane %v1148, %v1177
      %v1179 = vcombine.high %v1157, %v1157
      %v1180 = vcombine.high %v1164, %v1164
      %v1181 = vcombine.high %v1171, %v1171
      %v1182 = vcombine.high %v1178, %v1178
      %1183 = vrot.lane.b32.xlu0 %v1157, 95
      %v1184 = vpop.permute.xlu0 %1183
      %1185 = vrot.lane.b32.xlu0 %v1171, 95
      %v1186 = vpop.permute.xlu0 %1185
      %1187 = vrot.lane.b32.xlu0 %v1179, 95
      %v1188 = vpop.permute.xlu0 %1187
      %1189 = vrot.lane.b32.xlu0 %v1181, 95
      %v1190 = vpop.permute.xlu0 %1189
      %1191 = vrot.lane.b32.xlu0 %v1164, 95
      %v1192 = vpop.permute.xlu0 %1191
      %1193 = vrot.lane.b32.xlu0 %v1178, 95
      %v1194 = vpop.permute.xlu0 %1193
      %1195 = vrot.lane.b32.xlu0 %v1180, 95
      %v1196 = vpop.permute.xlu0 %1195
      %1197 = vrot.lane.b32.xlu0 %v1182, 95
      %v1198 = vpop.permute.xlu0 %1197
      %vm1199 = vcmask 777216
      %v1200 = vsel %vm1199, %v1184, %v1186
      %v1201 = vsel %vm1199, %v1186, %v1188
      %v1202 = vsel %vm1199, %v1188, %v1190
      %v1203 = vsel %vm1199, %v1190, %v1192
      %v1204 = vsel %vm1199, %v1192, %v1194
      %v1205 = vsel %vm1199, %v1194, %v1196
      %v1206 = vsel %vm1199, %v1196, %v1198
      %vm1214 = vcmask 1043459
      %vm1215 = vsmask.f32 3328
      %vm1216 = vmand %vm1214, %vm1215
      %v1217 = vld [vmem:[#allocation2] sm:$0x8]
      %v1218 = vsel %vm1216, %v1200, %v1217
      %1219 = vst [vmem:[#allocation2] sm:$0x8] %v1218
      %v1220 = vld [vmem:[#allocation2 + $0x8] sm:$0x8]
      %v1221 = vsel %vm1216, %v1201, %v1220
      %1222 = vst [vmem:[#allocation2 + $0x8] sm:$0x8] %v1221
      %v1223 = vld [vmem:[#allocation2 + $0x10] sm:$0x8]
      %v1224 = vsel %vm1216, %v1202, %v1223
      %1225 = vst [vmem:[#allocation2 + $0x10] sm:$0x8] %v1224
      %v1226 = vld [vmem:[#allocation2 + $0x18] sm:$0x8]
      %v1227 = vsel %vm1216, %v1203, %v1226
      %1228 = vst [vmem:[#allocation2 + $0x18] sm:$0x8] %v1227
      %v1229 = vld [vmem:[#allocation2 + $0x20] sm:$0x8]
      %v1230 = vsel %vm1216, %v1204, %v1229
      %1231 = vst [vmem:[#allocation2 + $0x20] sm:$0x8] %v1230
      %v1232 = vld [vmem:[#allocation2 + $0x28] sm:$0x8]
      %v1233 = vsel %vm1216, %v1205, %v1232
      %1234 = vst [vmem:[#allocation2 + $0x28] sm:$0x8] %v1233
      %v1235 = vld [vmem:[#allocation2 + $0x30] sm:$0x8]
      %v1236 = vsel %vm1216, %v1206, %v1235
      %1237 = vst [vmem:[#allocation2 + $0x30] sm:$0x8] %v1236
      %v1238 = vld [vmem:[%s405] sm:$0xff]
      %v1240 = vcombine.high %v1238, %v1238
      %v1242 = vunpack.c.l.s4 1966171168
      %v1243 = vunpack.c.0.s8 %v1242
      %v1244 = vlaneseq
      %v1245 = vshrl.u32 %v1244, 7
      %v1246 = vsub.s32 %v1243, %v1245
      %v1247 = vrot.slane %v1238, %v1246
      %v1249 = vunpack.c.l.s4 1966171168
      %v1250 = vunpack.c.0.s8 %v1249
      %v1251 = vlaneseq
      %v1252 = vshrl.u32 %v1251, 7
      %v1253 = vsub.s32 %v1250, %v1252
      %v1254 = vrot.slane %v1240, %v1253
      %v1255 = vcombine.high %v1247, %v1247
      %v1256 = vcombine.high %v1254, %v1254
      %v1258 = vunpack.c.l.s4 1966171168
      %v1259 = vunpack.c.0.s8 %v1258
      %v1260 = vlaneseq
      %v1261 = vshrl.u32 %v1260, 7
      %v1262 = vsub.s32 %v1259, %v1261
      %v1263 = vrot.slane %v1247, %v1262
      %v1265 = vunpack.c.l.s4 1966171168
      %v1266 = vunpack.c.0.s8 %v1265
      %v1267 = vlaneseq
      %v1268 = vshrl.u32 %v1267, 7
      %v1269 = vsub.s32 %v1266, %v1268
      %v1270 = vrot.slane %v1254, %v1269
      %v1272 = vunpack.c.l.s4 1966171168
      %v1273 = vunpack.c.0.s8 %v1272
      %v1274 = vlaneseq
      %v1275 = vshrl.u32 %v1274, 7
      %v1276 = vsub.s32 %v1273, %v1275
      %v1277 = vrot.slane %v1255, %v1276
      %v1279 = vunpack.c.l.s4 1966171168
      %v1280 = vunpack.c.0.s8 %v1279
      %v1281 = vlaneseq
      %v1282 = vshrl.u32 %v1281, 7
      %v1283 = vsub.s32 %v1280, %v1282
      %v1284 = vrot.slane %v1256, %v1283
      %v1285 = vcombine.high %v1263, %v1263
      %v1286 = vcombine.high %v1270, %v1270
      %v1287 = vcombine.high %v1277, %v1277
      %v1288 = vcombine.high %v1284, %v1284
      %v1290 = vshll.u32 %v1263, 16
      %v1292 = vrot.slane %v1290, 5
      %v1294 = vshll.u32 %v1277, 16
      %v1296 = vrot.slane %v1294, 5
      %v1298 = vshll.u32 %v1285, 16
      %v1300 = vrot.slane %v1298, 5
      %v1302 = vshll.u32 %v1287, 16
      %v1304 = vrot.slane %v1302, 5
      %v1306 = vshll.u32 %v1270, 16
      %v1308 = vrot.slane %v1306, 5
      %v1310 = vshll.u32 %v1284, 16
      %v1312 = vrot.slane %v1310, 5
      %v1314 = vshll.u32 %v1286, 16
      %v1316 = vrot.slane %v1314, 5
      %v1318 = vshll.u32 %v1288, 16
      %v1320 = vrot.slane %v1318, 5
      %1321 = vrot.lane.b32.xlu0 %v1292, 94
      %v1322 = vpop.permute.xlu0 %1321
      %1323 = vrot.lane.b32.xlu0 %v1296, 94
      %v1324 = vpop.permute.xlu0 %1323
      %1325 = vrot.lane.b32.xlu0 %v1300, 94
      %v1326 = vpop.permute.xlu0 %1325
      %1327 = vrot.lane.b32.xlu0 %v1304, 94
      %v1328 = vpop.permute.xlu0 %1327
      %1329 = vrot.lane.b32.xlu0 %v1308, 94
      %v1330 = vpop.permute.xlu0 %1329
      %1331 = vrot.lane.b32.xlu0 %v1312, 94
      %v1332 = vpop.permute.xlu0 %1331
      %1333 = vrot.lane.b32.xlu0 %v1316, 94
      %v1334 = vpop.permute.xlu0 %1333
      %1335 = vrot.lane.b32.xlu0 %v1320, 94
      %v1336 = vpop.permute.xlu0 %1335
      %vm1337 = vcmask 769024
      %v1338 = vsel %vm1337, %v1322, %v1324
      %v1339 = vsel %vm1337, %v1324, %v1326
      %v1340 = vsel %vm1337, %v1326, %v1328
      %v1341 = vsel %vm1337, %v1328, %v1330
      %v1342 = vsel %vm1337, %v1330, %v1332
      %v1343 = vsel %vm1337, %v1332, %v1334
      %v1344 = vsel %vm1337, %v1334, %v1336
      %vm1352 = vsmask.f32 7950
      %vm1353 = vmand %vm1214, %vm1352
      %v1354 = vld [vmem:[#allocation2] sm:$0x8]
      %v1355 = vsel %vm1353, %v1338, %v1354
      %1356 = vst [vmem:[#allocation2] sm:$0x8] %v1355
      %v1357 = vld [vmem:[#allocation2 + $0x8] sm:$0x8]
      %v1358 = vsel %vm1353, %v1339, %v1357
      %1359 = vst [vmem:[#allocation2 + $0x8] sm:$0x8] %v1358
      %v1360 = vld [vmem:[#allocation2 + $0x10] sm:$0x8]
      %v1361 = vsel %vm1353, %v1340, %v1360
      %1362 = vst [vmem:[#allocation2 + $0x10] sm:$0x8] %v1361
      %v1363 = vld [vmem:[#allocation2 + $0x18] sm:$0x8]
      %v1364 = vsel %vm1353, %v1341, %v1363
      %1365 = vst [vmem:[#allocation2 + $0x18] sm:$0x8] %v1364
      %v1366 = vld [vmem:[#allocation2 + $0x20] sm:$0x8]
      %v1367 = vsel %vm1353, %v1342, %v1366
      %1368 = vst [vmem:[#allocation2 + $0x20] sm:$0x8] %v1367
      %v1369 = vld [vmem:[#allocation2 + $0x28] sm:$0x8]
      %v1370 = vsel %vm1353, %v1343, %v1369
      %1371 = vst [vmem:[#allocation2 + $0x28] sm:$0x8] %v1370
      %v1372 = vld [vmem:[#allocation2 + $0x30] sm:$0x8]
      %v1373 = vsel %vm1353, %v1344, %v1372
      %1374 = vst [vmem:[#allocation2 + $0x30] sm:$0x8] %v1373
      %v1375 = vld [vmem:[%s405] sm:$0xff]
      %v1377 = vcombine.high %v1375, %v1375
      %v1379 = vunpack.c.l.s4 1966171168
      %v1380 = vunpack.c.0.s8 %v1379
      %v1381 = vlaneseq
      %v1382 = vshrl.u32 %v1381, 7
      %v1383 = vsub.s32 %v1380, %v1382
      %v1384 = vrot.slane %v1375, %v1383
      %v1386 = vunpack.c.l.s4 1966171168
      %v1387 = vunpack.c.0.s8 %v1386
      %v1388 = vlaneseq
      %v1389 = vshrl.u32 %v1388, 7
      %v1390 = vsub.s32 %v1387, %v1389
      %v1391 = vrot.slane %v1377, %v1390
      %v1392 = vcombine.high %v1384, %v1384
      %v1393 = vcombine.high %v1391, %v1391
      %v1395 = vunpack.c.l.s4 1966171168
      %v1396 = vunpack.c.0.s8 %v1395
      %v1397 = vlaneseq
      %v1398 = vshrl.u32 %v1397, 7
      %v1399 = vsub.s32 %v1396, %v1398
      %v1400 = vrot.slane %v1384, %v1399
      %v1402 = vunpack.c.l.s4 1966171168
      %v1403 = vunpack.c.0.s8 %v1402
      %v1404 = vlaneseq
      %v1405 = vshrl.u32 %v1404, 7
      %v1406 = vsub.s32 %v1403, %v1405
      %v1407 = vrot.slane %v1391, %v1406
      %v1409 = vunpack.c.l.s4 1966171168
      %v1410 = vunpack.c.0.s8 %v1409
      %v1411 = vlaneseq
      %v1412 = vshrl.u32 %v1411, 7
      %v1413 = vsub.s32 %v1410, %v1412
      %v1414 = vrot.slane %v1392, %v1413
      %v1416 = vunpack.c.l.s4 1966171168
      %v1417 = vunpack.c.0.s8 %v1416
      %v1418 = vlaneseq
      %v1419 = vshrl.u32 %v1418, 7
      %v1420 = vsub.s32 %v1417, %v1419
      %v1421 = vrot.slane %v1393, %v1420
      %v1422 = vcombine.low %v1400, %v1400
      %v1423 = vcombine.low %v1407, %v1407
      %v1424 = vcombine.low %v1414, %v1414
      %v1425 = vcombine.low %v1421, %v1421
      %1426 = vrot.lane.b32.xlu0 %v1422, 93
      %v1427 = vpop.permute.xlu0 %1426
      %1428 = vrot.lane.b32.xlu0 %v1424, 93
      %v1429 = vpop.permute.xlu0 %1428
      %1430 = vrot.lane.b32.xlu0 %v1400, 93
      %v1431 = vpop.permute.xlu0 %1430
      %1432 = vrot.lane.b32.xlu0 %v1414, 93
      %v1433 = vpop.permute.xlu0 %1432
      %1434 = vrot.lane.b32.xlu0 %v1423, 93
      %v1435 = vpop.permute.xlu0 %1434
      %1436 = vrot.lane.b32.xlu0 %v1425, 93
      %v1437 = vpop.permute.xlu0 %1436
      %1438 = vrot.lane.b32.xlu0 %v1407, 93
      %v1439 = vpop.permute.xlu0 %1438
      %1440 = vrot.lane.b32.xlu0 %v1421, 93
      %v1441 = vpop.permute.xlu0 %1440
      %vm1442 = vcmask 760832
      %v1443 = vsel %vm1442, %v1427, %v1429
      %v1444 = vsel %vm1442, %v1429, %v1431
      %v1445 = vsel %vm1442, %v1431, %v1433
      %v1446 = vsel %vm1442, %v1433, %v1435
      %v1447 = vsel %vm1442, %v1435, %v1437
      %v1448 = vsel %vm1442, %v1437, %v1439
      %v1449 = vsel %vm1442, %v1439, %v1441
      %vm1457 = vcmask 1044484
      %vm1458 = vsmask.f32 4352
      %vm1459 = vmand %vm1457, %vm1458
      %v1460 = vld [vmem:[#allocation2] sm:$0x10]
      %v1461 = vsel %vm1459, %v1443, %v1460
      %1462 = vst [vmem:[#allocation2] sm:$0x10] %v1461
      %v1463 = vld [vmem:[#allocation2 + $0x8] sm:$0x10]
      %v1464 = vsel %vm1459, %v1444, %v1463
      %1465 = vst [vmem:[#allocation2 + $0x8] sm:$0x10] %v1464
      %v1466 = vld [vmem:[#allocation2 + $0x10] sm:$0x10]
      %v1467 = vsel %vm1459, %v1445, %v1466
      %1468 = vst [vmem:[#allocation2 + $0x10] sm:$0x10] %v1467
      %v1469 = vld [vmem:[#allocation2 + $0x18] sm:$0x10]
      %v1470 = vsel %vm1459, %v1446, %v1469
      %1471 = vst [vmem:[#allocation2 + $0x18] sm:$0x10] %v1470
      %v1472 = vld [vmem:[#allocation2 + $0x20] sm:$0x10]
      %v1473 = vsel %vm1459, %v1447, %v1472
      %1474 = vst [vmem:[#allocation2 + $0x20] sm:$0x10] %v1473
      %v1475 = vld [vmem:[#allocation2 + $0x28] sm:$0x10]
      %v1476 = vsel %vm1459, %v1448, %v1475
      %1477 = vst [vmem:[#allocation2 + $0x28] sm:$0x10] %v1476
      %v1478 = vld [vmem:[#allocation2 + $0x30] sm:$0x10]
      %v1479 = vsel %vm1459, %v1449, %v1478
      %1480 = vst [vmem:[#allocation2 + $0x30] sm:$0x10] %v1479
      %v1481 = vld [vmem:[%s405] sm:$0xff]
      %v1483 = vcombine.high %v1481, %v1481
      %v1485 = vunpack.c.l.s4 1966171168
      %v1486 = vunpack.c.0.s8 %v1485
      %v1487 = vlaneseq
      %v1488 = vshrl.u32 %v1487, 7
      %v1489 = vsub.s32 %v1486, %v1488
      %v1490 = vrot.slane %v1481, %v1489
      %v1492 = vunpack.c.l.s4 1966171168
      %v1493 = vunpack.c.0.s8 %v1492
      %v1494 = vlaneseq
      %v1495 = vshrl.u32 %v1494, 7
      %v1496 = vsub.s32 %v1493, %v1495
      %v1497 = vrot.slane %v1483, %v1496
      %v1498 = vcombine.high %v1490, %v1490
      %v1499 = vcombine.high %v1497, %v1497
      %v1501 = vunpack.c.l.s4 1966171168
      %v1502 = vunpack.c.0.s8 %v1501
      %v1503 = vlaneseq
      %v1504 = vshrl.u32 %v1503, 7
      %v1505 = vsub.s32 %v1502, %v1504
      %v1506 = vrot.slane %v1490, %v1505
      %v1508 = vunpack.c.l.s4 1966171168
      %v1509 = vunpack.c.0.s8 %v1508
      %v1510 = vlaneseq
      %v1511 = vshrl.u32 %v1510, 7
      %v1512 = vsub.s32 %v1509, %v1511
      %v1513 = vrot.slane %v1497, %v1512
      %v1515 = vunpack.c.l.s4 1966171168
      %v1516 = vunpack.c.0.s8 %v1515
      %v1517 = vlaneseq
      %v1518 = vshrl.u32 %v1517, 7
      %v1519 = vsub.s32 %v1516, %v1518
      %v1520 = vrot.slane %v1498, %v1519
      %v1522 = vunpack.c.l.s4 1966171168
      %v1523 = vunpack.c.0.s8 %v1522
      %v1524 = vlaneseq
      %v1525 = vshrl.u32 %v1524, 7
      %v1526 = vsub.s32 %v1523, %v1525
      %v1527 = vrot.slane %v1499, %v1526
      %v1528 = vcombine.high %v1506, %v1506
      %v1529 = vcombine.high %v1513, %v1513
      %v1530 = vcombine.high %v1520, %v1520
      %v1531 = vcombine.high %v1527, %v1527
      %v1533 = vshll.u32 %v1506, 16
      %v1535 = vrot.slane %v1533, 4
      %v1537 = vshll.u32 %v1520, 16
      %v1539 = vrot.slane %v1537, 4
      %v1541 = vshll.u32 %v1528, 16
      %v1543 = vrot.slane %v1541, 4
      %v1545 = vshll.u32 %v1530, 16
      %v1547 = vrot.slane %v1545, 4
      %v1549 = vshll.u32 %v1513, 16
      %v1551 = vrot.slane %v1549, 4
      %v1553 = vshll.u32 %v1527, 16
      %v1555 = vrot.slane %v1553, 4
      %v1557 = vshll.u32 %v1529, 16
      %v1559 = vrot.slane %v1557, 4
      %v1561 = vshll.u32 %v1531, 16
      %v1563 = vrot.slane %v1561, 4
      %1564 = vrot.lane.b32.xlu0 %v1535, 92
      %v1565 = vpop.permute.xlu0 %1564
      %1566 = vrot.lane.b32.xlu0 %v1539, 92
      %v1567 = vpop.permute.xlu0 %1566
      %1568 = vrot.lane.b32.xlu0 %v1543, 92
      %v1569 = vpop.permute.xlu0 %1568
      %1570 = vrot.lane.b32.xlu0 %v1547, 92
      %v1571 = vpop.permute.xlu0 %1570
      %1572 = vrot.lane.b32.xlu0 %v1551, 92
      %v1573 = vpop.permute.xlu0 %1572
      %1574 = vrot.lane.b32.xlu0 %v1555, 92
      %v1575 = vpop.permute.xlu0 %1574
      %1576 = vrot.lane.b32.xlu0 %v1559, 92
      %v1577 = vpop.permute.xlu0 %1576
      %1578 = vrot.lane.b32.xlu0 %v1563, 92
      %v1579 = vpop.permute.xlu0 %1578
      %vm1580 = vcmask 752640
      %v1581 = vsel %vm1580, %v1565, %v1567
      %v1582 = vsel %vm1580, %v1567, %v1569
      %v1583 = vsel %vm1580, %v1569, %v1571
      %v1584 = vsel %vm1580, %v1571, %v1573
      %v1585 = vsel %vm1580, %v1573, %v1575
      %v1586 = vsel %vm1580, %v1575, %v1577
      %v1587 = vsel %vm1580, %v1577, %v1579
      %vm1595 = vmand %vm1457, %vm413
      %v1596 = vld [vmem:[#allocation2] sm:$0x10]
      %v1597 = vsel %vm1595, %v1581, %v1596
      %1598 = vst [vmem:[#allocation2] sm:$0x10] %v1597
      %v1599 = vld [vmem:[#allocation2 + $0x8] sm:$0x10]
      %v1600 = vsel %vm1595, %v1582, %v1599
      %1601 = vst [vmem:[#allocation2 + $0x8] sm:$0x10] %v1600
      %v1602 = vld [vmem:[#allocation2 + $0x10] sm:$0x10]
      %v1603 = vsel %vm1595, %v1583, %v1602
      %1604 = vst [vmem:[#allocation2 + $0x10] sm:$0x10] %v1603
      %v1605 = vld [vmem:[#allocation2 + $0x18] sm:$0x10]
      %v1606 = vsel %vm1595, %v1584, %v1605
      %1607 = vst [vmem:[#allocation2 + $0x18] sm:$0x10] %v1606
      %v1608 = vld [vmem:[#allocation2 + $0x20] sm:$0x10]
      %v1609 = vsel %vm1595, %v1585, %v1608
      %1610 = vst [vmem:[#allocation2 + $0x20] sm:$0x10] %v1609
      %v1611 = vld [vmem:[#allocation2 + $0x28] sm:$0x10]
      %v1612 = vsel %vm1595, %v1586, %v1611
      %1613 = vst [vmem:[#allocation2 + $0x28] sm:$0x10] %v1612
      %v1614 = vld [vmem:[#allocation2 + $0x30] sm:$0x10]
      %v1615 = vsel %vm1595, %v1587, %v1614
      %1616 = vst [vmem:[#allocation2 + $0x30] sm:$0x10] %v1615
      %v1617 = vld [vmem:[%s405] sm:$0xff]
      %v1619 = vcombine.low %v1617, %v1617
      %v1621 = vunpack.c.l.s4 1966171168
      %v1622 = vunpack.c.0.s8 %v1621
      %v1623 = vlaneseq
      %v1624 = vshrl.u32 %v1623, 7
      %v1625 = vsub.s32 %v1622, %v1624
      %v1626 = vrot.slane %v1619, %v1625
      %v1628 = vunpack.c.l.s4 1966171168
      %v1629 = vunpack.c.0.s8 %v1628
      %v1630 = vlaneseq
      %v1631 = vshrl.u32 %v1630, 7
      %v1632 = vsub.s32 %v1629, %v1631
      %v1633 = vrot.slane %v1617, %v1632
      %v1634 = vcombine.high %v1626, %v1626
      %v1635 = vcombine.high %v1633, %v1633
      %v1637 = vunpack.c.l.s4 1966171168
      %v1638 = vunpack.c.0.s8 %v1637
      %v1639 = vlaneseq
      %v1640 = vshrl.u32 %v1639, 7
      %v1641 = vsub.s32 %v1638, %v1640
      %v1642 = vrot.slane %v1626, %v1641
      %v1644 = vunpack.c.l.s4 1966171168
      %v1645 = vunpack.c.0.s8 %v1644
      %v1646 = vlaneseq
      %v1647 = vshrl.u32 %v1646, 7
      %v1648 = vsub.s32 %v1645, %v1647
      %v1649 = vrot.slane %v1633, %v1648
      %v1651 = vunpack.c.l.s4 1966171168
      %v1652 = vunpack.c.0.s8 %v1651
      %v1653 = vlaneseq
      %v1654 = vshrl.u32 %v1653, 7
      %v1655 = vsub.s32 %v1652, %v1654
      %v1656 = vrot.slane %v1634, %v1655
      %v1658 = vunpack.c.l.s4 1966171168
      %v1659 = vunpack.c.0.s8 %v1658
      %v1660 = vlaneseq
      %v1661 = vshrl.u32 %v1660, 7
      %v1662 = vsub.s32 %v1659, %v1661
      %v1663 = vrot.slane %v1635, %v1662
      %v1664 = vcombine.low %v1642, %v1642
      %v1665 = vcombine.low %v1649, %v1649
      %v1666 = vcombine.low %v1656, %v1656
      %v1667 = vcombine.low %v1663, %v1663
      %1668 = vrot.lane.b32.xlu0 %v1664, 64
      %v1669 = vpop.permute.xlu0 %1668
      %1670 = vrot.lane.b32.xlu0 %v1666, 64
      %v1671 = vpop.permute.xlu0 %1670
      %1672 = vrot.lane.b32.xlu0 %v1642, 64
      %v1673 = vpop.permute.xlu0 %1672
      %1674 = vrot.lane.b32.xlu0 %v1656, 64
      %v1675 = vpop.permute.xlu0 %1674
      %1676 = vrot.lane.b32.xlu0 %v1665, 64
      %v1677 = vpop.permute.xlu0 %1676
      %1678 = vrot.lane.b32.xlu0 %v1667, 64
      %v1679 = vpop.permute.xlu0 %1678
      %1680 = vrot.lane.b32.xlu0 %v1649, 64
      %v1681 = vpop.permute.xlu0 %1680
      %1682 = vrot.lane.b32.xlu0 %v1663, 64
      %v1683 = vpop.permute.xlu0 %1682
      %vm1684 = vcmask 523264
      %v1685 = vsel %vm1684, %v1669, %v1671
      %v1686 = vsel %vm1684, %v1671, %v1673
      %v1687 = vsel %vm1684, %v1673, %v1675
      %v1688 = vsel %vm1684, %v1675, %v1677
      %v1689 = vsel %vm1684, %v1677, %v1679
      %v1690 = vsel %vm1684, %v1679, %v1681
      %v1691 = vsel %vm1684, %v1681, %v1683
      %vm1699 = vcmask 1045509
      %vm1700 = vsmask.f32 5376
      %vm1701 = vmand %vm1699, %vm1700
      %v1702 = vld [vmem:[#allocation2] sm:$0x20]
      %v1703 = vsel %vm1701, %v1685, %v1702
      %1704 = vst [vmem:[#allocation2] sm:$0x20] %v1703
      %v1705 = vld [vmem:[#allocation2 + $0x8] sm:$0x20]
      %v1706 = vsel %vm1701, %v1686, %v1705
      %1707 = vst [vmem:[#allocation2 + $0x8] sm:$0x20] %v1706
      %v1708 = vld [vmem:[#allocation2 + $0x10] sm:$0x20]
      %v1709 = vsel %vm1701, %v1687, %v1708
      %1710 = vst [vmem:[#allocation2 + $0x10] sm:$0x20] %v1709
      %v1711 = vld [vmem:[#allocation2 + $0x18] sm:$0x20]
      %v1712 = vsel %vm1701, %v1688, %v1711
      %1713 = vst [vmem:[#allocation2 + $0x18] sm:$0x20] %v1712
      %v1714 = vld [vmem:[#allocation2 + $0x20] sm:$0x20]
      %v1715 = vsel %vm1701, %v1689, %v1714
      %1716 = vst [vmem:[#allocation2 + $0x20] sm:$0x20] %v1715
      %v1717 = vld [vmem:[#allocation2 + $0x28] sm:$0x20]
      %v1718 = vsel %vm1701, %v1690, %v1717
      %1719 = vst [vmem:[#allocation2 + $0x28] sm:$0x20] %v1718
      %v1720 = vld [vmem:[#allocation2 + $0x30] sm:$0x20]
      %v1721 = vsel %vm1701, %v1691, %v1720
      %1722 = vst [vmem:[#allocation2 + $0x30] sm:$0x20] %v1721
      %v1723 = vld [vmem:[%s405] sm:$0xff]
      %v1725 = vcombine.high %v1723, %v1723
      %v1727 = vunpack.c.l.s4 1966171168
      %v1728 = vunpack.c.0.s8 %v1727
      %v1729 = vlaneseq
      %v1730 = vshrl.u32 %v1729, 7
      %v1731 = vsub.s32 %v1728, %v1730
      %v1732 = vrot.slane %v1723, %v1731
      %v1734 = vunpack.c.l.s4 1966171168
      %v1735 = vunpack.c.0.s8 %v1734
      %v1736 = vlaneseq
      %v1737 = vshrl.u32 %v1736, 7
      %v1738 = vsub.s32 %v1735, %v1737
      %v1739 = vrot.slane %v1725, %v1738
      %v1740 = vcombine.high %v1732, %v1732
      %v1741 = vcombine.high %v1739, %v1739
      %v1743 = vunpack.c.l.s4 1966171168
      %v1744 = vunpack.c.0.s8 %v1743
      %v1745 = vlaneseq
      %v1746 = vshrl.u32 %v1745, 7
      %v1747 = vsub.s32 %v1744, %v1746
      %v1748 = vrot.slane %v1732, %v1747
      %v1750 = vunpack.c.l.s4 1966171168
      %v1751 = vunpack.c.0.s8 %v1750
      %v1752 = vlaneseq
      %v1753 = vshrl.u32 %v1752, 7
      %v1754 = vsub.s32 %v1751, %v1753
      %v1755 = vrot.slane %v1739, %v1754
      %v1757 = vunpack.c.l.s4 1966171168
      %v1758 = vunpack.c.0.s8 %v1757
      %v1759 = vlaneseq
      %v1760 = vshrl.u32 %v1759, 7
      %v1761 = vsub.s32 %v1758, %v1760
      %v1762 = vrot.slane %v1740, %v1761
      %v1764 = vunpack.c.l.s4 1966171168
      %v1765 = vunpack.c.0.s8 %v1764
      %v1766 = vlaneseq
      %v1767 = vshrl.u32 %v1766, 7
      %v1768 = vsub.s32 %v1765, %v1767
      %v1769 = vrot.slane %v1741, %v1768
      %v1770 = vcombine.high %v1748, %v1748
      %v1771 = vcombine.high %v1755, %v1755
      %v1772 = vcombine.high %v1762, %v1762
      %v1773 = vcombine.high %v1769, %v1769
      %v1775 = vshll.u32 %v1748, 16
      %v1777 = vrot.slane %v1775, 3
      %v1779 = vshll.u32 %v1762, 16
      %v1781 = vrot.slane %v1779, 3
      %v1783 = vshll.u32 %v1770, 16
      %v1785 = vrot.slane %v1783, 3
      %v1787 = vshll.u32 %v1772, 16
      %v1789 = vrot.slane %v1787, 3
      %v1791 = vshll.u32 %v1755, 16
      %v1793 = vrot.slane %v1791, 3
      %v1795 = vshll.u32 %v1769, 16
      %v1797 = vrot.slane %v1795, 3
      %v1799 = vshll.u32 %v1771, 16
      %v1801 = vrot.slane %v1799, 3
      %v1803 = vshll.u32 %v1773, 16
      %v1805 = vrot.slane %v1803, 3
      %1806 = vrot.lane.b32.xlu0 %v1777, 63
      %v1807 = vpop.permute.xlu0 %1806
      %1808 = vrot.lane.b32.xlu0 %v1781, 63
      %v1809 = vpop.permute.xlu0 %1808
      %1810 = vrot.lane.b32.xlu0 %v1785, 63
      %v1811 = vpop.permute.xlu0 %1810
      %1812 = vrot.lane.b32.xlu0 %v1789, 63
      %v1813 = vpop.permute.xlu0 %1812
      %1814 = vrot.lane.b32.xlu0 %v1793, 63
      %v1815 = vpop.permute.xlu0 %1814
      %1816 = vrot.lane.b32.xlu0 %v1797, 63
      %v1817 = vpop.permute.xlu0 %1816
      %1818 = vrot.lane.b32.xlu0 %v1801, 63
      %v1819 = vpop.permute.xlu0 %1818
      %1820 = vrot.lane.b32.xlu0 %v1805, 63
      %v1821 = vpop.permute.xlu0 %1820
      %vm1822 = vcmask 515072
      %v1823 = vsel %vm1822, %v1807, %v1809
      %v1824 = vsel %vm1822, %v1809, %v1811
      %v1825 = vsel %vm1822, %v1811, %v1813
      %v1826 = vsel %vm1822, %v1813, %v1815
      %v1827 = vsel %vm1822, %v1815, %v1817
      %v1828 = vsel %vm1822, %v1817, %v1819
      %v1829 = vsel %vm1822, %v1819, %v1821
      %vm1837 = vsmask.f32 7958
      %vm1838 = vmand %vm1699, %vm1837
      %v1839 = vld [vmem:[#allocation2] sm:$0x20]
      %v1840 = vsel %vm1838, %v1823, %v1839
      %1841 = vst [vmem:[#allocation2] sm:$0x20] %v1840
      %v1842 = vld [vmem:[#allocation2 + $0x8] sm:$0x20]
      %v1843 = vsel %vm1838, %v1824, %v1842
      %1844 = vst [vmem:[#allocation2 + $0x8] sm:$0x20] %v1843
      %v1845 = vld [vmem:[#allocation2 + $0x10] sm:$0x20]
      %v1846 = vsel %vm1838, %v1825, %v1845
      %1847 = vst [vmem:[#allocation2 + $0x10] sm:$0x20] %v1846
      %v1848 = vld [vmem:[#allocation2 + $0x18] sm:$0x20]
      %v1849 = vsel %vm1838, %v1826, %v1848
      %1850 = vst [vmem:[#allocation2 + $0x18] sm:$0x20] %v1849
      %v1851 = vld [vmem:[#allocation2 + $0x20] sm:$0x20]
      %v1852 = vsel %vm1838, %v1827, %v1851
      %1853 = vst [vmem:[#allocation2 + $0x20] sm:$0x20] %v1852
      %v1854 = vld [vmem:[#allocation2 + $0x28] sm:$0x20]
      %v1855 = vsel %vm1838, %v1828, %v1854
      %1856 = vst [vmem:[#allocation2 + $0x28] sm:$0x20] %v1855
      %v1857 = vld [vmem:[#allocation2 + $0x30] sm:$0x20]
      %v1858 = vsel %vm1838, %v1829, %v1857
      %1859 = vst [vmem:[#allocation2 + $0x30] sm:$0x20] %v1858
      %v1860 = vld [vmem:[%s405] sm:$0xff]
      %v1862 = vcombine.high %v1860, %v1860
      %v1864 = vunpack.c.l.s4 1966171168
      %v1865 = vunpack.c.0.s8 %v1864
      %v1866 = vlaneseq
      %v1867 = vshrl.u32 %v1866, 7
      %v1868 = vsub.s32 %v1865, %v1867
      %v1869 = vrot.slane %v1860, %v1868
      %v1871 = vunpack.c.l.s4 1966171168
      %v1872 = vunpack.c.0.s8 %v1871
      %v1873 = vlaneseq
      %v1874 = vshrl.u32 %v1873, 7
      %v1875 = vsub.s32 %v1872, %v1874
      %v1876 = vrot.slane %v1862, %v1875
      %v1877 = vcombine.low %v1869, %v1869
      %v1878 = vcombine.low %v1876, %v1876
      %v1880 = vunpack.c.l.s4 1966171168
      %v1881 = vunpack.c.0.s8 %v1880
      %v1882 = vlaneseq
      %v1883 = vshrl.u32 %v1882, 7
      %v1884 = vsub.s32 %v1881, %v1883
      %v1885 = vrot.slane %v1877, %v1884
      %v1887 = vunpack.c.l.s4 1966171168
      %v1888 = vunpack.c.0.s8 %v1887
      %v1889 = vlaneseq
      %v1890 = vshrl.u32 %v1889, 7
      %v1891 = vsub.s32 %v1888, %v1890
      %v1892 = vrot.slane %v1878, %v1891
      %v1894 = vunpack.c.l.s4 1966171168
      %v1895 = vunpack.c.0.s8 %v1894
      %v1896 = vlaneseq
      %v1897 = vshrl.u32 %v1896, 7
      %v1898 = vsub.s32 %v1895, %v1897
      %v1899 = vrot.slane %v1869, %v1898
      %v1901 = vunpack.c.l.s4 1966171168
      %v1902 = vunpack.c.0.s8 %v1901
      %v1903 = vlaneseq
      %v1904 = vshrl.u32 %v1903, 7
      %v1905 = vsub.s32 %v1902, %v1904
      %v1906 = vrot.slane %v1876, %v1905
      %v1907 = vcombine.low %v1885, %v1885
      %v1908 = vcombine.low %v1892, %v1892
      %v1909 = vcombine.low %v1899, %v1899
      %v1910 = vcombine.low %v1906, %v1906
      %1911 = vrot.lane.b32.xlu0 %v1907, 62
      %v1912 = vpop.permute.xlu0 %1911
      %1913 = vrot.lane.b32.xlu0 %v1909, 62
      %v1914 = vpop.permute.xlu0 %1913
      %1915 = vrot.lane.b32.xlu0 %v1885, 62
      %v1916 = vpop.permute.xlu0 %1915
      %1917 = vrot.lane.b32.xlu0 %v1899, 62
      %v1918 = vpop.permute.xlu0 %1917
      %1919 = vrot.lane.b32.xlu0 %v1908, 62
      %v1920 = vpop.permute.xlu0 %1919
      %1921 = vrot.lane.b32.xlu0 %v1910, 62
      %v1922 = vpop.permute.xlu0 %1921
      %1923 = vrot.lane.b32.xlu0 %v1892, 62
      %v1924 = vpop.permute.xlu0 %1923
      %1925 = vrot.lane.b32.xlu0 %v1906, 62
      %v1926 = vpop.permute.xlu0 %1925
      %vm1927 = vcmask 506880
      %v1928 = vsel %vm1927, %v1912, %v1914
      %v1929 = vsel %vm1927, %v1914, %v1916
      %v1930 = vsel %vm1927, %v1916, %v1918
      %v1931 = vsel %vm1927, %v1918, %v1920
      %v1932 = vsel %vm1927, %v1920, %v1922
      %v1933 = vsel %vm1927, %v1922, %v1924
      %v1934 = vsel %vm1927, %v1924, %v1926
      %vm1942 = vcmask 1046534
      %vm1943 = vsmask.f32 6400
      %vm1944 = vmand %vm1942, %vm1943
      %v1945 = vld [vmem:[#allocation2] sm:$0x40]
      %v1946 = vsel %vm1944, %v1928, %v1945
      %1947 = vst [vmem:[#allocation2] sm:$0x40] %v1946
      %v1948 = vld [vmem:[#allocation2 + $0x8] sm:$0x40]
      %v1949 = vsel %vm1944, %v1929, %v1948
      %1950 = vst [vmem:[#allocation2 + $0x8] sm:$0x40] %v1949
      %v1951 = vld [vmem:[#allocation2 + $0x10] sm:$0x40]
      %v1952 = vsel %vm1944, %v1930, %v1951
      %1953 = vst [vmem:[#allocation2 + $0x10] sm:$0x40] %v1952
      %v1954 = vld [vmem:[#allocation2 + $0x18] sm:$0x40]
      %v1955 = vsel %vm1944, %v1931, %v1954
      %1956 = vst [vmem:[#allocation2 + $0x18] sm:$0x40] %v1955
      %v1957 = vld [vmem:[#allocation2 + $0x20] sm:$0x40]
      %v1958 = vsel %vm1944, %v1932, %v1957
      %1959 = vst [vmem:[#allocation2 + $0x20] sm:$0x40] %v1958
      %v1960 = vld [vmem:[#allocation2 + $0x28] sm:$0x40]
      %v1961 = vsel %vm1944, %v1933, %v1960
      %1962 = vst [vmem:[#allocation2 + $0x28] sm:$0x40] %v1961
      %v1963 = vld [vmem:[#allocation2 + $0x30] sm:$0x40]
      %v1964 = vsel %vm1944, %v1934, %v1963
      %1965 = vst [vmem:[#allocation2 + $0x30] sm:$0x40] %v1964
      %v1966 = vld [vmem:[%s405] sm:$0xff]
      %v1968 = vcombine.high %v1966, %v1966
      %v1970 = vunpack.c.l.s4 1966171168
      %v1971 = vunpack.c.0.s8 %v1970
      %v1972 = vlaneseq
      %v1973 = vshrl.u32 %v1972, 7
      %v1974 = vsub.s32 %v1971, %v1973
      %v1975 = vrot.slane %v1966, %v1974
      %v1977 = vunpack.c.l.s4 1966171168
      %v1978 = vunpack.c.0.s8 %v1977
      %v1979 = vlaneseq
      %v1980 = vshrl.u32 %v1979, 7
      %v1981 = vsub.s32 %v1978, %v1980
      %v1982 = vrot.slane %v1968, %v1981
      %v1983 = vcombine.high %v1975, %v1975
      %v1984 = vcombine.high %v1982, %v1982
      %v1986 = vunpack.c.l.s4 1966171168
      %v1987 = vunpack.c.0.s8 %v1986
      %v1988 = vlaneseq
      %v1989 = vshrl.u32 %v1988, 7
      %v1990 = vsub.s32 %v1987, %v1989
      %v1991 = vrot.slane %v1975, %v1990
      %v1993 = vunpack.c.l.s4 1966171168
      %v1994 = vunpack.c.0.s8 %v1993
      %v1995 = vlaneseq
      %v1996 = vshrl.u32 %v1995, 7
      %v1997 = vsub.s32 %v1994, %v1996
      %v1998 = vrot.slane %v1982, %v1997
      %v2000 = vunpack.c.l.s4 1966171168
      %v2001 = vunpack.c.0.s8 %v2000
      %v2002 = vlaneseq
      %v2003 = vshrl.u32 %v2002, 7
      %v2004 = vsub.s32 %v2001, %v2003
      %v2005 = vrot.slane %v1983, %v2004
      %v2007 = vunpack.c.l.s4 1966171168
      %v2008 = vunpack.c.0.s8 %v2007
      %v2009 = vlaneseq
      %v2010 = vshrl.u32 %v2009, 7
      %v2011 = vsub.s32 %v2008, %v2010
      %v2012 = vrot.slane %v1984, %v2011
      %v2013 = vcombine.high %v1991, %v1991
      %v2014 = vcombine.high %v1998, %v1998
      %v2015 = vcombine.high %v2005, %v2005
      %v2016 = vcombine.high %v2012, %v2012
      %v2018 = vshll.u32 %v1991, 16
      %v2020 = vrot.slane %v2018, 2
      %v2022 = vshll.u32 %v2005, 16
      %v2024 = vrot.slane %v2022, 2
      %v2026 = vshll.u32 %v2013, 16
      %v2028 = vrot.slane %v2026, 2
      %v2030 = vshll.u32 %v2015, 16
      %v2032 = vrot.slane %v2030, 2
      %v2034 = vshll.u32 %v1998, 16
      %v2036 = vrot.slane %v2034, 2
      %v2038 = vshll.u32 %v2012, 16
      %v2040 = vrot.slane %v2038, 2
      %v2042 = vshll.u32 %v2014, 16
      %v2044 = vrot.slane %v2042, 2
      %v2046 = vshll.u32 %v2016, 16
      %v2048 = vrot.slane %v2046, 2
      %2049 = vrot.lane.b32.xlu0 %v2020, 61
      %v2050 = vpop.permute.xlu0 %2049
      %2051 = vrot.lane.b32.xlu0 %v2024, 61
      %v2052 = vpop.permute.xlu0 %2051
      %2053 = vrot.lane.b32.xlu0 %v2028, 61
      %v2054 = vpop.permute.xlu0 %2053
      %2055 = vrot.lane.b32.xlu0 %v2032, 61
      %v2056 = vpop.permute.xlu0 %2055
      %2057 = vrot.lane.b32.xlu0 %v2036, 61
      %v2058 = vpop.permute.xlu0 %2057
      %2059 = vrot.lane.b32.xlu0 %v2040, 61
      %v2060 = vpop.permute.xlu0 %2059
      %2061 = vrot.lane.b32.xlu0 %v2044, 61
      %v2062 = vpop.permute.xlu0 %2061
      %2063 = vrot.lane.b32.xlu0 %v2048, 61
      %v2064 = vpop.permute.xlu0 %2063
      %vm2065 = vcmask 498688
      %v2066 = vsel %vm2065, %v2050, %v2052
      %v2067 = vsel %vm2065, %v2052, %v2054
      %v2068 = vsel %vm2065, %v2054, %v2056
      %v2069 = vsel %vm2065, %v2056, %v2058
      %v2070 = vsel %vm2065, %v2058, %v2060
      %v2071 = vsel %vm2065, %v2060, %v2062
      %v2072 = vsel %vm2065, %v2062, %v2064
      %vm2080 = vsmask.f32 7962
      %vm2081 = vmand %vm1942, %vm2080
      %v2082 = vld [vmem:[#allocation2] sm:$0x40]
      %v2083 = vsel %vm2081, %v2066, %v2082
      %2084 = vst [vmem:[#allocation2] sm:$0x40] %v2083
      %v2085 = vld [vmem:[#allocation2 + $0x8] sm:$0x40]
      %v2086 = vsel %vm2081, %v2067, %v2085
      %2087 = vst [vmem:[#allocation2 + $0x8] sm:$0x40] %v2086
      %v2088 = vld [vmem:[#allocation2 + $0x10] sm:$0x40]
      %v2089 = vsel %vm2081, %v2068, %v2088
      %2090 = vst [vmem:[#allocation2 + $0x10] sm:$0x40] %v2089
      %v2091 = vld [vmem:[#allocation2 + $0x18] sm:$0x40]
      %v2092 = vsel %vm2081, %v2069, %v2091
      %2093 = vst [vmem:[#allocation2 + $0x18] sm:$0x40] %v2092
      %v2094 = vld [vmem:[#allocation2 + $0x20] sm:$0x40]
      %v2095 = vsel %vm2081, %v2070, %v2094
      %2096 = vst [vmem:[#allocation2 + $0x20] sm:$0x40] %v2095
      %v2097 = vld [vmem:[#allocation2 + $0x28] sm:$0x40]
      %v2098 = vsel %vm2081, %v2071, %v2097
      %2099 = vst [vmem:[#allocation2 + $0x28] sm:$0x40] %v2098
      %v2100 = vld [vmem:[#allocation2 + $0x30] sm:$0x40]
      %v2101 = vsel %vm2081, %v2072, %v2100
      %2102 = vst [vmem:[#allocation2 + $0x30] sm:$0x40] %v2101
      %v2103 = vld [vmem:[%s405] sm:$0xff]
      %v2105 = vcombine.low %v2103, %v2103
      %v2107 = vunpack.c.l.s4 1966171168
      %v2108 = vunpack.c.0.s8 %v2107
      %v2109 = vlaneseq
      %v2110 = vshrl.u32 %v2109, 7
      %v2111 = vsub.s32 %v2108, %v2110
      %v2112 = vrot.slane %v2105, %v2111
      %v2114 = vunpack.c.l.s4 1966171168
      %v2115 = vunpack.c.0.s8 %v2114
      %v2116 = vlaneseq
      %v2117 = vshrl.u32 %v2116, 7
      %v2118 = vsub.s32 %v2115, %v2117
      %v2119 = vrot.slane %v2103, %v2118
      %v2120 = vcombine.low %v2112, %v2112
      %v2121 = vcombine.low %v2119, %v2119
      %v2123 = vunpack.c.l.s4 1966171168
      %v2124 = vunpack.c.0.s8 %v2123
      %v2125 = vlaneseq
      %v2126 = vshrl.u32 %v2125, 7
      %v2127 = vsub.s32 %v2124, %v2126
      %v2128 = vrot.slane %v2120, %v2127
      %v2130 = vunpack.c.l.s4 1966171168
      %v2131 = vunpack.c.0.s8 %v2130
      %v2132 = vlaneseq
      %v2133 = vshrl.u32 %v2132, 7
      %v2134 = vsub.s32 %v2131, %v2133
      %v2135 = vrot.slane %v2121, %v2134
      %v2137 = vunpack.c.l.s4 1966171168
      %v2138 = vunpack.c.0.s8 %v2137
      %v2139 = vlaneseq
      %v2140 = vshrl.u32 %v2139, 7
      %v2141 = vsub.s32 %v2138, %v2140
      %v2142 = vrot.slane %v2112, %v2141
      %v2144 = vunpack.c.l.s4 1966171168
      %v2145 = vunpack.c.0.s8 %v2144
      %v2146 = vlaneseq
      %v2147 = vshrl.u32 %v2146, 7
      %v2148 = vsub.s32 %v2145, %v2147
      %v2149 = vrot.slane %v2119, %v2148
      %v2150 = vcombine.low %v2128, %v2128
      %v2151 = vcombine.low %v2135, %v2135
      %v2152 = vcombine.low %v2142, %v2142
      %v2153 = vcombine.low %v2149, %v2149
      %2154 = vrot.lane.b32.xlu0 %v2150, 60
      %v2155 = vpop.permute.xlu0 %2154
      %2156 = vrot.lane.b32.xlu0 %v2152, 60
      %v2157 = vpop.permute.xlu0 %2156
      %2158 = vrot.lane.b32.xlu0 %v2128, 60
      %v2159 = vpop.permute.xlu0 %2158
      %2160 = vrot.lane.b32.xlu0 %v2142, 60
      %v2161 = vpop.permute.xlu0 %2160
      %2162 = vrot.lane.b32.xlu0 %v2151, 60
      %v2163 = vpop.permute.xlu0 %2162
      %2164 = vrot.lane.b32.xlu0 %v2153, 60
      %v2165 = vpop.permute.xlu0 %2164
      %2166 = vrot.lane.b32.xlu0 %v2135, 60
      %v2167 = vpop.permute.xlu0 %2166
      %2168 = vrot.lane.b32.xlu0 %v2149, 60
      %v2169 = vpop.permute.xlu0 %2168
      %vm2170 = vcmask 490496
      %v2171 = vsel %vm2170, %v2155, %v2157
      %v2172 = vsel %vm2170, %v2157, %v2159
      %v2173 = vsel %vm2170, %v2159, %v2161
      %v2174 = vsel %vm2170, %v2161, %v2163
      %v2175 = vsel %vm2170, %v2163, %v2165
      %v2176 = vsel %vm2170, %v2165, %v2167
      %v2177 = vsel %vm2170, %v2167, %v2169
      %vm2185 = vcmask 1047559
      %vm2186 = vsmask.f32 7424
      %vm2187 = vmand %vm2185, %vm2186
      %v2188 = vld [vmem:[#allocation2] sm:$0x80]
      %v2189 = vsel %vm2187, %v2171, %v2188
      %2190 = vst [vmem:[#allocation2] sm:$0x80] %v2189
      %v2191 = vld [vmem:[#allocation2 + $0x8] sm:$0x80]
      %v2192 = vsel %vm2187, %v2172, %v2191
      %2193 = vst [vmem:[#allocation2 + $0x8] sm:$0x80] %v2192
      %v2194 = vld [vmem:[#allocation2 + $0x10] sm:$0x80]
      %v2195 = vsel %vm2187, %v2173, %v2194
      %2196 = vst [vmem:[#allocation2 + $0x10] sm:$0x80] %v2195
      %v2197 = vld [vmem:[#allocation2 + $0x18] sm:$0x80]
      %v2198 = vsel %vm2187, %v2174, %v2197
      %2199 = vst [vmem:[#allocation2 + $0x18] sm:$0x80] %v2198
      %v2200 = vld [vmem:[#allocation2 + $0x20] sm:$0x80]
      %v2201 = vsel %vm2187, %v2175, %v2200
      %2202 = vst [vmem:[#allocation2 + $0x20] sm:$0x80] %v2201
      %v2203 = vld [vmem:[#allocation2 + $0x28] sm:$0x80]
      %v2204 = vsel %vm2187, %v2176, %v2203
      %2205 = vst [vmem:[#allocation2 + $0x28] sm:$0x80] %v2204
      %v2206 = vld [vmem:[#allocation2 + $0x30] sm:$0x80]
      %v2207 = vsel %vm2187, %v2177, %v2206
      %2208 = vst [vmem:[#allocation2 + $0x30] sm:$0x80] %v2207
      %v2209 = vld [vmem:[%s405] sm:$0xff]
      %v2211 = vcombine.high %v2209, %v2209
      %v2213 = vunpack.c.l.s4 1966171168
      %v2214 = vunpack.c.0.s8 %v2213
      %v2215 = vlaneseq
      %v2216 = vshrl.u32 %v2215, 7
      %v2217 = vsub.s32 %v2214, %v2216
      %v2218 = vrot.slane %v2209, %v2217
      %v2220 = vunpack.c.l.s4 1966171168
      %v2221 = vunpack.c.0.s8 %v2220
      %v2222 = vlaneseq
      %v2223 = vshrl.u32 %v2222, 7
      %v2224 = vsub.s32 %v2221, %v2223
      %v2225 = vrot.slane %v2211, %v2224
      %v2226 = vcombine.high %v2218, %v2218
      %v2227 = vcombine.high %v2225, %v2225
      %v2229 = vunpack.c.l.s4 1966171168
      %v2230 = vunpack.c.0.s8 %v2229
      %v2231 = vlaneseq
      %v2232 = vshrl.u32 %v2231, 7
      %v2233 = vsub.s32 %v2230, %v2232
      %v2234 = vrot.slane %v2218, %v2233
      %v2236 = vunpack.c.l.s4 1966171168
      %v2237 = vunpack.c.0.s8 %v2236
      %v2238 = vlaneseq
      %v2239 = vshrl.u32 %v2238, 7
      %v2240 = vsub.s32 %v2237, %v2239
      %v2241 = vrot.slane %v2225, %v2240
      %v2243 = vunpack.c.l.s4 1966171168
      %v2244 = vunpack.c.0.s8 %v2243
      %v2245 = vlaneseq
      %v2246 = vshrl.u32 %v2245, 7
      %v2247 = vsub.s32 %v2244, %v2246
      %v2248 = vrot.slane %v2226, %v2247
      %v2250 = vunpack.c.l.s4 1966171168
      %v2251 = vunpack.c.0.s8 %v2250
      %v2252 = vlaneseq
      %v2253 = vshrl.u32 %v2252, 7
      %v2254 = vsub.s32 %v2251, %v2253
      %v2255 = vrot.slane %v2227, %v2254
      %v2256 = vcombine.high %v2234, %v2234
      %v2257 = vcombine.high %v2241, %v2241
      %v2258 = vcombine.high %v2248, %v2248
      %v2259 = vcombine.high %v2255, %v2255
      %v2261 = vshll.u32 %v2234, 16
      %v2263 = vrot.slane %v2261, 1
      %v2265 = vshll.u32 %v2248, 16
      %v2267 = vrot.slane %v2265, 1
      %v2269 = vshll.u32 %v2256, 16
      %v2271 = vrot.slane %v2269, 1
      %v2273 = vshll.u32 %v2258, 16
      %v2275 = vrot.slane %v2273, 1
      %v2277 = vshll.u32 %v2241, 16
      %v2279 = vrot.slane %v2277, 1
      %v2281 = vshll.u32 %v2255, 16
      %v2283 = vrot.slane %v2281, 1
      %v2285 = vshll.u32 %v2257, 16
      %v2287 = vrot.slane %v2285, 1
      %v2289 = vshll.u32 %v2259, 16
      %v2291 = vrot.slane %v2289, 1
      %2292 = vrot.lane.b32.xlu0 %v2263, 32
      %v2293 = vpop.permute.xlu0 %2292
      %2294 = vrot.lane.b32.xlu0 %v2267, 32
      %v2295 = vpop.permute.xlu0 %2294
      %2296 = vrot.lane.b32.xlu0 %v2271, 32
      %v2297 = vpop.permute.xlu0 %2296
      %2298 = vrot.lane.b32.xlu0 %v2275, 32
      %v2299 = vpop.permute.xlu0 %2298
      %2300 = vrot.lane.b32.xlu0 %v2279, 32
      %v2301 = vpop.permute.xlu0 %2300
      %2302 = vrot.lane.b32.xlu0 %v2283, 32
      %v2303 = vpop.permute.xlu0 %2302
      %2304 = vrot.lane.b32.xlu0 %v2287, 32
      %v2305 = vpop.permute.xlu0 %2304
      %2306 = vrot.lane.b32.xlu0 %v2291, 32
      %v2307 = vpop.permute.xlu0 %2306
      %vm2308 = vcmask 261120
      %v2309 = vsel %vm2308, %v2293, %v2295
      %v2310 = vsel %vm2308, %v2295, %v2297
      %v2311 = vsel %vm2308, %v2297, %v2299
      %v2312 = vsel %vm2308, %v2299, %v2301
      %v2313 = vsel %vm2308, %v2301, %v2303
      %v2314 = vsel %vm2308, %v2303, %v2305
      %v2315 = vsel %vm2308, %v2305, %v2307
      %vm2323 = vsmask.f32 7966
      %vm2324 = vmand %vm2185, %vm2323
      %v2325 = vld [vmem:[#allocation2] sm:$0x80]
      %v2326 = vsel %vm2324, %v2309, %v2325
      %2327 = vst [vmem:[#allocation2] sm:$0x80] %v2326
      %v2328 = vld [vmem:[#allocation2 + $0x8] sm:$0x80]
      %v2329 = vsel %vm2324, %v2310, %v2328
      %2330 = vst [vmem:[#allocation2 + $0x8] sm:$0x80] %v2329
      %v2331 = vld [vmem:[#allocation2 + $0x10] sm:$0x80]
      %v2332 = vsel %vm2324, %v2311, %v2331
      %2333 = vst [vmem:[#allocation2 + $0x10] sm:$0x80] %v2332
      %v2334 = vld [vmem:[#allocation2 + $0x18] sm:$0x80]
      %v2335 = vsel %vm2324, %v2312, %v2334
      %2336 = vst [vmem:[#allocation2 + $0x18] sm:$0x80] %v2335
      %v2337 = vld [vmem:[#allocation2 + $0x20] sm:$0x80]
      %v2338 = vsel %vm2324, %v2313, %v2337
      %2339 = vst [vmem:[#allocation2 + $0x20] sm:$0x80] %v2338
      %v2340 = vld [vmem:[#allocation2 + $0x28] sm:$0x80]
      %v2341 = vsel %vm2324, %v2314, %v2340
      %2342 = vst [vmem:[#allocation2 + $0x28] sm:$0x80] %v2341
      %v2343 = vld [vmem:[#allocation2 + $0x30] sm:$0x80]
      %v2344 = vsel %vm2324, %v2315, %v2343
      %2345 = vst [vmem:[#allocation2 + $0x30] sm:$0x80] %v2344
      %v2346 = vld [vmem:[%s405] sm:$0xff]
      %v2348 = vcombine.high %v2346, %v2346
      %v2350 = vunpack.c.l.s4 1966171168
      %v2351 = vunpack.c.0.s8 %v2350
      %v2352 = vlaneseq
      %v2353 = vshrl.u32 %v2352, 7
      %v2354 = vsub.s32 %v2351, %v2353
      %v2355 = vrot.slane %v2346, %v2354
      %v2357 = vunpack.c.l.s4 1966171168
      %v2358 = vunpack.c.0.s8 %v2357
      %v2359 = vlaneseq
      %v2360 = vshrl.u32 %v2359, 7
      %v2361 = vsub.s32 %v2358, %v2360
      %v2362 = vrot.slane %v2348, %v2361
      %v2363 = vcombine.high %v2355, %v2355
      %v2364 = vcombine.high %v2362, %v2362
      %v2366 = vunpack.c.l.s4 1966171168
      %v2367 = vunpack.c.0.s8 %v2366
      %v2368 = vlaneseq
      %v2369 = vshrl.u32 %v2368, 7
      %v2370 = vsub.s32 %v2367, %v2369
      %v2371 = vrot.slane %v2355, %v2370
      %v2373 = vunpack.c.l.s4 1966171168
      %v2374 = vunpack.c.0.s8 %v2373
      %v2375 = vlaneseq
      %v2376 = vshrl.u32 %v2375, 7
      %v2377 = vsub.s32 %v2374, %v2376
      %v2378 = vrot.slane %v2362, %v2377
      %v2380 = vunpack.c.l.s4 1966171168
      %v2381 = vunpack.c.0.s8 %v2380
      %v2382 = vlaneseq
      %v2383 = vshrl.u32 %v2382, 7
      %v2384 = vsub.s32 %v2381, %v2383
      %v2385 = vrot.slane %v2363, %v2384
      %v2387 = vunpack.c.l.s4 1966171168
      %v2388 = vunpack.c.0.s8 %v2387
      %v2389 = vlaneseq
      %v2390 = vshrl.u32 %v2389, 7
      %v2391 = vsub.s32 %v2388, %v2390
      %v2392 = vrot.slane %v2364, %v2391
      %v2393 = vcombine.high %v2371, %v2371
      %v2394 = vcombine.high %v2378, %v2378
      %v2395 = vcombine.high %v2385, %v2385
      %v2396 = vcombine.high %v2392, %v2392
      %2397 = vrot.lane.b32.xlu0 %v2371, 31
      %v2398 = vpop.permute.xlu0 %2397
      %2399 = vrot.lane.b32.xlu0 %v2385, 31
      %v2400 = vpop.permute.xlu0 %2399
      %2401 = vrot.lane.b32.xlu0 %v2393, 31
      %v2402 = vpop.permute.xlu0 %2401
      %2403 = vrot.lane.b32.xlu0 %v2395, 31
      %v2404 = vpop.permute.xlu0 %2403
      %2405 = vrot.lane.b32.xlu0 %v2378, 31
      %v2406 = vpop.permute.xlu0 %2405
      %2407 = vrot.lane.b32.xlu0 %v2392, 31
      %v2408 = vpop.permute.xlu0 %2407
      %2409 = vrot.lane.b32.xlu0 %v2394, 31
      %v2410 = vpop.permute.xlu0 %2409
      %2411 = vrot.lane.b32.xlu0 %v2396, 31
      %v2412 = vpop.permute.xlu0 %2411
      %vm2413 = vcmask 252928
      %v2414 = vsel %vm2413, %v2398, %v2400
      %v2415 = vsel %vm2413, %v2400, %v2402
      %v2416 = vsel %vm2413, %v2402, %v2404
      %v2417 = vsel %vm2413, %v2404, %v2406
      %v2418 = vsel %vm2413, %v2406, %v2408
      %v2419 = vsel %vm2413, %v2408, %v2410
      %v2420 = vsel %vm2413, %v2410, %v2412
      %v2428 = vld [vmem:[#allocation2 + $0x38] sm:$0x1]
      %v2429 = vsel %vm495, %v2414, %v2428
      %2430 = vst [vmem:[#allocation2 + $0x38] sm:$0x1] %v2429
      %v2431 = vld [vmem:[#allocation2 + $0x40] sm:$0x1]
      %v2432 = vsel %vm495, %v2415, %v2431
      %2433 = vst [vmem:[#allocation2 + $0x40] sm:$0x1] %v2432
      %v2434 = vld [vmem:[#allocation2 + $0x48] sm:$0x1]
      %v2435 = vsel %vm495, %v2416, %v2434
      %2436 = vst [vmem:[#allocation2 + $0x48] sm:$0x1] %v2435
      %v2437 = vld [vmem:[#allocation2 + $0x50] sm:$0x1]
      %v2438 = vsel %vm495, %v2417, %v2437
      %2439 = vst [vmem:[#allocation2 + $0x50] sm:$0x1] %v2438
      %v2440 = vld [vmem:[#allocation2 + $0x58] sm:$0x1]
      %v2441 = vsel %vm495, %v2418, %v2440
      %2442 = vst [vmem:[#allocation2 + $0x58] sm:$0x1] %v2441
      %v2443 = vld [vmem:[#allocation2 + $0x60] sm:$0x1]
      %v2444 = vsel %vm495, %v2419, %v2443
      %2445 = vst [vmem:[#allocation2 + $0x60] sm:$0x1] %v2444
      %v2446 = vld [vmem:[#allocation2 + $0x68] sm:$0x1]
      %v2447 = vsel %vm495, %v2420, %v2446
      %2448 = vst [vmem:[#allocation2 + $0x68] sm:$0x1] %v2447
      %v2449 = vld [vmem:[%s405] sm:$0xff]
      %v2451 = vcombine.high %v2449, %v2449
      %v2453 = vunpack.c.l.s4 1966171168
      %v2454 = vunpack.c.0.s8 %v2453
      %v2455 = vlaneseq
      %v2456 = vshrl.u32 %v2455, 7
      %v2457 = vsub.s32 %v2454, %v2456
      %v2458 = vrot.slane %v2449, %v2457
      %v2460 = vunpack.c.l.s4 1966171168
      %v2461 = vunpack.c.0.s8 %v2460
      %v2462 = vlaneseq
      %v2463 = vshrl.u32 %v2462, 7
      %v2464 = vsub.s32 %v2461, %v2463
      %v2465 = vrot.slane %v2451, %v2464
      %v2466 = vcombine.high %v2458, %v2458
      %v2467 = vcombine.high %v2465, %v2465
      %v2469 = vunpack.c.l.s4 1966171168
      %v2470 = vunpack.c.0.s8 %v2469
      %v2471 = vlaneseq
      %v2472 = vshrl.u32 %v2471, 7
      %v2473 = vsub.s32 %v2470, %v2472
      %v2474 = vrot.slane %v2458, %v2473
      %v2476 = vunpack.c.l.s4 1966171168
      %v2477 = vunpack.c.0.s8 %v2476
      %v2478 = vlaneseq
      %v2479 = vshrl.u32 %v2478, 7
      %v2480 = vsub.s32 %v2477, %v2479
      %v2481 = vrot.slane %v2465, %v2480
      %v2483 = vunpack.c.l.s4 1966171168
      %v2484 = vunpack.c.0.s8 %v2483
      %v2485 = vlaneseq
      %v2486 = vshrl.u32 %v2485, 7
      %v2487 = vsub.s32 %v2484, %v2486
      %v2488 = vrot.slane %v2466, %v2487
      %v2490 = vunpack.c.l.s4 1966171168
      %v2491 = vunpack.c.0.s8 %v2490
      %v2492 = vlaneseq
      %v2493 = vshrl.u32 %v2492, 7
      %v2494 = vsub.s32 %v2491, %v2493
      %v2495 = vrot.slane %v2467, %v2494
      %v2496 = vcombine.high %v2474, %v2474
      %v2497 = vcombine.high %v2481, %v2481
      %v2498 = vcombine.high %v2488, %v2488
      %v2499 = vcombine.high %v2495, %v2495
      %v2501 = vshll.u32 %v2474, 16
      %v2504 = vshll.u32 %v2488, 16
      %v2507 = vshll.u32 %v2496, 16
      %v2510 = vshll.u32 %v2498, 16
      %v2513 = vshll.u32 %v2481, 16
      %v2516 = vshll.u32 %v2495, 16
      %v2519 = vshll.u32 %v2497, 16
      %v2522 = vshll.u32 %v2499, 16
      %2524 = vrot.lane.b32.xlu0 %v2501, 30
      %v2525 = vpop.permute.xlu0 %2524
      %2526 = vrot.lane.b32.xlu0 %v2504, 30
      %v2527 = vpop.permute.xlu0 %2526
      %2528 = vrot.lane.b32.xlu0 %v2507, 30
      %v2529 = vpop.permute.xlu0 %2528
      %2530 = vrot.lane.b32.xlu0 %v2510, 30
      %v2531 = vpop.permute.xlu0 %2530
      %2532 = vrot.lane.b32.xlu0 %v2513, 30
      %v2533 = vpop.permute.xlu0 %2532
      %2534 = vrot.lane.b32.xlu0 %v2516, 30
      %v2535 = vpop.permute.xlu0 %2534
      %2536 = vrot.lane.b32.xlu0 %v2519, 30
      %v2537 = vpop.permute.xlu0 %2536
      %2538 = vrot.lane.b32.xlu0 %v2522, 30
      %v2539 = vpop.permute.xlu0 %2538
      %vm2540 = vcmask 244736
      %v2541 = vsel %vm2540, %v2525, %v2527
      %v2542 = vsel %vm2540, %v2527, %v2529
      %v2543 = vsel %vm2540, %v2529, %v2531
      %v2544 = vsel %vm2540, %v2531, %v2533
      %v2545 = vsel %vm2540, %v2533, %v2535
      %v2546 = vsel %vm2540, %v2535, %v2537
      %v2547 = vsel %vm2540, %v2537, %v2539
      %v2555 = vld [vmem:[#allocation2 + $0x38] sm:$0x1]
      %v2556 = vsel %vm624, %v2541, %v2555
      %2557 = vst [vmem:[#allocation2 + $0x38] sm:$0x1] %v2556
      %v2558 = vld [vmem:[#allocation2 + $0x40] sm:$0x1]
      %v2559 = vsel %vm624, %v2542, %v2558
      %2560 = vst [vmem:[#allocation2 + $0x40] sm:$0x1] %v2559
      %v2561 = vld [vmem:[#allocation2 + $0x48] sm:$0x1]
      %v2562 = vsel %vm624, %v2543, %v2561
      %2563 = vst [vmem:[#allocation2 + $0x48] sm:$0x1] %v2562
      %v2564 = vld [vmem:[#allocation2 + $0x50] sm:$0x1]
      %v2565 = vsel %vm624, %v2544, %v2564
      %2566 = vst [vmem:[#allocation2 + $0x50] sm:$0x1] %v2565
      %v2567 = vld [vmem:[#allocation2 + $0x58] sm:$0x1]
      %v2568 = vsel %vm624, %v2545, %v2567
      %2569 = vst [vmem:[#allocation2 + $0x58] sm:$0x1] %v2568
      %v2570 = vld [vmem:[#allocation2 + $0x60] sm:$0x1]
      %v2571 = vsel %vm624, %v2546, %v2570
      %2572 = vst [vmem:[#allocation2 + $0x60] sm:$0x1] %v2571
      %v2573 = vld [vmem:[#allocation2 + $0x68] sm:$0x1]
      %v2574 = vsel %vm624, %v2547, %v2573
      %2575 = vst [vmem:[#allocation2 + $0x68] sm:$0x1] %v2574
      %v2576 = vld [vmem:[%s405] sm:$0xff]
      %v2578 = vcombine.low %v2576, %v2576
      %v2580 = vunpack.c.l.s4 1966171168
      %v2581 = vunpack.c.0.s8 %v2580
      %v2582 = vlaneseq
      %v2583 = vshrl.u32 %v2582, 7
      %v2584 = vsub.s32 %v2581, %v2583
      %v2585 = vrot.slane %v2578, %v2584
      %v2587 = vunpack.c.l.s4 1966171168
      %v2588 = vunpack.c.0.s8 %v2587
      %v2589 = vlaneseq
      %v2590 = vshrl.u32 %v2589, 7
      %v2591 = vsub.s32 %v2588, %v2590
      %v2592 = vrot.slane %v2576, %v2591
      %v2593 = vcombine.high %v2585, %v2585
      %v2594 = vcombine.high %v2592, %v2592
      %v2596 = vunpack.c.l.s4 1966171168
      %v2597 = vunpack.c.0.s8 %v2596
      %v2598 = vlaneseq
      %v2599 = vshrl.u32 %v2598, 7
      %v2600 = vsub.s32 %v2597, %v2599
      %v2601 = vrot.slane %v2585, %v2600
      %v2603 = vunpack.c.l.s4 1966171168
      %v2604 = vunpack.c.0.s8 %v2603
      %v2605 = vlaneseq
      %v2606 = vshrl.u32 %v2605, 7
      %v2607 = vsub.s32 %v2604, %v2606
      %v2608 = vrot.slane %v2592, %v2607
      %v2610 = vunpack.c.l.s4 1966171168
      %v2611 = vunpack.c.0.s8 %v2610
      %v2612 = vlaneseq
      %v2613 = vshrl.u32 %v2612, 7
      %v2614 = vsub.s32 %v2611, %v2613
      %v2615 = vrot.slane %v2593, %v2614
      %v2617 = vunpack.c.l.s4 1966171168
      %v2618 = vunpack.c.0.s8 %v2617
      %v2619 = vlaneseq
      %v2620 = vshrl.u32 %v2619, 7
      %v2621 = vsub.s32 %v2618, %v2620
      %v2622 = vrot.slane %v2594, %v2621
      %v2623 = vcombine.high %v2601, %v2601
      %v2624 = vcombine.high %v2608, %v2608
      %v2625 = vcombine.high %v2615, %v2615
      %v2626 = vcombine.high %v2622, %v2622
      %2627 = vrot.lane.b32.xlu0 %v2601, 29
      %v2628 = vpop.permute.xlu0 %2627
      %2629 = vrot.lane.b32.xlu0 %v2615, 29
      %v2630 = vpop.permute.xlu0 %2629
      %2631 = vrot.lane.b32.xlu0 %v2623, 29
      %v2632 = vpop.permute.xlu0 %2631
      %2633 = vrot.lane.b32.xlu0 %v2625, 29
      %v2634 = vpop.permute.xlu0 %2633
      %2635 = vrot.lane.b32.xlu0 %v2608, 29
      %v2636 = vpop.permute.xlu0 %2635
      %2637 = vrot.lane.b32.xlu0 %v2622, 29
      %v2638 = vpop.permute.xlu0 %2637
      %2639 = vrot.lane.b32.xlu0 %v2624, 29
      %v2640 = vpop.permute.xlu0 %2639
      %2641 = vrot.lane.b32.xlu0 %v2626, 29
      %v2642 = vpop.permute.xlu0 %2641
      %vm2643 = vcmask 236544
      %v2644 = vsel %vm2643, %v2628, %v2630
      %v2645 = vsel %vm2643, %v2630, %v2632
      %v2646 = vsel %vm2643, %v2632, %v2634
      %v2647 = vsel %vm2643, %v2634, %v2636
      %v2648 = vsel %vm2643, %v2636, %v2638
      %v2649 = vsel %vm2643, %v2638, %v2640
      %v2650 = vsel %vm2643, %v2640, %v2642
      %v2658 = vld [vmem:[#allocation2 + $0x38] sm:$0x2]
      %v2659 = vsel %vm730, %v2644, %v2658
      %2660 = vst [vmem:[#allocation2 + $0x38] sm:$0x2] %v2659
      %v2661 = vld [vmem:[#allocation2 + $0x40] sm:$0x2]
      %v2662 = vsel %vm730, %v2645, %v2661
      %2663 = vst [vmem:[#allocation2 + $0x40] sm:$0x2] %v2662
      %v2664 = vld [vmem:[#allocation2 + $0x48] sm:$0x2]
      %v2665 = vsel %vm730, %v2646, %v2664
      %2666 = vst [vmem:[#allocation2 + $0x48] sm:$0x2] %v2665
      %v2667 = vld [vmem:[#allocation2 + $0x50] sm:$0x2]
      %v2668 = vsel %vm730, %v2647, %v2667
      %2669 = vst [vmem:[#allocation2 + $0x50] sm:$0x2] %v2668
      %v2670 = vld [vmem:[#allocation2 + $0x58] sm:$0x2]
      %v2671 = vsel %vm730, %v2648, %v2670
      %2672 = vst [vmem:[#allocation2 + $0x58] sm:$0x2] %v2671
      %v2673 = vld [vmem:[#allocation2 + $0x60] sm:$0x2]
      %v2674 = vsel %vm730, %v2649, %v2673
      %2675 = vst [vmem:[#allocation2 + $0x60] sm:$0x2] %v2674
      %v2676 = vld [vmem:[#allocation2 + $0x68] sm:$0x2]
      %v2677 = vsel %vm730, %v2650, %v2676
      %2678 = vst [vmem:[#allocation2 + $0x68] sm:$0x2] %v2677
      %v2679 = vld [vmem:[%s405] sm:$0xff]
      %v2681 = vcombine.high %v2679, %v2679
      %v2683 = vunpack.c.l.s4 1966171168
      %v2684 = vunpack.c.0.s8 %v2683
      %v2685 = vlaneseq
      %v2686 = vshrl.u32 %v2685, 7
      %v2687 = vsub.s32 %v2684, %v2686
      %v2688 = vrot.slane %v2679, %v2687
      %v2690 = vunpack.c.l.s4 1966171168
      %v2691 = vunpack.c.0.s8 %v2690
      %v2692 = vlaneseq
      %v2693 = vshrl.u32 %v2692, 7
      %v2694 = vsub.s32 %v2691, %v2693
      %v2695 = vrot.slane %v2681, %v2694
      %v2696 = vcombine.high %v2688, %v2688
      %v2697 = vcombine.high %v2695, %v2695
      %v2699 = vunpack.c.l.s4 1966171168
      %v2700 = vunpack.c.0.s8 %v2699
      %v2701 = vlaneseq
      %v2702 = vshrl.u32 %v2701, 7
      %v2703 = vsub.s32 %v2700, %v2702
      %v2704 = vrot.slane %v2688, %v2703
      %v2706 = vunpack.c.l.s4 1966171168
      %v2707 = vunpack.c.0.s8 %v2706
      %v2708 = vlaneseq
      %v2709 = vshrl.u32 %v2708, 7
      %v2710 = vsub.s32 %v2707, %v2709
      %v2711 = vrot.slane %v2695, %v2710
      %v2713 = vunpack.c.l.s4 1966171168
      %v2714 = vunpack.c.0.s8 %v2713
      %v2715 = vlaneseq
      %v2716 = vshrl.u32 %v2715, 7
      %v2717 = vsub.s32 %v2714, %v2716
      %v2718 = vrot.slane %v2696, %v2717
      %v2720 = vunpack.c.l.s4 1966171168
      %v2721 = vunpack.c.0.s8 %v2720
      %v2722 = vlaneseq
      %v2723 = vshrl.u32 %v2722, 7
      %v2724 = vsub.s32 %v2721, %v2723
      %v2725 = vrot.slane %v2697, %v2724
      %v2726 = vcombine.high %v2704, %v2704
      %v2727 = vcombine.high %v2711, %v2711
      %v2728 = vcombine.high %v2718, %v2718
      %v2729 = vcombine.high %v2725, %v2725
      %v2731 = vshll.u32 %v2704, 16
      %v2733 = vrot.slane %v2731, 7
      %v2735 = vshll.u32 %v2718, 16
      %v2737 = vrot.slane %v2735, 7
      %v2739 = vshll.u32 %v2726, 16
      %v2741 = vrot.slane %v2739, 7
      %v2743 = vshll.u32 %v2728, 16
      %v2745 = vrot.slane %v2743, 7
      %v2747 = vshll.u32 %v2711, 16
      %v2749 = vrot.slane %v2747, 7
      %v2751 = vshll.u32 %v2725, 16
      %v2753 = vrot.slane %v2751, 7
      %v2755 = vshll.u32 %v2727, 16
      %v2757 = vrot.slane %v2755, 7
      %v2759 = vshll.u32 %v2729, 16
      %v2761 = vrot.slane %v2759, 7
      %2762 = vrot.lane.b32.xlu0 %v2733, 28
      %v2763 = vpop.permute.xlu0 %2762
      %2764 = vrot.lane.b32.xlu0 %v2737, 28
      %v2765 = vpop.permute.xlu0 %2764
      %2766 = vrot.lane.b32.xlu0 %v2741, 28
      %v2767 = vpop.permute.xlu0 %2766
      %2768 = vrot.lane.b32.xlu0 %v2745, 28
      %v2769 = vpop.permute.xlu0 %2768
      %2770 = vrot.lane.b32.xlu0 %v2749, 28
      %v2771 = vpop.permute.xlu0 %2770
      %2772 = vrot.lane.b32.xlu0 %v2753, 28
      %v2773 = vpop.permute.xlu0 %2772
      %2774 = vrot.lane.b32.xlu0 %v2757, 28
      %v2775 = vpop.permute.xlu0 %2774
      %2776 = vrot.lane.b32.xlu0 %v2761, 28
      %v2777 = vpop.permute.xlu0 %2776
      %vm2778 = vcmask 228352
      %v2779 = vsel %vm2778, %v2763, %v2765
      %v2780 = vsel %vm2778, %v2765, %v2767
      %v2781 = vsel %vm2778, %v2767, %v2769
      %v2782 = vsel %vm2778, %v2769, %v2771
      %v2783 = vsel %vm2778, %v2771, %v2773
      %v2784 = vsel %vm2778, %v2773, %v2775
      %v2785 = vsel %vm2778, %v2775, %v2777
      %v2793 = vld [vmem:[#allocation2 + $0x38] sm:$0x2]
      %v2794 = vsel %vm867, %v2779, %v2793
      %2795 = vst [vmem:[#allocation2 + $0x38] sm:$0x2] %v2794
      %v2796 = vld [vmem:[#allocation2 + $0x40] sm:$0x2]
      %v2797 = vsel %vm867, %v2780, %v2796
      %2798 = vst [vmem:[#allocation2 + $0x40] sm:$0x2] %v2797
      %v2799 = vld [vmem:[#allocation2 + $0x48] sm:$0x2]
      %v2800 = vsel %vm867, %v2781, %v2799
      %2801 = vst [vmem:[#allocation2 + $0x48] sm:$0x2] %v2800
      %v2802 = vld [vmem:[#allocation2 + $0x50] sm:$0x2]
      %v2803 = vsel %vm867, %v2782, %v2802
      %2804 = vst [vmem:[#allocation2 + $0x50] sm:$0x2] %v2803
      %v2805 = vld [vmem:[#allocation2 + $0x58] sm:$0x2]
      %v2806 = vsel %vm867, %v2783, %v2805
      %2807 = vst [vmem:[#allocation2 + $0x58] sm:$0x2] %v2806
      %v2808 = vld [vmem:[#allocation2 + $0x60] sm:$0x2]
      %v2809 = vsel %vm867, %v2784, %v2808
      %2810 = vst [vmem:[#allocation2 + $0x60] sm:$0x2] %v2809
      %v2811 = vld [vmem:[#allocation2 + $0x68] sm:$0x2]
      %v2812 = vsel %vm867, %v2785, %v2811
      %2813 = vst [vmem:[#allocation2 + $0x68] sm:$0x2] %v2812
      %v2814 = vld [vmem:[%s405 + $0x1] sm:$0x7f]
      %v2816 = vcombine.high %v2814, %v2814
      %v2818 = vunpack.c.l.s4 1966171168
      %v2819 = vunpack.c.0.s8 %v2818
      %v2820 = vlaneseq
      %v2821 = vshrl.u32 %v2820, 7
      %v2822 = vsub.s32 %v2819, %v2821
      %v2823 = vrot.slane %v2814, %v2822
      %v2825 = vunpack.c.l.s4 1966171168
      %v2826 = vunpack.c.0.s8 %v2825
      %v2827 = vlaneseq
      %v2828 = vshrl.u32 %v2827, 7
      %v2829 = vsub.s32 %v2826, %v2828
      %v2830 = vrot.slane %v2816, %v2829
      %v2831 = vcombine.low %v2823, %v2823
      %v2832 = vcombine.low %v2830, %v2830
      %v2834 = vunpack.c.l.s4 1966171168
      %v2835 = vunpack.c.0.s8 %v2834
      %v2836 = vlaneseq
      %v2837 = vshrl.u32 %v2836, 7
      %v2838 = vsub.s32 %v2835, %v2837
      %v2839 = vrot.slane %v2831, %v2838
      %v2841 = vunpack.c.l.s4 1966171168
      %v2842 = vunpack.c.0.s8 %v2841
      %v2843 = vlaneseq
      %v2844 = vshrl.u32 %v2843, 7
      %v2845 = vsub.s32 %v2842, %v2844
      %v2846 = vrot.slane %v2832, %v2845
      %v2848 = vunpack.c.l.s4 1966171168
      %v2849 = vunpack.c.0.s8 %v2848
      %v2850 = vlaneseq
      %v2851 = vshrl.u32 %v2850, 7
      %v2852 = vsub.s32 %v2849, %v2851
      %v2853 = vrot.slane %v2823, %v2852
      %v2855 = vunpack.c.l.s4 1966171168
      %v2856 = vunpack.c.0.s8 %v2855
      %v2857 = vlaneseq
      %v2858 = vshrl.u32 %v2857, 7
      %v2859 = vsub.s32 %v2856, %v2858
      %v2860 = vrot.slane %v2830, %v2859
      %v2861 = vcombine.high %v2839, %v2839
      %v2862 = vcombine.high %v2846, %v2846
      %v2863 = vcombine.high %v2853, %v2853
      %v2871 = vld [vmem:[#allocation2 + $0x38] sm:$0x4]
      %v2872 = vsel %vm973, %v2839, %v2871
      %2873 = vst [vmem:[#allocation2 + $0x38] sm:$0x4] %v2872
      %v2874 = vld [vmem:[#allocation2 + $0x40] sm:$0x4]
      %v2875 = vsel %vm973, %v2853, %v2874
      %2876 = vst [vmem:[#allocation2 + $0x40] sm:$0x4] %v2875
      %v2877 = vld [vmem:[#allocation2 + $0x48] sm:$0x4]
      %v2878 = vsel %vm973, %v2861, %v2877
      %2879 = vst [vmem:[#allocation2 + $0x48] sm:$0x4] %v2878
      %v2880 = vld [vmem:[#allocation2 + $0x50] sm:$0x4]
      %v2881 = vsel %vm973, %v2863, %v2880
      %2882 = vst [vmem:[#allocation2 + $0x50] sm:$0x4] %v2881
      %v2883 = vld [vmem:[#allocation2 + $0x58] sm:$0x4]
      %v2884 = vsel %vm973, %v2846, %v2883
      %2885 = vst [vmem:[#allocation2 + $0x58] sm:$0x4] %v2884
      %v2886 = vld [vmem:[#allocation2 + $0x60] sm:$0x4]
      %v2887 = vsel %vm973, %v2860, %v2886
      %2888 = vst [vmem:[#allocation2 + $0x60] sm:$0x4] %v2887
      %v2889 = vld [vmem:[#allocation2 + $0x68] sm:$0x4]
      %v2890 = vsel %vm973, %v2862, %v2889
      %2891 = vst [vmem:[#allocation2 + $0x68] sm:$0x4] %v2890
      %v2892 = vld [vmem:[%s405 + $0x1] sm:$0xff]
      %v2894 = vcombine.high %v2892, %v2892
      %v2896 = vunpack.c.l.s4 1966171168
      %v2897 = vunpack.c.0.s8 %v2896
      %v2898 = vlaneseq
      %v2899 = vshrl.u32 %v2898, 7
      %v2900 = vsub.s32 %v2897, %v2899
      %v2901 = vrot.slane %v2892, %v2900
      %v2903 = vunpack.c.l.s4 1966171168
      %v2904 = vunpack.c.0.s8 %v2903
      %v2905 = vlaneseq
      %v2906 = vshrl.u32 %v2905, 7
      %v2907 = vsub.s32 %v2904, %v2906
      %v2908 = vrot.slane %v2894, %v2907
      %v2909 = vcombine.high %v2901, %v2901
      %v2910 = vcombine.high %v2908, %v2908
      %v2912 = vunpack.c.l.s4 1966171168
      %v2913 = vunpack.c.0.s8 %v2912
      %v2914 = vlaneseq
      %v2915 = vshrl.u32 %v2914, 7
      %v2916 = vsub.s32 %v2913, %v2915
      %v2917 = vrot.slane %v2901, %v2916
      %v2919 = vunpack.c.l.s4 1966171168
      %v2920 = vunpack.c.0.s8 %v2919
      %v2921 = vlaneseq
      %v2922 = vshrl.u32 %v2921, 7
      %v2923 = vsub.s32 %v2920, %v2922
      %v2924 = vrot.slane %v2908, %v2923
      %v2926 = vunpack.c.l.s4 1966171168
      %v2927 = vunpack.c.0.s8 %v2926
      %v2928 = vlaneseq
      %v2929 = vshrl.u32 %v2928, 7
      %v2930 = vsub.s32 %v2927, %v2929
      %v2931 = vrot.slane %v2909, %v2930
      %v2933 = vunpack.c.l.s4 1966171168
      %v2934 = vunpack.c.0.s8 %v2933
      %v2935 = vlaneseq
      %v2936 = vshrl.u32 %v2935, 7
      %v2937 = vsub.s32 %v2934, %v2936
      %v2938 = vrot.slane %v2910, %v2937
      %v2939 = vcombine.high %v2917, %v2917
      %v2940 = vcombine.high %v2924, %v2924
      %v2941 = vcombine.high %v2931, %v2931
      %v2942 = vcombine.high %v2938, %v2938
      %v2944 = vshll.u32 %v2917, 16
      %v2946 = vrot.slane %v2944, 6
      %v2948 = vshll.u32 %v2931, 16
      %v2950 = vrot.slane %v2948, 6
      %v2952 = vshll.u32 %v2939, 16
      %v2954 = vrot.slane %v2952, 6
      %v2956 = vshll.u32 %v2941, 16
      %v2958 = vrot.slane %v2956, 6
      %v2960 = vshll.u32 %v2924, 16
      %v2962 = vrot.slane %v2960, 6
      %v2964 = vshll.u32 %v2938, 16
      %v2966 = vrot.slane %v2964, 6
      %v2968 = vshll.u32 %v2940, 16
      %v2970 = vrot.slane %v2968, 6
      %v2972 = vshll.u32 %v2942, 16
      %v2974 = vrot.slane %v2972, 6
      %2975 = vrot.lane.b32.xlu0 %v2946, 127
      %v2976 = vpop.permute.xlu0 %2975
      %2977 = vrot.lane.b32.xlu0 %v2950, 127
      %v2978 = vpop.permute.xlu0 %2977
      %2979 = vrot.lane.b32.xlu0 %v2954, 127
      %v2980 = vpop.permute.xlu0 %2979
      %2981 = vrot.lane.b32.xlu0 %v2958, 127
      %v2982 = vpop.permute.xlu0 %2981
      %2983 = vrot.lane.b32.xlu0 %v2962, 127
      %v2984 = vpop.permute.xlu0 %2983
      %2985 = vrot.lane.b32.xlu0 %v2966, 127
      %v2986 = vpop.permute.xlu0 %2985
      %2987 = vrot.lane.b32.xlu0 %v2970, 127
      %v2988 = vpop.permute.xlu0 %2987
      %2989 = vrot.lane.b32.xlu0 %v2974, 127
      %v2990 = vpop.permute.xlu0 %2989
      %v2991 = vsel %vm608, %v2976, %v2978
      %v2992 = vsel %vm608, %v2978, %v2980
      %v2993 = vsel %vm608, %v2980, %v2982
      %v2994 = vsel %vm608, %v2982, %v2984
      %v2995 = vsel %vm608, %v2984, %v2986
      %v2996 = vsel %vm608, %v2986, %v2988
      %v2997 = vsel %vm608, %v2988, %v2990
      %v3005 = vld [vmem:[#allocation2 + $0x38] sm:$0x4]
      %v3006 = vsel %vm1110, %v2991, %v3005
      %3007 = vst [vmem:[#allocation2 + $0x38] sm:$0x4] %v3006
      %v3008 = vld [vmem:[#allocation2 + $0x40] sm:$0x4]
      %v3009 = vsel %vm1110, %v2992, %v3008
      %3010 = vst [vmem:[#allocation2 + $0x40] sm:$0x4] %v3009
      %v3011 = vld [vmem:[#allocation2 + $0x48] sm:$0x4]
      %v3012 = vsel %vm1110, %v2993, %v3011
      %3013 = vst [vmem:[#allocation2 + $0x48] sm:$0x4] %v3012
      %v3014 = vld [vmem:[#allocation2 + $0x50] sm:$0x4]
      %v3015 = vsel %vm1110, %v2994, %v3014
      %3016 = vst [vmem:[#allocation2 + $0x50] sm:$0x4] %v3015
      %v3017 = vld [vmem:[#allocation2 + $0x58] sm:$0x4]
      %v3018 = vsel %vm1110, %v2995, %v3017
      %3019 = vst [vmem:[#allocation2 + $0x58] sm:$0x4] %v3018
      %v3020 = vld [vmem:[#allocation2 + $0x60] sm:$0x4]
      %v3021 = vsel %vm1110, %v2996, %v3020
      %3022 = vst [vmem:[#allocation2 + $0x60] sm:$0x4] %v3021
      %v3023 = vld [vmem:[#allocation2 + $0x68] sm:$0x4]
      %v3024 = vsel %vm1110, %v2997, %v3023
      %3025 = vst [vmem:[#allocation2 + $0x68] sm:$0x4] %v3024
      %v3026 = vld [vmem:[%s405 + $0x1] sm:$0xff]
      %v3028 = vcombine.low %v3026, %v3026
      %v3030 = vunpack.c.l.s4 1966171168
      %v3031 = vunpack.c.0.s8 %v3030
      %v3032 = vlaneseq
      %v3033 = vshrl.u32 %v3032, 7
      %v3034 = vsub.s32 %v3031, %v3033
      %v3035 = vrot.slane %v3028, %v3034
      %v3037 = vunpack.c.l.s4 1966171168
      %v3038 = vunpack.c.0.s8 %v3037
      %v3039 = vlaneseq
      %v3040 = vshrl.u32 %v3039, 7
      %v3041 = vsub.s32 %v3038, %v3040
      %v3042 = vrot.slane %v3026, %v3041
      %v3043 = vcombine.low %v3035, %v3035
      %v3044 = vcombine.low %v3042, %v3042
      %v3046 = vunpack.c.l.s4 1966171168
      %v3047 = vunpack.c.0.s8 %v3046
      %v3048 = vlaneseq
      %v3049 = vshrl.u32 %v3048, 7
      %v3050 = vsub.s32 %v3047, %v3049
      %v3051 = vrot.slane %v3043, %v3050
      %v3053 = vunpack.c.l.s4 1966171168
      %v3054 = vunpack.c.0.s8 %v3053
      %v3055 = vlaneseq
      %v3056 = vshrl.u32 %v3055, 7
      %v3057 = vsub.s32 %v3054, %v3056
      %v3058 = vrot.slane %v3044, %v3057
      %v3060 = vunpack.c.l.s4 1966171168
      %v3061 = vunpack.c.0.s8 %v3060
      %v3062 = vlaneseq
      %v3063 = vshrl.u32 %v3062, 7
      %v3064 = vsub.s32 %v3061, %v3063
      %v3065 = vrot.slane %v3035, %v3064
      %v3067 = vunpack.c.l.s4 1966171168
      %v3068 = vunpack.c.0.s8 %v3067
      %v3069 = vlaneseq
      %v3070 = vshrl.u32 %v3069, 7
      %v3071 = vsub.s32 %v3068, %v3070
      %v3072 = vrot.slane %v3042, %v3071
      %v3073 = vcombine.high %v3051, %v3051
      %v3074 = vcombine.high %v3058, %v3058
      %v3075 = vcombine.high %v3065, %v3065
      %v3076 = vcombine.high %v3072, %v3072
      %3077 = vrot.lane.b32.xlu0 %v3051, 126
      %v3078 = vpop.permute.xlu0 %3077
      %3079 = vrot.lane.b32.xlu0 %v3065, 126
      %v3080 = vpop.permute.xlu0 %3079
      %3081 = vrot.lane.b32.xlu0 %v3073, 126
      %v3082 = vpop.permute.xlu0 %3081
      %3083 = vrot.lane.b32.xlu0 %v3075, 126
      %v3084 = vpop.permute.xlu0 %3083
      %3085 = vrot.lane.b32.xlu0 %v3058, 126
      %v3086 = vpop.permute.xlu0 %3085
      %3087 = vrot.lane.b32.xlu0 %v3072, 126
      %v3088 = vpop.permute.xlu0 %3087
      %3089 = vrot.lane.b32.xlu0 %v3074, 126
      %v3090 = vpop.permute.xlu0 %3089
      %3091 = vrot.lane.b32.xlu0 %v3076, 126
      %v3092 = vpop.permute.xlu0 %3091
      %v3093 = vsel %vm713, %v3078, %v3080
      %v3094 = vsel %vm713, %v3080, %v3082
      %v3095 = vsel %vm713, %v3082, %v3084
      %v3096 = vsel %vm713, %v3084, %v3086
      %v3097 = vsel %vm713, %v3086, %v3088
      %v3098 = vsel %vm713, %v3088, %v3090
      %v3099 = vsel %vm713, %v3090, %v3092
      %v3107 = vld [vmem:[#allocation2 + $0x38] sm:$0x8]
      %v3108 = vsel %vm1216, %v3093, %v3107
      %3109 = vst [vmem:[#allocation2 + $0x38] sm:$0x8] %v3108
      %v3110 = vld [vmem:[#allocation2 + $0x40] sm:$0x8]
      %v3111 = vsel %vm1216, %v3094, %v3110
      %3112 = vst [vmem:[#allocation2 + $0x40] sm:$0x8] %v3111
      %v3113 = vld [vmem:[#allocation2 + $0x48] sm:$0x8]
      %v3114 = vsel %vm1216, %v3095, %v3113
      %3115 = vst [vmem:[#allocation2 + $0x48] sm:$0x8] %v3114
      %v3116 = vld [vmem:[#allocation2 + $0x50] sm:$0x8]
      %v3117 = vsel %vm1216, %v3096, %v3116
      %3118 = vst [vmem:[#allocation2 + $0x50] sm:$0x8] %v3117
      %v3119 = vld [vmem:[#allocation2 + $0x58] sm:$0x8]
      %v3120 = vsel %vm1216, %v3097, %v3119
      %3121 = vst [vmem:[#allocation2 + $0x58] sm:$0x8] %v3120
      %v3122 = vld [vmem:[#allocation2 + $0x60] sm:$0x8]
      %v3123 = vsel %vm1216, %v3098, %v3122
      %3124 = vst [vmem:[#allocation2 + $0x60] sm:$0x8] %v3123
      %v3125 = vld [vmem:[#allocation2 + $0x68] sm:$0x8]
      %v3126 = vsel %vm1216, %v3099, %v3125
      %3127 = vst [vmem:[#allocation2 + $0x68] sm:$0x8] %v3126
      %v3128 = vld [vmem:[%s405 + $0x1] sm:$0xff]
      %v3130 = vcombine.high %v3128, %v3128
      %v3132 = vunpack.c.l.s4 1966171168
      %v3133 = vunpack.c.0.s8 %v3132
      %v3134 = vlaneseq
      %v3135 = vshrl.u32 %v3134, 7
      %v3136 = vsub.s32 %v3133, %v3135
      %v3137 = vrot.slane %v3128, %v3136
      %v3139 = vunpack.c.l.s4 1966171168
      %v3140 = vunpack.c.0.s8 %v3139
      %v3141 = vlaneseq
      %v3142 = vshrl.u32 %v3141, 7
      %v3143 = vsub.s32 %v3140, %v3142
      %v3144 = vrot.slane %v3130, %v3143
      %v3145 = vcombine.high %v3137, %v3137
      %v3146 = vcombine.high %v3144, %v3144
      %v3148 = vunpack.c.l.s4 1966171168
      %v3149 = vunpack.c.0.s8 %v3148
      %v3150 = vlaneseq
      %v3151 = vshrl.u32 %v3150, 7
      %v3152 = vsub.s32 %v3149, %v3151
      %v3153 = vrot.slane %v3137, %v3152
      %v3155 = vunpack.c.l.s4 1966171168
      %v3156 = vunpack.c.0.s8 %v3155
      %v3157 = vlaneseq
      %v3158 = vshrl.u32 %v3157, 7
      %v3159 = vsub.s32 %v3156, %v3158
      %v3160 = vrot.slane %v3144, %v3159
      %v3162 = vunpack.c.l.s4 1966171168
      %v3163 = vunpack.c.0.s8 %v3162
      %v3164 = vlaneseq
      %v3165 = vshrl.u32 %v3164, 7
      %v3166 = vsub.s32 %v3163, %v3165
      %v3167 = vrot.slane %v3145, %v3166
      %v3169 = vunpack.c.l.s4 1966171168
      %v3170 = vunpack.c.0.s8 %v3169
      %v3171 = vlaneseq
      %v3172 = vshrl.u32 %v3171, 7
      %v3173 = vsub.s32 %v3170, %v3172
      %v3174 = vrot.slane %v3146, %v3173
      %v3175 = vcombine.high %v3153, %v3153
      %v3176 = vcombine.high %v3160, %v3160
      %v3177 = vcombine.high %v3167, %v3167
      %v3178 = vcombine.high %v3174, %v3174
      %v3180 = vshll.u32 %v3153, 16
      %v3182 = vrot.slane %v3180, 5
      %v3184 = vshll.u32 %v3167, 16
      %v3186 = vrot.slane %v3184, 5
      %v3188 = vshll.u32 %v3175, 16
      %v3190 = vrot.slane %v3188, 5
      %v3192 = vshll.u32 %v3177, 16
      %v3194 = vrot.slane %v3192, 5
      %v3196 = vshll.u32 %v3160, 16
      %v3198 = vrot.slane %v3196, 5
      %v3200 = vshll.u32 %v3174, 16
      %v3202 = vrot.slane %v3200, 5
      %v3204 = vshll.u32 %v3176, 16
      %v3206 = vrot.slane %v3204, 5
      %v3208 = vshll.u32 %v3178, 16
      %v3210 = vrot.slane %v3208, 5
      %3211 = vrot.lane.b32.xlu0 %v3182, 125
      %v3212 = vpop.permute.xlu0 %3211
      %3213 = vrot.lane.b32.xlu0 %v3186, 125
      %v3214 = vpop.permute.xlu0 %3213
      %3215 = vrot.lane.b32.xlu0 %v3190, 125
      %v3216 = vpop.permute.xlu0 %3215
      %3217 = vrot.lane.b32.xlu0 %v3194, 125
      %v3218 = vpop.permute.xlu0 %3217
      %3219 = vrot.lane.b32.xlu0 %v3198, 125
      %v3220 = vpop.permute.xlu0 %3219
      %3221 = vrot.lane.b32.xlu0 %v3202, 125
      %v3222 = vpop.permute.xlu0 %3221
      %3223 = vrot.lane.b32.xlu0 %v3206, 125
      %v3224 = vpop.permute.xlu0 %3223
      %3225 = vrot.lane.b32.xlu0 %v3210, 125
      %v3226 = vpop.permute.xlu0 %3225
      %v3227 = vsel %vm851, %v3212, %v3214
      %v3228 = vsel %vm851, %v3214, %v3216
      %v3229 = vsel %vm851, %v3216, %v3218
      %v3230 = vsel %vm851, %v3218, %v3220
      %v3231 = vsel %vm851, %v3220, %v3222
      %v3232 = vsel %vm851, %v3222, %v3224
      %v3233 = vsel %vm851, %v3224, %v3226
      %v3241 = vld [vmem:[#allocation2 + $0x38] sm:$0x8]
      %v3242 = vsel %vm1353, %v3227, %v3241
      %3243 = vst [vmem:[#allocation2 + $0x38] sm:$0x8] %v3242
      %v3244 = vld [vmem:[#allocation2 + $0x40] sm:$0x8]
      %v3245 = vsel %vm1353, %v3228, %v3244
      %3246 = vst [vmem:[#allocation2 + $0x40] sm:$0x8] %v3245
      %v3247 = vld [vmem:[#allocation2 + $0x48] sm:$0x8]
      %v3248 = vsel %vm1353, %v3229, %v3247
      %3249 = vst [vmem:[#allocation2 + $0x48] sm:$0x8] %v3248
      %v3250 = vld [vmem:[#allocation2 + $0x50] sm:$0x8]
      %v3251 = vsel %vm1353, %v3230, %v3250
      %3252 = vst [vmem:[#allocation2 + $0x50] sm:$0x8] %v3251
      %v3253 = vld [vmem:[#allocation2 + $0x58] sm:$0x8]
      %v3254 = vsel %vm1353, %v3231, %v3253
      %3255 = vst [vmem:[#allocation2 + $0x58] sm:$0x8] %v3254
      %v3256 = vld [vmem:[#allocation2 + $0x60] sm:$0x8]
      %v3257 = vsel %vm1353, %v3232, %v3256
      %3258 = vst [vmem:[#allocation2 + $0x60] sm:$0x8] %v3257
      %v3259 = vld [vmem:[#allocation2 + $0x68] sm:$0x8]
      %v3260 = vsel %vm1353, %v3233, %v3259
      %3261 = vst [vmem:[#allocation2 + $0x68] sm:$0x8] %v3260
      %v3262 = vld [vmem:[%s405 + $0x1] sm:$0xff]
      %v3264 = vcombine.high %v3262, %v3262
      %v3266 = vunpack.c.l.s4 1966171168
      %v3267 = vunpack.c.0.s8 %v3266
      %v3268 = vlaneseq
      %v3269 = vshrl.u32 %v3268, 7
      %v3270 = vsub.s32 %v3267, %v3269
      %v3271 = vrot.slane %v3262, %v3270
      %v3273 = vunpack.c.l.s4 1966171168
      %v3274 = vunpack.c.0.s8 %v3273
      %v3275 = vlaneseq
      %v3276 = vshrl.u32 %v3275, 7
      %v3277 = vsub.s32 %v3274, %v3276
      %v3278 = vrot.slane %v3264, %v3277
      %v3279 = vcombine.high %v3271, %v3271
      %v3280 = vcombine.high %v3278, %v3278
      %v3282 = vunpack.c.l.s4 1966171168
      %v3283 = vunpack.c.0.s8 %v3282
      %v3284 = vlaneseq
      %v3285 = vshrl.u32 %v3284, 7
      %v3286 = vsub.s32 %v3283, %v3285
      %v3287 = vrot.slane %v3271, %v3286
      %v3289 = vunpack.c.l.s4 1966171168
      %v3290 = vunpack.c.0.s8 %v3289
      %v3291 = vlaneseq
      %v3292 = vshrl.u32 %v3291, 7
      %v3293 = vsub.s32 %v3290, %v3292
      %v3294 = vrot.slane %v3278, %v3293
      %v3296 = vunpack.c.l.s4 1966171168
      %v3297 = vunpack.c.0.s8 %v3296
      %v3298 = vlaneseq
      %v3299 = vshrl.u32 %v3298, 7
      %v3300 = vsub.s32 %v3297, %v3299
      %v3301 = vrot.slane %v3279, %v3300
      %v3303 = vunpack.c.l.s4 1966171168
      %v3304 = vunpack.c.0.s8 %v3303
      %v3305 = vlaneseq
      %v3306 = vshrl.u32 %v3305, 7
      %v3307 = vsub.s32 %v3304, %v3306
      %v3308 = vrot.slane %v3280, %v3307
      %v3309 = vcombine.low %v3287, %v3287
      %v3310 = vcombine.low %v3294, %v3294
      %v3311 = vcombine.low %v3301, %v3301
      %v3312 = vcombine.low %v3308, %v3308
      %3313 = vrot.lane.b32.xlu0 %v3309, 124
      %v3314 = vpop.permute.xlu0 %3313
      %3315 = vrot.lane.b32.xlu0 %v3311, 124
      %v3316 = vpop.permute.xlu0 %3315
      %3317 = vrot.lane.b32.xlu0 %v3287, 124
      %v3318 = vpop.permute.xlu0 %3317
      %3319 = vrot.lane.b32.xlu0 %v3301, 124
      %v3320 = vpop.permute.xlu0 %3319
      %3321 = vrot.lane.b32.xlu0 %v3310, 124
      %v3322 = vpop.permute.xlu0 %3321
      %3323 = vrot.lane.b32.xlu0 %v3312, 124
      %v3324 = vpop.permute.xlu0 %3323
      %3325 = vrot.lane.b32.xlu0 %v3294, 124
      %v3326 = vpop.permute.xlu0 %3325
      %3327 = vrot.lane.b32.xlu0 %v3308, 124
      %v3328 = vpop.permute.xlu0 %3327
      %v3329 = vsel %vm956, %v3314, %v3316
      %v3330 = vsel %vm956, %v3316, %v3318
      %v3331 = vsel %vm956, %v3318, %v3320
      %v3332 = vsel %vm956, %v3320, %v3322
      %v3333 = vsel %vm956, %v3322, %v3324
      %v3334 = vsel %vm956, %v3324, %v3326
      %v3335 = vsel %vm956, %v3326, %v3328
      %v3343 = vld [vmem:[#allocation2 + $0x38] sm:$0x10]
      %v3344 = vsel %vm1459, %v3329, %v3343
      %3345 = vst [vmem:[#allocation2 + $0x38] sm:$0x10] %v3344
      %v3346 = vld [vmem:[#allocation2 + $0x40] sm:$0x10]
      %v3347 = vsel %vm1459, %v3330, %v3346
      %3348 = vst [vmem:[#allocation2 + $0x40] sm:$0x10] %v3347
      %v3349 = vld [vmem:[#allocation2 + $0x48] sm:$0x10]
      %v3350 = vsel %vm1459, %v3331, %v3349
      %3351 = vst [vmem:[#allocation2 + $0x48] sm:$0x10] %v3350
      %v3352 = vld [vmem:[#allocation2 + $0x50] sm:$0x10]
      %v3353 = vsel %vm1459, %v3332, %v3352
      %3354 = vst [vmem:[#allocation2 + $0x50] sm:$0x10] %v3353
      %v3355 = vld [vmem:[#allocation2 + $0x58] sm:$0x10]
      %v3356 = vsel %vm1459, %v3333, %v3355
      %3357 = vst [vmem:[#allocation2 + $0x58] sm:$0x10] %v3356
      %v3358 = vld [vmem:[#allocation2 + $0x60] sm:$0x10]
      %v3359 = vsel %vm1459, %v3334, %v3358
      %3360 = vst [vmem:[#allocation2 + $0x60] sm:$0x10] %v3359
      %v3361 = vld [vmem:[#allocation2 + $0x68] sm:$0x10]
      %v3362 = vsel %vm1459, %v3335, %v3361
      %3363 = vst [vmem:[#allocation2 + $0x68] sm:$0x10] %v3362
      %v3364 = vld [vmem:[%s1] sm:$0xf]
      %v3365 = vld [vmem:[%s1 + $0x4] sm:$0xf]
      %v3366 = vld [vmem:[#allocation2] sm:$0xff]
      %v3367 = vld [vmem:[#allocation2 + $0x8] sm:$0xff]
      %v3368 = vld [vmem:[#allocation2 + $0x10] sm:$0xff]
      %v3369 = vld [vmem:[#allocation2 + $0x18] sm:$0xff]
      %v3370 = vld [vmem:[#allocation2 + $0x20] sm:$0xff]
      %v3371 = vld [vmem:[#allocation2 + $0x28] sm:$0xff]
      %v3372 = vld [vmem:[#allocation2 + $0x30] sm:$0xff]
      %v3373 = vld [vmem:[#allocation2 + $0x38] sm:$0xff]
      %v3374 = vld [vmem:[#allocation2 + $0x40] sm:$0xff]
      %v3375 = vld [vmem:[#allocation2 + $0x48] sm:$0xff]
      %v3376 = vld [vmem:[#allocation2 + $0x50] sm:$0xff]
      %v3377 = vld [vmem:[#allocation2 + $0x58] sm:$0xff]
      %v3378 = vld [vmem:[#allocation2 + $0x60] sm:$0xff]
      %v3379 = vld [vmem:[#allocation2 + $0x68] sm:$0xff]
      %v3380 = vld [vmem:[%s2] sm:$0xff]
      %v3381 = vld [vmem:[%s2 + $0x8] sm:$0xff]
      %3383 = vset.pattern.permute.xlu0 0
      %3384 = vperm.xlu0 %3383, %v3380
      %v3385 = vpop.permute.xlu0 %3384
      %3388 = vset.pattern.permute.xlu0 0
      %3389 = vperm.xlu0 %3388, %v3381
      %v3390 = vpop.permute.xlu0 %3389
      %v3394 = vunpack.c.l.b16 %v3364
      %v3395 = vunpack.c.l.b16 %v3365
      %v3396 = vpack.c.b16 %v3395, %v3394
      %vm3397 = vcmask 261120
      %v3399 = vsel %vm3397, %v3396, 0
      %3401 = vmatprep.subr.bf16.mxu0 %v3367
      %3402 = vmatpush1.bf16.msra.mxu0 %v3366
      %3403 = vmatprep.subr.bf16.mxu0 %v3374
      %3404 = vmatpush1.bf16.msra.mxu0 %v3373
      %3405 = vmatprep.subr.bf16.mxu0 0
      %3406 = vmatpush1.bf16.msra.mxu0 0
      %3407 = vmatprep.subr.bf16.mxu0 0
      %3408 = vmatpush1.bf16.msra.mxu0 0
      %3409 = vmatprep.subr.bf16.mxu0 0
      %3410 = vmatpush1.bf16.msra.mxu0 0
      %3411 = vmatprep.subr.bf16.mxu0 0
      %3412 = vmatpush1.bf16.msra.mxu0 0
      %3413 = vmatprep.subr.bf16.mxu0 0
      %3414 = vmatpush1.bf16.msra.mxu0 0
      %3415 = vmatprep.subr.bf16.mxu0 0
      %3416 = vmatpush1.bf16.msra.mxu0 0
      %3417 = vmatprep.subr.bf16.mxu0 0
      %3418 = vmatpush1.bf16.msra.mxu0 0
      %3419 = vmatprep.subr.bf16.mxu0 0
      %3420 = vmatpush1.bf16.msra.mxu0 0
      %3421 = vmatprep.subr.bf16.mxu0 0
      %3422 = vmatpush1.bf16.msra.mxu0 0
      %3423 = vmatprep.subr.bf16.mxu0 0
      %3424 = vmatpush1.bf16.msra.mxu0 0
      %3425 = vmatprep.subr.bf16.mxu0 0
      %3426 = vmatpush1.bf16.msra.mxu0 0
      %3427 = vmatprep.subr.bf16.mxu0 0
      %3428 = vmatpush1.bf16.msra.mxu0 0
      %3429 = vmatprep.subr.bf16.mxu0 0
      %3430 = vmatpush1.bf16.msra.mxu0 0
      %3431 = vmatprep.subr.bf16.mxu0 0
      %3432 = vmatpush1.bf16.msra.mxu0 0
      %3433 = vmatprep.mubr.bf16.mxu0 0
      %3434 = vmatmul.mubr.bf16.gmra.mrb[0].mxu0 %v3399
      %v3435 = vpop.f32.mrb[0].mxu0
      %v3436 = vadd.f32 %v3385, %v3435
      %v3437 = vpop.f32.mrb[0].mxu0
      %v3438 = vadd.f32 %v3385, %v3437
      %v3439 = vpop.f32.mrb[0].mxu0
      %v3440 = vadd.f32 %v3390, %v3439
      %v3441 = vpop.f32.mrb[0].mxu0
      %v3442 = vadd.f32 %v3390, %v3441
      %3443 = vdwg.mxu0
      %3444 = vmatprep.subr.bf16.mxu0 %v3369
      %3445 = vmatpush1.bf16.msra.mxu0 %v3368
      %3446 = vmatprep.subr.bf16.mxu0 %v3376
      %3447 = vmatpush1.bf16.msra.mxu0 %v3375
      %3448 = vmatprep.subr.bf16.mxu0 0
      %3449 = vmatpush1.bf16.msra.mxu0 0
      %3450 = vmatprep.subr.bf16.mxu0 0
      %3451 = vmatpush1.bf16.msra.mxu0 0
      %3452 = vmatprep.subr.bf16.mxu0 0
      %3453 = vmatpush1.bf16.msra.mxu0 0
      %3454 = vmatprep.subr.bf16.mxu0 0
      %3455 = vmatpush1.bf16.msra.mxu0 0
      %3456 = vmatprep.subr.bf16.mxu0 0
      %3457 = vmatpush1.bf16.msra.mxu0 0
      %3458 = vmatprep.subr.bf16.mxu0 0
      %3459 = vmatpush1.bf16.msra.mxu0 0
      %3460 = vmatprep.subr.bf16.mxu0 0
      %3461 = vmatpush1.bf16.msra.mxu0 0
      %3462 = vmatprep.subr.bf16.mxu0 0
      %3463 = vmatpush1.bf16.msra.mxu0 0
      %3464 = vmatprep.subr.bf16.mxu0 0
      %3465 = vmatpush1.bf16.msra.mxu0 0
      %3466 = vmatprep.subr.bf16.mxu0 0
      %3467 = vmatpush1.bf16.msra.mxu0 0
      %3468 = vmatprep.subr.bf16.mxu0 0
      %3469 = vmatpush1.bf16.msra.mxu0 0
      %3470 = vmatprep.subr.bf16.mxu0 0
      %3471 = vmatpush1.bf16.msra.mxu0 0
      %3472 = vmatprep.subr.bf16.mxu0 0
      %3473 = vmatpush1.bf16.msra.mxu0 0
      %3474 = vmatprep.subr.bf16.mxu0 0
      %3475 = vmatpush1.bf16.msra.mxu0 0
      %3476 = vmatprep.mubr.bf16.mxu0 0
      %3477 = vmatmul.mubr.bf16.gmra.mrb[0].mxu0 %v3399
      %v3478 = vpop.f32.mrb[0].mxu0
      %v3479 = vadd.f32 %v3385, %v3478
      %v3480 = vpop.f32.mrb[0].mxu0
      %v3481 = vadd.f32 %v3385, %v3480
      %v3482 = vpop.f32.mrb[0].mxu0
      %v3483 = vadd.f32 %v3390, %v3482
      %v3484 = vpop.f32.mrb[0].mxu0
      %v3485 = vadd.f32 %v3390, %v3484
      %3486 = vdwg.mxu0
      %3487 = vmatprep.subr.bf16.mxu0 %v3371
      %3488 = vmatpush1.bf16.msra.mxu0 %v3370
      %3489 = vmatprep.subr.bf16.mxu0 %v3378
      %3490 = vmatpush1.bf16.msra.mxu0 %v3377
      %3491 = vmatprep.subr.bf16.mxu0 0
      %3492 = vmatpush1.bf16.msra.mxu0 0
      %3493 = vmatprep.subr.bf16.mxu0 0
      %3494 = vmatpush1.bf16.msra.mxu0 0
      %3495 = vmatprep.subr.bf16.mxu0 0
      %3496 = vmatpush1.bf16.msra.mxu0 0
      %3497 = vmatprep.subr.bf16.mxu0 0
      %3498 = vmatpush1.bf16.msra.mxu0 0
      %3499 = vmatprep.subr.bf16.mxu0 0
      %3500 = vmatpush1.bf16.msra.mxu0 0
      %3501 = vmatprep.subr.bf16.mxu0 0
      %3502 = vmatpush1.bf16.msra.mxu0 0
      %3503 = vmatprep.subr.bf16.mxu0 0
      %3504 = vmatpush1.bf16.msra.mxu0 0
      %3505 = vmatprep.subr.bf16.mxu0 0
      %3506 = vmatpush1.bf16.msra.mxu0 0
      %3507 = vmatprep.subr.bf16.mxu0 0
      %3508 = vmatpush1.bf16.msra.mxu0 0
      %3509 = vmatprep.subr.bf16.mxu0 0
      %3510 = vmatpush1.bf16.msra.mxu0 0
      %3511 = vmatprep.subr.bf16.mxu0 0
      %3512 = vmatpush1.bf16.msra.mxu0 0
      %3513 = vmatprep.subr.bf16.mxu0 0
      %3514 = vmatpush1.bf16.msra.mxu0 0
      %3515 = vmatprep.subr.bf16.mxu0 0
      %3516 = vmatpush1.bf16.msra.mxu0 0
      %3517 = vmatprep.subr.bf16.mxu0 0
      %3518 = vmatpush1.bf16.msra.mxu0 0
      %3519 = vmatprep.mubr.bf16.mxu0 0
      %3520 = vmatmul.mubr.bf16.gmra.mrb[0].mxu0 %v3399
      %v3521 = vpop.f32.mrb[0].mxu0
      %v3522 = vadd.f32 %v3385, %v3521
      %v3523 = vpop.f32.mrb[0].mxu0
      %v3524 = vadd.f32 %v3385, %v3523
      %v3525 = vpop.f32.mrb[0].mxu0
      %v3526 = vadd.f32 %v3390, %v3525
      %v3527 = vpop.f32.mrb[0].mxu0
      %v3528 = vadd.f32 %v3390, %v3527
      %3529 = vdwg.mxu0
      %3530 = vmatprep.subr.bf16.mxu0 0
      %3531 = vmatpush1.bf16.msra.mxu0 %v3372
      %3532 = vmatprep.subr.bf16.mxu0 0
      %3533 = vmatpush1.bf16.msra.mxu0 %v3379
      %3534 = vmatprep.subr.bf16.mxu0 0
      %3535 = vmatpush1.bf16.msra.mxu0 0
      %3536 = vmatprep.subr.bf16.mxu0 0
      %3537 = vmatpush1.bf16.msra.mxu0 0
      %3538 = vmatprep.subr.bf16.mxu0 0
      %3539 = vmatpush1.bf16.msra.mxu0 0
      %3540 = vmatprep.subr.bf16.mxu0 0
      %3541 = vmatpush1.bf16.msra.mxu0 0
      %3542 = vmatprep.subr.bf16.mxu0 0
      %3543 = vmatpush1.bf16.msra.mxu0 0
      %3544 = vmatprep.subr.bf16.mxu0 0
      %3545 = vmatpush1.bf16.msra.mxu0 0
      %3546 = vmatprep.subr.bf16.mxu0 0
      %3547 = vmatpush1.bf16.msra.mxu0 0
      %3548 = vmatprep.subr.bf16.mxu0 0
      %3549 = vmatpush1.bf16.msra.mxu0 0
      %3550 = vmatprep.subr.bf16.mxu0 0
      %3551 = vmatpush1.bf16.msra.mxu0 0
      %3552 = vmatprep.subr.bf16.mxu0 0
      %3553 = vmatpush1.bf16.msra.mxu0 0
      %3554 = vmatprep.subr.bf16.mxu0 0
      %3555 = vmatpush1.bf16.msra.mxu0 0
      %3556 = vmatprep.subr.bf16.mxu0 0
      %3557 = vmatpush1.bf16.msra.mxu0 0
      %3558 = vmatprep.subr.bf16.mxu0 0
      %3559 = vmatpush1.bf16.msra.mxu0 0
      %3560 = vmatprep.subr.bf16.mxu0 0
      %3561 = vmatpush1.bf16.msra.mxu0 0
      %3562 = vmatprep.mubr.bf16.mxu0 0
      %3563 = vmatmul.mubr.bf16.gmra.mrb[0].mxu0 %v3399
      %v3564 = vpop.f32.mrb[0].mxu0
      %v3565 = vadd.f32 %v3385, %v3564
      %v3566 = vpop.f32.mrb[0].mxu0
      %v3567 = vpop.f32.mrb[0].mxu0
      %v3568 = vadd.f32 %v3390, %v3567
      %v3569 = vpop.f32.mrb[0].mxu0
      %3570 = vdwg.mxu0
      %v3571 = vmax.f32 %v3436, 0.0
      %v3572 = vmax.f32 %v3438, 0.0
      %v3573 = vmax.f32 %v3479, 0.0
      %v3574 = vmax.f32 %v3481, 0.0
      %v3575 = vmax.f32 %v3522, 0.0
      %v3576 = vmax.f32 %v3524, 0.0
      %v3577 = vmax.f32 %v3565, 0.0
      %v3578 = vmax.f32 %v3440, 0.0
      %v3579 = vmax.f32 %v3442, 0.0
      %v3580 = vmax.f32 %v3483, 0.0
      %v3581 = vmax.f32 %v3485, 0.0
      %v3582 = vmax.f32 %v3526, 0.0
      %v3583 = vmax.f32 %v3528, 0.0
      %v3584 = vmax.f32 %v3568, 0.0
      %v3585 = vpack.c.bf16 %v3578, %v3571
      %v3586 = vpack.c.bf16 %v3579, %v3572
      %v3587 = vpack.c.bf16 %v3580, %v3573
      %v3588 = vpack.c.bf16 %v3581, %v3574
      %v3589 = vpack.c.bf16 %v3582, %v3575
      %v3590 = vpack.c.bf16 %v3583, %v3576
      %v3591 = vpack.c.bf16 %v3584, %v3577
      %3592 = vst [vmem:[#allocation3] sm:$0xff] %v3585
      %3593 = vst [vmem:[#allocation3 + $0x8] sm:$0xff] %v3586
      %3594 = vst [vmem:[#allocation3 + $0x10] sm:$0xff] %v3587
      %3595 = vst [vmem:[#allocation3 + $0x18] sm:$0xff] %v3588
      %3596 = vst [vmem:[#allocation3 + $0x20] sm:$0xff] %v3589
      %3597 = vst [vmem:[#allocation3 + $0x28] sm:$0xff] %v3590
      %3598 = vst [vmem:[#allocation3 + $0x30] sm:$0xff] %v3591
      %3599 = vst [vmem:[#allocation3 + $0x38] sm:$0xff] 0
      %v3600 = vld [vmem:[#allocation3] sm:$0xff]
      %v3601 = vld [vmem:[#allocation3 + $0x8] sm:$0xff]
      %v3602 = vld [vmem:[#allocation3 + $0x10] sm:$0xff]
      %v3603 = vld [vmem:[#allocation3 + $0x18] sm:$0xff]
      %v3604 = vld [vmem:[#allocation3 + $0x20] sm:$0xff]
      %v3605 = vld [vmem:[#allocation3 + $0x28] sm:$0xff]
      %v3606 = vld [vmem:[#allocation3 + $0x30] sm:$0xff]
      %v3607 = vld [vmem:[#allocation3] sm:$0xff]
      %v3608 = vld [vmem:[#allocation3 + $0x8] sm:$0xff]
      %v3609 = vld [vmem:[#allocation3 + $0x10] sm:$0xff]
      %v3610 = vld [vmem:[#allocation3 + $0x18] sm:$0xff]
      %v3611 = vld [vmem:[#allocation3 + $0x20] sm:$0xff]
      %v3612 = vld [vmem:[#allocation3 + $0x28] sm:$0xff]
      %v3613 = vld [vmem:[#allocation3 + $0x30] sm:$0xff]
      %v3614 = vld [vmem:[#allocation3 + $0x38] sm:$0xff]
      %3623 = vrot.lane.b32.xlu0 %v3607, 127
      %v3624 = vpop.permute.xlu0 %3623
      %3625 = vrot.lane.b32.xlu0 %v3608, 127
      %v3626 = vpop.permute.xlu0 %3625
      %3627 = vrot.lane.b32.xlu0 %v3609, 127
      %v3628 = vpop.permute.xlu0 %3627
      %3629 = vrot.lane.b32.xlu0 %v3610, 127
      %v3630 = vpop.permute.xlu0 %3629
      %3631 = vrot.lane.b32.xlu0 %v3611, 127
      %v3632 = vpop.permute.xlu0 %3631
      %3633 = vrot.lane.b32.xlu0 %v3612, 127
      %v3634 = vpop.permute.xlu0 %3633
      %3635 = vrot.lane.b32.xlu0 %v3613, 127
      %v3636 = vpop.permute.xlu0 %3635
      %3637 = vrot.lane.b32.xlu0 %v3614, 127
      %v3638 = vpop.permute.xlu0 %3637
      %v3639 = vsel %vm608, %v3624, %v3626
      %v3640 = vsel %vm608, %v3626, %v3628
      %v3641 = vsel %vm608, %v3628, %v3630
      %v3642 = vsel %vm608, %v3630, %v3632
      %v3643 = vsel %vm608, %v3632, %v3634
      %v3644 = vsel %vm608, %v3634, %v3636
      %v3645 = vsel %vm608, %v3636, %v3638
      %v3653 = vmax.bf16 %v3600, %v3639
      %v3654 = vmax.bf16 %v3601, %v3640
      %v3655 = vmax.bf16 %v3602, %v3641
      %v3656 = vmax.bf16 %v3603, %v3642
      %v3657 = vmax.bf16 %v3604, %v3643
      %v3658 = vmax.bf16 %v3605, %v3644
      %v3659 = vmax.bf16 %v3606, %v3645
      %v3661 = vmax.bf16 %v3607, %v3639
      %v3662 = vmax.bf16 %v3608, %v3640
      %v3663 = vmax.bf16 %v3609, %v3641
      %v3664 = vmax.bf16 %v3610, %v3642
      %v3665 = vmax.bf16 %v3611, %v3643
      %v3666 = vmax.bf16 %v3612, %v3644
      %v3667 = vmax.bf16 %v3613, %v3645
      %v3668 = vmax.bf16 %v3614, %v3638
      %3677 = vrot.lane.b32.xlu0 %v3661, 96
      %v3678 = vpop.permute.xlu0 %3677
      %3679 = vrot.lane.b32.xlu0 %v3662, 96
      %v3680 = vpop.permute.xlu0 %3679
      %3681 = vrot.lane.b32.xlu0 %v3663, 96
      %v3682 = vpop.permute.xlu0 %3681
      %3683 = vrot.lane.b32.xlu0 %v3664, 96
      %v3684 = vpop.permute.xlu0 %3683
      %3685 = vrot.lane.b32.xlu0 %v3665, 96
      %v3686 = vpop.permute.xlu0 %3685
      %3687 = vrot.lane.b32.xlu0 %v3666, 96
      %v3688 = vpop.permute.xlu0 %3687
      %3689 = vrot.lane.b32.xlu0 %v3667, 96
      %v3690 = vpop.permute.xlu0 %3689
      %3691 = vrot.lane.b32.xlu0 %v3668, 96
      %v3692 = vpop.permute.xlu0 %3691
      %v3693 = vsel %vm1094, %v3678, %v3680
      %v3694 = vsel %vm1094, %v3680, %v3682
      %v3695 = vsel %vm1094, %v3682, %v3684
      %v3696 = vsel %vm1094, %v3684, %v3686
      %v3697 = vsel %vm1094, %v3686, %v3688
      %v3698 = vsel %vm1094, %v3688, %v3690
      %v3699 = vsel %vm1094, %v3690, %v3692
      %v3707 = vmax.bf16 %v3653, %v3693
      %v3708 = vmax.bf16 %v3654, %v3694
      %v3709 = vmax.bf16 %v3655, %v3695
      %v3710 = vmax.bf16 %v3656, %v3696
      %v3711 = vmax.bf16 %v3657, %v3697
      %v3712 = vmax.bf16 %v3658, %v3698
      %v3713 = vmax.bf16 %v3659, %v3699
      %v3714 = vld [vmem:[%s3] sm:$0xff]
      %v3715 = vld [vmem:[%s3 + $0x8] sm:$0xf]
      %v3716 = vld [vmem:[%s3 + $0xc] sm:$0xff]
      %v3717 = vld [vmem:[%s3 + $0x14] sm:$0xf]
      %v3718 = vld [vmem:[%s3 + $0x18] sm:$0xff]
      %v3719 = vld [vmem:[%s3 + $0x20] sm:$0xf]
      %v3720 = vld [vmem:[%s3 + $0x24] sm:$0xff]
      %v3721 = vld [vmem:[%s3 + $0x2c] sm:$0xf]
      %v3722 = vld [vmem:[%s3 + $0x30] sm:$0xff]
      %v3723 = vld [vmem:[%s3 + $0x38] sm:$0xf]
      %v3724 = vld [vmem:[%s3 + $0x3c] sm:$0xff]
      %v3725 = vld [vmem:[%s3 + $0x44] sm:$0xf]
      %v3726 = vld [vmem:[%s3 + $0x48] sm:$0xff]
      %v3727 = vld [vmem:[%s3 + $0x50] sm:$0xf]
      %v3728 = vld [vmem:[%s3 + $0x54] sm:$0xff]
      %v3729 = vld [vmem:[%s3 + $0x5c] sm:$0xf]
      %v3730 = vld [vmem:[%s3 + $0x60] sm:$0xff]
      %v3731 = vld [vmem:[%s3 + $0x68] sm:$0xf]
      %v3732 = vld [vmem:[%s3 + $0x6c] sm:$0xff]
      %v3733 = vld [vmem:[%s3 + $0x74] sm:$0xf]
      %v3734 = vld [vmem:[%s3 + $0x78] sm:$0xff]
      %v3735 = vld [vmem:[%s3 + $0x80] sm:$0xf]
      %v3736 = vld [vmem:[%s3 + $0x84] sm:$0xff]
      %v3737 = vld [vmem:[%s3 + $0x8c] sm:$0xf]
      %v3738 = vld [vmem:[%s3 + $0x90] sm:$0xff]
      %v3739 = vld [vmem:[%s3 + $0x98] sm:$0xf]
      %v3740 = vld [vmem:[%s3 + $0x9c] sm:$0xff]
      %v3741 = vld [vmem:[%s3 + $0xa4] sm:$0xf]
      %v3742 = vld [vmem:[%s3 + $0xa8] sm:$0xff]
      %v3743 = vld [vmem:[%s3 + $0xb0] sm:$0xf]
      %v3744 = vld [vmem:[%s3 + $0xb4] sm:$0xff]
      %v3745 = vld [vmem:[%s3 + $0xbc] sm:$0xf]
      %v3746 = vld [vmem:[%s3 + $0xc0] sm:$0xff]
      %v3747 = vld [vmem:[%s3 + $0xc8] sm:$0xf]
      %v3748 = vld [vmem:[%s3 + $0xcc] sm:$0xff]
      %v3749 = vld [vmem:[%s3 + $0xd4] sm:$0xf]
      %v3750 = vld [vmem:[%s3 + $0xd8] sm:$0xff]
      %v3751 = vld [vmem:[%s3 + $0xe0] sm:$0xf]
      %v3752 = vld [vmem:[%s3 + $0xe4] sm:$0xff]
      %v3753 = vld [vmem:[%s3 + $0xec] sm:$0xf]
      %v3754 = vld [vmem:[%s3 + $0xf0] sm:$0xff]
      %v3755 = vld [vmem:[%s3 + $0xf8] sm:$0xf]
      %v3756 = vld [vmem:[%s3 + $0xfc] sm:$0xff]
      %v3757 = vld [vmem:[%s3 + $0x104] sm:$0xf]
      %v3758 = vld [vmem:[%s3 + $0x108] sm:$0xff]
      %v3759 = vld [vmem:[%s3 + $0x110] sm:$0xf]
      %v3760 = vld [vmem:[%s3 + $0x114] sm:$0xff]
      %v3761 = vld [vmem:[%s3 + $0x11c] sm:$0xf]
      %v3762 = vld [vmem:[%s3 + $0x120] sm:$0xff]
      %v3763 = vld [vmem:[%s3 + $0x128] sm:$0xf]
      %v3764 = vld [vmem:[%s3 + $0x12c] sm:$0xff]
      %v3765 = vld [vmem:[%s3 + $0x134] sm:$0xf]
      %v3766 = vld [vmem:[%s3 + $0x138] sm:$0xff]
      %v3767 = vld [vmem:[%s3 + $0x140] sm:$0xf]
      %v3768 = vld [vmem:[%s3 + $0x144] sm:$0xff]
      %v3769 = vld [vmem:[%s3 + $0x14c] sm:$0xf]
      %v3770 = vld [vmem:[%s3 + $0x150] sm:$0xff]
      %v3771 = vld [vmem:[%s3 + $0x158] sm:$0xf]
      %v3772 = vld [vmem:[%s3 + $0x15c] sm:$0xff]
      %v3773 = vld [vmem:[%s3 + $0x164] sm:$0xf]
      %v3774 = vld [vmem:[%s3 + $0x168] sm:$0xff]
      %v3775 = vld [vmem:[%s3 + $0x170] sm:$0xf]
      %v3776 = vld [vmem:[%s3 + $0x174] sm:$0xff]
      %v3777 = vld [vmem:[%s3 + $0x17c] sm:$0xf]
      %v3778 = vld [vmem:[%s3 + $0x180] sm:$0xff]
      %v3779 = vld [vmem:[%s3 + $0x188] sm:$0xf]
      %v3780 = vld [vmem:[%s3 + $0x18c] sm:$0xff]
      %v3781 = vld [vmem:[%s3 + $0x194] sm:$0xf]
      %v3782 = vld [vmem:[%s3 + $0x198] sm:$0xff]
      %v3783 = vld [vmem:[%s3 + $0x1a0] sm:$0xf]
      %v3784 = vld [vmem:[%s3 + $0x1a4] sm:$0xff]
      %v3785 = vld [vmem:[%s3 + $0x1ac] sm:$0xf]
      %v3786 = vld [vmem:[%s3 + $0x1b0] sm:$0xff]
      %v3787 = vld [vmem:[%s3 + $0x1b8] sm:$0xf]
      %v3788 = vld [vmem:[%s3 + $0x1bc] sm:$0xff]
      %v3789 = vld [vmem:[%s3 + $0x1c4] sm:$0xf]
      %v3790 = vld [vmem:[%s3 + $0x1c8] sm:$0xff]
      %v3791 = vld [vmem:[%s3 + $0x1d0] sm:$0xf]
      %v3792 = vld [vmem:[%s3 + $0x1d4] sm:$0xff]
      %v3793 = vld [vmem:[%s3 + $0x1dc] sm:$0xf]
      %v3794 = vld [vmem:[%s3 + $0x1e0] sm:$0xff]
      %v3795 = vld [vmem:[%s3 + $0x1e8] sm:$0xf]
      %v3796 = vld [vmem:[%s3 + $0x1ec] sm:$0xff]
      %v3797 = vld [vmem:[%s3 + $0x1f4] sm:$0xf]
      %v3798 = vld [vmem:[%s3 + $0x1f8] sm:$0xff]
      %v3799 = vld [vmem:[%s3 + $0x200] sm:$0xf]
      %v3800 = vld [vmem:[%s3 + $0x204] sm:$0xff]
      %v3801 = vld [vmem:[%s3 + $0x20c] sm:$0xf]
      %v3802 = vld [vmem:[%s3 + $0x210] sm:$0xff]
      %v3803 = vld [vmem:[%s3 + $0x218] sm:$0xf]
      %v3804 = vld [vmem:[%s3 + $0x21c] sm:$0xff]
      %v3805 = vld [vmem:[%s3 + $0x224] sm:$0xf]
      %v3806 = vld [vmem:[%s3 + $0x228] sm:$0xff]
      %v3807 = vld [vmem:[%s3 + $0x230] sm:$0xf]
      %v3808 = vld [vmem:[%s3 + $0x234] sm:$0xff]
      %v3809 = vld [vmem:[%s3 + $0x23c] sm:$0xf]
      %v3810 = vld [vmem:[%s3 + $0x240] sm:$0xff]
      %v3811 = vld [vmem:[%s3 + $0x248] sm:$0xf]
      %v3812 = vld [vmem:[%s3 + $0x24c] sm:$0xff]
      %v3813 = vld [vmem:[%s3 + $0x254] sm:$0xf]
      %v3814 = vld [vmem:[%s3 + $0x258] sm:$0xff]
      %v3815 = vld [vmem:[%s3 + $0x260] sm:$0xf]
      %v3816 = vld [vmem:[%s3 + $0x264] sm:$0xff]
      %v3817 = vld [vmem:[%s3 + $0x26c] sm:$0xf]
      %v3818 = vld [vmem:[%s3 + $0x270] sm:$0xff]
      %v3819 = vld [vmem:[%s3 + $0x278] sm:$0xf]
      %v3820 = vld [vmem:[%s3 + $0x27c] sm:$0xff]
      %v3821 = vld [vmem:[%s3 + $0x284] sm:$0xf]
      %v3822 = vld [vmem:[%s3 + $0x288] sm:$0xff]
      %v3823 = vld [vmem:[%s3 + $0x290] sm:$0xf]
      %v3824 = vld [vmem:[%s3 + $0x294] sm:$0xff]
      %v3825 = vld [vmem:[%s3 + $0x29c] sm:$0xf]
      %v3826 = vld [vmem:[%s3 + $0x2a0] sm:$0xff]
      %v3827 = vld [vmem:[%s3 + $0x2a8] sm:$0xf]
      %v3828 = vld [vmem:[%s3 + $0x2ac] sm:$0xff]
      %v3829 = vld [vmem:[%s3 + $0x2b4] sm:$0xf]
      %v3830 = vld [vmem:[%s3 + $0x2b8] sm:$0xff]
      %v3831 = vld [vmem:[%s3 + $0x2c0] sm:$0xf]
      %v3832 = vld [vmem:[%s3 + $0x2c4] sm:$0xff]
      %v3833 = vld [vmem:[%s3 + $0x2cc] sm:$0xf]
      %v3834 = vld [vmem:[%s3 + $0x2d0] sm:$0xff]
      %v3835 = vld [vmem:[%s3 + $0x2d8] sm:$0xf]
      %v3836 = vld [vmem:[%s3 + $0x2dc] sm:$0xff]
      %v3837 = vld [vmem:[%s3 + $0x2e4] sm:$0xf]
      %v3838 = vld [vmem:[%s3 + $0x2e8] sm:$0xff]
      %v3839 = vld [vmem:[%s3 + $0x2f0] sm:$0xf]
      %v3840 = vld [vmem:[%s3 + $0x2f4] sm:$0xff]
      %v3841 = vld [vmem:[%s3 + $0x2fc] sm:$0xf]
      %v3842 = vld [vmem:[%s3 + $0x300] sm:$0xff]
      %v3843 = vld [vmem:[%s3 + $0x308] sm:$0xf]
      %v3844 = vld [vmem:[%s3 + $0x30c] sm:$0xff]
      %v3845 = vld [vmem:[%s3 + $0x314] sm:$0xf]
      %v3846 = vld [vmem:[%s3 + $0x318] sm:$0xff]
      %v3847 = vld [vmem:[%s3 + $0x320] sm:$0xf]
      %v3848 = vld [vmem:[%s3 + $0x324] sm:$0xff]
      %v3849 = vld [vmem:[%s3 + $0x32c] sm:$0xf]
      %v3850 = vld [vmem:[%s3 + $0x330] sm:$0xff]
      %v3851 = vld [vmem:[%s3 + $0x338] sm:$0xf]
      %v3852 = vld [vmem:[%s3 + $0x33c] sm:$0xff]
      %v3853 = vld [vmem:[%s3 + $0x344] sm:$0xf]
      %v3854 = vld [vmem:[%s3 + $0x348] sm:$0xff]
      %v3855 = vld [vmem:[%s3 + $0x350] sm:$0xf]
      %v3856 = vld [vmem:[%s3 + $0x354] sm:$0xff]
      %v3857 = vld [vmem:[%s3 + $0x35c] sm:$0xf]
      %v3858 = vld [vmem:[%s3 + $0x360] sm:$0xff]
      %v3859 = vld [vmem:[%s3 + $0x368] sm:$0xf]
      %v3860 = vld [vmem:[%s3 + $0x36c] sm:$0xff]
      %v3861 = vld [vmem:[%s3 + $0x374] sm:$0xf]
      %v3862 = vld [vmem:[%s3 + $0x378] sm:$0xff]
      %v3863 = vld [vmem:[%s3 + $0x380] sm:$0xf]
      %v3864 = vld [vmem:[%s3 + $0x384] sm:$0xff]
      %v3865 = vld [vmem:[%s3 + $0x38c] sm:$0xf]
      %v3866 = vld [vmem:[%s3 + $0x390] sm:$0xff]
      %v3867 = vld [vmem:[%s3 + $0x398] sm:$0xf]
      %v3868 = vld [vmem:[%s3 + $0x39c] sm:$0xff]
      %v3869 = vld [vmem:[%s3 + $0x3a4] sm:$0xf]
      %v3870 = vld [vmem:[%s3 + $0x3a8] sm:$0xff]
      %v3871 = vld [vmem:[%s3 + $0x3b0] sm:$0xf]
      %v3872 = vld [vmem:[%s3 + $0x3b4] sm:$0xff]
      %v3873 = vld [vmem:[%s3 + $0x3bc] sm:$0xf]
      %v3874 = vld [vmem:[%s3 + $0x3c0] sm:$0xff]
      %v3875 = vld [vmem:[%s3 + $0x3c8] sm:$0xf]
      %v3876 = vld [vmem:[%s3 + $0x3cc] sm:$0xff]
      %v3877 = vld [vmem:[%s3 + $0x3d4] sm:$0xf]
      %v3878 = vld [vmem:[%s3 + $0x3d8] sm:$0xff]
      %v3879 = vld [vmem:[%s3 + $0x3e0] sm:$0xf]
      %v3880 = vld [vmem:[%s3 + $0x3e4] sm:$0xff]
      %v3881 = vld [vmem:[%s3 + $0x3ec] sm:$0xf]
      %v3882 = vld [vmem:[%s3 + $0x3f0] sm:$0xff]
      %v3883 = vld [vmem:[%s3 + $0x3f8] sm:$0xf]
      %v3884 = vld [vmem:[%s3 + $0x3fc] sm:$0xff]
      %v3885 = vld [vmem:[%s3 + $0x404] sm:$0xf]
      %v3886 = vld [vmem:[%s3 + $0x408] sm:$0xff]
      %v3887 = vld [vmem:[%s3 + $0x410] sm:$0xf]
      %v3888 = vld [vmem:[%s3 + $0x414] sm:$0xff]
      %v3889 = vld [vmem:[%s3 + $0x41c] sm:$0xf]
      %v3890 = vld [vmem:[%s3 + $0x420] sm:$0xff]
      %v3891 = vld [vmem:[%s3 + $0x428] sm:$0xf]
      %v3892 = vld [vmem:[%s3 + $0x42c] sm:$0xff]
      %v3893 = vld [vmem:[%s3 + $0x434] sm:$0xf]
      %v3894 = vld [vmem:[%s3 + $0x438] sm:$0xff]
      %v3895 = vld [vmem:[%s3 + $0x440] sm:$0xf]
      %v3896 = vld [vmem:[%s3 + $0x444] sm:$0xff]
      %v3897 = vld [vmem:[%s3 + $0x44c] sm:$0xf]
      %v3898 = vld [vmem:[%s3 + $0x450] sm:$0xff]
      %v3899 = vld [vmem:[%s3 + $0x458] sm:$0xf]
      %v3900 = vld [vmem:[%s3 + $0x45c] sm:$0xff]
      %v3901 = vld [vmem:[%s3 + $0x464] sm:$0xf]
      %v3902 = vld [vmem:[%s3 + $0x468] sm:$0xff]
      %v3903 = vld [vmem:[%s3 + $0x470] sm:$0xf]
      %v3904 = vld [vmem:[%s3 + $0x474] sm:$0xff]
      %v3905 = vld [vmem:[%s3 + $0x47c] sm:$0xf]
      %v3906 = vld [vmem:[%s3 + $0x480] sm:$0xff]
      %v3907 = vld [vmem:[%s3 + $0x488] sm:$0xf]
      %v3908 = vld [vmem:[%s3 + $0x48c] sm:$0xff]
      %v3909 = vld [vmem:[%s3 + $0x494] sm:$0xf]
      %v3910 = vld [vmem:[%s3 + $0x498] sm:$0xff]
      %v3911 = vld [vmem:[%s3 + $0x4a0] sm:$0xf]
      %v3912 = vld [vmem:[%s3 + $0x4a4] sm:$0xff]
      %v3913 = vld [vmem:[%s3 + $0x4ac] sm:$0xf]
      %v3914 = vld [vmem:[%s3 + $0x4b0] sm:$0xff]
      %v3915 = vld [vmem:[%s3 + $0x4b8] sm:$0xf]
      %v3916 = vld [vmem:[%s3 + $0x4bc] sm:$0xff]
      %v3917 = vld [vmem:[%s3 + $0x4c4] sm:$0xf]
      %v3918 = vld [vmem:[%s3 + $0x4c8] sm:$0xff]
      %v3919 = vld [vmem:[%s3 + $0x4d0] sm:$0xf]
      %v3920 = vld [vmem:[%s3 + $0x4d4] sm:$0xff]
      %v3921 = vld [vmem:[%s3 + $0x4dc] sm:$0xf]
      %v3922 = vld [vmem:[%s3 + $0x4e0] sm:$0xff]
      %v3923 = vld [vmem:[%s3 + $0x4e8] sm:$0xf]
      %v3924 = vld [vmem:[%s3 + $0x4ec] sm:$0xff]
      %v3925 = vld [vmem:[%s3 + $0x4f4] sm:$0xf]
      %v3926 = vld [vmem:[%s3 + $0x4f8] sm:$0xff]
      %v3927 = vld [vmem:[%s3 + $0x500] sm:$0xf]
      %v3928 = vld [vmem:[%s3 + $0x504] sm:$0xff]
      %v3929 = vld [vmem:[%s3 + $0x50c] sm:$0xf]
      %v3930 = vld [vmem:[%s3 + $0x510] sm:$0xff]
      %v3931 = vld [vmem:[%s3 + $0x518] sm:$0xf]
      %v3932 = vld [vmem:[%s3 + $0x51c] sm:$0xff]
      %v3933 = vld [vmem:[%s3 + $0x524] sm:$0xf]
      %v3934 = vld [vmem:[%s3 + $0x528] sm:$0xff]
      %v3935 = vld [vmem:[%s3 + $0x530] sm:$0xf]
      %v3936 = vld [vmem:[%s3 + $0x534] sm:$0xff]
      %v3937 = vld [vmem:[%s3 + $0x53c] sm:$0xf]
      %v4162 = vunpack.c.l.b16 %v3714
      %v4163 = vunpack.c.h.b16 %v3714
      %v4164 = vunpack.c.l.b16 %v3715
      %v4165 = vunpack.c.l.b16 %v3716
      %v4166 = vunpack.c.h.b16 %v3716
      %v4167 = vunpack.c.l.b16 %v3717
      %v4168 = vunpack.c.l.b16 %v3718
      %v4169 = vunpack.c.h.b16 %v3718
      %v4170 = vunpack.c.l.b16 %v3719
      %v4171 = vunpack.c.l.b16 %v3720
      %v4172 = vunpack.c.h.b16 %v3720
      %v4173 = vunpack.c.l.b16 %v3721
      %v4174 = vunpack.c.l.b16 %v3722
      %v4175 = vunpack.c.h.b16 %v3722
      %v4176 = vunpack.c.l.b16 %v3723
      %v4177 = vunpack.c.l.b16 %v3724
      %v4178 = vunpack.c.h.b16 %v3724
      %v4179 = vunpack.c.l.b16 %v3725
      %v4180 = vunpack.c.l.b16 %v3726
      %v4181 = vunpack.c.h.b16 %v3726
      %v4182 = vunpack.c.l.b16 %v3727
      %v4183 = vunpack.c.l.b16 %v3728
      %v4184 = vunpack.c.h.b16 %v3728
      %v4185 = vunpack.c.l.b16 %v3729
      %v4186 = vunpack.c.l.b16 %v3730
      %v4187 = vunpack.c.h.b16 %v3730
      %v4188 = vunpack.c.l.b16 %v3731
      %v4189 = vunpack.c.l.b16 %v3732
      %v4190 = vunpack.c.h.b16 %v3732
      %v4191 = vunpack.c.l.b16 %v3733
      %v4192 = vunpack.c.l.b16 %v3734
      %v4193 = vunpack.c.h.b16 %v3734
      %v4194 = vunpack.c.l.b16 %v3735
      %v4195 = vunpack.c.l.b16 %v3736
      %v4196 = vunpack.c.h.b16 %v3736
      %v4197 = vunpack.c.l.b16 %v3737
      %v4198 = vunpack.c.l.b16 %v3738
      %v4199 = vunpack.c.h.b16 %v3738
      %v4200 = vunpack.c.l.b16 %v3739
      %v4201 = vunpack.c.l.b16 %v3740
      %v4202 = vunpack.c.h.b16 %v3740
      %v4203 = vunpack.c.l.b16 %v3741
      %v4204 = vunpack.c.l.b16 %v3742
      %v4205 = vunpack.c.h.b16 %v3742
      %v4206 = vunpack.c.l.b16 %v3743
      %v4207 = vunpack.c.l.b16 %v3744
      %v4208 = vunpack.c.h.b16 %v3744
      %v4209 = vunpack.c.l.b16 %v3745
      %v4210 = vunpack.c.l.b16 %v3746
      %v4211 = vunpack.c.h.b16 %v3746
      %v4212 = vunpack.c.l.b16 %v3747
      %v4213 = vunpack.c.l.b16 %v3748
      %v4214 = vunpack.c.h.b16 %v3748
      %v4215 = vunpack.c.l.b16 %v3749
      %v4216 = vunpack.c.l.b16 %v3750
      %v4217 = vunpack.c.h.b16 %v3750
      %v4218 = vunpack.c.l.b16 %v3751
      %v4219 = vunpack.c.l.b16 %v3752
      %v4220 = vunpack.c.h.b16 %v3752
      %v4221 = vunpack.c.l.b16 %v3753
      %v4222 = vunpack.c.l.b16 %v3754
      %v4223 = vunpack.c.h.b16 %v3754
      %v4224 = vunpack.c.l.b16 %v3755
      %v4225 = vunpack.c.l.b16 %v3756
      %v4226 = vunpack.c.h.b16 %v3756
      %v4227 = vunpack.c.l.b16 %v3757
      %v4228 = vunpack.c.l.b16 %v3758
      %v4229 = vunpack.c.h.b16 %v3758
      %v4230 = vunpack.c.l.b16 %v3759
      %v4231 = vunpack.c.l.b16 %v3760
      %v4232 = vunpack.c.h.b16 %v3760
      %v4233 = vunpack.c.l.b16 %v3761
      %v4234 = vunpack.c.l.b16 %v3762
      %v4235 = vunpack.c.h.b16 %v3762
      %v4236 = vunpack.c.l.b16 %v3763
      %v4237 = vunpack.c.l.b16 %v3764
      %v4238 = vunpack.c.h.b16 %v3764
      %v4239 = vunpack.c.l.b16 %v3765
      %v4240 = vunpack.c.l.b16 %v3766
      %v4241 = vunpack.c.h.b16 %v3766
      %v4242 = vunpack.c.l.b16 %v3767
      %v4243 = vunpack.c.l.b16 %v3768
      %v4244 = vunpack.c.h.b16 %v3768
      %v4245 = vunpack.c.l.b16 %v3769
      %v4246 = vunpack.c.l.b16 %v3770
      %v4247 = vunpack.c.h.b16 %v3770
      %v4248 = vunpack.c.l.b16 %v3771
      %v4249 = vunpack.c.l.b16 %v3772
      %v4250 = vunpack.c.h.b16 %v3772
      %v4251 = vunpack.c.l.b16 %v3773
      %v4252 = vunpack.c.l.b16 %v3774
      %v4253 = vunpack.c.h.b16 %v3774
      %v4254 = vunpack.c.l.b16 %v3775
      %v4255 = vunpack.c.l.b16 %v3776
      %v4256 = vunpack.c.h.b16 %v3776
      %v4257 = vunpack.c.l.b16 %v3777
      %v4258 = vunpack.c.l.b16 %v3778
      %v4259 = vunpack.c.h.b16 %v3778
      %v4260 = vunpack.c.l.b16 %v3779
      %v4261 = vunpack.c.l.b16 %v3780
      %v4262 = vunpack.c.h.b16 %v3780
      %v4263 = vunpack.c.l.b16 %v3781
      %v4264 = vunpack.c.l.b16 %v3782
      %v4265 = vunpack.c.h.b16 %v3782
      %v4266 = vunpack.c.l.b16 %v3783
      %v4267 = vunpack.c.l.b16 %v3784
      %v4268 = vunpack.c.h.b16 %v3784
      %v4269 = vunpack.c.l.b16 %v3785
      %v4270 = vunpack.c.l.b16 %v3786
      %v4271 = vunpack.c.h.b16 %v3786
      %v4272 = vunpack.c.l.b16 %v3787
      %v4273 = vunpack.c.l.b16 %v3788
      %v4274 = vunpack.c.h.b16 %v3788
      %v4275 = vunpack.c.l.b16 %v3789
      %v4276 = vunpack.c.l.b16 %v3790
      %v4277 = vunpack.c.h.b16 %v3790
      %v4278 = vunpack.c.l.b16 %v3791
      %v4279 = vunpack.c.l.b16 %v3792
      %v4280 = vunpack.c.h.b16 %v3792
      %v4281 = vunpack.c.l.b16 %v3793
      %v4282 = vunpack.c.l.b16 %v3794
      %v4283 = vunpack.c.h.b16 %v3794
      %v4284 = vunpack.c.l.b16 %v3795
      %v4285 = vunpack.c.l.b16 %v3796
      %v4286 = vunpack.c.h.b16 %v3796
      %v4287 = vunpack.c.l.b16 %v3797
      %v4288 = vunpack.c.l.b16 %v3798
      %v4289 = vunpack.c.h.b16 %v3798
      %v4290 = vunpack.c.l.b16 %v3799
      %v4291 = vunpack.c.l.b16 %v3800
      %v4292 = vunpack.c.h.b16 %v3800
      %v4293 = vunpack.c.l.b16 %v3801
      %v4294 = vunpack.c.l.b16 %v3802
      %v4295 = vunpack.c.h.b16 %v3802
      %v4296 = vunpack.c.l.b16 %v3803
      %v4297 = vunpack.c.l.b16 %v3804
      %v4298 = vunpack.c.h.b16 %v3804
      %v4299 = vunpack.c.l.b16 %v3805
      %v4300 = vunpack.c.l.b16 %v3806
      %v4301 = vunpack.c.h.b16 %v3806
      %v4302 = vunpack.c.l.b16 %v3807
      %v4303 = vunpack.c.l.b16 %v3808
      %v4304 = vunpack.c.h.b16 %v3808
      %v4305 = vunpack.c.l.b16 %v3809
      %v4306 = vunpack.c.l.b16 %v3810
      %v4307 = vunpack.c.h.b16 %v3810
      %v4308 = vunpack.c.l.b16 %v3811
      %v4309 = vunpack.c.l.b16 %v3812
      %v4310 = vunpack.c.h.b16 %v3812
      %v4311 = vunpack.c.l.b16 %v3813
      %v4312 = vunpack.c.l.b16 %v3814
      %v4313 = vunpack.c.h.b16 %v3814
      %v4314 = vunpack.c.l.b16 %v3815
      %v4315 = vunpack.c.l.b16 %v3816
      %v4316 = vunpack.c.h.b16 %v3816
      %v4317 = vunpack.c.l.b16 %v3817
      %v4318 = vunpack.c.l.b16 %v3818
      %v4319 = vunpack.c.h.b16 %v3818
      %v4320 = vunpack.c.l.b16 %v3819
      %v4321 = vunpack.c.l.b16 %v3820
      %v4322 = vunpack.c.h.b16 %v3820
      %v4323 = vunpack.c.l.b16 %v3821
      %v4324 = vunpack.c.l.b16 %v3822
      %v4325 = vunpack.c.h.b16 %v3822
      %v4326 = vunpack.c.l.b16 %v3823
      %v4327 = vunpack.c.l.b16 %v3824
      %v4328 = vunpack.c.h.b16 %v3824
      %v4329 = vunpack.c.l.b16 %v3825
      %v4330 = vunpack.c.l.b16 %v3826
      %v4331 = vunpack.c.h.b16 %v3826
      %v4332 = vunpack.c.l.b16 %v3827
      %v4333 = vunpack.c.l.b16 %v3828
      %v4334 = vunpack.c.h.b16 %v3828
      %v4335 = vunpack.c.l.b16 %v3829
      %v4336 = vunpack.c.l.b16 %v3830
      %v4337 = vunpack.c.h.b16 %v3830
      %v4338 = vunpack.c.l.b16 %v3831
      %v4339 = vunpack.c.l.b16 %v3832
      %v4340 = vunpack.c.h.b16 %v3832
      %v4341 = vunpack.c.l.b16 %v3833
      %v4342 = vunpack.c.l.b16 %v3834
      %v4343 = vunpack.c.h.b16 %v3834
      %v4344 = vunpack.c.l.b16 %v3835
      %v4345 = vunpack.c.l.b16 %v3836
      %v4346 = vunpack.c.h.b16 %v3836
      %v4347 = vunpack.c.l.b16 %v3837
      %v4348 = vunpack.c.l.b16 %v3838
      %v4349 = vunpack.c.h.b16 %v3838
      %v4350 = vunpack.c.l.b16 %v3839
      %v4351 = vunpack.c.l.b16 %v3840
      %v4352 = vunpack.c.h.b16 %v3840
      %v4353 = vunpack.c.l.b16 %v3841
      %v4354 = vunpack.c.l.b16 %v3842
      %v4355 = vunpack.c.h.b16 %v3842
      %v4356 = vunpack.c.l.b16 %v3843
      %v4357 = vunpack.c.l.b16 %v3844
      %v4358 = vunpack.c.h.b16 %v3844
      %v4359 = vunpack.c.l.b16 %v3845
      %v4360 = vunpack.c.l.b16 %v3846
      %v4361 = vunpack.c.h.b16 %v3846
      %v4362 = vunpack.c.l.b16 %v3847
      %v4363 = vunpack.c.l.b16 %v3848
      %v4364 = vunpack.c.h.b16 %v3848
      %v4365 = vunpack.c.l.b16 %v3849
      %v4366 = vunpack.c.l.b16 %v3850
      %v4367 = vunpack.c.h.b16 %v3850
      %v4368 = vunpack.c.l.b16 %v3851
      %v4369 = vunpack.c.l.b16 %v3852
      %v4370 = vunpack.c.h.b16 %v3852
      %v4371 = vunpack.c.l.b16 %v3853
      %v4372 = vunpack.c.l.b16 %v3854
      %v4373 = vunpack.c.h.b16 %v3854
      %v4374 = vunpack.c.l.b16 %v3855
      %v4375 = vunpack.c.l.b16 %v3856
      %v4376 = vunpack.c.h.b16 %v3856
      %v4377 = vunpack.c.l.b16 %v3857
      %v4378 = vunpack.c.l.b16 %v3858
      %v4379 = vunpack.c.h.b16 %v3858
      %v4380 = vunpack.c.l.b16 %v3859
      %v4381 = vunpack.c.l.b16 %v3860
      %v4382 = vunpack.c.h.b16 %v3860
      %v4383 = vunpack.c.l.b16 %v3861
      %v4384 = vunpack.c.l.b16 %v3862
      %v4385 = vunpack.c.h.b16 %v3862
      %v4386 = vunpack.c.l.b16 %v3863
      %v4387 = vunpack.c.l.b16 %v3864
      %v4388 = vunpack.c.h.b16 %v3864
      %v4389 = vunpack.c.l.b16 %v3865
      %v4390 = vunpack.c.l.b16 %v3866
      %v4391 = vunpack.c.h.b16 %v3866
      %v4392 = vunpack.c.l.b16 %v3867
      %v4393 = vunpack.c.l.b16 %v3868
      %v4394 = vunpack.c.h.b16 %v3868
      %v4395 = vunpack.c.l.b16 %v3869
      %v4396 = vunpack.c.l.b16 %v3870
      %v4397 = vunpack.c.h.b16 %v3870
      %v4398 = vunpack.c.l.b16 %v3871
      %v4399 = vunpack.c.l.b16 %v3872
      %v4400 = vunpack.c.h.b16 %v3872
      %v4401 = vunpack.c.l.b16 %v3873
      %v4402 = vunpack.c.l.b16 %v3874
      %v4403 = vunpack.c.h.b16 %v3874
      %v4404 = vunpack.c.l.b16 %v3875
      %v4405 = vunpack.c.l.b16 %v3876
      %v4406 = vunpack.c.h.b16 %v3876
      %v4407 = vunpack.c.l.b16 %v3877
      %v4408 = vunpack.c.l.b16 %v3878
      %v4409 = vunpack.c.h.b16 %v3878
      %v4410 = vunpack.c.l.b16 %v3879
      %v4411 = vunpack.c.l.b16 %v3880
      %v4412 = vunpack.c.h.b16 %v3880
      %v4413 = vunpack.c.l.b16 %v3881
      %v4414 = vunpack.c.l.b16 %v3882
      %v4415 = vunpack.c.h.b16 %v3882
      %v4416 = vunpack.c.l.b16 %v3883
      %v4417 = vunpack.c.l.b16 %v3884
      %v4418 = vunpack.c.h.b16 %v3884
      %v4419 = vunpack.c.l.b16 %v3885
      %v4420 = vunpack.c.l.b16 %v3886
      %v4421 = vunpack.c.h.b16 %v3886
      %v4422 = vunpack.c.l.b16 %v3887
      %v4423 = vunpack.c.l.b16 %v3888
      %v4424 = vunpack.c.h.b16 %v3888
      %v4425 = vunpack.c.l.b16 %v3889
      %v4426 = vunpack.c.l.b16 %v3890
      %v4427 = vunpack.c.h.b16 %v3890
      %v4428 = vunpack.c.l.b16 %v3891
      %v4429 = vunpack.c.l.b16 %v3892
      %v4430 = vunpack.c.h.b16 %v3892
      %v4431 = vunpack.c.l.b16 %v3893
      %v4432 = vunpack.c.l.b16 %v3894
      %v4433 = vunpack.c.h.b16 %v3894
      %v4434 = vunpack.c.l.b16 %v3895
      %v4435 = vunpack.c.l.b16 %v3896
      %v4436 = vunpack.c.h.b16 %v3896
      %v4437 = vunpack.c.l.b16 %v3897
      %v4438 = vunpack.c.l.b16 %v3898
      %v4439 = vunpack.c.h.b16 %v3898
      %v4440 = vunpack.c.l.b16 %v3899
      %v4441 = vunpack.c.l.b16 %v3900
      %v4442 = vunpack.c.h.b16 %v3900
      %v4443 = vunpack.c.l.b16 %v3901
      %v4444 = vunpack.c.l.b16 %v3902
      %v4445 = vunpack.c.h.b16 %v3902
      %v4446 = vunpack.c.l.b16 %v3903
      %v4447 = vunpack.c.l.b16 %v3904
      %v4448 = vunpack.c.h.b16 %v3904
      %v4449 = vunpack.c.l.b16 %v3905
      %v4450 = vunpack.c.l.b16 %v3906
      %v4451 = vunpack.c.h.b16 %v3906
      %v4452 = vunpack.c.l.b16 %v3907
      %v4453 = vunpack.c.l.b16 %v3908
      %v4454 = vunpack.c.h.b16 %v3908
      %v4455 = vunpack.c.l.b16 %v3909
      %v4456 = vunpack.c.l.b16 %v3910
      %v4457 = vunpack.c.h.b16 %v3910
      %v4458 = vunpack.c.l.b16 %v3911
      %v4459 = vunpack.c.l.b16 %v3912
      %v4460 = vunpack.c.h.b16 %v3912
      %v4461 = vunpack.c.l.b16 %v3913
      %v4462 = vunpack.c.l.b16 %v3914
      %v4463 = vunpack.c.h.b16 %v3914
      %v4464 = vunpack.c.l.b16 %v3915
      %v4465 = vunpack.c.l.b16 %v3916
      %v4466 = vunpack.c.h.b16 %v3916
      %v4467 = vunpack.c.l.b16 %v3917
      %v4468 = vunpack.c.l.b16 %v3918
      %v4469 = vunpack.c.h.b16 %v3918
      %v4470 = vunpack.c.l.b16 %v3919
      %v4471 = vunpack.c.l.b16 %v3920
      %v4472 = vunpack.c.h.b16 %v3920
      %v4473 = vunpack.c.l.b16 %v3921
      %v4474 = vunpack.c.l.b16 %v3922
      %v4475 = vunpack.c.h.b16 %v3922
      %v4476 = vunpack.c.l.b16 %v3923
      %v4477 = vunpack.c.l.b16 %v3924
      %v4478 = vunpack.c.h.b16 %v3924
      %v4479 = vunpack.c.l.b16 %v3925
      %v4480 = vunpack.c.l.b16 %v3926
      %v4481 = vunpack.c.h.b16 %v3926
      %v4482 = vunpack.c.l.b16 %v3927
      %v4483 = vunpack.c.l.b16 %v3928
      %v4484 = vunpack.c.h.b16 %v3928
      %v4485 = vunpack.c.l.b16 %v3929
      %v4486 = vunpack.c.l.b16 %v3930
      %v4487 = vunpack.c.h.b16 %v3930
      %v4488 = vunpack.c.l.b16 %v3931
      %v4489 = vunpack.c.l.b16 %v3932
      %v4490 = vunpack.c.h.b16 %v3932
      %v4491 = vunpack.c.l.b16 %v3933
      %v4492 = vunpack.c.l.b16 %v3934
      %v4493 = vunpack.c.h.b16 %v3934
      %v4494 = vunpack.c.l.b16 %v3935
      %v4495 = vunpack.c.l.b16 %v3936
      %v4496 = vunpack.c.h.b16 %v3936
      %v4497 = vunpack.c.l.b16 %v3937
      %v4498 = vpack.c.b16 %v4165, %v4162
      %v4499 = vpack.c.b16 %v4166, %v4163
      %v4500 = vpack.c.b16 %v4167, %v4164
      %v4501 = vpack.c.b16 %v4171, %v4168
      %v4502 = vpack.c.b16 %v4172, %v4169
      %v4503 = vpack.c.b16 %v4173, %v4170
      %v4504 = vpack.c.b16 %v4177, %v4174
      %v4505 = vpack.c.b16 %v4178, %v4175
      %v4506 = vpack.c.b16 %v4179, %v4176
      %v4507 = vpack.c.b16 %v4183, %v4180
      %v4508 = vpack.c.b16 %v4184, %v4181
      %v4509 = vpack.c.b16 %v4185, %v4182
      %v4510 = vpack.c.b16 %v4189, %v4186
      %v4511 = vpack.c.b16 %v4190, %v4187
      %v4512 = vpack.c.b16 %v4191, %v4188
      %v4513 = vpack.c.b16 %v4195, %v4192
      %v4514 = vpack.c.b16 %v4196, %v4193
      %v4515 = vpack.c.b16 %v4197, %v4194
      %v4516 = vpack.c.b16 %v4201, %v4198
      %v4517 = vpack.c.b16 %v4202, %v4199
      %v4518 = vpack.c.b16 %v4203, %v4200
      %v4519 = vpack.c.b16 %v4207, %v4204
      %v4520 = vpack.c.b16 %v4208, %v4205
      %v4521 = vpack.c.b16 %v4209, %v4206
      %v4522 = vpack.c.b16 %v4213, %v4210
      %v4523 = vpack.c.b16 %v4214, %v4211
      %v4524 = vpack.c.b16 %v4215, %v4212
      %v4525 = vpack.c.b16 %v4219, %v4216
      %v4526 = vpack.c.b16 %v4220, %v4217
      %v4527 = vpack.c.b16 %v4221, %v4218
      %v4528 = vpack.c.b16 %v4225, %v4222
      %v4529 = vpack.c.b16 %v4226, %v4223
      %v4530 = vpack.c.b16 %v4227, %v4224
      %v4531 = vpack.c.b16 %v4231, %v4228
      %v4532 = vpack.c.b16 %v4232, %v4229
      %v4533 = vpack.c.b16 %v4233, %v4230
      %v4534 = vpack.c.b16 %v4237, %v4234
      %v4535 = vpack.c.b16 %v4238, %v4235
      %v4536 = vpack.c.b16 %v4239, %v4236
      %v4537 = vpack.c.b16 %v4243, %v4240
      %v4538 = vpack.c.b16 %v4244, %v4241
      %v4539 = vpack.c.b16 %v4245, %v4242
      %v4540 = vpack.c.b16 %v4249, %v4246
      %v4541 = vpack.c.b16 %v4250, %v4247
      %v4542 = vpack.c.b16 %v4251, %v4248
      %v4543 = vpack.c.b16 %v4255, %v4252
      %v4544 = vpack.c.b16 %v4256, %v4253
      %v4545 = vpack.c.b16 %v4257, %v4254
      %v4546 = vpack.c.b16 %v4261, %v4258
      %v4547 = vpack.c.b16 %v4262, %v4259
      %v4548 = vpack.c.b16 %v4263, %v4260
      %v4549 = vpack.c.b16 %v4267, %v4264
      %v4550 = vpack.c.b16 %v4268, %v4265
      %v4551 = vpack.c.b16 %v4269, %v4266
      %v4552 = vpack.c.b16 %v4273, %v4270
      %v4553 = vpack.c.b16 %v4274, %v4271
      %v4554 = vpack.c.b16 %v4275, %v4272
      %v4555 = vpack.c.b16 %v4279, %v4276
      %v4556 = vpack.c.b16 %v4280, %v4277
      %v4557 = vpack.c.b16 %v4281, %v4278
      %v4558 = vpack.c.b16 %v4285, %v4282
      %v4559 = vpack.c.b16 %v4286, %v4283
      %v4560 = vpack.c.b16 %v4287, %v4284
      %v4561 = vpack.c.b16 %v4291, %v4288
      %v4562 = vpack.c.b16 %v4292, %v4289
      %v4563 = vpack.c.b16 %v4293, %v4290
      %v4564 = vpack.c.b16 %v4297, %v4294
      %v4565 = vpack.c.b16 %v4298, %v4295
      %v4566 = vpack.c.b16 %v4299, %v4296
      %v4567 = vpack.c.b16 %v4303, %v4300
      %v4568 = vpack.c.b16 %v4304, %v4301
      %v4569 = vpack.c.b16 %v4305, %v4302
      %v4570 = vpack.c.b16 %v4309, %v4306
      %v4571 = vpack.c.b16 %v4310, %v4307
      %v4572 = vpack.c.b16 %v4311, %v4308
      %v4573 = vpack.c.b16 %v4315, %v4312
      %v4574 = vpack.c.b16 %v4316, %v4313
      %v4575 = vpack.c.b16 %v4317, %v4314
      %v4576 = vpack.c.b16 %v4321, %v4318
      %v4577 = vpack.c.b16 %v4322, %v4319
      %v4578 = vpack.c.b16 %v4323, %v4320
      %v4579 = vpack.c.b16 %v4327, %v4324
      %v4580 = vpack.c.b16 %v4328, %v4325
      %v4581 = vpack.c.b16 %v4329, %v4326
      %v4582 = vpack.c.b16 %v4333, %v4330
      %v4583 = vpack.c.b16 %v4334, %v4331
      %v4584 = vpack.c.b16 %v4335, %v4332
      %v4585 = vpack.c.b16 %v4339, %v4336
      %v4586 = vpack.c.b16 %v4340, %v4337
      %v4587 = vpack.c.b16 %v4341, %v4338
      %v4588 = vpack.c.b16 %v4345, %v4342
      %v4589 = vpack.c.b16 %v4346, %v4343
      %v4590 = vpack.c.b16 %v4347, %v4344
      %v4591 = vpack.c.b16 %v4351, %v4348
      %v4592 = vpack.c.b16 %v4352, %v4349
      %v4593 = vpack.c.b16 %v4353, %v4350
      %v4594 = vpack.c.b16 %v4357, %v4354
      %v4595 = vpack.c.b16 %v4358, %v4355
      %v4596 = vpack.c.b16 %v4359, %v4356
      %v4597 = vpack.c.b16 %v4363, %v4360
      %v4598 = vpack.c.b16 %v4364, %v4361
      %v4599 = vpack.c.b16 %v4365, %v4362
      %v4600 = vpack.c.b16 %v4369, %v4366
      %v4601 = vpack.c.b16 %v4370, %v4367
      %v4602 = vpack.c.b16 %v4371, %v4368
      %v4603 = vpack.c.b16 %v4375, %v4372
      %v4604 = vpack.c.b16 %v4376, %v4373
      %v4605 = vpack.c.b16 %v4377, %v4374
      %v4606 = vpack.c.b16 %v4381, %v4378
      %v4607 = vpack.c.b16 %v4382, %v4379
      %v4608 = vpack.c.b16 %v4383, %v4380
      %v4609 = vpack.c.b16 %v4387, %v4384
      %v4610 = vpack.c.b16 %v4388, %v4385
      %v4611 = vpack.c.b16 %v4389, %v4386
      %v4612 = vpack.c.b16 %v4393, %v4390
      %v4613 = vpack.c.b16 %v4394, %v4391
      %v4614 = vpack.c.b16 %v4395, %v4392
      %v4615 = vpack.c.b16 %v4399, %v4396
      %v4616 = vpack.c.b16 %v4400, %v4397
      %v4617 = vpack.c.b16 %v4401, %v4398
      %v4618 = vpack.c.b16 %v4405, %v4402
      %v4619 = vpack.c.b16 %v4406, %v4403
      %v4620 = vpack.c.b16 %v4407, %v4404
      %v4621 = vpack.c.b16 %v4411, %v4408
      %v4622 = vpack.c.b16 %v4412, %v4409
      %v4623 = vpack.c.b16 %v4413, %v4410
      %v4624 = vpack.c.b16 %v4417, %v4414
      %v4625 = vpack.c.b16 %v4418, %v4415
      %v4626 = vpack.c.b16 %v4419, %v4416
      %v4627 = vpack.c.b16 %v4423, %v4420
      %v4628 = vpack.c.b16 %v4424, %v4421
      %v4629 = vpack.c.b16 %v4425, %v4422
      %v4630 = vpack.c.b16 %v4429, %v4426
      %v4631 = vpack.c.b16 %v4430, %v4427
      %v4632 = vpack.c.b16 %v4431, %v4428
      %v4633 = vpack.c.b16 %v4435, %v4432
      %v4634 = vpack.c.b16 %v4436, %v4433
      %v4635 = vpack.c.b16 %v4437, %v4434
      %v4636 = vpack.c.b16 %v4441, %v4438
      %v4637 = vpack.c.b16 %v4442, %v4439
      %v4638 = vpack.c.b16 %v4443, %v4440
      %v4639 = vpack.c.b16 %v4447, %v4444
      %v4640 = vpack.c.b16 %v4448, %v4445
      %v4641 = vpack.c.b16 %v4449, %v4446
      %v4642 = vpack.c.b16 %v4453, %v4450
      %v4643 = vpack.c.b16 %v4454, %v4451
      %v4644 = vpack.c.b16 %v4455, %v4452
      %v4645 = vpack.c.b16 %v4459, %v4456
      %v4646 = vpack.c.b16 %v4460, %v4457
      %v4647 = vpack.c.b16 %v4461, %v4458
      %v4648 = vpack.c.b16 %v4465, %v4462
      %v4649 = vpack.c.b16 %v4466, %v4463
      %v4650 = vpack.c.b16 %v4467, %v4464
      %v4651 = vpack.c.b16 %v4471, %v4468
      %v4652 = vpack.c.b16 %v4472, %v4469
      %v4653 = vpack.c.b16 %v4473, %v4470
      %v4654 = vpack.c.b16 %v4477, %v4474
      %v4655 = vpack.c.b16 %v4478, %v4475
      %v4656 = vpack.c.b16 %v4479, %v4476
      %v4657 = vpack.c.b16 %v4483, %v4480
      %v4658 = vpack.c.b16 %v4484, %v4481
      %v4659 = vpack.c.b16 %v4485, %v4482
      %v4660 = vpack.c.b16 %v4489, %v4486
      %v4661 = vpack.c.b16 %v4490, %v4487
      %v4662 = vpack.c.b16 %v4491, %v4488
      %v4663 = vpack.c.b16 %v4495, %v4492
      %v4664 = vpack.c.b16 %v4496, %v4493
      %v4665 = vpack.c.b16 %v4497, %v4494
      %4834 = vmatprep.subr.bf16.mxu0 %v4499
      %4835 = vmatpush1.bf16.msra.mxu0 %v4498
      %4836 = vmatprep.subr.bf16.mxu0 %v4502
      %4837 = vmatpush1.bf16.msra.mxu0 %v4501
      %4838 = vmatprep.subr.bf16.mxu0 %v4505
      %4839 = vmatpush1.bf16.msra.mxu0 %v4504
      %4840 = vmatprep.subr.bf16.mxu0 %v4508
      %4841 = vmatpush1.bf16.msra.mxu0 %v4507
      %4842 = vmatprep.subr.bf16.mxu0 %v4511
      %4843 = vmatpush1.bf16.msra.mxu0 %v4510
      %4844 = vmatprep.subr.bf16.mxu0 %v4514
      %4845 = vmatpush1.bf16.msra.mxu0 %v4513
      %4846 = vmatprep.subr.bf16.mxu0 %v4517
      %4847 = vmatpush1.bf16.msra.mxu0 %v4516
      %4848 = vmatprep.subr.bf16.mxu0 %v4520
      %4849 = vmatpush1.bf16.msra.mxu0 %v4519
      %4850 = vmatprep.subr.bf16.mxu0 %v4523
      %4851 = vmatpush1.bf16.msra.mxu0 %v4522
      %4852 = vmatprep.subr.bf16.mxu0 %v4526
      %4853 = vmatpush1.bf16.msra.mxu0 %v4525
      %4854 = vmatprep.subr.bf16.mxu0 %v4529
      %4855 = vmatpush1.bf16.msra.mxu0 %v4528
      %4856 = vmatprep.subr.bf16.mxu0 %v4532
      %4857 = vmatpush1.bf16.msra.mxu0 %v4531
      %4858 = vmatprep.subr.bf16.mxu0 %v4535
      %4859 = vmatpush1.bf16.msra.mxu0 %v4534
      %4860 = vmatprep.subr.bf16.mxu0 %v4538
      %4861 = vmatpush1.bf16.msra.mxu0 %v4537
      %4862 = vmatprep.subr.bf16.mxu0 %v4541
      %4863 = vmatpush1.bf16.msra.mxu0 %v4540
      %4864 = vmatprep.subr.bf16.mxu0 %v4544
      %4865 = vmatpush1.bf16.msra.mxu0 %v4543
      %4866 = vmatprep.mubr.bf16.mxu0 %v3708
      %4867 = vmatmul.mubr.bf16.gmra.mrb[0].mxu0 %v3707
      %v4868 = vpop.f32.mrb[0].mxu0
      %v4869 = vadd.f32 0.0, %v4868
      %v4870 = vpop.f32.mrb[0].mxu0
      %v4871 = vadd.f32 0.0, %v4870
      %v4872 = vpop.f32.mrb[0].mxu0
      %v4873 = vadd.f32 0.0, %v4872
      %v4874 = vpop.f32.mrb[0].mxu0
      %v4875 = vadd.f32 0.0, %v4874
      %4876 = vdwg.mxu0
      %4877 = vmatprep.subr.bf16.mxu0 %v4547
      %4878 = vmatpush1.bf16.msra.mxu0 %v4546
      %4879 = vmatprep.subr.bf16.mxu0 %v4550
      %4880 = vmatpush1.bf16.msra.mxu0 %v4549
      %4881 = vmatprep.subr.bf16.mxu0 %v4553
      %4882 = vmatpush1.bf16.msra.mxu0 %v4552
      %4883 = vmatprep.subr.bf16.mxu0 %v4556
      %4884 = vmatpush1.bf16.msra.mxu0 %v4555
      %4885 = vmatprep.subr.bf16.mxu0 %v4559
      %4886 = vmatpush1.bf16.msra.mxu0 %v4558
      %4887 = vmatprep.subr.bf16.mxu0 %v4562
      %4888 = vmatpush1.bf16.msra.mxu0 %v4561
      %4889 = vmatprep.subr.bf16.mxu0 %v4565
      %4890 = vmatpush1.bf16.msra.mxu0 %v4564
      %4891 = vmatprep.subr.bf16.mxu0 %v4568
      %4892 = vmatpush1.bf16.msra.mxu0 %v4567
      %4893 = vmatprep.subr.bf16.mxu0 %v4571
      %4894 = vmatpush1.bf16.msra.mxu0 %v4570
      %4895 = vmatprep.subr.bf16.mxu0 %v4574
      %4896 = vmatpush1.bf16.msra.mxu0 %v4573
      %4897 = vmatprep.subr.bf16.mxu0 %v4577
      %4898 = vmatpush1.bf16.msra.mxu0 %v4576
      %4899 = vmatprep.subr.bf16.mxu0 %v4580
      %4900 = vmatpush1.bf16.msra.mxu0 %v4579
      %4901 = vmatprep.subr.bf16.mxu0 %v4583
      %4902 = vmatpush1.bf16.msra.mxu0 %v4582
      %4903 = vmatprep.subr.bf16.mxu0 %v4586
      %4904 = vmatpush1.bf16.msra.mxu0 %v4585
      %4905 = vmatprep.subr.bf16.mxu0 %v4589
      %4906 = vmatpush1.bf16.msra.mxu0 %v4588
      %4907 = vmatprep.subr.bf16.mxu0 %v4592
      %4908 = vmatpush1.bf16.msra.mxu0 %v4591
      %4909 = vmatprep.mubr.bf16.mxu0 %v3710
      %4910 = vmatmul.mubr.bf16.gmra.mrb[0].mxu0 %v3709
      %v4911 = vpop.f32.mrb[0].mxu0
      %v4912 = vadd.f32 %v4869, %v4911
      %v4913 = vpop.f32.mrb[0].mxu0
      %v4914 = vadd.f32 %v4871, %v4913
      %v4915 = vpop.f32.mrb[0].mxu0
      %v4916 = vadd.f32 %v4873, %v4915
      %v4917 = vpop.f32.mrb[0].mxu0
      %v4918 = vadd.f32 %v4875, %v4917
      %4919 = vdwg.mxu0
      %4920 = vmatprep.subr.bf16.mxu0 %v4595
      %4921 = vmatpush1.bf16.msra.mxu0 %v4594
      %4922 = vmatprep.subr.bf16.mxu0 %v4598
      %4923 = vmatpush1.bf16.msra.mxu0 %v4597
      %4924 = vmatprep.subr.bf16.mxu0 %v4601
      %4925 = vmatpush1.bf16.msra.mxu0 %v4600
      %4926 = vmatprep.subr.bf16.mxu0 %v4604
      %4927 = vmatpush1.bf16.msra.mxu0 %v4603
      %4928 = vmatprep.subr.bf16.mxu0 %v4607
      %4929 = vmatpush1.bf16.msra.mxu0 %v4606
      %4930 = vmatprep.subr.bf16.mxu0 %v4610
      %4931 = vmatpush1.bf16.msra.mxu0 %v4609
      %4932 = vmatprep.subr.bf16.mxu0 %v4613
      %4933 = vmatpush1.bf16.msra.mxu0 %v4612
      %4934 = vmatprep.subr.bf16.mxu0 %v4616
      %4935 = vmatpush1.bf16.msra.mxu0 %v4615
      %4936 = vmatprep.subr.bf16.mxu0 %v4619
      %4937 = vmatpush1.bf16.msra.mxu0 %v4618
      %4938 = vmatprep.subr.bf16.mxu0 %v4622
      %4939 = vmatpush1.bf16.msra.mxu0 %v4621
      %4940 = vmatprep.subr.bf16.mxu0 %v4625
      %4941 = vmatpush1.bf16.msra.mxu0 %v4624
      %4942 = vmatprep.subr.bf16.mxu0 %v4628
      %4943 = vmatpush1.bf16.msra.mxu0 %v4627
      %4944 = vmatprep.subr.bf16.mxu0 %v4631
      %4945 = vmatpush1.bf16.msra.mxu0 %v4630
      %4946 = vmatprep.subr.bf16.mxu0 %v4634
      %4947 = vmatpush1.bf16.msra.mxu0 %v4633
      %4948 = vmatprep.subr.bf16.mxu0 %v4637
      %4949 = vmatpush1.bf16.msra.mxu0 %v4636
      %4950 = vmatprep.subr.bf16.mxu0 %v4640
      %4951 = vmatpush1.bf16.msra.mxu0 %v4639
      %4952 = vmatprep.mubr.bf16.mxu0 %v3712
      %4953 = vmatmul.mubr.bf16.gmra.mrb[0].mxu0 %v3711
      %v4954 = vpop.f32.mrb[0].mxu0
      %v4955 = vadd.f32 %v4912, %v4954
      %v4956 = vpop.f32.mrb[0].mxu0
      %v4957 = vadd.f32 %v4914, %v4956
      %v4958 = vpop.f32.mrb[0].mxu0
      %v4959 = vadd.f32 %v4916, %v4958
      %v4960 = vpop.f32.mrb[0].mxu0
      %v4961 = vadd.f32 %v4918, %v4960
      %4962 = vdwg.mxu0
      %4963 = vmatprep.subr.bf16.mxu0 %v4643
      %4964 = vmatpush1.bf16.msra.mxu0 %v4642
      %4965 = vmatprep.subr.bf16.mxu0 %v4646
      %4966 = vmatpush1.bf16.msra.mxu0 %v4645
      %4967 = vmatprep.subr.bf16.mxu0 %v4649
      %4968 = vmatpush1.bf16.msra.mxu0 %v4648
      %4969 = vmatprep.subr.bf16.mxu0 %v4652
      %4970 = vmatpush1.bf16.msra.mxu0 %v4651
      %4971 = vmatprep.subr.bf16.mxu0 %v4655
      %4972 = vmatpush1.bf16.msra.mxu0 %v4654
      %4973 = vmatprep.subr.bf16.mxu0 %v4658
      %4974 = vmatpush1.bf16.msra.mxu0 %v4657
      %4975 = vmatprep.subr.bf16.mxu0 %v4661
      %4976 = vmatpush1.bf16.msra.mxu0 %v4660
      %4977 = vmatprep.subr.bf16.mxu0 %v4664
      %4978 = vmatpush1.bf16.msra.mxu0 %v4663
      %4979 = vmatprep.subr.bf16.mxu0 0
      %4980 = vmatpush1.bf16.msra.mxu0 0
      %4981 = vmatprep.subr.bf16.mxu0 0
      %4982 = vmatpush1.bf16.msra.mxu0 0
      %4983 = vmatprep.subr.bf16.mxu0 0
      %4984 = vmatpush1.bf16.msra.mxu0 0
      %4985 = vmatprep.subr.bf16.mxu0 0
      %4986 = vmatpush1.bf16.msra.mxu0 0
      %4987 = vmatprep.subr.bf16.mxu0 0
      %4988 = vmatpush1.bf16.msra.mxu0 0
      %4989 = vmatprep.subr.bf16.mxu0 0
      %4990 = vmatpush1.bf16.msra.mxu0 0
      %4991 = vmatprep.subr.bf16.mxu0 0
      %4992 = vmatpush1.bf16.msra.mxu0 0
      %4993 = vmatprep.subr.bf16.mxu0 0
      %4994 = vmatpush1.bf16.msra.mxu0 0
      %4995 = vmatprep.mubr.bf16.mxu0 0
      %4996 = vmatmul.mubr.bf16.gmra.mrb[0].mxu0 %v3713
      %v4997 = vpop.f32.mrb[0].mxu0
      %v4998 = vadd.f32 %v4955, %v4997
      %v4999 = vpop.f32.mrb[0].mxu0
      %v5000 = vadd.f32 %v4957, %v4999
      %v5001 = vpop.f32.mrb[0].mxu0
      %v5002 = vadd.f32 %v4959, %v5001
      %v5003 = vpop.f32.mrb[0].mxu0
      %v5004 = vadd.f32 %v4961, %v5003
      %5005 = vdwg.mxu0
      %5006 = vmatprep.subr.bf16.mxu0 0
      %5007 = vmatpush1.bf16.msra.mxu0 %v4500
      %5008 = vmatprep.subr.bf16.mxu0 0
      %5009 = vmatpush1.bf16.msra.mxu0 %v4503
      %5010 = vmatprep.subr.bf16.mxu0 0
      %5011 = vmatpush1.bf16.msra.mxu0 %v4506
      %5012 = vmatprep.subr.bf16.mxu0 0
      %5013 = vmatpush1.bf16.msra.mxu0 %v4509
      %5014 = vmatprep.subr.bf16.mxu0 0
      %5015 = vmatpush1.bf16.msra.mxu0 %v4512
      %5016 = vmatprep.subr.bf16.mxu0 0
      %5017 = vmatpush1.bf16.msra.mxu0 %v4515
      %5018 = vmatprep.subr.bf16.mxu0 0
      %5019 = vmatpush1.bf16.msra.mxu0 %v4518
      %5020 = vmatprep.subr.bf16.mxu0 0
      %5021 = vmatpush1.bf16.msra.mxu0 %v4521
      %5022 = vmatprep.subr.bf16.mxu0 0
      %5023 = vmatpush1.bf16.msra.mxu0 %v4524
      %5024 = vmatprep.subr.bf16.mxu0 0
      %5025 = vmatpush1.bf16.msra.mxu0 %v4527
      %5026 = vmatprep.subr.bf16.mxu0 0
      %5027 = vmatpush1.bf16.msra.mxu0 %v4530
      %5028 = vmatprep.subr.bf16.mxu0 0
      %5029 = vmatpush1.bf16.msra.mxu0 %v4533
      %5030 = vmatprep.subr.bf16.mxu0 0
      %5031 = vmatpush1.bf16.msra.mxu0 %v4536
      %5032 = vmatprep.subr.bf16.mxu0 0
      %5033 = vmatpush1.bf16.msra.mxu0 %v4539
      %5034 = vmatprep.subr.bf16.mxu0 0
      %5035 = vmatpush1.bf16.msra.mxu0 %v4542
      %5036 = vmatprep.subr.bf16.mxu0 0
      %5037 = vmatpush1.bf16.msra.mxu0 %v4545
      %5038 = vmatprep.mubr.bf16.mxu0 %v3708
      %5039 = vmatmul.mubr.bf16.gmra.mrb[0].mxu0 %v3707
      %v5040 = vpop.f32.mrb[0].mxu0
      %v5041 = vadd.f32 0.0, %v5040
      %v5042 = vpop.f32.mrb[0].mxu0
      %v5043 = vpop.f32.mrb[0].mxu0
      %v5044 = vadd.f32 0.0, %v5043
      %v5045 = vpop.f32.mrb[0].mxu0
      %5046 = vdwg.mxu0
      %5047 = vmatprep.subr.bf16.mxu0 0
      %5048 = vmatpush1.bf16.msra.mxu0 %v4548
      %5049 = vmatprep.subr.bf16.mxu0 0
      %5050 = vmatpush1.bf16.msra.mxu0 %v4551
      %5051 = vmatprep.subr.bf16.mxu0 0
      %5052 = vmatpush1.bf16.msra.mxu0 %v4554
      %5053 = vmatprep.subr.bf16.mxu0 0
      %5054 = vmatpush1.bf16.msra.mxu0 %v4557
      %5055 = vmatprep.subr.bf16.mxu0 0
      %5056 = vmatpush1.bf16.msra.mxu0 %v4560
      %5057 = vmatprep.subr.bf16.mxu0 0
      %5058 = vmatpush1.bf16.msra.mxu0 %v4563
      %5059 = vmatprep.subr.bf16.mxu0 0
      %5060 = vmatpush1.bf16.msra.mxu0 %v4566
      %5061 = vmatprep.subr.bf16.mxu0 0
      %5062 = vmatpush1.bf16.msra.mxu0 %v4569
      %5063 = vmatprep.subr.bf16.mxu0 0
      %5064 = vmatpush1.bf16.msra.mxu0 %v4572
      %5065 = vmatprep.subr.bf16.mxu0 0
      %5066 = vmatpush1.bf16.msra.mxu0 %v4575
      %5067 = vmatprep.subr.bf16.mxu0 0
      %5068 = vmatpush1.bf16.msra.mxu0 %v4578
      %5069 = vmatprep.subr.bf16.mxu0 0
      %5070 = vmatpush1.bf16.msra.mxu0 %v4581
      %5071 = vmatprep.subr.bf16.mxu0 0
      %5072 = vmatpush1.bf16.msra.mxu0 %v4584
      %5073 = vmatprep.subr.bf16.mxu0 0
      %5074 = vmatpush1.bf16.msra.mxu0 %v4587
      %5075 = vmatprep.subr.bf16.mxu0 0
      %5076 = vmatpush1.bf16.msra.mxu0 %v4590
      %5077 = vmatprep.subr.bf16.mxu0 0
      %5078 = vmatpush1.bf16.msra.mxu0 %v4593
      %5079 = vmatprep.mubr.bf16.mxu0 %v3710
      %5080 = vmatmul.mubr.bf16.gmra.mrb[0].mxu0 %v3709
      %v5081 = vpop.f32.mrb[0].mxu0
      %v5082 = vadd.f32 %v5041, %v5081
      %v5083 = vpop.f32.mrb[0].mxu0
      %v5084 = vpop.f32.mrb[0].mxu0
      %v5085 = vadd.f32 %v5044, %v5084
      %v5086 = vpop.f32.mrb[0].mxu0
      %5087 = vdwg.mxu0
      %5088 = vmatprep.subr.bf16.mxu0 0
      %5089 = vmatpush1.bf16.msra.mxu0 %v4596
      %5090 = vmatprep.subr.bf16.mxu0 0
      %5091 = vmatpush1.bf16.msra.mxu0 %v4599
      %5092 = vmatprep.subr.bf16.mxu0 0
      %5093 = vmatpush1.bf16.msra.mxu0 %v4602
      %5094 = vmatprep.subr.bf16.mxu0 0
      %5095 = vmatpush1.bf16.msra.mxu0 %v4605
      %5096 = vmatprep.subr.bf16.mxu0 0
      %5097 = vmatpush1.bf16.msra.mxu0 %v4608
      %5098 = vmatprep.subr.bf16.mxu0 0
      %5099 = vmatpush1.bf16.msra.mxu0 %v4611
      %5100 = vmatprep.subr.bf16.mxu0 0
      %5101 = vmatpush1.bf16.msra.mxu0 %v4614
      %5102 = vmatprep.subr.bf16.mxu0 0
      %5103 = vmatpush1.bf16.msra.mxu0 %v4617
      %5104 = vmatprep.subr.bf16.mxu0 0
      %5105 = vmatpush1.bf16.msra.mxu0 %v4620
      %5106 = vmatprep.subr.bf16.mxu0 0
      %5107 = vmatpush1.bf16.msra.mxu0 %v4623
      %5108 = vmatprep.subr.bf16.mxu0 0
      %5109 = vmatpush1.bf16.msra.mxu0 %v4626
      %5110 = vmatprep.subr.bf16.mxu0 0
      %5111 = vmatpush1.bf16.msra.mxu0 %v4629
      %5112 = vmatprep.subr.bf16.mxu0 0
      %5113 = vmatpush1.bf16.msra.mxu0 %v4632
      %5114 = vmatprep.subr.bf16.mxu0 0
      %5115 = vmatpush1.bf16.msra.mxu0 %v4635
      %5116 = vmatprep.subr.bf16.mxu0 0
      %5117 = vmatpush1.bf16.msra.mxu0 %v4638
      %5118 = vmatprep.subr.bf16.mxu0 0
      %5119 = vmatpush1.bf16.msra.mxu0 %v4641
      %5120 = vmatprep.mubr.bf16.mxu0 %v3712
      %5121 = vmatmul.mubr.bf16.gmra.mrb[0].mxu0 %v3711
      %v5122 = vpop.f32.mrb[0].mxu0
      %v5123 = vadd.f32 %v5082, %v5122
      %v5124 = vpop.f32.mrb[0].mxu0
      %v5125 = vpop.f32.mrb[0].mxu0
      %v5126 = vadd.f32 %v5085, %v5125
      %v5127 = vpop.f32.mrb[0].mxu0
      %5128 = vdwg.mxu0
      %5129 = vmatprep.subr.bf16.mxu0 0
      %5130 = vmatpush1.bf16.msra.mxu0 %v4644
      %5131 = vmatprep.subr.bf16.mxu0 0
      %5132 = vmatpush1.bf16.msra.mxu0 %v4647
      %5133 = vmatprep.subr.bf16.mxu0 0
      %5134 = vmatpush1.bf16.msra.mxu0 %v4650
      %5135 = vmatprep.subr.bf16.mxu0 0
      %5136 = vmatpush1.bf16.msra.mxu0 %v4653
      %5137 = vmatprep.subr.bf16.mxu0 0
      %5138 = vmatpush1.bf16.msra.mxu0 %v4656
      %5139 = vmatprep.subr.bf16.mxu0 0
      %5140 = vmatpush1.bf16.msra.mxu0 %v4659
      %5141 = vmatprep.subr.bf16.mxu0 0
      %5142 = vmatpush1.bf16.msra.mxu0 %v4662
      %5143 = vmatprep.subr.bf16.mxu0 0
      %5144 = vmatpush1.bf16.msra.mxu0 %v4665
      %5145 = vmatprep.subr.bf16.mxu0 0
      %5146 = vmatpush1.bf16.msra.mxu0 0
      %5147 = vmatprep.subr.bf16.mxu0 0
      %5148 = vmatpush1.bf16.msra.mxu0 0
      %5149 = vmatprep.subr.bf16.mxu0 0
      %5150 = vmatpush1.bf16.msra.mxu0 0
      %5151 = vmatprep.subr.bf16.mxu0 0
      %5152 = vmatpush1.bf16.msra.mxu0 0
      %5153 = vmatprep.subr.bf16.mxu0 0
      %5154 = vmatpush1.bf16.msra.mxu0 0
      %5155 = vmatprep.subr.bf16.mxu0 0
      %5156 = vmatpush1.bf16.msra.mxu0 0
      %5157 = vmatprep.subr.bf16.mxu0 0
      %5158 = vmatpush1.bf16.msra.mxu0 0
      %5159 = vmatprep.subr.bf16.mxu0 0
      %5160 = vmatpush1.bf16.msra.mxu0 0
      %5161 = vmatprep.mubr.bf16.mxu0 0
      %5162 = vmatmul.mubr.bf16.gmra.mrb[0].mxu0 %v3713
      %v5163 = vpop.f32.mrb[0].mxu0
      %v5164 = vadd.f32 %v5123, %v5163
      %v5165 = vpop.f32.mrb[0].mxu0
      %v5166 = vpop.f32.mrb[0].mxu0
      %v5167 = vadd.f32 %v5126, %v5166
      %v5168 = vpop.f32.mrb[0].mxu0
      %5169 = vdwg.mxu0
      %v5170 = vpack.c.bf16 %v5002, %v4998
      %v5171 = vpack.c.bf16 %v5004, %v5000
      %v5172 = vpack.c.bf16 %v5167, %v5164
      %5173 = vst [vmem:[#allocation4] sm:$0xff] %v5170
      %5174 = vst [vmem:[#allocation4 + $0x8] sm:$0xff] %v5171
      %5175 = vst [vmem:[#allocation4 + $0x10] sm:$0xff] %v5172
      %v5176 = vld [vmem:[#allocation4] sm:$0xff]
      %v5177 = vld [vmem:[#allocation4 + $0x8] sm:$0xff]
      %5178 = vst [vmem:[#allocation5] sm:$0xff] %v5176
      %5179 = vst [vmem:[#allocation5 + $0x8] sm:$0xff] %v5177
      %v5180 = vld [vmem:[#allocation4] sm:$0xff]
      %v5181 = vld [vmem:[#allocation4 + $0x8] sm:$0xff]
      %v5182 = vld [vmem:[#allocation4 + $0x10] sm:$0xff]
      %5186 = vrot.lane.b32.xlu0 %v5180, 127
      %v5187 = vpop.permute.xlu0 %5186
      %5188 = vrot.lane.b32.xlu0 %v5181, 127
      %v5189 = vpop.permute.xlu0 %5188
      %5190 = vrot.lane.b32.xlu0 %v5182, 127
      %v5191 = vpop.permute.xlu0 %5190
      %v5192 = vsel %vm608, %v5187, %v5189
      %v5193 = vsel %vm608, %v5189, %v5191
      %5196 = vst [vmem:[#allocation5 + $0x10] sm:$0xff] %v5192
      %5197 = vst [vmem:[#allocation5 + $0x18] sm:$0xff] %v5193
      %v5198 = vld [vmem:[#allocation4] sm:$0xff]
      %v5199 = vld [vmem:[#allocation4 + $0x8] sm:$0xff]
      %v5200 = vld [vmem:[#allocation4 + $0x10] sm:$0xff]
      %5204 = vrot.lane.b32.xlu0 %v5198, 126
      %v5205 = vpop.permute.xlu0 %5204
      %5206 = vrot.lane.b32.xlu0 %v5199, 126
      %v5207 = vpop.permute.xlu0 %5206
      %5208 = vrot.lane.b32.xlu0 %v5200, 126
      %v5209 = vpop.permute.xlu0 %5208
      %v5210 = vsel %vm713, %v5205, %v5207
      %v5211 = vsel %vm713, %v5207, %v5209
      %5214 = vst [vmem:[#allocation5 + $0x20] sm:$0xff] %v5210
      %5215 = vst [vmem:[#allocation5 + $0x28] sm:$0xff] %v5211
      %v5216 = vld [vmem:[#allocation4] sm:$0xff]
      %v5217 = vld [vmem:[#allocation4 + $0x8] sm:$0xff]
      %v5218 = vld [vmem:[#allocation4 + $0x10] sm:$0xff]
      %5222 = vrot.lane.b32.xlu0 %v5216, 125
      %v5223 = vpop.permute.xlu0 %5222
      %5224 = vrot.lane.b32.xlu0 %v5217, 125
      %v5225 = vpop.permute.xlu0 %5224
      %5226 = vrot.lane.b32.xlu0 %v5218, 125
      %v5227 = vpop.permute.xlu0 %5226
      %v5228 = vsel %vm851, %v5223, %v5225
      %v5229 = vsel %vm851, %v5225, %v5227
      %5232 = vst [vmem:[#allocation5 + $0x30] sm:$0xff] %v5228
      %5233 = vst [vmem:[#allocation5 + $0x38] sm:$0xff] %v5229
      %v5234 = vld [vmem:[#allocation4] sm:$0xff]
      %v5235 = vld [vmem:[#allocation4 + $0x8] sm:$0xff]
      %v5236 = vld [vmem:[#allocation4 + $0x10] sm:$0xff]
      %5240 = vrot.lane.b32.xlu0 %v5234, 124
      %v5241 = vpop.permute.xlu0 %5240
      %5242 = vrot.lane.b32.xlu0 %v5235, 124
      %v5243 = vpop.permute.xlu0 %5242
      %5244 = vrot.lane.b32.xlu0 %v5236, 124
      %v5245 = vpop.permute.xlu0 %5244
      %v5246 = vsel %vm956, %v5241, %v5243
      %v5247 = vsel %vm956, %v5243, %v5245
      %5250 = vst [vmem:[#allocation5 + $0x40] sm:$0xff] %v5246
      %5251 = vst [vmem:[#allocation5 + $0x48] sm:$0xff] %v5247
      %v5252 = vld [vmem:[#allocation4] sm:$0xff]
      %v5253 = vld [vmem:[#allocation4 + $0x8] sm:$0xff]
      %v5254 = vld [vmem:[#allocation4 + $0x10] sm:$0xff]
      %5258 = vrot.lane.b32.xlu0 %v5252, 110
      %v5259 = vpop.permute.xlu0 %5258
      %5260 = vrot.lane.b32.xlu0 %v5253, 110
      %v5261 = vpop.permute.xlu0 %5260
      %5262 = vrot.lane.b32.xlu0 %v5254, 110
      %v5263 = vpop.permute.xlu0 %5262
      %vm5264 = vcmask 900096
      %v5265 = vsel %vm5264, %v5259, %v5261
      %v5266 = vsel %vm5264, %v5261, %v5263
      %5269 = vst [vmem:[#allocation5 + $0x50] sm:$0xff] %v5265
      %5270 = vst [vmem:[#allocation5 + $0x58] sm:$0xff] %v5266
      %v5271 = vld [vmem:[#allocation4] sm:$0xff]
      %v5272 = vld [vmem:[#allocation4 + $0x8] sm:$0xff]
      %v5273 = vld [vmem:[#allocation4 + $0x10] sm:$0xff]
      %5277 = vrot.lane.b32.xlu0 %v5271, 109
      %v5278 = vpop.permute.xlu0 %5277
      %5279 = vrot.lane.b32.xlu0 %v5272, 109
      %v5280 = vpop.permute.xlu0 %5279
      %5281 = vrot.lane.b32.xlu0 %v5273, 109
      %v5282 = vpop.permute.xlu0 %5281
      %vm5283 = vcmask 891904
      %v5284 = vsel %vm5283, %v5278, %v5280
      %v5285 = vsel %vm5283, %v5280, %v5282
      %5288 = vst [vmem:[#allocation5 + $0x60] sm:$0xff] %v5284
      %5289 = vst [vmem:[#allocation5 + $0x68] sm:$0xff] %v5285
      %v5290 = vld [vmem:[#allocation4] sm:$0xff]
      %v5291 = vld [vmem:[#allocation4 + $0x8] sm:$0xff]
      %v5292 = vld [vmem:[#allocation4 + $0x10] sm:$0xff]
      %5296 = vrot.lane.b32.xlu0 %v5290, 108
      %v5297 = vpop.permute.xlu0 %5296
      %5298 = vrot.lane.b32.xlu0 %v5291, 108
      %v5299 = vpop.permute.xlu0 %5298
      %5300 = vrot.lane.b32.xlu0 %v5292, 108
      %v5301 = vpop.permute.xlu0 %5300
      %vm5302 = vcmask 883712
      %v5303 = vsel %vm5302, %v5297, %v5299
      %v5304 = vsel %vm5302, %v5299, %v5301
      %5307 = vst [vmem:[#allocation5 + $0x70] sm:$0xff] %v5303
      %5308 = vst [vmem:[#allocation5 + $0x78] sm:$0xff] %v5304
      %v5309 = vld [vmem:[#allocation4] sm:$0xff]
      %v5310 = vld [vmem:[#allocation4 + $0x8] sm:$0xff]
      %v5311 = vld [vmem:[#allocation4 + $0x10] sm:$0xff]
      %5315 = vrot.lane.b32.xlu0 %v5309, 107
      %v5316 = vpop.permute.xlu0 %5315
      %5317 = vrot.lane.b32.xlu0 %v5310, 107
      %v5318 = vpop.permute.xlu0 %5317
      %5319 = vrot.lane.b32.xlu0 %v5311, 107
      %v5320 = vpop.permute.xlu0 %5319
      %vm5321 = vcmask 875520
      %v5322 = vsel %vm5321, %v5316, %v5318
      %v5323 = vsel %vm5321, %v5318, %v5320
      %5326 = vst [vmem:[#allocation5 + $0x80] sm:$0xff] %v5322
      %5327 = vst [vmem:[#allocation5 + $0x88] sm:$0xff] %v5323
      %v5328 = vld [vmem:[#allocation4] sm:$0xff]
      %v5329 = vld [vmem:[#allocation4 + $0x8] sm:$0xff]
      %v5330 = vld [vmem:[#allocation4 + $0x10] sm:$0xff]
      %5334 = vrot.lane.b32.xlu0 %v5328, 106
      %v5335 = vpop.permute.xlu0 %5334
      %5336 = vrot.lane.b32.xlu0 %v5329, 106
      %v5337 = vpop.permute.xlu0 %5336
      %5338 = vrot.lane.b32.xlu0 %v5330, 106
      %v5339 = vpop.permute.xlu0 %5338
      %vm5340 = vcmask 867328
      %v5341 = vsel %vm5340, %v5335, %v5337
      %v5342 = vsel %vm5340, %v5337, %v5339
      %5345 = vst [vmem:[#allocation5 + $0x90] sm:$0xff] %v5341
      %5346 = vst [vmem:[#allocation5 + $0x98] sm:$0xff] %v5342
      %v5347 = vld [vmem:[#allocation4] sm:$0xff]
      %v5348 = vld [vmem:[#allocation4 + $0x8] sm:$0xff]
      %v5349 = vld [vmem:[#allocation4 + $0x10] sm:$0xff]
      %5353 = vrot.lane.b32.xlu0 %v5347, 92
      %v5354 = vpop.permute.xlu0 %5353
      %5355 = vrot.lane.b32.xlu0 %v5348, 92
      %v5356 = vpop.permute.xlu0 %5355
      %5357 = vrot.lane.b32.xlu0 %v5349, 92
      %v5358 = vpop.permute.xlu0 %5357
      %v5359 = vsel %vm1580, %v5354, %v5356
      %v5360 = vsel %vm1580, %v5356, %v5358
      %5363 = vst [vmem:[#allocation5 + $0xa0] sm:$0xff] %v5359
      %5364 = vst [vmem:[#allocation5 + $0xa8] sm:$0xff] %v5360
      %v5365 = vld [vmem:[#allocation4] sm:$0xff]
      %v5366 = vld [vmem:[#allocation4 + $0x8] sm:$0xff]
      %v5367 = vld [vmem:[#allocation4 + $0x10] sm:$0xff]
      %5371 = vrot.lane.b32.xlu0 %v5365, 91
      %v5372 = vpop.permute.xlu0 %5371
      %5373 = vrot.lane.b32.xlu0 %v5366, 91
      %v5374 = vpop.permute.xlu0 %5373
      %5375 = vrot.lane.b32.xlu0 %v5367, 91
      %v5376 = vpop.permute.xlu0 %5375
      %vm5377 = vcmask 744448
      %v5378 = vsel %vm5377, %v5372, %v5374
      %v5379 = vsel %vm5377, %v5374, %v5376
      %5382 = vst [vmem:[#allocation5 + $0xb0] sm:$0xff] %v5378
      %5383 = vst [vmem:[#allocation5 + $0xb8] sm:$0xff] %v5379
      %v5384 = vld [vmem:[#allocation4] sm:$0xff]
      %v5385 = vld [vmem:[#allocation4 + $0x8] sm:$0xff]
      %v5386 = vld [vmem:[#allocation4 + $0x10] sm:$0xff]
      %5390 = vrot.lane.b32.xlu0 %v5384, 90
      %v5391 = vpop.permute.xlu0 %5390
      %5392 = vrot.lane.b32.xlu0 %v5385, 90
      %v5393 = vpop.permute.xlu0 %5392
      %5394 = vrot.lane.b32.xlu0 %v5386, 90
      %v5395 = vpop.permute.xlu0 %5394
      %vm5396 = vcmask 736256
      %v5397 = vsel %vm5396, %v5391, %v5393
      %v5398 = vsel %vm5396, %v5393, %v5395
      %5401 = vst [vmem:[#allocation5 + $0xc0] sm:$0xff] %v5397
      %5402 = vst [vmem:[#allocation5 + $0xc8] sm:$0xff] %v5398
      %v5403 = vld [vmem:[#allocation4] sm:$0xff]
      %v5404 = vld [vmem:[#allocation4 + $0x8] sm:$0xff]
      %v5405 = vld [vmem:[#allocation4 + $0x10] sm:$0xff]
      %5409 = vrot.lane.b32.xlu0 %v5403, 89
      %v5410 = vpop.permute.xlu0 %5409
      %5411 = vrot.lane.b32.xlu0 %v5404, 89
      %v5412 = vpop.permute.xlu0 %5411
      %5413 = vrot.lane.b32.xlu0 %v5405, 89
      %v5414 = vpop.permute.xlu0 %5413
      %vm5415 = vcmask 728064
      %v5416 = vsel %vm5415, %v5410, %v5412
      %v5417 = vsel %vm5415, %v5412, %v5414
      %5420 = vst [vmem:[#allocation5 + $0xd0] sm:$0xff] %v5416
      %5421 = vst [vmem:[#allocation5 + $0xd8] sm:$0xff] %v5417
      %v5422 = vld [vmem:[#allocation4] sm:$0xff]
      %v5423 = vld [vmem:[#allocation4 + $0x8] sm:$0xff]
      %v5424 = vld [vmem:[#allocation4 + $0x10] sm:$0xff]
      %5428 = vrot.lane.b32.xlu0 %v5422, 88
      %v5429 = vpop.permute.xlu0 %5428
      %5430 = vrot.lane.b32.xlu0 %v5423, 88
      %v5431 = vpop.permute.xlu0 %5430
      %5432 = vrot.lane.b32.xlu0 %v5424, 88
      %v5433 = vpop.permute.xlu0 %5432
      %vm5434 = vcmask 719872
      %v5435 = vsel %vm5434, %v5429, %v5431
      %v5436 = vsel %vm5434, %v5431, %v5433
      %5439 = vst [vmem:[#allocation5 + $0xe0] sm:$0xff] %v5435
      %5440 = vst [vmem:[#allocation5 + $0xe8] sm:$0xff] %v5436
      %v5441 = vld [vmem:[#allocation4] sm:$0xff]
      %v5442 = vld [vmem:[#allocation4 + $0x8] sm:$0xff]
      %v5443 = vld [vmem:[#allocation4 + $0x10] sm:$0xff]
      %5447 = vrot.lane.b32.xlu0 %v5441, 74
      %v5448 = vpop.permute.xlu0 %5447
      %5449 = vrot.lane.b32.xlu0 %v5442, 74
      %v5450 = vpop.permute.xlu0 %5449
      %5451 = vrot.lane.b32.xlu0 %v5443, 74
      %v5452 = vpop.permute.xlu0 %5451
      %vm5453 = vcmask 605184
      %v5454 = vsel %vm5453, %v5448, %v5450
      %v5455 = vsel %vm5453, %v5450, %v5452
      %5458 = vst [vmem:[#allocation5 + $0xf0] sm:$0xff] %v5454
      %5459 = vst [vmem:[#allocation5 + $0xf8] sm:$0xff] %v5455
      %v5460 = vld [vmem:[#allocation4] sm:$0xff]
      %v5461 = vld [vmem:[#allocation4 + $0x8] sm:$0xff]
      %v5462 = vld [vmem:[#allocation4 + $0x10] sm:$0xff]
      %5466 = vrot.lane.b32.xlu0 %v5460, 73
      %v5467 = vpop.permute.xlu0 %5466
      %5468 = vrot.lane.b32.xlu0 %v5461, 73
      %v5469 = vpop.permute.xlu0 %5468
      %5470 = vrot.lane.b32.xlu0 %v5462, 73
      %v5471 = vpop.permute.xlu0 %5470
      %vm5472 = vcmask 596992
      %v5473 = vsel %vm5472, %v5467, %v5469
      %v5474 = vsel %vm5472, %v5469, %v5471
      %5477 = vst [vmem:[#allocation5 + $0x100] sm:$0xff] %v5473
      %5478 = vst [vmem:[#allocation5 + $0x108] sm:$0xff] %v5474
      %v5479 = vld [vmem:[#allocation4] sm:$0xff]
      %v5480 = vld [vmem:[#allocation4 + $0x8] sm:$0xff]
      %v5481 = vld [vmem:[#allocation4 + $0x10] sm:$0xff]
      %5485 = vrot.lane.b32.xlu0 %v5479, 72
      %v5486 = vpop.permute.xlu0 %5485
      %5487 = vrot.lane.b32.xlu0 %v5480, 72
      %v5488 = vpop.permute.xlu0 %5487
      %5489 = vrot.lane.b32.xlu0 %v5481, 72
      %v5490 = vpop.permute.xlu0 %5489
      %vm5491 = vcmask 588800
      %v5492 = vsel %vm5491, %v5486, %v5488
      %v5493 = vsel %vm5491, %v5488, %v5490
      %5496 = vst [vmem:[#allocation5 + $0x110] sm:$0xff] %v5492
      %5497 = vst [vmem:[#allocation5 + $0x118] sm:$0xff] %v5493
      %v5498 = vld [vmem:[#allocation4] sm:$0xff]
      %v5499 = vld [vmem:[#allocation4 + $0x8] sm:$0xff]
      %v5500 = vld [vmem:[#allocation4 + $0x10] sm:$0xff]
      %5504 = vrot.lane.b32.xlu0 %v5498, 71
      %v5505 = vpop.permute.xlu0 %5504
      %5506 = vrot.lane.b32.xlu0 %v5499, 71
      %v5507 = vpop.permute.xlu0 %5506
      %5508 = vrot.lane.b32.xlu0 %v5500, 71
      %v5509 = vpop.permute.xlu0 %5508
      %vm5510 = vcmask 580608
      %v5511 = vsel %vm5510, %v5505, %v5507
      %v5512 = vsel %vm5510, %v5507, %v5509
      %5515 = vst [vmem:[#allocation5 + $0x120] sm:$0xff] %v5511
      %5516 = vst [vmem:[#allocation5 + $0x128] sm:$0xff] %v5512
      %v5517 = vld [vmem:[#allocation4] sm:$0xff]
      %v5518 = vld [vmem:[#allocation4 + $0x8] sm:$0xff]
      %v5519 = vld [vmem:[#allocation4 + $0x10] sm:$0xff]
      %5523 = vrot.lane.b32.xlu0 %v5517, 70
      %v5524 = vpop.permute.xlu0 %5523
      %5525 = vrot.lane.b32.xlu0 %v5518, 70
      %v5526 = vpop.permute.xlu0 %5525
      %5527 = vrot.lane.b32.xlu0 %v5519, 70
      %v5528 = vpop.permute.xlu0 %5527
      %vm5529 = vcmask 572416
      %v5530 = vsel %vm5529, %v5524, %v5526
      %v5531 = vsel %vm5529, %v5526, %v5528
      %5534 = vst [vmem:[#allocation5 + $0x130] sm:$0xff] %v5530
      %5535 = vst [vmem:[#allocation5 + $0x138] sm:$0xff] %v5531
      %v5536 = vld [vmem:[#allocation4] sm:$0xff]
      %v5537 = vld [vmem:[#allocation4 + $0x8] sm:$0xff]
      %v5538 = vld [vmem:[#allocation4 + $0x10] sm:$0xff]
      %5542 = vrot.lane.b32.xlu0 %v5536, 56
      %v5543 = vpop.permute.xlu0 %5542
      %5544 = vrot.lane.b32.xlu0 %v5537, 56
      %v5545 = vpop.permute.xlu0 %5544
      %5546 = vrot.lane.b32.xlu0 %v5538, 56
      %v5547 = vpop.permute.xlu0 %5546
      %vm5548 = vcmask 457728
      %v5549 = vsel %vm5548, %v5543, %v5545
      %v5550 = vsel %vm5548, %v5545, %v5547
      %5553 = vst [vmem:[#allocation5 + $0x140] sm:$0xff] %v5549
      %5554 = vst [vmem:[#allocation5 + $0x148] sm:$0xff] %v5550
      %v5555 = vld [vmem:[#allocation4] sm:$0xff]
      %v5556 = vld [vmem:[#allocation4 + $0x8] sm:$0xff]
      %v5557 = vld [vmem:[#allocation4 + $0x10] sm:$0xff]
      %5561 = vrot.lane.b32.xlu0 %v5555, 55
      %v5562 = vpop.permute.xlu0 %5561
      %5563 = vrot.lane.b32.xlu0 %v5556, 55
      %v5564 = vpop.permute.xlu0 %5563
      %5565 = vrot.lane.b32.xlu0 %v5557, 55
      %v5566 = vpop.permute.xlu0 %5565
      %vm5567 = vcmask 449536
      %v5568 = vsel %vm5567, %v5562, %v5564
      %v5569 = vsel %vm5567, %v5564, %v5566
      %5572 = vst [vmem:[#allocation5 + $0x150] sm:$0xff] %v5568
      %5573 = vst [vmem:[#allocation5 + $0x158] sm:$0xff] %v5569
      %v5574 = vld [vmem:[#allocation4] sm:$0xff]
      %v5575 = vld [vmem:[#allocation4 + $0x8] sm:$0xff]
      %v5576 = vld [vmem:[#allocation4 + $0x10] sm:$0xff]
      %5580 = vrot.lane.b32.xlu0 %v5574, 54
      %v5581 = vpop.permute.xlu0 %5580
      %5582 = vrot.lane.b32.xlu0 %v5575, 54
      %v5583 = vpop.permute.xlu0 %5582
      %5584 = vrot.lane.b32.xlu0 %v5576, 54
      %v5585 = vpop.permute.xlu0 %5584
      %vm5586 = vcmask 441344
      %v5587 = vsel %vm5586, %v5581, %v5583
      %v5588 = vsel %vm5586, %v5583, %v5585
      %5591 = vst [vmem:[#allocation5 + $0x160] sm:$0xff] %v5587
      %5592 = vst [vmem:[#allocation5 + $0x168] sm:$0xff] %v5588
      %v5593 = vld [vmem:[#allocation4] sm:$0xff]
      %v5594 = vld [vmem:[#allocation4 + $0x8] sm:$0xff]
      %v5595 = vld [vmem:[#allocation4 + $0x10] sm:$0xff]
      %5599 = vrot.lane.b32.xlu0 %v5593, 53
      %v5600 = vpop.permute.xlu0 %5599
      %5601 = vrot.lane.b32.xlu0 %v5594, 53
      %v5602 = vpop.permute.xlu0 %5601
      %5603 = vrot.lane.b32.xlu0 %v5595, 53
      %v5604 = vpop.permute.xlu0 %5603
      %vm5605 = vcmask 433152
      %v5606 = vsel %vm5605, %v5600, %v5602
      %v5607 = vsel %vm5605, %v5602, %v5604
      %5610 = vst [vmem:[#allocation5 + $0x170] sm:$0xff] %v5606
      %5611 = vst [vmem:[#allocation5 + $0x178] sm:$0xff] %v5607
      %v5612 = vld [vmem:[#allocation4] sm:$0xff]
      %v5613 = vld [vmem:[#allocation4 + $0x8] sm:$0xff]
      %v5614 = vld [vmem:[#allocation4 + $0x10] sm:$0xff]
      %5618 = vrot.lane.b32.xlu0 %v5612, 52
      %v5619 = vpop.permute.xlu0 %5618
      %5620 = vrot.lane.b32.xlu0 %v5613, 52
      %v5621 = vpop.permute.xlu0 %5620
      %5622 = vrot.lane.b32.xlu0 %v5614, 52
      %v5623 = vpop.permute.xlu0 %5622
      %vm5624 = vcmask 424960
      %v5625 = vsel %vm5624, %v5619, %v5621
      %v5626 = vsel %vm5624, %v5621, %v5623
      %5629 = vst [vmem:[#allocation5 + $0x180] sm:$0xff] %v5625
      %5630 = vst [vmem:[#allocation5 + $0x188] sm:$0xff] %v5626
      %v5631 = vld [vmem:[%s4] sm:$0xff]
      %v5632 = vld [vmem:[%s4 + $0x8] sm:$0xff]
      %v5633 = vld [vmem:[%s4 + $0x10] sm:$0xff]
      %v5634 = vld [vmem:[%s4 + $0x18] sm:$0xff]
      %v5635 = vld [vmem:[%s4 + $0x20] sm:$0xff]
      %v5636 = vld [vmem:[%s4 + $0x28] sm:$0xff]
      %v5637 = vld [vmem:[%s4 + $0x30] sm:$0xff]
      %v5638 = vld [vmem:[%s4 + $0x38] sm:$0xff]
      %v5639 = vld [vmem:[#allocation5] sm:$0xff]
      %v5640 = vld [vmem:[#allocation5 + $0x8] sm:$0xff]
      %v5641 = vld [vmem:[#allocation5 + $0x10] sm:$0xff]
      %v5642 = vld [vmem:[#allocation5 + $0x18] sm:$0xff]
      %v5643 = vld [vmem:[#allocation5 + $0x20] sm:$0xff]
      %v5644 = vld [vmem:[#allocation5 + $0x28] sm:$0xff]
      %v5645 = vld [vmem:[#allocation5 + $0x30] sm:$0xff]
      %v5646 = vld [vmem:[#allocation5 + $0x38] sm:$0xff]
      %v5647 = vld [vmem:[#allocation5 + $0x40] sm:$0xff]
      %v5648 = vld [vmem:[#allocation5 + $0x48] sm:$0xff]
      %v5649 = vld [vmem:[#allocation5 + $0x50] sm:$0xff]
      %v5650 = vld [vmem:[#allocation5 + $0x58] sm:$0xff]
      %v5651 = vld [vmem:[#allocation5 + $0x60] sm:$0xff]
      %v5652 = vld [vmem:[#allocation5 + $0x68] sm:$0xff]
      %v5653 = vld [vmem:[#allocation5 + $0x70] sm:$0xff]
      %v5654 = vld [vmem:[#allocation5 + $0x78] sm:$0xff]
      %v5655 = vld [vmem:[#allocation5 + $0x80] sm:$0xff]
      %v5656 = vld [vmem:[#allocation5 + $0x88] sm:$0xff]
      %v5657 = vld [vmem:[#allocation5 + $0x90] sm:$0xff]
      %v5658 = vld [vmem:[#allocation5 + $0x98] sm:$0xff]
      %v5659 = vld [vmem:[#allocation5 + $0xa0] sm:$0xff]
      %v5660 = vld [vmem:[#allocation5 + $0xa8] sm:$0xff]
      %v5661 = vld [vmem:[#allocation5 + $0xb0] sm:$0xff]
      %v5662 = vld [vmem:[#allocation5 + $0xb8] sm:$0xff]
      %v5663 = vld [vmem:[#allocation5 + $0xc0] sm:$0xff]
      %v5664 = vld [vmem:[#allocation5 + $0xc8] sm:$0xff]
      %v5665 = vld [vmem:[#allocation5 + $0xd0] sm:$0xff]
      %v5666 = vld [vmem:[#allocation5 + $0xd8] sm:$0xff]
      %v5667 = vld [vmem:[#allocation5 + $0xe0] sm:$0xff]
      %v5668 = vld [vmem:[#allocation5 + $0xe8] sm:$0xff]
      %v5669 = vld [vmem:[#allocation5 + $0xf0] sm:$0xff]
      %v5670 = vld [vmem:[#allocation5 + $0xf8] sm:$0xff]
      %v5671 = vld [vmem:[#allocation5 + $0x100] sm:$0xff]
      %v5672 = vld [vmem:[#allocation5 + $0x108] sm:$0xff]
      %v5673 = vld [vmem:[#allocation5 + $0x110] sm:$0xff]
      %v5674 = vld [vmem:[#allocation5 + $0x118] sm:$0xff]
      %v5675 = vld [vmem:[#allocation5 + $0x120] sm:$0xff]
      %v5676 = vld [vmem:[#allocation5 + $0x128] sm:$0xff]
      %v5677 = vld [vmem:[#allocation5 + $0x130] sm:$0xff]
      %v5678 = vld [vmem:[#allocation5 + $0x138] sm:$0xff]
      %v5679 = vld [vmem:[#allocation5 + $0x140] sm:$0xff]
      %v5680 = vld [vmem:[#allocation5 + $0x148] sm:$0xff]
      %v5681 = vld [vmem:[#allocation5 + $0x150] sm:$0xff]
      %v5682 = vld [vmem:[#allocation5 + $0x158] sm:$0xff]
      %v5683 = vld [vmem:[#allocation5 + $0x160] sm:$0xff]
      %v5684 = vld [vmem:[#allocation5 + $0x168] sm:$0xff]
      %v5685 = vld [vmem:[#allocation5 + $0x170] sm:$0xff]
      %v5686 = vld [vmem:[#allocation5 + $0x178] sm:$0xff]
      %v5687 = vld [vmem:[#allocation5 + $0x180] sm:$0xff]
      %v5688 = vld [vmem:[#allocation5 + $0x188] sm:$0xff]
      %v5689 = vld [vmem:[%s5] sm:$0xff]
      %v5690 = vld [vmem:[%s5 + $0x8] sm:$0xff]
      %v5691 = vld [vmem:[%s5 + $0x10] sm:$0xff]
      %v5692 = vld [vmem:[%s5 + $0x18] sm:$0xff]
      %5694 = vset.pattern.permute.xlu0 0
      %5695 = vperm.xlu0 %5694, %v5689
      %v5696 = vpop.permute.xlu0 %5695
      %5699 = vset.pattern.permute.xlu0 0
      %5700 = vperm.xlu0 %5699, %v5690
      %v5701 = vpop.permute.xlu0 %5700
      %5704 = vset.pattern.permute.xlu0 0
      %5705 = vperm.xlu0 %5704, %v5691
      %v5706 = vpop.permute.xlu0 %5705
      %5709 = vset.pattern.permute.xlu0 0
      %5710 = vperm.xlu0 %5709, %v5692
      %v5711 = vpop.permute.xlu0 %5710
      %v5721 = vunpack.c.l.b16 %v5631
      %v5722 = vunpack.c.h.b16 %v5631
      %v5723 = vunpack.c.l.b16 %v5632
      %v5724 = vunpack.c.h.b16 %v5632
      %v5725 = vunpack.c.l.b16 %v5633
      %v5726 = vunpack.c.h.b16 %v5633
      %v5727 = vunpack.c.l.b16 %v5634
      %v5728 = vunpack.c.h.b16 %v5634
      %v5729 = vunpack.c.l.b16 %v5635
      %v5730 = vunpack.c.h.b16 %v5635
      %v5731 = vunpack.c.l.b16 %v5636
      %v5732 = vunpack.c.h.b16 %v5636
      %v5733 = vunpack.c.l.b16 %v5637
      %v5734 = vunpack.c.h.b16 %v5637
      %v5735 = vunpack.c.l.b16 %v5638
      %v5736 = vunpack.c.h.b16 %v5638
      %v5737 = vpack.c.b16 %v5725, %v5721
      %v5738 = vpack.c.b16 %v5726, %v5722
      %v5739 = vpack.c.b16 %v5727, %v5723
      %v5740 = vpack.c.b16 %v5728, %v5724
      %v5741 = vpack.c.b16 %v5733, %v5729
      %v5742 = vpack.c.b16 %v5734, %v5730
      %v5743 = vpack.c.b16 %v5735, %v5731
      %v5744 = vpack.c.b16 %v5736, %v5732
      %vm5751 = vcmask 130048
      %v5753 = vsel %vm5751, %v5740, 0
      %v5756 = vsel %vm5751, %v5744, 0
      %5758 = vmatprep.subr.bf16.mxu0 %v5640
      %5759 = vmatpush1.bf16.msra.mxu0 %v5639
      %5760 = vmatprep.subr.bf16.mxu0 %v5642
      %5761 = vmatpush1.bf16.msra.mxu0 %v5641
      %5762 = vmatprep.subr.bf16.mxu0 %v5644
      %5763 = vmatpush1.bf16.msra.mxu0 %v5643
      %5764 = vmatprep.subr.bf16.mxu0 %v5646
      %5765 = vmatpush1.bf16.msra.mxu0 %v5645
      %5766 = vmatprep.subr.bf16.mxu0 %v5648
      %5767 = vmatpush1.bf16.msra.mxu0 %v5647
      %5768 = vmatprep.subr.bf16.mxu0 %v5650
      %5769 = vmatpush1.bf16.msra.mxu0 %v5649
      %5770 = vmatprep.subr.bf16.mxu0 %v5652
      %5771 = vmatpush1.bf16.msra.mxu0 %v5651
      %5772 = vmatprep.subr.bf16.mxu0 %v5654
      %5773 = vmatpush1.bf16.msra.mxu0 %v5653
      %5774 = vmatprep.subr.bf16.mxu0 %v5656
      %5775 = vmatpush1.bf16.msra.mxu0 %v5655
      %5776 = vmatprep.subr.bf16.mxu0 %v5658
      %5777 = vmatpush1.bf16.msra.mxu0 %v5657
      %5778 = vmatprep.subr.bf16.mxu0 %v5660
      %5779 = vmatpush1.bf16.msra.mxu0 %v5659
      %5780 = vmatprep.subr.bf16.mxu0 %v5662
      %5781 = vmatpush1.bf16.msra.mxu0 %v5661
      %5782 = vmatprep.subr.bf16.mxu0 %v5664
      %5783 = vmatpush1.bf16.msra.mxu0 %v5663
      %5784 = vmatprep.subr.bf16.mxu0 %v5666
      %5785 = vmatpush1.bf16.msra.mxu0 %v5665
      %5786 = vmatprep.subr.bf16.mxu0 %v5668
      %5787 = vmatpush1.bf16.msra.mxu0 %v5667
      %5788 = vmatprep.subr.bf16.mxu0 %v5670
      %5789 = vmatpush1.bf16.msra.mxu0 %v5669
      %5790 = vmatprep.mubr.bf16.mxu0 %v5738
      %5791 = vmatmul.mubr.bf16.gmra.mrb[0].mxu0 %v5737
      %v5792 = vpop.f32.mrb[0].mxu0
      %v5793 = vadd.f32 %v5696, %v5792
      %v5794 = vpop.f32.mrb[0].mxu0
      %v5795 = vadd.f32 %v5696, %v5794
      %v5796 = vpop.f32.mrb[0].mxu0
      %v5797 = vadd.f32 %v5701, %v5796
      %v5798 = vpop.f32.mrb[0].mxu0
      %v5799 = vadd.f32 %v5701, %v5798
      %5800 = vmatprep.mubr.bf16.mxu0 %v5742
      %5801 = vmatmul.mubr.bf16.gmra.mrb[0].mxu0 %v5741
      %v5802 = vpop.f32.mrb[0].mxu0
      %v5803 = vadd.f32 %v5706, %v5802
      %v5804 = vpop.f32.mrb[0].mxu0
      %v5805 = vadd.f32 %v5706, %v5804
      %v5806 = vpop.f32.mrb[0].mxu0
      %v5807 = vadd.f32 %v5711, %v5806
      %v5808 = vpop.f32.mrb[0].mxu0
      %v5809 = vadd.f32 %v5711, %v5808
      %5810 = vdwg.mxu0
      %5811 = vmatprep.subr.bf16.mxu0 %v5672
      %5812 = vmatpush1.bf16.msra.mxu0 %v5671
      %5813 = vmatprep.subr.bf16.mxu0 %v5674
      %5814 = vmatpush1.bf16.msra.mxu0 %v5673
      %5815 = vmatprep.subr.bf16.mxu0 %v5676
      %5816 = vmatpush1.bf16.msra.mxu0 %v5675
      %5817 = vmatprep.subr.bf16.mxu0 %v5678
      %5818 = vmatpush1.bf16.msra.mxu0 %v5677
      %5819 = vmatprep.subr.bf16.mxu0 %v5680
      %5820 = vmatpush1.bf16.msra.mxu0 %v5679
      %5821 = vmatprep.subr.bf16.mxu0 %v5682
      %5822 = vmatpush1.bf16.msra.mxu0 %v5681
      %5823 = vmatprep.subr.bf16.mxu0 %v5684
      %5824 = vmatpush1.bf16.msra.mxu0 %v5683
      %5825 = vmatprep.subr.bf16.mxu0 %v5686
      %5826 = vmatpush1.bf16.msra.mxu0 %v5685
      %5827 = vmatprep.subr.bf16.mxu0 %v5688
      %5828 = vmatpush1.bf16.msra.mxu0 %v5687
      %5829 = vmatprep.subr.bf16.mxu0 0
      %5830 = vmatpush1.bf16.msra.mxu0 0
      %5831 = vmatprep.subr.bf16.mxu0 0
      %5832 = vmatpush1.bf16.msra.mxu0 0
      %5833 = vmatprep.subr.bf16.mxu0 0
      %5834 = vmatpush1.bf16.msra.mxu0 0
      %5835 = vmatprep.subr.bf16.mxu0 0
      %5836 = vmatpush1.bf16.msra.mxu0 0
      %5837 = vmatprep.subr.bf16.mxu0 0
      %5838 = vmatpush1.bf16.msra.mxu0 0
      %5839 = vmatprep.subr.bf16.mxu0 0
      %5840 = vmatpush1.bf16.msra.mxu0 0
      %5841 = vmatprep.subr.bf16.mxu0 0
      %5842 = vmatpush1.bf16.msra.mxu0 0
      %5843 = vmatprep.mubr.bf16.mxu0 %v5753
      %5844 = vmatmul.mubr.bf16.gmra.mrb[0].mxu0 %v5739
      %v5845 = vpop.f32.mrb[0].mxu0
      %v5846 = vadd.f32 %v5793, %v5845
      %v5847 = vpop.f32.mrb[0].mxu0
      %v5848 = vadd.f32 %v5795, %v5847
      %v5849 = vpop.f32.mrb[0].mxu0
      %v5850 = vadd.f32 %v5797, %v5849
      %v5851 = vpop.f32.mrb[0].mxu0
      %v5852 = vadd.f32 %v5799, %v5851
      %5853 = vmatprep.mubr.bf16.mxu0 %v5756
      %5854 = vmatmul.mubr.bf16.gmra.mrb[0].mxu0 %v5743
      %v5855 = vpop.f32.mrb[0].mxu0
      %v5856 = vadd.f32 %v5803, %v5855
      %v5857 = vpop.f32.mrb[0].mxu0
      %v5858 = vadd.f32 %v5805, %v5857
      %v5859 = vpop.f32.mrb[0].mxu0
      %v5860 = vadd.f32 %v5807, %v5859
      %v5861 = vpop.f32.mrb[0].mxu0
      %v5862 = vadd.f32 %v5809, %v5861
      %5863 = vdwg.mxu0
      %v5864 = vmax.f32 %v5846, 0.0
      %v5865 = vmax.f32 %v5848, 0.0
      %v5866 = vmax.f32 %v5850, 0.0
      %v5867 = vmax.f32 %v5852, 0.0
      %v5868 = vmax.f32 %v5856, 0.0
      %v5869 = vmax.f32 %v5858, 0.0
      %v5870 = vmax.f32 %v5860, 0.0
      %v5871 = vmax.f32 %v5862, 0.0
      %v5872 = vpack.c.bf16 %v5866, %v5864
      %v5873 = vpack.c.bf16 %v5867, %v5865
      %v5874 = vpack.c.bf16 %v5870, %v5868
      %v5875 = vpack.c.bf16 %v5871, %v5869
      %v5876 = vld [vmem:[%s6] sm:$0xff]
      %v5877 = vld [vmem:[%s6 + $0x8] sm:$0xf]
      %v5878 = vld [vmem:[%s6 + $0xc] sm:$0xff]
      %v5879 = vld [vmem:[%s6 + $0x14] sm:$0xf]
      %v5880 = vld [vmem:[%s6 + $0x18] sm:$0xff]
      %v5881 = vld [vmem:[%s6 + $0x20] sm:$0xf]
      %v5882 = vld [vmem:[%s6 + $0x24] sm:$0xff]
      %v5883 = vld [vmem:[%s6 + $0x2c] sm:$0xf]
      %v5884 = vld [vmem:[%s6 + $0x30] sm:$0xff]
      %v5885 = vld [vmem:[%s6 + $0x38] sm:$0xf]
      %v5886 = vld [vmem:[%s6 + $0x3c] sm:$0xff]
      %v5887 = vld [vmem:[%s6 + $0x44] sm:$0xf]
      %v5888 = vld [vmem:[%s6 + $0x48] sm:$0xff]
      %v5889 = vld [vmem:[%s6 + $0x50] sm:$0xf]
      %v5890 = vld [vmem:[%s6 + $0x54] sm:$0xff]
      %v5891 = vld [vmem:[%s6 + $0x5c] sm:$0xf]
      %v5892 = vld [vmem:[%s6 + $0x60] sm:$0xff]
      %v5893 = vld [vmem:[%s6 + $0x68] sm:$0xf]
      %v5894 = vld [vmem:[%s6 + $0x6c] sm:$0xff]
      %v5895 = vld [vmem:[%s6 + $0x74] sm:$0xf]
      %v5896 = vld [vmem:[%s6 + $0x78] sm:$0xff]
      %v5897 = vld [vmem:[%s6 + $0x80] sm:$0xf]
      %v5898 = vld [vmem:[%s6 + $0x84] sm:$0xff]
      %v5899 = vld [vmem:[%s6 + $0x8c] sm:$0xf]
      %v5900 = vld [vmem:[%s6 + $0x90] sm:$0xff]
      %v5901 = vld [vmem:[%s6 + $0x98] sm:$0xf]
      %v5902 = vld [vmem:[%s6 + $0x9c] sm:$0xff]
      %v5903 = vld [vmem:[%s6 + $0xa4] sm:$0xf]
      %v5904 = vld [vmem:[%s6 + $0xa8] sm:$0xff]
      %v5905 = vld [vmem:[%s6 + $0xb0] sm:$0xf]
      %v5906 = vld [vmem:[%s6 + $0xb4] sm:$0xff]
      %v5907 = vld [vmem:[%s6 + $0xbc] sm:$0xf]
      %v5908 = vld [vmem:[%s6 + $0xc0] sm:$0xff]
      %v5909 = vld [vmem:[%s6 + $0xc8] sm:$0xf]
      %v5910 = vld [vmem:[%s6 + $0xcc] sm:$0xff]
      %v5911 = vld [vmem:[%s6 + $0xd4] sm:$0xf]
      %v5912 = vld [vmem:[%s6 + $0xd8] sm:$0xff]
      %v5913 = vld [vmem:[%s6 + $0xe0] sm:$0xf]
      %v5914 = vld [vmem:[%s6 + $0xe4] sm:$0xff]
      %v5915 = vld [vmem:[%s6 + $0xec] sm:$0xf]
      %v5916 = vld [vmem:[%s6 + $0xf0] sm:$0xff]
      %v5917 = vld [vmem:[%s6 + $0xf8] sm:$0xf]
      %v5918 = vld [vmem:[%s6 + $0xfc] sm:$0xff]
      %v5919 = vld [vmem:[%s6 + $0x104] sm:$0xf]
      %v5920 = vld [vmem:[%s6 + $0x108] sm:$0xff]
      %v5921 = vld [vmem:[%s6 + $0x110] sm:$0xf]
      %v5922 = vld [vmem:[%s6 + $0x114] sm:$0xff]
      %v5923 = vld [vmem:[%s6 + $0x11c] sm:$0xf]
      %v5924 = vld [vmem:[%s6 + $0x120] sm:$0xff]
      %v5925 = vld [vmem:[%s6 + $0x128] sm:$0xf]
      %v5926 = vld [vmem:[%s6 + $0x12c] sm:$0xff]
      %v5927 = vld [vmem:[%s6 + $0x134] sm:$0xf]
      %v5928 = vld [vmem:[%s6 + $0x138] sm:$0xff]
      %v5929 = vld [vmem:[%s6 + $0x140] sm:$0xf]
      %v5930 = vld [vmem:[%s6 + $0x144] sm:$0xff]
      %v5931 = vld [vmem:[%s6 + $0x14c] sm:$0xf]
      %v5932 = vld [vmem:[%s6 + $0x150] sm:$0xff]
      %v5933 = vld [vmem:[%s6 + $0x158] sm:$0xf]
      %v5934 = vld [vmem:[%s6 + $0x15c] sm:$0xff]
      %v5935 = vld [vmem:[%s6 + $0x164] sm:$0xf]
      %v5936 = vld [vmem:[%s6 + $0x168] sm:$0xff]
      %v5937 = vld [vmem:[%s6 + $0x170] sm:$0xf]
      %v5938 = vld [vmem:[%s6 + $0x174] sm:$0xff]
      %v5939 = vld [vmem:[%s6 + $0x17c] sm:$0xf]
      %v6004 = vunpack.c.l.b16 %v5876
      %v6005 = vunpack.c.h.b16 %v5876
      %v6006 = vunpack.c.l.b16 %v5877
      %v6007 = vunpack.c.l.b16 %v5878
      %v6008 = vunpack.c.h.b16 %v5878
      %v6009 = vunpack.c.l.b16 %v5879
      %v6010 = vunpack.c.l.b16 %v5880
      %v6011 = vunpack.c.h.b16 %v5880
      %v6012 = vunpack.c.l.b16 %v5881
      %v6013 = vunpack.c.l.b16 %v5882
      %v6014 = vunpack.c.h.b16 %v5882
      %v6015 = vunpack.c.l.b16 %v5883
      %v6016 = vunpack.c.l.b16 %v5884
      %v6017 = vunpack.c.h.b16 %v5884
      %v6018 = vunpack.c.l.b16 %v5885
      %v6019 = vunpack.c.l.b16 %v5886
      %v6020 = vunpack.c.h.b16 %v5886
      %v6021 = vunpack.c.l.b16 %v5887
      %v6022 = vunpack.c.l.b16 %v5888
      %v6023 = vunpack.c.h.b16 %v5888
      %v6024 = vunpack.c.l.b16 %v5889
      %v6025 = vunpack.c.l.b16 %v5890
      %v6026 = vunpack.c.h.b16 %v5890
      %v6027 = vunpack.c.l.b16 %v5891
      %v6028 = vunpack.c.l.b16 %v5892
      %v6029 = vunpack.c.h.b16 %v5892
      %v6030 = vunpack.c.l.b16 %v5893
      %v6031 = vunpack.c.l.b16 %v5894
      %v6032 = vunpack.c.h.b16 %v5894
      %v6033 = vunpack.c.l.b16 %v5895
      %v6034 = vunpack.c.l.b16 %v5896
      %v6035 = vunpack.c.h.b16 %v5896
      %v6036 = vunpack.c.l.b16 %v5897
      %v6037 = vunpack.c.l.b16 %v5898
      %v6038 = vunpack.c.h.b16 %v5898
      %v6039 = vunpack.c.l.b16 %v5899
      %v6040 = vunpack.c.l.b16 %v5900
      %v6041 = vunpack.c.h.b16 %v5900
      %v6042 = vunpack.c.l.b16 %v5901
      %v6043 = vunpack.c.l.b16 %v5902
      %v6044 = vunpack.c.h.b16 %v5902
      %v6045 = vunpack.c.l.b16 %v5903
      %v6046 = vunpack.c.l.b16 %v5904
      %v6047 = vunpack.c.h.b16 %v5904
      %v6048 = vunpack.c.l.b16 %v5905
      %v6049 = vunpack.c.l.b16 %v5906
      %v6050 = vunpack.c.h.b16 %v5906
      %v6051 = vunpack.c.l.b16 %v5907
      %v6052 = vunpack.c.l.b16 %v5908
      %v6053 = vunpack.c.h.b16 %v5908
      %v6054 = vunpack.c.l.b16 %v5909
      %v6055 = vunpack.c.l.b16 %v5910
      %v6056 = vunpack.c.h.b16 %v5910
      %v6057 = vunpack.c.l.b16 %v5911
      %v6058 = vunpack.c.l.b16 %v5912
      %v6059 = vunpack.c.h.b16 %v5912
      %v6060 = vunpack.c.l.b16 %v5913
      %v6061 = vunpack.c.l.b16 %v5914
      %v6062 = vunpack.c.h.b16 %v5914
      %v6063 = vunpack.c.l.b16 %v5915
      %v6064 = vunpack.c.l.b16 %v5916
      %v6065 = vunpack.c.h.b16 %v5916
      %v6066 = vunpack.c.l.b16 %v5917
      %v6067 = vunpack.c.l.b16 %v5918
      %v6068 = vunpack.c.h.b16 %v5918
      %v6069 = vunpack.c.l.b16 %v5919
      %v6070 = vunpack.c.l.b16 %v5920
      %v6071 = vunpack.c.h.b16 %v5920
      %v6072 = vunpack.c.l.b16 %v5921
      %v6073 = vunpack.c.l.b16 %v5922
      %v6074 = vunpack.c.h.b16 %v5922
      %v6075 = vunpack.c.l.b16 %v5923
      %v6076 = vunpack.c.l.b16 %v5924
      %v6077 = vunpack.c.h.b16 %v5924
      %v6078 = vunpack.c.l.b16 %v5925
      %v6079 = vunpack.c.l.b16 %v5926
      %v6080 = vunpack.c.h.b16 %v5926
      %v6081 = vunpack.c.l.b16 %v5927
      %v6082 = vunpack.c.l.b16 %v5928
      %v6083 = vunpack.c.h.b16 %v5928
      %v6084 = vunpack.c.l.b16 %v5929
      %v6085 = vunpack.c.l.b16 %v5930
      %v6086 = vunpack.c.h.b16 %v5930
      %v6087 = vunpack.c.l.b16 %v5931
      %v6088 = vunpack.c.l.b16 %v5932
      %v6089 = vunpack.c.h.b16 %v5932
      %v6090 = vunpack.c.l.b16 %v5933
      %v6091 = vunpack.c.l.b16 %v5934
      %v6092 = vunpack.c.h.b16 %v5934
      %v6093 = vunpack.c.l.b16 %v5935
      %v6094 = vunpack.c.l.b16 %v5936
      %v6095 = vunpack.c.h.b16 %v5936
      %v6096 = vunpack.c.l.b16 %v5937
      %v6097 = vunpack.c.l.b16 %v5938
      %v6098 = vunpack.c.h.b16 %v5938
      %v6099 = vunpack.c.l.b16 %v5939
      %v6100 = vpack.c.b16 %v6007, %v6004
      %v6101 = vpack.c.b16 %v6008, %v6005
      %v6102 = vpack.c.b16 %v6009, %v6006
      %v6103 = vpack.c.b16 %v6013, %v6010
      %v6104 = vpack.c.b16 %v6014, %v6011
      %v6105 = vpack.c.b16 %v6015, %v6012
      %v6106 = vpack.c.b16 %v6019, %v6016
      %v6107 = vpack.c.b16 %v6020, %v6017
      %v6108 = vpack.c.b16 %v6021, %v6018
      %v6109 = vpack.c.b16 %v6025, %v6022
      %v6110 = vpack.c.b16 %v6026, %v6023
      %v6111 = vpack.c.b16 %v6027, %v6024
      %v6112 = vpack.c.b16 %v6031, %v6028
      %v6113 = vpack.c.b16 %v6032, %v6029
      %v6114 = vpack.c.b16 %v6033, %v6030
      %v6115 = vpack.c.b16 %v6037, %v6034
      %v6116 = vpack.c.b16 %v6038, %v6035
      %v6117 = vpack.c.b16 %v6039, %v6036
      %v6118 = vpack.c.b16 %v6043, %v6040
      %v6119 = vpack.c.b16 %v6044, %v6041
      %v6120 = vpack.c.b16 %v6045, %v6042
      %v6121 = vpack.c.b16 %v6049, %v6046
      %v6122 = vpack.c.b16 %v6050, %v6047
      %v6123 = vpack.c.b16 %v6051, %v6048
      %v6124 = vpack.c.b16 %v6055, %v6052
      %v6125 = vpack.c.b16 %v6056, %v6053
      %v6126 = vpack.c.b16 %v6057, %v6054
      %v6127 = vpack.c.b16 %v6061, %v6058
      %v6128 = vpack.c.b16 %v6062, %v6059
      %v6129 = vpack.c.b16 %v6063, %v6060
      %v6130 = vpack.c.b16 %v6067, %v6064
      %v6131 = vpack.c.b16 %v6068, %v6065
      %v6132 = vpack.c.b16 %v6069, %v6066
      %v6133 = vpack.c.b16 %v6073, %v6070
      %v6134 = vpack.c.b16 %v6074, %v6071
      %v6135 = vpack.c.b16 %v6075, %v6072
      %v6136 = vpack.c.b16 %v6079, %v6076
      %v6137 = vpack.c.b16 %v6080, %v6077
      %v6138 = vpack.c.b16 %v6081, %v6078
      %v6139 = vpack.c.b16 %v6085, %v6082
      %v6140 = vpack.c.b16 %v6086, %v6083
      %v6141 = vpack.c.b16 %v6087, %v6084
      %v6142 = vpack.c.b16 %v6091, %v6088
      %v6143 = vpack.c.b16 %v6092, %v6089
      %v6144 = vpack.c.b16 %v6093, %v6090
      %v6145 = vpack.c.b16 %v6097, %v6094
      %v6146 = vpack.c.b16 %v6098, %v6095
      %v6147 = vpack.c.b16 %v6099, %v6096
      %6196 = vmatprep.subr.bf16.mxu0 %v6101
      %6197 = vmatpush1.bf16.msra.mxu0 %v6100
      %6198 = vmatprep.subr.bf16.mxu0 %v6104
      %6199 = vmatpush1.bf16.msra.mxu0 %v6103
      %6200 = vmatprep.subr.bf16.mxu0 %v6107
      %6201 = vmatpush1.bf16.msra.mxu0 %v6106
      %6202 = vmatprep.subr.bf16.mxu0 %v6110
      %6203 = vmatpush1.bf16.msra.mxu0 %v6109
      %6204 = vmatprep.subr.bf16.mxu0 %v6113
      %6205 = vmatpush1.bf16.msra.mxu0 %v6112
      %6206 = vmatprep.subr.bf16.mxu0 %v6116
      %6207 = vmatpush1.bf16.msra.mxu0 %v6115
      %6208 = vmatprep.subr.bf16.mxu0 %v6119
      %6209 = vmatpush1.bf16.msra.mxu0 %v6118
      %6210 = vmatprep.subr.bf16.mxu0 %v6122
      %6211 = vmatpush1.bf16.msra.mxu0 %v6121
      %6212 = vmatprep.subr.bf16.mxu0 %v6125
      %6213 = vmatpush1.bf16.msra.mxu0 %v6124
      %6214 = vmatprep.subr.bf16.mxu0 %v6128
      %6215 = vmatpush1.bf16.msra.mxu0 %v6127
      %6216 = vmatprep.subr.bf16.mxu0 %v6131
      %6217 = vmatpush1.bf16.msra.mxu0 %v6130
      %6218 = vmatprep.subr.bf16.mxu0 %v6134
      %6219 = vmatpush1.bf16.msra.mxu0 %v6133
      %6220 = vmatprep.subr.bf16.mxu0 %v6137
      %6221 = vmatpush1.bf16.msra.mxu0 %v6136
      %6222 = vmatprep.subr.bf16.mxu0 %v6140
      %6223 = vmatpush1.bf16.msra.mxu0 %v6139
      %6224 = vmatprep.subr.bf16.mxu0 %v6143
      %6225 = vmatpush1.bf16.msra.mxu0 %v6142
      %6226 = vmatprep.subr.bf16.mxu0 %v6146
      %6227 = vmatpush1.bf16.msra.mxu0 %v6145
      %6228 = vmatprep.mubr.bf16.mxu0 %v5873
      %6229 = vmatmul.mubr.bf16.gmra.mrb[0].mxu0 %v5872
      %v6230 = vpop.f32.mrb[0].mxu0
      %v6231 = vadd.f32 0.0, %v6230
      %v6232 = vpop.f32.mrb[0].mxu0
      %v6233 = vadd.f32 0.0, %v6232
      %v6234 = vpop.f32.mrb[0].mxu0
      %v6235 = vadd.f32 0.0, %v6234
      %v6236 = vpop.f32.mrb[0].mxu0
      %v6237 = vadd.f32 0.0, %v6236
      %6238 = vmatprep.mubr.bf16.mxu0 %v5875
      %6239 = vmatmul.mubr.bf16.gmra.mrb[0].mxu0 %v5874
      %v6240 = vpop.f32.mrb[0].mxu0
      %v6241 = vadd.f32 0.0, %v6240
      %v6242 = vpop.f32.mrb[0].mxu0
      %v6243 = vadd.f32 0.0, %v6242
      %v6244 = vpop.f32.mrb[0].mxu0
      %v6245 = vadd.f32 0.0, %v6244
      %v6246 = vpop.f32.mrb[0].mxu0
      %v6247 = vadd.f32 0.0, %v6246
      %6248 = vdwg.mxu0
      %6249 = vmatprep.subr.bf16.mxu0 0
      %6250 = vmatpush1.bf16.msra.mxu0 %v6102
      %6251 = vmatprep.subr.bf16.mxu0 0
      %6252 = vmatpush1.bf16.msra.mxu0 %v6105
      %6253 = vmatprep.subr.bf16.mxu0 0
      %6254 = vmatpush1.bf16.msra.mxu0 %v6108
      %6255 = vmatprep.subr.bf16.mxu0 0
      %6256 = vmatpush1.bf16.msra.mxu0 %v6111
      %6257 = vmatprep.subr.bf16.mxu0 0
      %6258 = vmatpush1.bf16.msra.mxu0 %v6114
      %6259 = vmatprep.subr.bf16.mxu0 0
      %6260 = vmatpush1.bf16.msra.mxu0 %v6117
      %6261 = vmatprep.subr.bf16.mxu0 0
      %6262 = vmatpush1.bf16.msra.mxu0 %v6120
      %6263 = vmatprep.subr.bf16.mxu0 0
      %6264 = vmatpush1.bf16.msra.mxu0 %v6123
      %6265 = vmatprep.subr.bf16.mxu0 0
      %6266 = vmatpush1.bf16.msra.mxu0 %v6126
      %6267 = vmatprep.subr.bf16.mxu0 0
      %6268 = vmatpush1.bf16.msra.mxu0 %v6129
      %6269 = vmatprep.subr.bf16.mxu0 0
      %6270 = vmatpush1.bf16.msra.mxu0 %v6132
      %6271 = vmatprep.subr.bf16.mxu0 0
      %6272 = vmatpush1.bf16.msra.mxu0 %v6135
      %6273 = vmatprep.subr.bf16.mxu0 0
      %6274 = vmatpush1.bf16.msra.mxu0 %v6138
      %6275 = vmatprep.subr.bf16.mxu0 0
      %6276 = vmatpush1.bf16.msra.mxu0 %v6141
      %6277 = vmatprep.subr.bf16.mxu0 0
      %6278 = vmatpush1.bf16.msra.mxu0 %v6144
      %6279 = vmatprep.subr.bf16.mxu0 0
      %6280 = vmatpush1.bf16.msra.mxu0 %v6147
      %6281 = vmatprep.mubr.bf16.mxu0 %v5873
      %6282 = vmatmul.mubr.bf16.gmra.mrb[0].mxu0 %v5872
      %v6283 = vpop.f32.mrb[0].mxu0
      %v6284 = vadd.f32 0.0, %v6283
      %v6285 = vpop.f32.mrb[0].mxu0
      %v6286 = vpop.f32.mrb[0].mxu0
      %v6287 = vadd.f32 0.0, %v6286
      %v6288 = vpop.f32.mrb[0].mxu0
      %6289 = vmatprep.mubr.bf16.mxu0 %v5875
      %6290 = vmatmul.mubr.bf16.gmra.mrb[0].mxu0 %v5874
      %v6291 = vpop.f32.mrb[0].mxu0
      %v6292 = vadd.f32 0.0, %v6291
      %v6293 = vpop.f32.mrb[0].mxu0
      %v6294 = vpop.f32.mrb[0].mxu0
      %v6295 = vadd.f32 0.0, %v6294
      %v6296 = vpop.f32.mrb[0].mxu0
      %6297 = vdwg.mxu0
      %v6298 = vpack.c.bf16 %v6235, %v6231
      %v6299 = vpack.c.bf16 %v6237, %v6233
      %v6300 = vpack.c.bf16 %v6287, %v6284
      %v6301 = vpack.c.bf16 %v6245, %v6241
      %v6302 = vpack.c.bf16 %v6247, %v6243
      %v6303 = vpack.c.bf16 %v6295, %v6292
      %6304 = vst [vmem:[#allocation6] sm:$0xff] %v6298
      %6305 = vst [vmem:[#allocation6 + $0x8] sm:$0xff] %v6299
      %6306 = vst [vmem:[#allocation6 + $0x10] sm:$0xff] %v6300
      %6307 = vst [vmem:[#allocation6 + $0x18] sm:$0xff] %v6301
      %6308 = vst [vmem:[#allocation6 + $0x20] sm:$0xff] %v6302
      %6309 = vst [vmem:[#allocation6 + $0x28] sm:$0xff] %v6303
      %v6310 = vld [vmem:[#allocation6] sm:$0xff]
      %v6311 = vld [vmem:[#allocation6 + $0x8] sm:$0xff]
      %v6312 = vld [vmem:[#allocation6 + $0x18] sm:$0xff]
      %v6313 = vld [vmem:[#allocation6 + $0x20] sm:$0xff]
      %6314 = vst [vmem:[#allocation7] sm:$0xff] %v6310
      %6315 = vst [vmem:[#allocation7 + $0x8] sm:$0xff] %v6311
      %6316 = vst [vmem:[#allocation7 + $0x10] sm:$0xff] %v6312
      %6317 = vst [vmem:[#allocation7 + $0x18] sm:$0xff] %v6313
      %v6318 = vld [vmem:[#allocation6] sm:$0xff]
      %v6319 = vld [vmem:[#allocation6 + $0x8] sm:$0xff]
      %v6320 = vld [vmem:[#allocation6 + $0x10] sm:$0xff]
      %v6321 = vld [vmem:[#allocation6 + $0x18] sm:$0xff]
      %v6322 = vld [vmem:[#allocation6 + $0x20] sm:$0xff]
      %v6323 = vld [vmem:[#allocation6 + $0x28] sm:$0xff]
      %6330 = vrot.lane.b32.xlu0 %v6318, 127
      %v6331 = vpop.permute.xlu0 %6330
      %6332 = vrot.lane.b32.xlu0 %v6319, 127
      %v6333 = vpop.permute.xlu0 %6332
      %6334 = vrot.lane.b32.xlu0 %v6320, 127
      %v6335 = vpop.permute.xlu0 %6334
      %6336 = vrot.lane.b32.xlu0 %v6321, 127
      %v6337 = vpop.permute.xlu0 %6336
      %6338 = vrot.lane.b32.xlu0 %v6322, 127
      %v6339 = vpop.permute.xlu0 %6338
      %6340 = vrot.lane.b32.xlu0 %v6323, 127
      %v6341 = vpop.permute.xlu0 %6340
      %v6342 = vsel %vm608, %v6331, %v6333
      %v6343 = vsel %vm608, %v6333, %v6335
      %v6344 = vsel %vm608, %v6337, %v6339
      %v6345 = vsel %vm608, %v6339, %v6341
      %6350 = vst [vmem:[#allocation7 + $0x20] sm:$0xff] %v6342
      %6351 = vst [vmem:[#allocation7 + $0x28] sm:$0xff] %v6343
      %6352 = vst [vmem:[#allocation7 + $0x30] sm:$0xff] %v6344
      %6353 = vst [vmem:[#allocation7 + $0x38] sm:$0xff] %v6345
      %v6354 = vld [vmem:[#allocation6] sm:$0xff]
      %v6355 = vld [vmem:[#allocation6 + $0x8] sm:$0xff]
      %v6356 = vld [vmem:[#allocation6 + $0x10] sm:$0xff]
      %v6357 = vld [vmem:[#allocation6 + $0x18] sm:$0xff]
      %v6358 = vld [vmem:[#allocation6 + $0x20] sm:$0xff]
      %v6359 = vld [vmem:[#allocation6 + $0x28] sm:$0xff]
      %6366 = vrot.lane.b32.xlu0 %v6354, 126
      %v6367 = vpop.permute.xlu0 %6366
      %6368 = vrot.lane.b32.xlu0 %v6355, 126
      %v6369 = vpop.permute.xlu0 %6368
      %6370 = vrot.lane.b32.xlu0 %v6356, 126
      %v6371 = vpop.permute.xlu0 %6370
      %6372 = vrot.lane.b32.xlu0 %v6357, 126
      %v6373 = vpop.permute.xlu0 %6372
      %6374 = vrot.lane.b32.xlu0 %v6358, 126
      %v6375 = vpop.permute.xlu0 %6374
      %6376 = vrot.lane.b32.xlu0 %v6359, 126
      %v6377 = vpop.permute.xlu0 %6376
      %v6378 = vsel %vm713, %v6367, %v6369
      %v6379 = vsel %vm713, %v6369, %v6371
      %v6380 = vsel %vm713, %v6373, %v6375
      %v6381 = vsel %vm713, %v6375, %v6377
      %6386 = vst [vmem:[#allocation7 + $0x40] sm:$0xff] %v6378
      %6387 = vst [vmem:[#allocation7 + $0x48] sm:$0xff] %v6379
      %6388 = vst [vmem:[#allocation7 + $0x50] sm:$0xff] %v6380
      %6389 = vst [vmem:[#allocation7 + $0x58] sm:$0xff] %v6381
      %v6390 = vld [vmem:[#allocation6] sm:$0xff]
      %v6391 = vld [vmem:[#allocation6 + $0x8] sm:$0xff]
      %v6392 = vld [vmem:[#allocation6 + $0x10] sm:$0xff]
      %v6393 = vld [vmem:[#allocation6 + $0x18] sm:$0xff]
      %v6394 = vld [vmem:[#allocation6 + $0x20] sm:$0xff]
      %v6395 = vld [vmem:[#allocation6 + $0x28] sm:$0xff]
      %6402 = vrot.lane.b32.xlu0 %v6390, 125
      %v6403 = vpop.permute.xlu0 %6402
      %6404 = vrot.lane.b32.xlu0 %v6391, 125
      %v6405 = vpop.permute.xlu0 %6404
      %6406 = vrot.lane.b32.xlu0 %v6392, 125
      %v6407 = vpop.permute.xlu0 %6406
      %6408 = vrot.lane.b32.xlu0 %v6393, 125
      %v6409 = vpop.permute.xlu0 %6408
      %6410 = vrot.lane.b32.xlu0 %v6394, 125
      %v6411 = vpop.permute.xlu0 %6410
      %6412 = vrot.lane.b32.xlu0 %v6395, 125
      %v6413 = vpop.permute.xlu0 %6412
      %v6414 = vsel %vm851, %v6403, %v6405
      %v6415 = vsel %vm851, %v6405, %v6407
      %v6416 = vsel %vm851, %v6409, %v6411
      %v6417 = vsel %vm851, %v6411, %v6413
      %6422 = vst [vmem:[#allocation7 + $0x60] sm:$0xff] %v6414
      %6423 = vst [vmem:[#allocation7 + $0x68] sm:$0xff] %v6415
      %6424 = vst [vmem:[#allocation7 + $0x70] sm:$0xff] %v6416
      %6425 = vst [vmem:[#allocation7 + $0x78] sm:$0xff] %v6417
      %v6426 = vld [vmem:[#allocation6] sm:$0xff]
      %v6427 = vld [vmem:[#allocation6 + $0x8] sm:$0xff]
      %v6428 = vld [vmem:[#allocation6 + $0x10] sm:$0xff]
      %v6429 = vld [vmem:[#allocation6 + $0x18] sm:$0xff]
      %v6430 = vld [vmem:[#allocation6 + $0x20] sm:$0xff]
      %v6431 = vld [vmem:[#allocation6 + $0x28] sm:$0xff]
      %6438 = vrot.lane.b32.xlu0 %v6426, 124
      %v6439 = vpop.permute.xlu0 %6438
      %6440 = vrot.lane.b32.xlu0 %v6427, 124
      %v6441 = vpop.permute.xlu0 %6440
      %6442 = vrot.lane.b32.xlu0 %v6428, 124
      %v6443 = vpop.permute.xlu0 %6442
      %6444 = vrot.lane.b32.xlu0 %v6429, 124
      %v6445 = vpop.permute.xlu0 %6444
      %6446 = vrot.lane.b32.xlu0 %v6430, 124
      %v6447 = vpop.permute.xlu0 %6446
      %6448 = vrot.lane.b32.xlu0 %v6431, 124
      %v6449 = vpop.permute.xlu0 %6448
      %v6450 = vsel %vm956, %v6439, %v6441
      %v6451 = vsel %vm956, %v6441, %v6443
      %v6452 = vsel %vm956, %v6445, %v6447
      %v6453 = vsel %vm956, %v6447, %v6449
      %6458 = vst [vmem:[#allocation7 + $0x80] sm:$0xff] %v6450
      %6459 = vst [vmem:[#allocation7 + $0x88] sm:$0xff] %v6451
      %6460 = vst [vmem:[#allocation7 + $0x90] sm:$0xff] %v6452
      %6461 = vst [vmem:[#allocation7 + $0x98] sm:$0xff] %v6453
      %v6462 = vld [vmem:[#allocation6] sm:$0xff]
      %v6463 = vld [vmem:[#allocation6 + $0x8] sm:$0xff]
      %v6464 = vld [vmem:[#allocation6 + $0x10] sm:$0xff]
      %v6465 = vld [vmem:[#allocation6 + $0x18] sm:$0xff]
      %v6466 = vld [vmem:[#allocation6 + $0x20] sm:$0xff]
      %v6467 = vld [vmem:[#allocation6 + $0x28] sm:$0xff]
      %6474 = vrot.lane.b32.xlu0 %v6462, 110
      %v6475 = vpop.permute.xlu0 %6474
      %6476 = vrot.lane.b32.xlu0 %v6463, 110
      %v6477 = vpop.permute.xlu0 %6476
      %6478 = vrot.lane.b32.xlu0 %v6464, 110
      %v6479 = vpop.permute.xlu0 %6478
      %6480 = vrot.lane.b32.xlu0 %v6465, 110
      %v6481 = vpop.permute.xlu0 %6480
      %6482 = vrot.lane.b32.xlu0 %v6466, 110
      %v6483 = vpop.permute.xlu0 %6482
      %6484 = vrot.lane.b32.xlu0 %v6467, 110
      %v6485 = vpop.permute.xlu0 %6484
      %v6486 = vsel %vm5264, %v6475, %v6477
      %v6487 = vsel %vm5264, %v6477, %v6479
      %v6488 = vsel %vm5264, %v6481, %v6483
      %v6489 = vsel %vm5264, %v6483, %v6485
      %6494 = vst [vmem:[#allocation7 + $0xa0] sm:$0xff] %v6486
      %6495 = vst [vmem:[#allocation7 + $0xa8] sm:$0xff] %v6487
      %6496 = vst [vmem:[#allocation7 + $0xb0] sm:$0xff] %v6488
      %6497 = vst [vmem:[#allocation7 + $0xb8] sm:$0xff] %v6489
      %v6498 = vld [vmem:[#allocation6] sm:$0xff]
      %v6499 = vld [vmem:[#allocation6 + $0x8] sm:$0xff]
      %v6500 = vld [vmem:[#allocation6 + $0x10] sm:$0xff]
      %v6501 = vld [vmem:[#allocation6 + $0x18] sm:$0xff]
      %v6502 = vld [vmem:[#allocation6 + $0x20] sm:$0xff]
      %v6503 = vld [vmem:[#allocation6 + $0x28] sm:$0xff]
      %6510 = vrot.lane.b32.xlu0 %v6498, 109
      %v6511 = vpop.permute.xlu0 %6510
      %6512 = vrot.lane.b32.xlu0 %v6499, 109
      %v6513 = vpop.permute.xlu0 %6512
      %6514 = vrot.lane.b32.xlu0 %v6500, 109
      %v6515 = vpop.permute.xlu0 %6514
      %6516 = vrot.lane.b32.xlu0 %v6501, 109
      %v6517 = vpop.permute.xlu0 %6516
      %6518 = vrot.lane.b32.xlu0 %v6502, 109
      %v6519 = vpop.permute.xlu0 %6518
      %6520 = vrot.lane.b32.xlu0 %v6503, 109
      %v6521 = vpop.permute.xlu0 %6520
      %v6522 = vsel %vm5283, %v6511, %v6513
      %v6523 = vsel %vm5283, %v6513, %v6515
      %v6524 = vsel %vm5283, %v6517, %v6519
      %v6525 = vsel %vm5283, %v6519, %v6521
      %6530 = vst [vmem:[#allocation7 + $0xc0] sm:$0xff] %v6522
      %6531 = vst [vmem:[#allocation7 + $0xc8] sm:$0xff] %v6523
      %6532 = vst [vmem:[#allocation7 + $0xd0] sm:$0xff] %v6524
      %6533 = vst [vmem:[#allocation7 + $0xd8] sm:$0xff] %v6525
      %v6534 = vld [vmem:[#allocation6] sm:$0xff]
      %v6535 = vld [vmem:[#allocation6 + $0x8] sm:$0xff]
      %v6536 = vld [vmem:[#allocation6 + $0x10] sm:$0xff]
      %v6537 = vld [vmem:[#allocation6 + $0x18] sm:$0xff]
      %v6538 = vld [vmem:[#allocation6 + $0x20] sm:$0xff]
      %v6539 = vld [vmem:[#allocation6 + $0x28] sm:$0xff]
      %6546 = vrot.lane.b32.xlu0 %v6534, 108
      %v6547 = vpop.permute.xlu0 %6546
      %6548 = vrot.lane.b32.xlu0 %v6535, 108
      %v6549 = vpop.permute.xlu0 %6548
      %6550 = vrot.lane.b32.xlu0 %v6536, 108
      %v6551 = vpop.permute.xlu0 %6550
      %6552 = vrot.lane.b32.xlu0 %v6537, 108
      %v6553 = vpop.permute.xlu0 %6552
      %6554 = vrot.lane.b32.xlu0 %v6538, 108
      %v6555 = vpop.permute.xlu0 %6554
      %6556 = vrot.lane.b32.xlu0 %v6539, 108
      %v6557 = vpop.permute.xlu0 %6556
      %v6558 = vsel %vm5302, %v6547, %v6549
      %v6559 = vsel %vm5302, %v6549, %v6551
      %v6560 = vsel %vm5302, %v6553, %v6555
      %v6561 = vsel %vm5302, %v6555, %v6557
      %6566 = vst [vmem:[#allocation7 + $0xe0] sm:$0xff] %v6558
      %6567 = vst [vmem:[#allocation7 + $0xe8] sm:$0xff] %v6559
      %6568 = vst [vmem:[#allocation7 + $0xf0] sm:$0xff] %v6560
      %6569 = vst [vmem:[#allocation7 + $0xf8] sm:$0xff] %v6561
      %v6570 = vld [vmem:[#allocation6] sm:$0xff]
      %v6571 = vld [vmem:[#allocation6 + $0x8] sm:$0xff]
      %v6572 = vld [vmem:[#allocation6 + $0x10] sm:$0xff]
      %v6573 = vld [vmem:[#allocation6 + $0x18] sm:$0xff]
      %v6574 = vld [vmem:[#allocation6 + $0x20] sm:$0xff]
      %v6575 = vld [vmem:[#allocation6 + $0x28] sm:$0xff]
      %6582 = vrot.lane.b32.xlu0 %v6570, 107
      %v6583 = vpop.permute.xlu0 %6582
      %6584 = vrot.lane.b32.xlu0 %v6571, 107
      %v6585 = vpop.permute.xlu0 %6584
      %6586 = vrot.lane.b32.xlu0 %v6572, 107
      %v6587 = vpop.permute.xlu0 %6586
      %6588 = vrot.lane.b32.xlu0 %v6573, 107
      %v6589 = vpop.permute.xlu0 %6588
      %6590 = vrot.lane.b32.xlu0 %v6574, 107
      %v6591 = vpop.permute.xlu0 %6590
      %6592 = vrot.lane.b32.xlu0 %v6575, 107
      %v6593 = vpop.permute.xlu0 %6592
      %v6594 = vsel %vm5321, %v6583, %v6585
      %v6595 = vsel %vm5321, %v6585, %v6587
      %v6596 = vsel %vm5321, %v6589, %v6591
      %v6597 = vsel %vm5321, %v6591, %v6593
      %6602 = vst [vmem:[#allocation7 + $0x100] sm:$0xff] %v6594
      %6603 = vst [vmem:[#allocation7 + $0x108] sm:$0xff] %v6595
      %6604 = vst [vmem:[#allocation7 + $0x110] sm:$0xff] %v6596
      %6605 = vst [vmem:[#allocation7 + $0x118] sm:$0xff] %v6597
      %v6606 = vld [vmem:[#allocation6] sm:$0xff]
      %v6607 = vld [vmem:[#allocation6 + $0x8] sm:$0xff]
      %v6608 = vld [vmem:[#allocation6 + $0x10] sm:$0xff]
      %v6609 = vld [vmem:[#allocation6 + $0x18] sm:$0xff]
      %v6610 = vld [vmem:[#allocation6 + $0x20] sm:$0xff]
      %v6611 = vld [vmem:[#allocation6 + $0x28] sm:$0xff]
      %6618 = vrot.lane.b32.xlu0 %v6606, 106
      %v6619 = vpop.permute.xlu0 %6618
      %6620 = vrot.lane.b32.xlu0 %v6607, 106
      %v6621 = vpop.permute.xlu0 %6620
      %6622 = vrot.lane.b32.xlu0 %v6608, 106
      %v6623 = vpop.permute.xlu0 %6622
      %6624 = vrot.lane.b32.xlu0 %v6609, 106
      %v6625 = vpop.permute.xlu0 %6624
      %6626 = vrot.lane.b32.xlu0 %v6610, 106
      %v6627 = vpop.permute.xlu0 %6626
      %6628 = vrot.lane.b32.xlu0 %v6611, 106
      %v6629 = vpop.permute.xlu0 %6628
      %v6630 = vsel %vm5340, %v6619, %v6621
      %v6631 = vsel %vm5340, %v6621, %v6623
      %v6632 = vsel %vm5340, %v6625, %v6627
      %v6633 = vsel %vm5340, %v6627, %v6629
      %6638 = vst [vmem:[#allocation7 + $0x120] sm:$0xff] %v6630
      %6639 = vst [vmem:[#allocation7 + $0x128] sm:$0xff] %v6631
      %6640 = vst [vmem:[#allocation7 + $0x130] sm:$0xff] %v6632
      %6641 = vst [vmem:[#allocation7 + $0x138] sm:$0xff] %v6633
      %v6642 = vld [vmem:[#allocation6] sm:$0xff]
      %v6643 = vld [vmem:[#allocation6 + $0x8] sm:$0xff]
      %v6644 = vld [vmem:[#allocation6 + $0x10] sm:$0xff]
      %v6645 = vld [vmem:[#allocation6 + $0x18] sm:$0xff]
      %v6646 = vld [vmem:[#allocation6 + $0x20] sm:$0xff]
      %v6647 = vld [vmem:[#allocation6 + $0x28] sm:$0xff]
      %6654 = vrot.lane.b32.xlu0 %v6642, 92
      %v6655 = vpop.permute.xlu0 %6654
      %6656 = vrot.lane.b32.xlu0 %v6643, 92
      %v6657 = vpop.permute.xlu0 %6656
      %6658 = vrot.lane.b32.xlu0 %v6644, 92
      %v6659 = vpop.permute.xlu0 %6658
      %6660 = vrot.lane.b32.xlu0 %v6645, 92
      %v6661 = vpop.permute.xlu0 %6660
      %6662 = vrot.lane.b32.xlu0 %v6646, 92
      %v6663 = vpop.permute.xlu0 %6662
      %6664 = vrot.lane.b32.xlu0 %v6647, 92
      %v6665 = vpop.permute.xlu0 %6664
      %v6666 = vsel %vm1580, %v6655, %v6657
      %v6667 = vsel %vm1580, %v6657, %v6659
      %v6668 = vsel %vm1580, %v6661, %v6663
      %v6669 = vsel %vm1580, %v6663, %v6665
      %6674 = vst [vmem:[#allocation7 + $0x140] sm:$0xff] %v6666
      %6675 = vst [vmem:[#allocation7 + $0x148] sm:$0xff] %v6667
      %6676 = vst [vmem:[#allocation7 + $0x150] sm:$0xff] %v6668
      %6677 = vst [vmem:[#allocation7 + $0x158] sm:$0xff] %v6669
      %v6678 = vld [vmem:[#allocation6] sm:$0xff]
      %v6679 = vld [vmem:[#allocation6 + $0x8] sm:$0xff]
      %v6680 = vld [vmem:[#allocation6 + $0x10] sm:$0xff]
      %v6681 = vld [vmem:[#allocation6 + $0x18] sm:$0xff]
      %v6682 = vld [vmem:[#allocation6 + $0x20] sm:$0xff]
      %v6683 = vld [vmem:[#allocation6 + $0x28] sm:$0xff]
      %6690 = vrot.lane.b32.xlu0 %v6678, 91
      %v6691 = vpop.permute.xlu0 %6690
      %6692 = vrot.lane.b32.xlu0 %v6679, 91
      %v6693 = vpop.permute.xlu0 %6692
      %6694 = vrot.lane.b32.xlu0 %v6680, 91
      %v6695 = vpop.permute.xlu0 %6694
      %6696 = vrot.lane.b32.xlu0 %v6681, 91
      %v6697 = vpop.permute.xlu0 %6696
      %6698 = vrot.lane.b32.xlu0 %v6682, 91
      %v6699 = vpop.permute.xlu0 %6698
      %6700 = vrot.lane.b32.xlu0 %v6683, 91
      %v6701 = vpop.permute.xlu0 %6700
      %v6702 = vsel %vm5377, %v6691, %v6693
      %v6703 = vsel %vm5377, %v6693, %v6695
      %v6704 = vsel %vm5377, %v6697, %v6699
      %v6705 = vsel %vm5377, %v6699, %v6701
      %6710 = vst [vmem:[#allocation7 + $0x160] sm:$0xff] %v6702
      %6711 = vst [vmem:[#allocation7 + $0x168] sm:$0xff] %v6703
      %6712 = vst [vmem:[#allocation7 + $0x170] sm:$0xff] %v6704
      %6713 = vst [vmem:[#allocation7 + $0x178] sm:$0xff] %v6705
      %v6714 = vld [vmem:[#allocation6] sm:$0xff]
      %v6715 = vld [vmem:[#allocation6 + $0x8] sm:$0xff]
      %v6716 = vld [vmem:[#allocation6 + $0x10] sm:$0xff]
      %v6717 = vld [vmem:[#allocation6 + $0x18] sm:$0xff]
      %v6718 = vld [vmem:[#allocation6 + $0x20] sm:$0xff]
      %v6719 = vld [vmem:[#allocation6 + $0x28] sm:$0xff]
      %6726 = vrot.lane.b32.xlu0 %v6714, 90
      %v6727 = vpop.permute.xlu0 %6726
      %6728 = vrot.lane.b32.xlu0 %v6715, 90
      %v6729 = vpop.permute.xlu0 %6728
      %6730 = vrot.lane.b32.xlu0 %v6716, 90
      %v6731 = vpop.permute.xlu0 %6730
      %6732 = vrot.lane.b32.xlu0 %v6717, 90
      %v6733 = vpop.permute.xlu0 %6732
      %6734 = vrot.lane.b32.xlu0 %v6718, 90
      %v6735 = vpop.permute.xlu0 %6734
      %6736 = vrot.lane.b32.xlu0 %v6719, 90
      %v6737 = vpop.permute.xlu0 %6736
      %v6738 = vsel %vm5396, %v6727, %v6729
      %v6739 = vsel %vm5396, %v6729, %v6731
      %v6740 = vsel %vm5396, %v6733, %v6735
      %v6741 = vsel %vm5396, %v6735, %v6737
      %6746 = vst [vmem:[#allocation7 + $0x180] sm:$0xff] %v6738
      %6747 = vst [vmem:[#allocation7 + $0x188] sm:$0xff] %v6739
      %6748 = vst [vmem:[#allocation7 + $0x190] sm:$0xff] %v6740
      %6749 = vst [vmem:[#allocation7 + $0x198] sm:$0xff] %v6741
      %v6750 = vld [vmem:[#allocation6] sm:$0xff]
      %v6751 = vld [vmem:[#allocation6 + $0x8] sm:$0xff]
      %v6752 = vld [vmem:[#allocation6 + $0x10] sm:$0xff]
      %v6753 = vld [vmem:[#allocation6 + $0x18] sm:$0xff]
      %v6754 = vld [vmem:[#allocation6 + $0x20] sm:$0xff]
      %v6755 = vld [vmem:[#allocation6 + $0x28] sm:$0xff]
      %6762 = vrot.lane.b32.xlu0 %v6750, 89
      %v6763 = vpop.permute.xlu0 %6762
      %6764 = vrot.lane.b32.xlu0 %v6751, 89
      %v6765 = vpop.permute.xlu0 %6764
      %6766 = vrot.lane.b32.xlu0 %v6752, 89
      %v6767 = vpop.permute.xlu0 %6766
      %6768 = vrot.lane.b32.xlu0 %v6753, 89
      %v6769 = vpop.permute.xlu0 %6768
      %6770 = vrot.lane.b32.xlu0 %v6754, 89
      %v6771 = vpop.permute.xlu0 %6770
      %6772 = vrot.lane.b32.xlu0 %v6755, 89
      %v6773 = vpop.permute.xlu0 %6772
      %v6774 = vsel %vm5415, %v6763, %v6765
      %v6775 = vsel %vm5415, %v6765, %v6767
      %v6776 = vsel %vm5415, %v6769, %v6771
      %v6777 = vsel %vm5415, %v6771, %v6773
      %6782 = vst [vmem:[#allocation7 + $0x1a0] sm:$0xff] %v6774
      %6783 = vst [vmem:[#allocation7 + $0x1a8] sm:$0xff] %v6775
      %6784 = vst [vmem:[#allocation7 + $0x1b0] sm:$0xff] %v6776
      %6785 = vst [vmem:[#allocation7 + $0x1b8] sm:$0xff] %v6777
      %v6786 = vld [vmem:[#allocation6] sm:$0xff]
      %v6787 = vld [vmem:[#allocation6 + $0x8] sm:$0xff]
      %v6788 = vld [vmem:[#allocation6 + $0x10] sm:$0xff]
      %v6789 = vld [vmem:[#allocation6 + $0x18] sm:$0xff]
      %v6790 = vld [vmem:[#allocation6 + $0x20] sm:$0xff]
      %v6791 = vld [vmem:[#allocation6 + $0x28] sm:$0xff]
      %6798 = vrot.lane.b32.xlu0 %v6786, 88
      %v6799 = vpop.permute.xlu0 %6798
      %6800 = vrot.lane.b32.xlu0 %v6787, 88
      %v6801 = vpop.permute.xlu0 %6800
      %6802 = vrot.lane.b32.xlu0 %v6788, 88
      %v6803 = vpop.permute.xlu0 %6802
      %6804 = vrot.lane.b32.xlu0 %v6789, 88
      %v6805 = vpop.permute.xlu0 %6804
      %6806 = vrot.lane.b32.xlu0 %v6790, 88
      %v6807 = vpop.permute.xlu0 %6806
      %6808 = vrot.lane.b32.xlu0 %v6791, 88
      %v6809 = vpop.permute.xlu0 %6808
      %v6810 = vsel %vm5434, %v6799, %v6801
      %v6811 = vsel %vm5434, %v6801, %v6803
      %v6812 = vsel %vm5434, %v6805, %v6807
      %v6813 = vsel %vm5434, %v6807, %v6809
      %6818 = vst [vmem:[#allocation7 + $0x1c0] sm:$0xff] %v6810
      %6819 = vst [vmem:[#allocation7 + $0x1c8] sm:$0xff] %v6811
      %6820 = vst [vmem:[#allocation7 + $0x1d0] sm:$0xff] %v6812
      %6821 = vst [vmem:[#allocation7 + $0x1d8] sm:$0xff] %v6813
      %v6822 = vld [vmem:[#allocation6] sm:$0xff]
      %v6823 = vld [vmem:[#allocation6 + $0x8] sm:$0xff]
      %v6824 = vld [vmem:[#allocation6 + $0x10] sm:$0xff]
      %v6825 = vld [vmem:[#allocation6 + $0x18] sm:$0xff]
      %v6826 = vld [vmem:[#allocation6 + $0x20] sm:$0xff]
      %v6827 = vld [vmem:[#allocation6 + $0x28] sm:$0xff]
      %6834 = vrot.lane.b32.xlu0 %v6822, 74
      %v6835 = vpop.permute.xlu0 %6834
      %6836 = vrot.lane.b32.xlu0 %v6823, 74
      %v6837 = vpop.permute.xlu0 %6836
      %6838 = vrot.lane.b32.xlu0 %v6824, 74
      %v6839 = vpop.permute.xlu0 %6838
      %6840 = vrot.lane.b32.xlu0 %v6825, 74
      %v6841 = vpop.permute.xlu0 %6840
      %6842 = vrot.lane.b32.xlu0 %v6826, 74
      %v6843 = vpop.permute.xlu0 %6842
      %6844 = vrot.lane.b32.xlu0 %v6827, 74
      %v6845 = vpop.permute.xlu0 %6844
      %v6846 = vsel %vm5453, %v6835, %v6837
      %v6847 = vsel %vm5453, %v6837, %v6839
      %v6848 = vsel %vm5453, %v6841, %v6843
      %v6849 = vsel %vm5453, %v6843, %v6845
      %6854 = vst [vmem:[#allocation7 + $0x1e0] sm:$0xff] %v6846
      %6855 = vst [vmem:[#allocation7 + $0x1e8] sm:$0xff] %v6847
      %6856 = vst [vmem:[#allocation7 + $0x1f0] sm:$0xff] %v6848
      %6857 = vst [vmem:[#allocation7 + $0x1f8] sm:$0xff] %v6849
      %v6858 = vld [vmem:[#allocation6] sm:$0xff]
      %v6859 = vld [vmem:[#allocation6 + $0x8] sm:$0xff]
      %v6860 = vld [vmem:[#allocation6 + $0x10] sm:$0xff]
      %v6861 = vld [vmem:[#allocation6 + $0x18] sm:$0xff]
      %v6862 = vld [vmem:[#allocation6 + $0x20] sm:$0xff]
      %v6863 = vld [vmem:[#allocation6 + $0x28] sm:$0xff]
      %6870 = vrot.lane.b32.xlu0 %v6858, 73
      %v6871 = vpop.permute.xlu0 %6870
      %6872 = vrot.lane.b32.xlu0 %v6859, 73
      %v6873 = vpop.permute.xlu0 %6872
      %6874 = vrot.lane.b32.xlu0 %v6860, 73
      %v6875 = vpop.permute.xlu0 %6874
      %6876 = vrot.lane.b32.xlu0 %v6861, 73
      %v6877 = vpop.permute.xlu0 %6876
      %6878 = vrot.lane.b32.xlu0 %v6862, 73
      %v6879 = vpop.permute.xlu0 %6878
      %6880 = vrot.lane.b32.xlu0 %v6863, 73
      %v6881 = vpop.permute.xlu0 %6880
      %v6882 = vsel %vm5472, %v6871, %v6873
      %v6883 = vsel %vm5472, %v6873, %v6875
      %v6884 = vsel %vm5472, %v6877, %v6879
      %v6885 = vsel %vm5472, %v6879, %v6881
      %6890 = vst [vmem:[#allocation7 + $0x200] sm:$0xff] %v6882
      %6891 = vst [vmem:[#allocation7 + $0x208] sm:$0xff] %v6883
      %6892 = vst [vmem:[#allocation7 + $0x210] sm:$0xff] %v6884
      %6893 = vst [vmem:[#allocation7 + $0x218] sm:$0xff] %v6885
      %v6894 = vld [vmem:[#allocation6] sm:$0xff]
      %v6895 = vld [vmem:[#allocation6 + $0x8] sm:$0xff]
      %v6896 = vld [vmem:[#allocation6 + $0x10] sm:$0xff]
      %v6897 = vld [vmem:[#allocation6 + $0x18] sm:$0xff]
      %v6898 = vld [vmem:[#allocation6 + $0x20] sm:$0xff]
      %v6899 = vld [vmem:[#allocation6 + $0x28] sm:$0xff]
      %6906 = vrot.lane.b32.xlu0 %v6894, 72
      %v6907 = vpop.permute.xlu0 %6906
      %6908 = vrot.lane.b32.xlu0 %v6895, 72
      %v6909 = vpop.permute.xlu0 %6908
      %6910 = vrot.lane.b32.xlu0 %v6896, 72
      %v6911 = vpop.permute.xlu0 %6910
      %6912 = vrot.lane.b32.xlu0 %v6897, 72
      %v6913 = vpop.permute.xlu0 %6912
      %6914 = vrot.lane.b32.xlu0 %v6898, 72
      %v6915 = vpop.permute.xlu0 %6914
      %6916 = vrot.lane.b32.xlu0 %v6899, 72
      %v6917 = vpop.permute.xlu0 %6916
      %v6918 = vsel %vm5491, %v6907, %v6909
      %v6919 = vsel %vm5491, %v6909, %v6911
      %v6920 = vsel %vm5491, %v6913, %v6915
      %v6921 = vsel %vm5491, %v6915, %v6917
      %6926 = vst [vmem:[#allocation7 + $0x220] sm:$0xff] %v6918
      %6927 = vst [vmem:[#allocation7 + $0x228] sm:$0xff] %v6919
      %6928 = vst [vmem:[#allocation7 + $0x230] sm:$0xff] %v6920
      %6929 = vst [vmem:[#allocation7 + $0x238] sm:$0xff] %v6921
      %v6930 = vld [vmem:[#allocation6] sm:$0xff]
      %v6931 = vld [vmem:[#allocation6 + $0x8] sm:$0xff]
      %v6932 = vld [vmem:[#allocation6 + $0x10] sm:$0xff]
      %v6933 = vld [vmem:[#allocation6 + $0x18] sm:$0xff]
      %v6934 = vld [vmem:[#allocation6 + $0x20] sm:$0xff]
      %v6935 = vld [vmem:[#allocation6 + $0x28] sm:$0xff]
      %6942 = vrot.lane.b32.xlu0 %v6930, 71
      %v6943 = vpop.permute.xlu0 %6942
      %6944 = vrot.lane.b32.xlu0 %v6931, 71
      %v6945 = vpop.permute.xlu0 %6944
      %6946 = vrot.lane.b32.xlu0 %v6932, 71
      %v6947 = vpop.permute.xlu0 %6946
      %6948 = vrot.lane.b32.xlu0 %v6933, 71
      %v6949 = vpop.permute.xlu0 %6948
      %6950 = vrot.lane.b32.xlu0 %v6934, 71
      %v6951 = vpop.permute.xlu0 %6950
      %6952 = vrot.lane.b32.xlu0 %v6935, 71
      %v6953 = vpop.permute.xlu0 %6952
      %v6954 = vsel %vm5510, %v6943, %v6945
      %v6955 = vsel %vm5510, %v6945, %v6947
      %v6956 = vsel %vm5510, %v6949, %v6951
      %v6957 = vsel %vm5510, %v6951, %v6953
      %6962 = vst [vmem:[#allocation7 + $0x240] sm:$0xff] %v6954
      %6963 = vst [vmem:[#allocation7 + $0x248] sm:$0xff] %v6955
      %6964 = vst [vmem:[#allocation7 + $0x250] sm:$0xff] %v6956
      %6965 = vst [vmem:[#allocation7 + $0x258] sm:$0xff] %v6957
      %v6966 = vld [vmem:[#allocation6] sm:$0xff]
      %v6967 = vld [vmem:[#allocation6 + $0x8] sm:$0xff]
      %v6968 = vld [vmem:[#allocation6 + $0x10] sm:$0xff]
      %v6969 = vld [vmem:[#allocation6 + $0x18] sm:$0xff]
      %v6970 = vld [vmem:[#allocation6 + $0x20] sm:$0xff]
      %v6971 = vld [vmem:[#allocation6 + $0x28] sm:$0xff]
      %6978 = vrot.lane.b32.xlu0 %v6966, 70
      %v6979 = vpop.permute.xlu0 %6978
      %6980 = vrot.lane.b32.xlu0 %v6967, 70
      %v6981 = vpop.permute.xlu0 %6980
      %6982 = vrot.lane.b32.xlu0 %v6968, 70
      %v6983 = vpop.permute.xlu0 %6982
      %6984 = vrot.lane.b32.xlu0 %v6969, 70
      %v6985 = vpop.permute.xlu0 %6984
      %6986 = vrot.lane.b32.xlu0 %v6970, 70
      %v6987 = vpop.permute.xlu0 %6986
      %6988 = vrot.lane.b32.xlu0 %v6971, 70
      %v6989 = vpop.permute.xlu0 %6988
      %v6990 = vsel %vm5529, %v6979, %v6981
      %v6991 = vsel %vm5529, %v6981, %v6983
      %v6992 = vsel %vm5529, %v6985, %v6987
      %v6993 = vsel %vm5529, %v6987, %v6989
      %6998 = vst [vmem:[#allocation7 + $0x260] sm:$0xff] %v6990
      %6999 = vst [vmem:[#allocation7 + $0x268] sm:$0xff] %v6991
      %7000 = vst [vmem:[#allocation7 + $0x270] sm:$0xff] %v6992
      %7001 = vst [vmem:[#allocation7 + $0x278] sm:$0xff] %v6993
      %v7002 = vld [vmem:[#allocation6] sm:$0xff]
      %v7003 = vld [vmem:[#allocation6 + $0x8] sm:$0xff]
      %v7004 = vld [vmem:[#allocation6 + $0x10] sm:$0xff]
      %v7005 = vld [vmem:[#allocation6 + $0x18] sm:$0xff]
      %v7006 = vld [vmem:[#allocation6 + $0x20] sm:$0xff]
      %v7007 = vld [vmem:[#allocation6 + $0x28] sm:$0xff]
      %7014 = vrot.lane.b32.xlu0 %v7002, 56
      %v7015 = vpop.permute.xlu0 %7014
      %7016 = vrot.lane.b32.xlu0 %v7003, 56
      %v7017 = vpop.permute.xlu0 %7016
      %7018 = vrot.lane.b32.xlu0 %v7004, 56
      %v7019 = vpop.permute.xlu0 %7018
      %7020 = vrot.lane.b32.xlu0 %v7005, 56
      %v7021 = vpop.permute.xlu0 %7020
      %7022 = vrot.lane.b32.xlu0 %v7006, 56
      %v7023 = vpop.permute.xlu0 %7022
      %7024 = vrot.lane.b32.xlu0 %v7007, 56
      %v7025 = vpop.permute.xlu0 %7024
      %v7026 = vsel %vm5548, %v7015, %v7017
      %v7027 = vsel %vm5548, %v7017, %v7019
      %v7028 = vsel %vm5548, %v7021, %v7023
      %v7029 = vsel %vm5548, %v7023, %v7025
      %7034 = vst [vmem:[#allocation7 + $0x280] sm:$0xff] %v7026
      %7035 = vst [vmem:[#allocation7 + $0x288] sm:$0xff] %v7027
      %7036 = vst [vmem:[#allocation7 + $0x290] sm:$0xff] %v7028
      %7037 = vst [vmem:[#allocation7 + $0x298] sm:$0xff] %v7029
      %v7038 = vld [vmem:[#allocation6] sm:$0xff]
      %v7039 = vld [vmem:[#allocation6 + $0x8] sm:$0xff]
      %v7040 = vld [vmem:[#allocation6 + $0x10] sm:$0xff]
      %v7041 = vld [vmem:[#allocation6 + $0x18] sm:$0xff]
      %v7042 = vld [vmem:[#allocation6 + $0x20] sm:$0xff]
      %v7043 = vld [vmem:[#allocation6 + $0x28] sm:$0xff]
      %7050 = vrot.lane.b32.xlu0 %v7038, 55
      %v7051 = vpop.permute.xlu0 %7050
      %7052 = vrot.lane.b32.xlu0 %v7039, 55
      %v7053 = vpop.permute.xlu0 %7052
      %7054 = vrot.lane.b32.xlu0 %v7040, 55
      %v7055 = vpop.permute.xlu0 %7054
      %7056 = vrot.lane.b32.xlu0 %v7041, 55
      %v7057 = vpop.permute.xlu0 %7056
      %7058 = vrot.lane.b32.xlu0 %v7042, 55
      %v7059 = vpop.permute.xlu0 %7058
      %7060 = vrot.lane.b32.xlu0 %v7043, 55
      %v7061 = vpop.permute.xlu0 %7060
      %v7062 = vsel %vm5567, %v7051, %v7053
      %v7063 = vsel %vm5567, %v7053, %v7055
      %v7064 = vsel %vm5567, %v7057, %v7059
      %v7065 = vsel %vm5567, %v7059, %v7061
      %7070 = vst [vmem:[#allocation7 + $0x2a0] sm:$0xff] %v7062
      %7071 = vst [vmem:[#allocation7 + $0x2a8] sm:$0xff] %v7063
      %7072 = vst [vmem:[#allocation7 + $0x2b0] sm:$0xff] %v7064
      %7073 = vst [vmem:[#allocation7 + $0x2b8] sm:$0xff] %v7065
      %v7074 = vld [vmem:[#allocation6] sm:$0xff]
      %v7075 = vld [vmem:[#allocation6 + $0x8] sm:$0xff]
      %v7076 = vld [vmem:[#allocation6 + $0x10] sm:$0xff]
      %v7077 = vld [vmem:[#allocation6 + $0x18] sm:$0xff]
      %v7078 = vld [vmem:[#allocation6 + $0x20] sm:$0xff]
      %v7079 = vld [vmem:[#allocation6 + $0x28] sm:$0xff]
      %7086 = vrot.lane.b32.xlu0 %v7074, 54
      %v7087 = vpop.permute.xlu0 %7086
      %7088 = vrot.lane.b32.xlu0 %v7075, 54
      %v7089 = vpop.permute.xlu0 %7088
      %7090 = vrot.lane.b32.xlu0 %v7076, 54
      %v7091 = vpop.permute.xlu0 %7090
      %7092 = vrot.lane.b32.xlu0 %v7077, 54
      %v7093 = vpop.permute.xlu0 %7092
      %7094 = vrot.lane.b32.xlu0 %v7078, 54
      %v7095 = vpop.permute.xlu0 %7094
      %7096 = vrot.lane.b32.xlu0 %v7079, 54
      %v7097 = vpop.permute.xlu0 %7096
      %v7098 = vsel %vm5586, %v7087, %v7089
      %v7099 = vsel %vm5586, %v7089, %v7091
      %v7100 = vsel %vm5586, %v7093, %v7095
      %v7101 = vsel %vm5586, %v7095, %v7097
      %7106 = vst [vmem:[#allocation7 + $0x2c0] sm:$0xff] %v7098
      %7107 = vst [vmem:[#allocation7 + $0x2c8] sm:$0xff] %v7099
      %7108 = vst [vmem:[#allocation7 + $0x2d0] sm:$0xff] %v7100
      %7109 = vst [vmem:[#allocation7 + $0x2d8] sm:$0xff] %v7101
      %v7110 = vld [vmem:[#allocation6] sm:$0xff]
      %v7111 = vld [vmem:[#allocation6 + $0x8] sm:$0xff]
      %v7112 = vld [vmem:[#allocation6 + $0x10] sm:$0xff]
      %v7113 = vld [vmem:[#allocation6 + $0x18] sm:$0xff]
      %v7114 = vld [vmem:[#allocation6 + $0x20] sm:$0xff]
      %v7115 = vld [vmem:[#allocation6 + $0x28] sm:$0xff]
      %7122 = vrot.lane.b32.xlu0 %v7110, 53
      %v7123 = vpop.permute.xlu0 %7122
      %7124 = vrot.lane.b32.xlu0 %v7111, 53
      %v7125 = vpop.permute.xlu0 %7124
      %7126 = vrot.lane.b32.xlu0 %v7112, 53
      %v7127 = vpop.permute.xlu0 %7126
      %7128 = vrot.lane.b32.xlu0 %v7113, 53
      %v7129 = vpop.permute.xlu0 %7128
      %7130 = vrot.lane.b32.xlu0 %v7114, 53
      %v7131 = vpop.permute.xlu0 %7130
      %7132 = vrot.lane.b32.xlu0 %v7115, 53
      %v7133 = vpop.permute.xlu0 %7132
      %v7134 = vsel %vm5605, %v7123, %v7125
      %v7135 = vsel %vm5605, %v7125, %v7127
      %v7136 = vsel %vm5605, %v7129, %v7131
      %v7137 = vsel %vm5605, %v7131, %v7133
      %7142 = vst [vmem:[#allocation7 + $0x2e0] sm:$0xff] %v7134
      %7143 = vst [vmem:[#allocation7 + $0x2e8] sm:$0xff] %v7135
      %7144 = vst [vmem:[#allocation7 + $0x2f0] sm:$0xff] %v7136
      %7145 = vst [vmem:[#allocation7 + $0x2f8] sm:$0xff] %v7137
      %v7146 = vld [vmem:[#allocation6] sm:$0xff]
      %v7147 = vld [vmem:[#allocation6 + $0x8] sm:$0xff]
      %v7148 = vld [vmem:[#allocation6 + $0x10] sm:$0xff]
      %v7149 = vld [vmem:[#allocation6 + $0x18] sm:$0xff]
      %v7150 = vld [vmem:[#allocation6 + $0x20] sm:$0xff]
      %v7151 = vld [vmem:[#allocation6 + $0x28] sm:$0xff]
      %7158 = vrot.lane.b32.xlu0 %v7146, 52
      %v7159 = vpop.permute.xlu0 %7158
      %7160 = vrot.lane.b32.xlu0 %v7147, 52
      %v7161 = vpop.permute.xlu0 %7160
      %7162 = vrot.lane.b32.xlu0 %v7148, 52
      %v7163 = vpop.permute.xlu0 %7162
      %7164 = vrot.lane.b32.xlu0 %v7149, 52
      %v7165 = vpop.permute.xlu0 %7164
      %7166 = vrot.lane.b32.xlu0 %v7150, 52
      %v7167 = vpop.permute.xlu0 %7166
      %7168 = vrot.lane.b32.xlu0 %v7151, 52
      %v7169 = vpop.permute.xlu0 %7168
      %v7170 = vsel %vm5624, %v7159, %v7161
      %v7171 = vsel %vm5624, %v7161, %v7163
      %v7172 = vsel %vm5624, %v7165, %v7167
      %v7173 = vsel %vm5624, %v7167, %v7169
      %7178 = vst [vmem:[#allocation7 + $0x300] sm:$0xff] %v7170
      %7179 = vst [vmem:[#allocation7 + $0x308] sm:$0xff] %v7171
      %7180 = vst [vmem:[#allocation7 + $0x310] sm:$0xff] %v7172
      %7181 = vst [vmem:[#allocation7 + $0x318] sm:$0xff] %v7173
      %v7182 = vld [vmem:[%s7] sm:$0xff]
      %v7183 = vld [vmem:[%s7 + $0x8] sm:$0xff]
      %v7184 = vld [vmem:[%s7 + $0x10] sm:$0xff]
      %v7185 = vld [vmem:[%s7 + $0x18] sm:$0xf]
      %v7186 = vld [vmem:[%s7 + $0x1c] sm:$0xff]
      %v7187 = vld [vmem:[%s7 + $0x24] sm:$0xff]
      %v7188 = vld [vmem:[%s7 + $0x2c] sm:$0xff]
      %v7189 = vld [vmem:[%s7 + $0x34] sm:$0xf]
      %v7190 = vld [vmem:[%s7 + $0x38] sm:$0xff]
      %v7191 = vld [vmem:[%s7 + $0x40] sm:$0xff]
      %v7192 = vld [vmem:[%s7 + $0x48] sm:$0xff]
      %v7193 = vld [vmem:[%s7 + $0x50] sm:$0xf]
      %v7194 = vld [vmem:[%s7 + $0x54] sm:$0xff]
      %v7195 = vld [vmem:[%s7 + $0x5c] sm:$0xff]
      %v7196 = vld [vmem:[%s7 + $0x64] sm:$0xff]
      %v7197 = vld [vmem:[%s7 + $0x6c] sm:$0xf]
      %v7198 = vld [vmem:[#allocation7] sm:$0xff]
      %v7199 = vld [vmem:[#allocation7 + $0x8] sm:$0xff]
      %v7200 = vld [vmem:[#allocation7 + $0x10] sm:$0xff]
      %v7201 = vld [vmem:[#allocation7 + $0x18] sm:$0xff]
      %v7202 = vld [vmem:[#allocation7 + $0x20] sm:$0xff]
      %v7203 = vld [vmem:[#allocation7 + $0x28] sm:$0xff]
      %v7204 = vld [vmem:[#allocation7 + $0x30] sm:$0xff]
      %v7205 = vld [vmem:[#allocation7 + $0x38] sm:$0xff]
      %v7206 = vld [vmem:[#allocation7 + $0x40] sm:$0xff]
      %v7207 = vld [vmem:[#allocation7 + $0x48] sm:$0xff]
      %v7208 = vld [vmem:[#allocation7 + $0x50] sm:$0xff]
      %v7209 = vld [vmem:[#allocation7 + $0x58] sm:$0xff]
      %v7210 = vld [vmem:[#allocation7 + $0x60] sm:$0xff]
      %v7211 = vld [vmem:[#allocation7 + $0x68] sm:$0xff]
      %v7212 = vld [vmem:[#allocation7 + $0x70] sm:$0xff]
      %v7213 = vld [vmem:[#allocation7 + $0x78] sm:$0xff]
      %v7214 = vld [vmem:[#allocation7 + $0x80] sm:$0xff]
      %v7215 = vld [vmem:[#allocation7 + $0x88] sm:$0xff]
      %v7216 = vld [vmem:[#allocation7 + $0x90] sm:$0xff]
      %v7217 = vld [vmem:[#allocation7 + $0x98] sm:$0xff]
      %v7218 = vld [vmem:[#allocation7 + $0xa0] sm:$0xff]
      %v7219 = vld [vmem:[#allocation7 + $0xa8] sm:$0xff]
      %v7220 = vld [vmem:[#allocation7 + $0xb0] sm:$0xff]
      %v7221 = vld [vmem:[#allocation7 + $0xb8] sm:$0xff]
      %v7222 = vld [vmem:[#allocation7 + $0xc0] sm:$0xff]
      %v7223 = vld [vmem:[#allocation7 + $0xc8] sm:$0xff]
      %v7224 = vld [vmem:[#allocation7 + $0xd0] sm:$0xff]
      %v7225 = vld [vmem:[#allocation7 + $0xd8] sm:$0xff]
      %v7226 = vld [vmem:[#allocation7 + $0xe0] sm:$0xff]
      %v7227 = vld [vmem:[#allocation7 + $0xe8] sm:$0xff]
      %v7228 = vld [vmem:[#allocation7 + $0xf0] sm:$0xff]
      %v7229 = vld [vmem:[#allocation7 + $0xf8] sm:$0xff]
      %v7230 = vld [vmem:[#allocation7 + $0x100] sm:$0xff]
      %v7231 = vld [vmem:[#allocation7 + $0x108] sm:$0xff]
      %v7232 = vld [vmem:[#allocation7 + $0x110] sm:$0xff]
      %v7233 = vld [vmem:[#allocation7 + $0x118] sm:$0xff]
      %v7234 = vld [vmem:[#allocation7 + $0x120] sm:$0xff]
      %v7235 = vld [vmem:[#allocation7 + $0x128] sm:$0xff]
      %v7236 = vld [vmem:[#allocation7 + $0x130] sm:$0xff]
      %v7237 = vld [vmem:[#allocation7 + $0x138] sm:$0xff]
      %v7238 = vld [vmem:[#allocation7 + $0x140] sm:$0xff]
      %v7239 = vld [vmem:[#allocation7 + $0x148] sm:$0xff]
      %v7240 = vld [vmem:[#allocation7 + $0x150] sm:$0xff]
      %v7241 = vld [vmem:[#allocation7 + $0x158] sm:$0xff]
      %v7242 = vld [vmem:[#allocation7 + $0x160] sm:$0xff]
      %v7243 = vld [vmem:[#allocation7 + $0x168] sm:$0xff]
      %v7244 = vld [vmem:[#allocation7 + $0x170] sm:$0xff]
      %v7245 = vld [vmem:[#allocation7 + $0x178] sm:$0xff]
      %v7246 = vld [vmem:[#allocation7 + $0x180] sm:$0xff]
      %v7247 = vld [vmem:[#allocation7 + $0x188] sm:$0xff]
      %v7248 = vld [vmem:[#allocation7 + $0x190] sm:$0xff]
      %v7249 = vld [vmem:[#allocation7 + $0x198] sm:$0xff]
      %v7250 = vld [vmem:[#allocation7 + $0x1a0] sm:$0xff]
      %v7251 = vld [vmem:[#allocation7 + $0x1a8] sm:$0xff]
      %v7252 = vld [vmem:[#allocation7 + $0x1b0] sm:$0xff]
      %v7253 = vld [vmem:[#allocation7 + $0x1b8] sm:$0xff]
      %v7254 = vld [vmem:[#allocation7 + $0x1c0] sm:$0xff]
      %v7255 = vld [vmem:[#allocation7 + $0x1c8] sm:$0xff]
      %v7256 = vld [vmem:[#allocation7 + $0x1d0] sm:$0xff]
      %v7257 = vld [vmem:[#allocation7 + $0x1d8] sm:$0xff]
      %v7258 = vld [vmem:[#allocation7 + $0x1e0] sm:$0xff]
      %v7259 = vld [vmem:[#allocation7 + $0x1e8] sm:$0xff]
      %v7260 = vld [vmem:[#allocation7 + $0x1f0] sm:$0xff]
      %v7261 = vld [vmem:[#allocation7 + $0x1f8] sm:$0xff]
      %v7262 = vld [vmem:[#allocation7 + $0x200] sm:$0xff]
      %v7263 = vld [vmem:[#allocation7 + $0x208] sm:$0xff]
      %v7264 = vld [vmem:[#allocation7 + $0x210] sm:$0xff]
      %v7265 = vld [vmem:[#allocation7 + $0x218] sm:$0xff]
      %v7266 = vld [vmem:[#allocation7 + $0x220] sm:$0xff]
      %v7267 = vld [vmem:[#allocation7 + $0x228] sm:$0xff]
      %v7268 = vld [vmem:[#allocation7 + $0x230] sm:$0xff]
      %v7269 = vld [vmem:[#allocation7 + $0x238] sm:$0xff]
      %v7270 = vld [vmem:[#allocation7 + $0x240] sm:$0xff]
      %v7271 = vld [vmem:[#allocation7 + $0x248] sm:$0xff]
      %v7272 = vld [vmem:[#allocation7 + $0x250] sm:$0xff]
      %v7273 = vld [vmem:[#allocation7 + $0x258] sm:$0xff]
      %v7274 = vld [vmem:[#allocation7 + $0x260] sm:$0xff]
      %v7275 = vld [vmem:[#allocation7 + $0x268] sm:$0xff]
      %v7276 = vld [vmem:[#allocation7 + $0x270] sm:$0xff]
      %v7277 = vld [vmem:[#allocation7 + $0x278] sm:$0xff]
      %v7278 = vld [vmem:[#allocation7 + $0x280] sm:$0xff]
      %v7279 = vld [vmem:[#allocation7 + $0x288] sm:$0xff]
      %v7280 = vld [vmem:[#allocation7 + $0x290] sm:$0xff]
      %v7281 = vld [vmem:[#allocation7 + $0x298] sm:$0xff]
      %v7282 = vld [vmem:[#allocation7 + $0x2a0] sm:$0xff]
      %v7283 = vld [vmem:[#allocation7 + $0x2a8] sm:$0xff]
      %v7284 = vld [vmem:[#allocation7 + $0x2b0] sm:$0xff]
      %v7285 = vld [vmem:[#allocation7 + $0x2b8] sm:$0xff]
      %v7286 = vld [vmem:[#allocation7 + $0x2c0] sm:$0xff]
      %v7287 = vld [vmem:[#allocation7 + $0x2c8] sm:$0xff]
      %v7288 = vld [vmem:[#allocation7 + $0x2d0] sm:$0xff]
      %v7289 = vld [vmem:[#allocation7 + $0x2d8] sm:$0xff]
      %v7290 = vld [vmem:[#allocation7 + $0x2e0] sm:$0xff]
      %v7291 = vld [vmem:[#allocation7 + $0x2e8] sm:$0xff]
      %v7292 = vld [vmem:[#allocation7 + $0x2f0] sm:$0xff]
      %v7293 = vld [vmem:[#allocation7 + $0x2f8] sm:$0xff]
      %v7294 = vld [vmem:[#allocation7 + $0x300] sm:$0xff]
      %v7295 = vld [vmem:[#allocation7 + $0x308] sm:$0xff]
      %v7296 = vld [vmem:[#allocation7 + $0x310] sm:$0xff]
      %v7297 = vld [vmem:[#allocation7 + $0x318] sm:$0xff]
      %v7298 = vld [vmem:[%s8] sm:$0xff]
      %v7299 = vld [vmem:[%s8 + $0x8] sm:$0xff]
      %v7300 = vld [vmem:[%s8 + $0x10] sm:$0xff]
      %v7301 = vld [vmem:[%s8 + $0x18] sm:$0xff]
      %7303 = vset.pattern.permute.xlu0 0
      %7304 = vperm.xlu0 %7303, %v7298
      %v7305 = vpop.permute.xlu0 %7304
      %7308 = vset.pattern.permute.xlu0 0
      %7309 = vperm.xlu0 %7308, %v7299
      %v7310 = vpop.permute.xlu0 %7309
      %7313 = vset.pattern.permute.xlu0 0
      %7314 = vperm.xlu0 %7313, %v7300
      %v7315 = vpop.permute.xlu0 %7314
      %7318 = vset.pattern.permute.xlu0 0
      %7319 = vperm.xlu0 %7318, %v7301
      %v7320 = vpop.permute.xlu0 %7319
      %v7338 = vunpack.c.l.b16 %v7182
      %v7339 = vunpack.c.h.b16 %v7182
      %v7340 = vunpack.c.l.b16 %v7183
      %v7341 = vunpack.c.h.b16 %v7183
      %v7342 = vunpack.c.l.b16 %v7184
      %v7343 = vunpack.c.h.b16 %v7184
      %v7344 = vunpack.c.l.b16 %v7185
      %v7345 = vunpack.c.l.b16 %v7186
      %v7346 = vunpack.c.h.b16 %v7186
      %v7347 = vunpack.c.l.b16 %v7187
      %v7348 = vunpack.c.h.b16 %v7187
      %v7349 = vunpack.c.l.b16 %v7188
      %v7350 = vunpack.c.h.b16 %v7188
      %v7351 = vunpack.c.l.b16 %v7189
      %v7352 = vunpack.c.l.b16 %v7190
      %v7353 = vunpack.c.h.b16 %v7190
      %v7354 = vunpack.c.l.b16 %v7191
      %v7355 = vunpack.c.h.b16 %v7191
      %v7356 = vunpack.c.l.b16 %v7192
      %v7357 = vunpack.c.h.b16 %v7192
      %v7358 = vunpack.c.l.b16 %v7193
      %v7359 = vunpack.c.l.b16 %v7194
      %v7360 = vunpack.c.h.b16 %v7194
      %v7361 = vunpack.c.l.b16 %v7195
      %v7362 = vunpack.c.h.b16 %v7195
      %v7363 = vunpack.c.l.b16 %v7196
      %v7364 = vunpack.c.h.b16 %v7196
      %v7365 = vunpack.c.l.b16 %v7197
      %v7366 = vpack.c.b16 %v7345, %v7338
      %v7367 = vpack.c.b16 %v7346, %v7339
      %v7368 = vpack.c.b16 %v7347, %v7340
      %v7369 = vpack.c.b16 %v7348, %v7341
      %v7370 = vpack.c.b16 %v7349, %v7342
      %v7371 = vpack.c.b16 %v7350, %v7343
      %v7372 = vpack.c.b16 %v7351, %v7344
      %v7373 = vpack.c.b16 %v7359, %v7352
      %v7374 = vpack.c.b16 %v7360, %v7353
      %v7375 = vpack.c.b16 %v7361, %v7354
      %v7376 = vpack.c.b16 %v7362, %v7355
      %v7377 = vpack.c.b16 %v7363, %v7356
      %v7378 = vpack.c.b16 %v7364, %v7357
      %v7379 = vpack.c.b16 %v7365, %v7358
      %v7393 = vsel %vm3397, %v7372, 0
      %v7396 = vsel %vm3397, %v7379, 0
      %7398 = vmatprep.subr.bf16.mxu0 %v7199
      %7399 = vmatpush1.bf16.msra.mxu0 %v7198
      %7400 = vmatprep.subr.bf16.mxu0 %v7201
      %7401 = vmatpush1.bf16.msra.mxu0 %v7200
      %7402 = vmatprep.subr.bf16.mxu0 %v7203
      %7403 = vmatpush1.bf16.msra.mxu0 %v7202
      %7404 = vmatprep.subr.bf16.mxu0 %v7205
      %7405 = vmatpush1.bf16.msra.mxu0 %v7204
      %7406 = vmatprep.subr.bf16.mxu0 %v7207
      %7407 = vmatpush1.bf16.msra.mxu0 %v7206
      %7408 = vmatprep.subr.bf16.mxu0 %v7209
      %7409 = vmatpush1.bf16.msra.mxu0 %v7208
      %7410 = vmatprep.subr.bf16.mxu0 %v7211
      %7411 = vmatpush1.bf16.msra.mxu0 %v7210
      %7412 = vmatprep.subr.bf16.mxu0 %v7213
      %7413 = vmatpush1.bf16.msra.mxu0 %v7212
      %7414 = vmatprep.subr.bf16.mxu0 %v7215
      %7415 = vmatpush1.bf16.msra.mxu0 %v7214
      %7416 = vmatprep.subr.bf16.mxu0 %v7217
      %7417 = vmatpush1.bf16.msra.mxu0 %v7216
      %7418 = vmatprep.subr.bf16.mxu0 %v7219
      %7419 = vmatpush1.bf16.msra.mxu0 %v7218
      %7420 = vmatprep.subr.bf16.mxu0 %v7221
      %7421 = vmatpush1.bf16.msra.mxu0 %v7220
      %7422 = vmatprep.subr.bf16.mxu0 %v7223
      %7423 = vmatpush1.bf16.msra.mxu0 %v7222
      %7424 = vmatprep.subr.bf16.mxu0 %v7225
      %7425 = vmatpush1.bf16.msra.mxu0 %v7224
      %7426 = vmatprep.subr.bf16.mxu0 %v7227
      %7427 = vmatpush1.bf16.msra.mxu0 %v7226
      %7428 = vmatprep.subr.bf16.mxu0 %v7229
      %7429 = vmatpush1.bf16.msra.mxu0 %v7228
      %7430 = vmatprep.mubr.bf16.mxu0 %v7367
      %7431 = vmatmul.mubr.bf16.gmra.mrb[0].mxu0 %v7366
      %v7432 = vpop.f32.mrb[0].mxu0
      %v7433 = vadd.f32 %v7305, %v7432
      %v7434 = vpop.f32.mrb[0].mxu0
      %v7435 = vadd.f32 %v7305, %v7434
      %v7436 = vpop.f32.mrb[0].mxu0
      %v7437 = vadd.f32 %v7310, %v7436
      %v7438 = vpop.f32.mrb[0].mxu0
      %v7439 = vadd.f32 %v7310, %v7438
      %7440 = vmatprep.mubr.bf16.mxu0 %v7374
      %7441 = vmatmul.mubr.bf16.gmra.mrb[0].mxu0 %v7373
      %v7442 = vpop.f32.mrb[0].mxu0
      %v7443 = vadd.f32 %v7315, %v7442
      %v7444 = vpop.f32.mrb[0].mxu0
      %v7445 = vadd.f32 %v7315, %v7444
      %v7446 = vpop.f32.mrb[0].mxu0
      %v7447 = vadd.f32 %v7320, %v7446
      %v7448 = vpop.f32.mrb[0].mxu0
      %v7449 = vadd.f32 %v7320, %v7448
      %7450 = vdwg.mxu0
      %7451 = vmatprep.subr.bf16.mxu0 %v7231
      %7452 = vmatpush1.bf16.msra.mxu0 %v7230
      %7453 = vmatprep.subr.bf16.mxu0 %v7233
      %7454 = vmatpush1.bf16.msra.mxu0 %v7232
      %7455 = vmatprep.subr.bf16.mxu0 %v7235
      %7456 = vmatpush1.bf16.msra.mxu0 %v7234
      %7457 = vmatprep.subr.bf16.mxu0 %v7237
      %7458 = vmatpush1.bf16.msra.mxu0 %v7236
      %7459 = vmatprep.subr.bf16.mxu0 %v7239
      %7460 = vmatpush1.bf16.msra.mxu0 %v7238
      %7461 = vmatprep.subr.bf16.mxu0 %v7241
      %7462 = vmatpush1.bf16.msra.mxu0 %v7240
      %7463 = vmatprep.subr.bf16.mxu0 %v7243
      %7464 = vmatpush1.bf16.msra.mxu0 %v7242
      %7465 = vmatprep.subr.bf16.mxu0 %v7245
      %7466 = vmatpush1.bf16.msra.mxu0 %v7244
      %7467 = vmatprep.subr.bf16.mxu0 %v7247
      %7468 = vmatpush1.bf16.msra.mxu0 %v7246
      %7469 = vmatprep.subr.bf16.mxu0 %v7249
      %7470 = vmatpush1.bf16.msra.mxu0 %v7248
      %7471 = vmatprep.subr.bf16.mxu0 %v7251
      %7472 = vmatpush1.bf16.msra.mxu0 %v7250
      %7473 = vmatprep.subr.bf16.mxu0 %v7253
      %7474 = vmatpush1.bf16.msra.mxu0 %v7252
      %7475 = vmatprep.subr.bf16.mxu0 %v7255
      %7476 = vmatpush1.bf16.msra.mxu0 %v7254
      %7477 = vmatprep.subr.bf16.mxu0 %v7257
      %7478 = vmatpush1.bf16.msra.mxu0 %v7256
      %7479 = vmatprep.subr.bf16.mxu0 %v7259
      %7480 = vmatpush1.bf16.msra.mxu0 %v7258
      %7481 = vmatprep.subr.bf16.mxu0 %v7261
      %7482 = vmatpush1.bf16.msra.mxu0 %v7260
      %7483 = vmatprep.mubr.bf16.mxu0 %v7369
      %7484 = vmatmul.mubr.bf16.gmra.mrb[0].mxu0 %v7368
      %v7485 = vpop.f32.mrb[0].mxu0
      %v7486 = vadd.f32 %v7433, %v7485
      %v7487 = vpop.f32.mrb[0].mxu0
      %v7488 = vadd.f32 %v7435, %v7487
      %v7489 = vpop.f32.mrb[0].mxu0
      %v7490 = vadd.f32 %v7437, %v7489
      %v7491 = vpop.f32.mrb[0].mxu0
      %v7492 = vadd.f32 %v7439, %v7491
      %7493 = vmatprep.mubr.bf16.mxu0 %v7376
      %7494 = vmatmul.mubr.bf16.gmra.mrb[0].mxu0 %v7375
      %v7495 = vpop.f32.mrb[0].mxu0
      %v7496 = vadd.f32 %v7443, %v7495
      %v7497 = vpop.f32.mrb[0].mxu0
      %v7498 = vadd.f32 %v7445, %v7497
      %v7499 = vpop.f32.mrb[0].mxu0
      %v7500 = vadd.f32 %v7447, %v7499
      %v7501 = vpop.f32.mrb[0].mxu0
      %v7502 = vadd.f32 %v7449, %v7501
      %7503 = vdwg.mxu0
      %7504 = vmatprep.subr.bf16.mxu0 %v7263
      %7505 = vmatpush1.bf16.msra.mxu0 %v7262
      %7506 = vmatprep.subr.bf16.mxu0 %v7265
      %7507 = vmatpush1.bf16.msra.mxu0 %v7264
      %7508 = vmatprep.subr.bf16.mxu0 %v7267
      %7509 = vmatpush1.bf16.msra.mxu0 %v7266
      %7510 = vmatprep.subr.bf16.mxu0 %v7269
      %7511 = vmatpush1.bf16.msra.mxu0 %v7268
      %7512 = vmatprep.subr.bf16.mxu0 %v7271
      %7513 = vmatpush1.bf16.msra.mxu0 %v7270
      %7514 = vmatprep.subr.bf16.mxu0 %v7273
      %7515 = vmatpush1.bf16.msra.mxu0 %v7272
      %7516 = vmatprep.subr.bf16.mxu0 %v7275
      %7517 = vmatpush1.bf16.msra.mxu0 %v7274
      %7518 = vmatprep.subr.bf16.mxu0 %v7277
      %7519 = vmatpush1.bf16.msra.mxu0 %v7276
      %7520 = vmatprep.subr.bf16.mxu0 %v7279
      %7521 = vmatpush1.bf16.msra.mxu0 %v7278
      %7522 = vmatprep.subr.bf16.mxu0 %v7281
      %7523 = vmatpush1.bf16.msra.mxu0 %v7280
      %7524 = vmatprep.subr.bf16.mxu0 %v7283
      %7525 = vmatpush1.bf16.msra.mxu0 %v7282
      %7526 = vmatprep.subr.bf16.mxu0 %v7285
      %7527 = vmatpush1.bf16.msra.mxu0 %v7284
      %7528 = vmatprep.subr.bf16.mxu0 %v7287
      %7529 = vmatpush1.bf16.msra.mxu0 %v7286
      %7530 = vmatprep.subr.bf16.mxu0 %v7289
      %7531 = vmatpush1.bf16.msra.mxu0 %v7288
      %7532 = vmatprep.subr.bf16.mxu0 %v7291
      %7533 = vmatpush1.bf16.msra.mxu0 %v7290
      %7534 = vmatprep.subr.bf16.mxu0 %v7293
      %7535 = vmatpush1.bf16.msra.mxu0 %v7292
      %7536 = vmatprep.mubr.bf16.mxu0 %v7371
      %7537 = vmatmul.mubr.bf16.gmra.mrb[0].mxu0 %v7370
      %v7538 = vpop.f32.mrb[0].mxu0
      %v7539 = vadd.f32 %v7486, %v7538
      %v7540 = vpop.f32.mrb[0].mxu0
      %v7541 = vadd.f32 %v7488, %v7540
      %v7542 = vpop.f32.mrb[0].mxu0
      %v7543 = vadd.f32 %v7490, %v7542
      %v7544 = vpop.f32.mrb[0].mxu0
      %v7545 = vadd.f32 %v7492, %v7544
      %7546 = vmatprep.mubr.bf16.mxu0 %v7378
      %7547 = vmatmul.mubr.bf16.gmra.mrb[0].mxu0 %v7377
      %v7548 = vpop.f32.mrb[0].mxu0
      %v7549 = vadd.f32 %v7496, %v7548
      %v7550 = vpop.f32.mrb[0].mxu0
      %v7551 = vadd.f32 %v7498, %v7550
      %v7552 = vpop.f32.mrb[0].mxu0
      %v7553 = vadd.f32 %v7500, %v7552
      %v7554 = vpop.f32.mrb[0].mxu0
      %v7555 = vadd.f32 %v7502, %v7554
      %7556 = vdwg.mxu0
      %7557 = vmatprep.subr.bf16.mxu0 %v7295
      %7558 = vmatpush1.bf16.msra.mxu0 %v7294
      %7559 = vmatprep.subr.bf16.mxu0 %v7297
      %7560 = vmatpush1.bf16.msra.mxu0 %v7296
      %7561 = vmatprep.subr.bf16.mxu0 0
      %7562 = vmatpush1.bf16.msra.mxu0 0
      %7563 = vmatprep.subr.bf16.mxu0 0
      %7564 = vmatpush1.bf16.msra.mxu0 0
      %7565 = vmatprep.subr.bf16.mxu0 0
      %7566 = vmatpush1.bf16.msra.mxu0 0
      %7567 = vmatprep.subr.bf16.mxu0 0
      %7568 = vmatpush1.bf16.msra.mxu0 0
      %7569 = vmatprep.subr.bf16.mxu0 0
      %7570 = vmatpush1.bf16.msra.mxu0 0
      %7571 = vmatprep.subr.bf16.mxu0 0
      %7572 = vmatpush1.bf16.msra.mxu0 0
      %7573 = vmatprep.subr.bf16.mxu0 0
      %7574 = vmatpush1.bf16.msra.mxu0 0
      %7575 = vmatprep.subr.bf16.mxu0 0
      %7576 = vmatpush1.bf16.msra.mxu0 0
      %7577 = vmatprep.subr.bf16.mxu0 0
      %7578 = vmatpush1.bf16.msra.mxu0 0
      %7579 = vmatprep.subr.bf16.mxu0 0
      %7580 = vmatpush1.bf16.msra.mxu0 0
      %7581 = vmatprep.subr.bf16.mxu0 0
      %7582 = vmatpush1.bf16.msra.mxu0 0
      %7583 = vmatprep.subr.bf16.mxu0 0
      %7584 = vmatpush1.bf16.msra.mxu0 0
      %7585 = vmatprep.subr.bf16.mxu0 0
      %7586 = vmatpush1.bf16.msra.mxu0 0
      %7587 = vmatprep.subr.bf16.mxu0 0
      %7588 = vmatpush1.bf16.msra.mxu0 0
      %7589 = vmatprep.mubr.bf16.mxu0 0
      %7590 = vmatmul.mubr.bf16.gmra.mrb[0].mxu0 %v7393
      %v7591 = vpop.f32.mrb[0].mxu0
      %v7592 = vadd.f32 %v7539, %v7591
      %v7593 = vpop.f32.mrb[0].mxu0
      %v7594 = vadd.f32 %v7541, %v7593
      %v7595 = vpop.f32.mrb[0].mxu0
      %v7596 = vadd.f32 %v7543, %v7595
      %v7597 = vpop.f32.mrb[0].mxu0
      %v7598 = vadd.f32 %v7545, %v7597
      %7599 = vmatprep.mubr.bf16.mxu0 0
      %7600 = vmatmul.mubr.bf16.gmra.mrb[0].mxu0 %v7396
      %v7601 = vpop.f32.mrb[0].mxu0
      %v7602 = vadd.f32 %v7549, %v7601
      %v7603 = vpop.f32.mrb[0].mxu0
      %v7604 = vadd.f32 %v7551, %v7603
      %v7605 = vpop.f32.mrb[0].mxu0
      %v7606 = vadd.f32 %v7553, %v7605
      %v7607 = vpop.f32.mrb[0].mxu0
      %v7608 = vadd.f32 %v7555, %v7607
      %7609 = vdwg.mxu0
      %v7610 = vmax.f32 %v7592, 0.0
      %v7611 = vmax.f32 %v7594, 0.0
      %v7612 = vmax.f32 %v7596, 0.0
      %v7613 = vmax.f32 %v7598, 0.0
      %v7614 = vmax.f32 %v7602, 0.0
      %v7615 = vmax.f32 %v7604, 0.0
      %v7616 = vmax.f32 %v7606, 0.0
      %v7617 = vmax.f32 %v7608, 0.0
      %v7618 = vpack.c.bf16 %v7612, %v7610
      %v7619 = vpack.c.bf16 %v7613, %v7611
      %v7620 = vpack.c.bf16 %v7616, %v7614
      %v7621 = vpack.c.bf16 %v7617, %v7615
      %7622 = vst [vmem:[#allocation8] sm:$0xff] %v7618
      %7623 = vst [vmem:[#allocation8 + $0x8] sm:$0xff] %v7619
      %7624 = vst [vmem:[#allocation8 + $0x18] sm:$0xff] %v7620
      %7625 = vst [vmem:[#allocation8 + $0x20] sm:$0xff] %v7621
      %7626 = vst [vmem:[#allocation8 + $0x10] sm:$0xff] 0
      %7627 = vst [vmem:[#allocation8 + $0x28] sm:$0xff] 0
      %v7628 = vld [vmem:[#allocation8] sm:$0xff]
      %v7629 = vld [vmem:[#allocation8 + $0x8] sm:$0xff]
      %v7630 = vld [vmem:[#allocation8 + $0x18] sm:$0xff]
      %v7631 = vld [vmem:[#allocation8 + $0x20] sm:$0xff]
      %v7632 = vld [vmem:[#allocation8] sm:$0xff]
      %v7633 = vld [vmem:[#allocation8 + $0x8] sm:$0xff]
      %v7634 = vld [vmem:[#allocation8 + $0x10] sm:$0xff]
      %v7635 = vld [vmem:[#allocation8 + $0x18] sm:$0xff]
      %v7636 = vld [vmem:[#allocation8 + $0x20] sm:$0xff]
      %v7637 = vld [vmem:[#allocation8 + $0x28] sm:$0xff]
      %7644 = vrot.lane.b32.xlu0 %v7632, 127
      %v7645 = vpop.permute.xlu0 %7644
      %7646 = vrot.lane.b32.xlu0 %v7633, 127
      %v7647 = vpop.permute.xlu0 %7646
      %7648 = vrot.lane.b32.xlu0 %v7634, 127
      %v7649 = vpop.permute.xlu0 %7648
      %7650 = vrot.lane.b32.xlu0 %v7635, 127
      %v7651 = vpop.permute.xlu0 %7650
      %7652 = vrot.lane.b32.xlu0 %v7636, 127
      %v7653 = vpop.permute.xlu0 %7652
      %7654 = vrot.lane.b32.xlu0 %v7637, 127
      %v7655 = vpop.permute.xlu0 %7654
      %v7656 = vsel %vm608, %v7645, %v7647
      %v7657 = vsel %vm608, %v7647, %v7649
      %v7658 = vsel %vm608, %v7651, %v7653
      %v7659 = vsel %vm608, %v7653, %v7655
      %v7664 = vmax.bf16 %v7628, %v7656
      %v7665 = vmax.bf16 %v7629, %v7657
      %v7666 = vmax.bf16 %v7630, %v7658
      %v7667 = vmax.bf16 %v7631, %v7659
      %v7670 = vmax.bf16 %v7632, %v7656
      %v7671 = vmax.bf16 %v7633, %v7657
      %v7672 = vmax.bf16 %v7634, %v7649
      %v7673 = vmax.bf16 %v7635, %v7658
      %v7674 = vmax.bf16 %v7636, %v7659
      %v7675 = vmax.bf16 %v7637, %v7655
      %7682 = vrot.lane.b32.xlu0 %v7670, 110
      %v7683 = vpop.permute.xlu0 %7682
      %7684 = vrot.lane.b32.xlu0 %v7671, 110
      %v7685 = vpop.permute.xlu0 %7684
      %7686 = vrot.lane.b32.xlu0 %v7672, 110
      %v7687 = vpop.permute.xlu0 %7686
      %7688 = vrot.lane.b32.xlu0 %v7673, 110
      %v7689 = vpop.permute.xlu0 %7688
      %7690 = vrot.lane.b32.xlu0 %v7674, 110
      %v7691 = vpop.permute.xlu0 %7690
      %7692 = vrot.lane.b32.xlu0 %v7675, 110
      %v7693 = vpop.permute.xlu0 %7692
      %v7694 = vsel %vm5264, %v7683, %v7685
      %v7695 = vsel %vm5264, %v7685, %v7687
      %v7696 = vsel %vm5264, %v7689, %v7691
      %v7697 = vsel %vm5264, %v7691, %v7693
      %v7702 = vmax.bf16 %v7664, %v7694
      %v7703 = vmax.bf16 %v7665, %v7695
      %v7704 = vmax.bf16 %v7666, %v7696
      %v7705 = vmax.bf16 %v7667, %v7697
      %v7706 = vld [vmem:[%s9] sm:$0xff]
      %v7707 = vld [vmem:[%s9 + $0x8] sm:$0xff]
      %v7708 = vld [vmem:[%s9 + $0x10] sm:$0xff]
      %v7709 = vld [vmem:[%s9 + $0x18] sm:$0xff]
      %v7710 = vld [vmem:[%s9 + $0x20] sm:$0xff]
      %v7711 = vld [vmem:[%s9 + $0x28] sm:$0xff]
      %v7712 = vld [vmem:[%s9 + $0x30] sm:$0xff]
      %v7713 = vld [vmem:[%s9 + $0x38] sm:$0xff]
      %v7714 = vld [vmem:[%s9 + $0x40] sm:$0xff]
      %v7715 = vld [vmem:[%s9 + $0x48] sm:$0xff]
      %v7716 = vld [vmem:[%s9 + $0x50] sm:$0xff]
      %v7717 = vld [vmem:[%s9 + $0x58] sm:$0xff]
      %v7718 = vld [vmem:[%s9 + $0x60] sm:$0xff]
      %v7719 = vld [vmem:[%s9 + $0x68] sm:$0xff]
      %v7720 = vld [vmem:[%s9 + $0x70] sm:$0xff]
      %v7721 = vld [vmem:[%s9 + $0x78] sm:$0xff]
      %v7722 = vld [vmem:[%s9 + $0x80] sm:$0xff]
      %v7723 = vld [vmem:[%s9 + $0x88] sm:$0xff]
      %v7724 = vld [vmem:[%s9 + $0x90] sm:$0xff]
      %v7725 = vld [vmem:[%s9 + $0x98] sm:$0xff]
      %v7726 = vld [vmem:[%s9 + $0xa0] sm:$0xff]
      %v7727 = vld [vmem:[%s9 + $0xa8] sm:$0xff]
      %v7728 = vld [vmem:[%s9 + $0xb0] sm:$0xff]
      %v7729 = vld [vmem:[%s9 + $0xb8] sm:$0xff]
      %v7730 = vld [vmem:[%s9 + $0xc0] sm:$0xff]
      %v7731 = vld [vmem:[%s9 + $0xc8] sm:$0xff]
      %v7732 = vld [vmem:[%s9 + $0xd0] sm:$0xff]
      %v7733 = vld [vmem:[%s9 + $0xd8] sm:$0xff]
      %v7734 = vld [vmem:[%s9 + $0xe0] sm:$0xff]
      %v7735 = vld [vmem:[%s9 + $0xe8] sm:$0xff]
      %v7736 = vld [vmem:[%s9 + $0xf0] sm:$0xff]
      %v7737 = vld [vmem:[%s9 + $0xf8] sm:$0xff]
      %v7770 = vunpack.c.l.b16 %v7706
      %v7771 = vunpack.c.h.b16 %v7706
      %v7772 = vunpack.c.l.b16 %v7707
      %v7773 = vunpack.c.h.b16 %v7707
      %v7774 = vunpack.c.l.b16 %v7708
      %v7775 = vunpack.c.h.b16 %v7708
      %v7776 = vunpack.c.l.b16 %v7709
      %v7777 = vunpack.c.h.b16 %v7709
      %v7778 = vunpack.c.l.b16 %v7710
      %v7779 = vunpack.c.h.b16 %v7710
      %v7780 = vunpack.c.l.b16 %v7711
      %v7781 = vunpack.c.h.b16 %v7711
      %v7782 = vunpack.c.l.b16 %v7712
      %v7783 = vunpack.c.h.b16 %v7712
      %v7784 = vunpack.c.l.b16 %v7713
      %v7785 = vunpack.c.h.b16 %v7713
      %v7786 = vunpack.c.l.b16 %v7714
      %v7787 = vunpack.c.h.b16 %v7714
      %v7788 = vunpack.c.l.b16 %v7715
      %v7789 = vunpack.c.h.b16 %v7715
      %v7790 = vunpack.c.l.b16 %v7716
      %v7791 = vunpack.c.h.b16 %v7716
      %v7792 = vunpack.c.l.b16 %v7717
      %v7793 = vunpack.c.h.b16 %v7717
      %v7794 = vunpack.c.l.b16 %v7718
      %v7795 = vunpack.c.h.b16 %v7718
      %v7796 = vunpack.c.l.b16 %v7719
      %v7797 = vunpack.c.h.b16 %v7719
      %v7798 = vunpack.c.l.b16 %v7720
      %v7799 = vunpack.c.h.b16 %v7720
      %v7800 = vunpack.c.l.b16 %v7721
      %v7801 = vunpack.c.h.b16 %v7721
      %v7802 = vunpack.c.l.b16 %v7722
      %v7803 = vunpack.c.h.b16 %v7722
      %v7804 = vunpack.c.l.b16 %v7723
      %v7805 = vunpack.c.h.b16 %v7723
      %v7806 = vunpack.c.l.b16 %v7724
      %v7807 = vunpack.c.h.b16 %v7724
      %v7808 = vunpack.c.l.b16 %v7725
      %v7809 = vunpack.c.h.b16 %v7725
      %v7810 = vunpack.c.l.b16 %v7726
      %v7811 = vunpack.c.h.b16 %v7726
      %v7812 = vunpack.c.l.b16 %v7727
      %v7813 = vunpack.c.h.b16 %v7727
      %v7814 = vunpack.c.l.b16 %v7728
      %v7815 = vunpack.c.h.b16 %v7728
      %v7816 = vunpack.c.l.b16 %v7729
      %v7817 = vunpack.c.h.b16 %v7729
      %v7818 = vunpack.c.l.b16 %v7730
      %v7819 = vunpack.c.h.b16 %v7730
      %v7820 = vunpack.c.l.b16 %v7731
      %v7821 = vunpack.c.h.b16 %v7731
      %v7822 = vunpack.c.l.b16 %v7732
      %v7823 = vunpack.c.h.b16 %v7732
      %v7824 = vunpack.c.l.b16 %v7733
      %v7825 = vunpack.c.h.b16 %v7733
      %v7826 = vunpack.c.l.b16 %v7734
      %v7827 = vunpack.c.h.b16 %v7734
      %v7828 = vunpack.c.l.b16 %v7735
      %v7829 = vunpack.c.h.b16 %v7735
      %v7830 = vunpack.c.l.b16 %v7736
      %v7831 = vunpack.c.h.b16 %v7736
      %v7832 = vunpack.c.l.b16 %v7737
      %v7833 = vunpack.c.h.b16 %v7737
      %v7834 = vpack.c.b16 %v7772, %v7770
      %v7835 = vpack.c.b16 %v7773, %v7771
      %v7836 = vpack.c.b16 %v7776, %v7774
      %v7837 = vpack.c.b16 %v7777, %v7775
      %v7838 = vpack.c.b16 %v7780, %v7778
      %v7839 = vpack.c.b16 %v7781, %v7779
      %v7840 = vpack.c.b16 %v7784, %v7782
      %v7841 = vpack.c.b16 %v7785, %v7783
      %v7842 = vpack.c.b16 %v7788, %v7786
      %v7843 = vpack.c.b16 %v7789, %v7787
      %v7844 = vpack.c.b16 %v7792, %v7790
      %v7845 = vpack.c.b16 %v7793, %v7791
      %v7846 = vpack.c.b16 %v7796, %v7794
      %v7847 = vpack.c.b16 %v7797, %v7795
      %v7848 = vpack.c.b16 %v7800, %v7798
      %v7849 = vpack.c.b16 %v7801, %v7799
      %v7850 = vpack.c.b16 %v7804, %v7802
      %v7851 = vpack.c.b16 %v7805, %v7803
      %v7852 = vpack.c.b16 %v7808, %v7806
      %v7853 = vpack.c.b16 %v7809, %v7807
      %v7854 = vpack.c.b16 %v7812, %v7810
      %v7855 = vpack.c.b16 %v7813, %v7811
      %v7856 = vpack.c.b16 %v7816, %v7814
      %v7857 = vpack.c.b16 %v7817, %v7815
      %v7858 = vpack.c.b16 %v7820, %v7818
      %v7859 = vpack.c.b16 %v7821, %v7819
      %v7860 = vpack.c.b16 %v7824, %v7822
      %v7861 = vpack.c.b16 %v7825, %v7823
      %v7862 = vpack.c.b16 %v7828, %v7826
      %v7863 = vpack.c.b16 %v7829, %v7827
      %v7864 = vpack.c.b16 %v7832, %v7830
      %v7865 = vpack.c.b16 %v7833, %v7831
      %7898 = vmatprep.subr.bf16.mxu0 %v7835
      %7899 = vmatpush1.bf16.msra.mxu0 %v7834
      %7900 = vmatprep.subr.bf16.mxu0 %v7837
      %7901 = vmatpush1.bf16.msra.mxu0 %v7836
      %7902 = vmatprep.subr.bf16.mxu0 %v7839
      %7903 = vmatpush1.bf16.msra.mxu0 %v7838
      %7904 = vmatprep.subr.bf16.mxu0 %v7841
      %7905 = vmatpush1.bf16.msra.mxu0 %v7840
      %7906 = vmatprep.subr.bf16.mxu0 %v7843
      %7907 = vmatpush1.bf16.msra.mxu0 %v7842
      %7908 = vmatprep.subr.bf16.mxu0 %v7845
      %7909 = vmatpush1.bf16.msra.mxu0 %v7844
      %7910 = vmatprep.subr.bf16.mxu0 %v7847
      %7911 = vmatpush1.bf16.msra.mxu0 %v7846
      %7912 = vmatprep.subr.bf16.mxu0 %v7849
      %7913 = vmatpush1.bf16.msra.mxu0 %v7848
      %7914 = vmatprep.subr.bf16.mxu0 %v7851
      %7915 = vmatpush1.bf16.msra.mxu0 %v7850
      %7916 = vmatprep.subr.bf16.mxu0 %v7853
      %7917 = vmatpush1.bf16.msra.mxu0 %v7852
      %7918 = vmatprep.subr.bf16.mxu0 %v7855
      %7919 = vmatpush1.bf16.msra.mxu0 %v7854
      %7920 = vmatprep.subr.bf16.mxu0 %v7857
      %7921 = vmatpush1.bf16.msra.mxu0 %v7856
      %7922 = vmatprep.subr.bf16.mxu0 %v7859
      %7923 = vmatpush1.bf16.msra.mxu0 %v7858
      %7924 = vmatprep.subr.bf16.mxu0 %v7861
      %7925 = vmatpush1.bf16.msra.mxu0 %v7860
      %7926 = vmatprep.subr.bf16.mxu0 %v7863
      %7927 = vmatpush1.bf16.msra.mxu0 %v7862
      %7928 = vmatprep.subr.bf16.mxu0 %v7865
      %7929 = vmatpush1.bf16.msra.mxu0 %v7864
      %7930 = vmatprep.mubr.bf16.mxu0 %v7703
      %7931 = vmatmul.mubr.bf16.gmra.mrb[0].mxu0 %v7702
      %v7932 = vpop.f32.mrb[0].mxu0
      %v7933 = vadd.f32 0.0, %v7932
      %v7934 = vpop.f32.mrb[0].mxu0
      %v7935 = vadd.f32 0.0, %v7934
      %v7936 = vpop.f32.mrb[0].mxu0
      %v7937 = vadd.f32 0.0, %v7936
      %v7938 = vpop.f32.mrb[0].mxu0
      %v7939 = vadd.f32 0.0, %v7938
      %7940 = vmatprep.mubr.bf16.mxu0 %v7705
      %7941 = vmatmul.mubr.bf16.gmra.mrb[0].mxu0 %v7704
      %v7942 = vpop.f32.mrb[0].mxu0
      %v7943 = vadd.f32 0.0, %v7942
      %v7944 = vpop.f32.mrb[0].mxu0
      %v7945 = vadd.f32 0.0, %v7944
      %v7946 = vpop.f32.mrb[0].mxu0
      %v7947 = vadd.f32 0.0, %v7946
      %v7948 = vpop.f32.mrb[0].mxu0
      %v7949 = vadd.f32 0.0, %v7948
      %7950 = vdwg.mxu0
      %v7951 = vpack.c.bf16 %v7937, %v7933
      %v7952 = vpack.c.bf16 %v7939, %v7935
      %v7953 = vpack.c.bf16 %v7947, %v7943
      %v7954 = vpack.c.bf16 %v7949, %v7945
      %7955 = vst [vmem:[#allocation9] sm:$0xff] %v7951
      %7956 = vst [vmem:[#allocation9 + $0x8] sm:$0xff] %v7952
      %7957 = vst [vmem:[#allocation9 + $0x10] sm:$0xff] %v7953
      %7958 = vst [vmem:[#allocation9 + $0x18] sm:$0xff] %v7954
      %v7959 = vld [vmem:[#allocation9] sm:$0xff]
      %v7960 = vld [vmem:[#allocation9 + $0x10] sm:$0xff]
      %7961 = vst [vmem:[#allocation10] sm:$0xff] %v7959
      %7962 = vst [vmem:[#allocation10 + $0x8] sm:$0xff] %v7960
      %v7963 = vld [vmem:[#allocation9] sm:$0xff]
      %v7964 = vld [vmem:[#allocation9 + $0x8] sm:$0xff]
      %v7965 = vld [vmem:[#allocation9 + $0x10] sm:$0xff]
      %v7966 = vld [vmem:[#allocation9 + $0x18] sm:$0xff]
      %7971 = vrot.lane.b32.xlu0 %v7963, 127
      %v7972 = vpop.permute.xlu0 %7971
      %7973 = vrot.lane.b32.xlu0 %v7964, 127
      %v7974 = vpop.permute.xlu0 %7973
      %7975 = vrot.lane.b32.xlu0 %v7965, 127
      %v7976 = vpop.permute.xlu0 %7975
      %7977 = vrot.lane.b32.xlu0 %v7966, 127
      %v7978 = vpop.permute.xlu0 %7977
      %v7979 = vsel %vm608, %v7972, %v7974
      %v7980 = vsel %vm608, %v7976, %v7978
      %7983 = vst [vmem:[#allocation10 + $0x10] sm:$0xff] %v7979
      %7984 = vst [vmem:[#allocation10 + $0x18] sm:$0xff] %v7980
      %v7985 = vld [vmem:[#allocation9] sm:$0xff]
      %v7986 = vld [vmem:[#allocation9 + $0x8] sm:$0xff]
      %v7987 = vld [vmem:[#allocation9 + $0x10] sm:$0xff]
      %v7988 = vld [vmem:[#allocation9 + $0x18] sm:$0xff]
      %7993 = vrot.lane.b32.xlu0 %v7985, 126
      %v7994 = vpop.permute.xlu0 %7993
      %7995 = vrot.lane.b32.xlu0 %v7986, 126
      %v7996 = vpop.permute.xlu0 %7995
      %7997 = vrot.lane.b32.xlu0 %v7987, 126
      %v7998 = vpop.permute.xlu0 %7997
      %7999 = vrot.lane.b32.xlu0 %v7988, 126
      %v8000 = vpop.permute.xlu0 %7999
      %v8001 = vsel %vm713, %v7994, %v7996
      %v8002 = vsel %vm713, %v7998, %v8000
      %8005 = vst [vmem:[#allocation10 + $0x20] sm:$0xff] %v8001
      %8006 = vst [vmem:[#allocation10 + $0x28] sm:$0xff] %v8002
      %v8007 = vld [vmem:[#allocation9] sm:$0xff]
      %v8008 = vld [vmem:[#allocation9 + $0x8] sm:$0xff]
      %v8009 = vld [vmem:[#allocation9 + $0x10] sm:$0xff]
      %v8010 = vld [vmem:[#allocation9 + $0x18] sm:$0xff]
      %8015 = vrot.lane.b32.xlu0 %v8007, 125
      %v8016 = vpop.permute.xlu0 %8015
      %8017 = vrot.lane.b32.xlu0 %v8008, 125
      %v8018 = vpop.permute.xlu0 %8017
      %8019 = vrot.lane.b32.xlu0 %v8009, 125
      %v8020 = vpop.permute.xlu0 %8019
      %8021 = vrot.lane.b32.xlu0 %v8010, 125
      %v8022 = vpop.permute.xlu0 %8021
      %v8023 = vsel %vm851, %v8016, %v8018
      %v8024 = vsel %vm851, %v8020, %v8022
      %8027 = vst [vmem:[#allocation10 + $0x30] sm:$0xff] %v8023
      %8028 = vst [vmem:[#allocation10 + $0x38] sm:$0xff] %v8024
      %v8029 = vld [vmem:[#allocation9] sm:$0xff]
      %v8030 = vld [vmem:[#allocation9 + $0x8] sm:$0xff]
      %v8031 = vld [vmem:[#allocation9 + $0x10] sm:$0xff]
      %v8032 = vld [vmem:[#allocation9 + $0x18] sm:$0xff]
      %8037 = vrot.lane.b32.xlu0 %v8029, 124
      %v8038 = vpop.permute.xlu0 %8037
      %8039 = vrot.lane.b32.xlu0 %v8030, 124
      %v8040 = vpop.permute.xlu0 %8039
      %8041 = vrot.lane.b32.xlu0 %v8031, 124
      %v8042 = vpop.permute.xlu0 %8041
      %8043 = vrot.lane.b32.xlu0 %v8032, 124
      %v8044 = vpop.permute.xlu0 %8043
      %v8045 = vsel %vm956, %v8038, %v8040
      %v8046 = vsel %vm956, %v8042, %v8044
      %8049 = vst [vmem:[#allocation10 + $0x40] sm:$0xff] %v8045
      %8050 = vst [vmem:[#allocation10 + $0x48] sm:$0xff] %v8046
      %v8051 = vld [vmem:[#allocation9] sm:$0xff]
      %v8052 = vld [vmem:[#allocation9 + $0x8] sm:$0xff]
      %v8053 = vld [vmem:[#allocation9 + $0x10] sm:$0xff]
      %v8054 = vld [vmem:[#allocation9 + $0x18] sm:$0xff]
      %8059 = vrot.lane.b32.xlu0 %v8051, 117
      %v8060 = vpop.permute.xlu0 %8059
      %8061 = vrot.lane.b32.xlu0 %v8052, 117
      %v8062 = vpop.permute.xlu0 %8061
      %8063 = vrot.lane.b32.xlu0 %v8053, 117
      %v8064 = vpop.permute.xlu0 %8063
      %8065 = vrot.lane.b32.xlu0 %v8054, 117
      %v8066 = vpop.permute.xlu0 %8065
      %vm8067 = vcmask 957440
      %v8068 = vsel %vm8067, %v8060, %v8062
      %v8069 = vsel %vm8067, %v8064, %v8066
      %8072 = vst [vmem:[#allocation10 + $0x50] sm:$0xff] %v8068
      %8073 = vst [vmem:[#allocation10 + $0x58] sm:$0xff] %v8069
      %v8074 = vld [vmem:[#allocation9] sm:$0xff]
      %v8075 = vld [vmem:[#allocation9 + $0x8] sm:$0xff]
      %v8076 = vld [vmem:[#allocation9 + $0x10] sm:$0xff]
      %v8077 = vld [vmem:[#allocation9 + $0x18] sm:$0xff]
      %8082 = vrot.lane.b32.xlu0 %v8074, 116
      %v8083 = vpop.permute.xlu0 %8082
      %8084 = vrot.lane.b32.xlu0 %v8075, 116
      %v8085 = vpop.permute.xlu0 %8084
      %8086 = vrot.lane.b32.xlu0 %v8076, 116
      %v8087 = vpop.permute.xlu0 %8086
      %8088 = vrot.lane.b32.xlu0 %v8077, 116
      %v8089 = vpop.permute.xlu0 %8088
      %vm8090 = vcmask 949248
      %v8091 = vsel %vm8090, %v8083, %v8085
      %v8092 = vsel %vm8090, %v8087, %v8089
      %8095 = vst [vmem:[#allocation10 + $0x60] sm:$0xff] %v8091
      %8096 = vst [vmem:[#allocation10 + $0x68] sm:$0xff] %v8092
      %v8097 = vld [vmem:[#allocation9] sm:$0xff]
      %v8098 = vld [vmem:[#allocation9 + $0x8] sm:$0xff]
      %v8099 = vld [vmem:[#allocation9 + $0x10] sm:$0xff]
      %v8100 = vld [vmem:[#allocation9 + $0x18] sm:$0xff]
      %8105 = vrot.lane.b32.xlu0 %v8097, 115
      %v8106 = vpop.permute.xlu0 %8105
      %8107 = vrot.lane.b32.xlu0 %v8098, 115
      %v8108 = vpop.permute.xlu0 %8107
      %8109 = vrot.lane.b32.xlu0 %v8099, 115
      %v8110 = vpop.permute.xlu0 %8109
      %8111 = vrot.lane.b32.xlu0 %v8100, 115
      %v8112 = vpop.permute.xlu0 %8111
      %vm8113 = vcmask 941056
      %v8114 = vsel %vm8113, %v8106, %v8108
      %v8115 = vsel %vm8113, %v8110, %v8112
      %8118 = vst [vmem:[#allocation10 + $0x70] sm:$0xff] %v8114
      %8119 = vst [vmem:[#allocation10 + $0x78] sm:$0xff] %v8115
      %v8120 = vld [vmem:[#allocation9] sm:$0xff]
      %v8121 = vld [vmem:[#allocation9 + $0x8] sm:$0xff]
      %v8122 = vld [vmem:[#allocation9 + $0x10] sm:$0xff]
      %v8123 = vld [vmem:[#allocation9 + $0x18] sm:$0xff]
      %8128 = vrot.lane.b32.xlu0 %v8120, 114
      %v8129 = vpop.permute.xlu0 %8128
      %8130 = vrot.lane.b32.xlu0 %v8121, 114
      %v8131 = vpop.permute.xlu0 %8130
      %8132 = vrot.lane.b32.xlu0 %v8122, 114
      %v8133 = vpop.permute.xlu0 %8132
      %8134 = vrot.lane.b32.xlu0 %v8123, 114
      %v8135 = vpop.permute.xlu0 %8134
      %vm8136 = vcmask 932864
      %v8137 = vsel %vm8136, %v8129, %v8131
      %v8138 = vsel %vm8136, %v8133, %v8135
      %8141 = vst [vmem:[#allocation10 + $0x80] sm:$0xff] %v8137
      %8142 = vst [vmem:[#allocation10 + $0x88] sm:$0xff] %v8138
      %v8143 = vld [vmem:[#allocation9] sm:$0xff]
      %v8144 = vld [vmem:[#allocation9 + $0x8] sm:$0xff]
      %v8145 = vld [vmem:[#allocation9 + $0x10] sm:$0xff]
      %v8146 = vld [vmem:[#allocation9 + $0x18] sm:$0xff]
      %8151 = vrot.lane.b32.xlu0 %v8143, 113
      %v8152 = vpop.permute.xlu0 %8151
      %8153 = vrot.lane.b32.xlu0 %v8144, 113
      %v8154 = vpop.permute.xlu0 %8153
      %8155 = vrot.lane.b32.xlu0 %v8145, 113
      %v8156 = vpop.permute.xlu0 %8155
      %8157 = vrot.lane.b32.xlu0 %v8146, 113
      %v8158 = vpop.permute.xlu0 %8157
      %vm8159 = vcmask 924672
      %v8160 = vsel %vm8159, %v8152, %v8154
      %v8161 = vsel %vm8159, %v8156, %v8158
      %8164 = vst [vmem:[#allocation10 + $0x90] sm:$0xff] %v8160
      %8165 = vst [vmem:[#allocation10 + $0x98] sm:$0xff] %v8161
      %v8166 = vld [vmem:[#allocation9] sm:$0xff]
      %v8167 = vld [vmem:[#allocation9 + $0x8] sm:$0xff]
      %v8168 = vld [vmem:[#allocation9 + $0x10] sm:$0xff]
      %v8169 = vld [vmem:[#allocation9 + $0x18] sm:$0xff]
      %8174 = vrot.lane.b32.xlu0 %v8166, 106
      %v8175 = vpop.permute.xlu0 %8174
      %8176 = vrot.lane.b32.xlu0 %v8167, 106
      %v8177 = vpop.permute.xlu0 %8176
      %8178 = vrot.lane.b32.xlu0 %v8168, 106
      %v8179 = vpop.permute.xlu0 %8178
      %8180 = vrot.lane.b32.xlu0 %v8169, 106
      %v8181 = vpop.permute.xlu0 %8180
      %v8182 = vsel %vm5340, %v8175, %v8177
      %v8183 = vsel %vm5340, %v8179, %v8181
      %8186 = vst [vmem:[#allocation10 + $0xa0] sm:$0xff] %v8182
      %8187 = vst [vmem:[#allocation10 + $0xa8] sm:$0xff] %v8183
      %v8188 = vld [vmem:[#allocation9] sm:$0xff]
      %v8189 = vld [vmem:[#allocation9 + $0x8] sm:$0xff]
      %v8190 = vld [vmem:[#allocation9 + $0x10] sm:$0xff]
      %v8191 = vld [vmem:[#allocation9 + $0x18] sm:$0xff]
      %8196 = vrot.lane.b32.xlu0 %v8188, 105
      %v8197 = vpop.permute.xlu0 %8196
      %8198 = vrot.lane.b32.xlu0 %v8189, 105
      %v8199 = vpop.permute.xlu0 %8198
      %8200 = vrot.lane.b32.xlu0 %v8190, 105
      %v8201 = vpop.permute.xlu0 %8200
      %8202 = vrot.lane.b32.xlu0 %v8191, 105
      %v8203 = vpop.permute.xlu0 %8202
      %vm8204 = vcmask 859136
      %v8205 = vsel %vm8204, %v8197, %v8199
      %v8206 = vsel %vm8204, %v8201, %v8203
      %8209 = vst [vmem:[#allocation10 + $0xb0] sm:$0xff] %v8205
      %8210 = vst [vmem:[#allocation10 + $0xb8] sm:$0xff] %v8206
      %v8211 = vld [vmem:[#allocation9] sm:$0xff]
      %v8212 = vld [vmem:[#allocation9 + $0x8] sm:$0xff]
      %v8213 = vld [vmem:[#allocation9 + $0x10] sm:$0xff]
      %v8214 = vld [vmem:[#allocation9 + $0x18] sm:$0xff]
      %8219 = vrot.lane.b32.xlu0 %v8211, 104
      %v8220 = vpop.permute.xlu0 %8219
      %8221 = vrot.lane.b32.xlu0 %v8212, 104
      %v8222 = vpop.permute.xlu0 %8221
      %8223 = vrot.lane.b32.xlu0 %v8213, 104
      %v8224 = vpop.permute.xlu0 %8223
      %8225 = vrot.lane.b32.xlu0 %v8214, 104
      %v8226 = vpop.permute.xlu0 %8225
      %vm8227 = vcmask 850944
      %v8228 = vsel %vm8227, %v8220, %v8222
      %v8229 = vsel %vm8227, %v8224, %v8226
      %8232 = vst [vmem:[#allocation10 + $0xc0] sm:$0xff] %v8228
      %8233 = vst [vmem:[#allocation10 + $0xc8] sm:$0xff] %v8229
      %v8234 = vld [vmem:[#allocation9] sm:$0xff]
      %v8235 = vld [vmem:[#allocation9 + $0x8] sm:$0xff]
      %v8236 = vld [vmem:[#allocation9 + $0x10] sm:$0xff]
      %v8237 = vld [vmem:[#allocation9 + $0x18] sm:$0xff]
      %8242 = vrot.lane.b32.xlu0 %v8234, 103
      %v8243 = vpop.permute.xlu0 %8242
      %8244 = vrot.lane.b32.xlu0 %v8235, 103
      %v8245 = vpop.permute.xlu0 %8244
      %8246 = vrot.lane.b32.xlu0 %v8236, 103
      %v8247 = vpop.permute.xlu0 %8246
      %8248 = vrot.lane.b32.xlu0 %v8237, 103
      %v8249 = vpop.permute.xlu0 %8248
      %vm8250 = vcmask 842752
      %v8251 = vsel %vm8250, %v8243, %v8245
      %v8252 = vsel %vm8250, %v8247, %v8249
      %8255 = vst [vmem:[#allocation10 + $0xd0] sm:$0xff] %v8251
      %8256 = vst [vmem:[#allocation10 + $0xd8] sm:$0xff] %v8252
      %v8257 = vld [vmem:[#allocation9] sm:$0xff]
      %v8258 = vld [vmem:[#allocation9 + $0x8] sm:$0xff]
      %v8259 = vld [vmem:[#allocation9 + $0x10] sm:$0xff]
      %v8260 = vld [vmem:[#allocation9 + $0x18] sm:$0xff]
      %8265 = vrot.lane.b32.xlu0 %v8257, 102
      %v8266 = vpop.permute.xlu0 %8265
      %8267 = vrot.lane.b32.xlu0 %v8258, 102
      %v8268 = vpop.permute.xlu0 %8267
      %8269 = vrot.lane.b32.xlu0 %v8259, 102
      %v8270 = vpop.permute.xlu0 %8269
      %8271 = vrot.lane.b32.xlu0 %v8260, 102
      %v8272 = vpop.permute.xlu0 %8271
      %vm8273 = vcmask 834560
      %v8274 = vsel %vm8273, %v8266, %v8268
      %v8275 = vsel %vm8273, %v8270, %v8272
      %8278 = vst [vmem:[#allocation10 + $0xe0] sm:$0xff] %v8274
      %8279 = vst [vmem:[#allocation10 + $0xe8] sm:$0xff] %v8275
      %v8280 = vld [vmem:[#allocation9] sm:$0xff]
      %v8281 = vld [vmem:[#allocation9 + $0x8] sm:$0xff]
      %v8282 = vld [vmem:[#allocation9 + $0x10] sm:$0xff]
      %v8283 = vld [vmem:[#allocation9 + $0x18] sm:$0xff]
      %8288 = vrot.lane.b32.xlu0 %v8280, 95
      %v8289 = vpop.permute.xlu0 %8288
      %8290 = vrot.lane.b32.xlu0 %v8281, 95
      %v8291 = vpop.permute.xlu0 %8290
      %8292 = vrot.lane.b32.xlu0 %v8282, 95
      %v8293 = vpop.permute.xlu0 %8292
      %8294 = vrot.lane.b32.xlu0 %v8283, 95
      %v8295 = vpop.permute.xlu0 %8294
      %v8296 = vsel %vm1199, %v8289, %v8291
      %v8297 = vsel %vm1199, %v8293, %v8295
      %8300 = vst [vmem:[#allocation10 + $0xf0] sm:$0xff] %v8296
      %8301 = vst [vmem:[#allocation10 + $0xf8] sm:$0xff] %v8297
      %v8302 = vld [vmem:[#allocation9] sm:$0xff]
      %v8303 = vld [vmem:[#allocation9 + $0x8] sm:$0xff]
      %v8304 = vld [vmem:[#allocation9 + $0x10] sm:$0xff]
      %v8305 = vld [vmem:[#allocation9 + $0x18] sm:$0xff]
      %8310 = vrot.lane.b32.xlu0 %v8302, 94
      %v8311 = vpop.permute.xlu0 %8310
      %8312 = vrot.lane.b32.xlu0 %v8303, 94
      %v8313 = vpop.permute.xlu0 %8312
      %8314 = vrot.lane.b32.xlu0 %v8304, 94
      %v8315 = vpop.permute.xlu0 %8314
      %8316 = vrot.lane.b32.xlu0 %v8305, 94
      %v8317 = vpop.permute.xlu0 %8316
      %v8318 = vsel %vm1337, %v8311, %v8313
      %v8319 = vsel %vm1337, %v8315, %v8317
      %8322 = vst [vmem:[#allocation10 + $0x100] sm:$0xff] %v8318
      %8323 = vst [vmem:[#allocation10 + $0x108] sm:$0xff] %v8319
      %v8324 = vld [vmem:[#allocation9] sm:$0xff]
      %v8325 = vld [vmem:[#allocation9 + $0x8] sm:$0xff]
      %v8326 = vld [vmem:[#allocation9 + $0x10] sm:$0xff]
      %v8327 = vld [vmem:[#allocation9 + $0x18] sm:$0xff]
      %8332 = vrot.lane.b32.xlu0 %v8324, 93
      %v8333 = vpop.permute.xlu0 %8332
      %8334 = vrot.lane.b32.xlu0 %v8325, 93
      %v8335 = vpop.permute.xlu0 %8334
      %8336 = vrot.lane.b32.xlu0 %v8326, 93
      %v8337 = vpop.permute.xlu0 %8336
      %8338 = vrot.lane.b32.xlu0 %v8327, 93
      %v8339 = vpop.permute.xlu0 %8338
      %v8340 = vsel %vm1442, %v8333, %v8335
      %v8341 = vsel %vm1442, %v8337, %v8339
      %8344 = vst [vmem:[#allocation10 + $0x110] sm:$0xff] %v8340
      %8345 = vst [vmem:[#allocation10 + $0x118] sm:$0xff] %v8341
      %v8346 = vld [vmem:[#allocation9] sm:$0xff]
      %v8347 = vld [vmem:[#allocation9 + $0x8] sm:$0xff]
      %v8348 = vld [vmem:[#allocation9 + $0x10] sm:$0xff]
      %v8349 = vld [vmem:[#allocation9 + $0x18] sm:$0xff]
      %8354 = vrot.lane.b32.xlu0 %v8346, 92
      %v8355 = vpop.permute.xlu0 %8354
      %8356 = vrot.lane.b32.xlu0 %v8347, 92
      %v8357 = vpop.permute.xlu0 %8356
      %8358 = vrot.lane.b32.xlu0 %v8348, 92
      %v8359 = vpop.permute.xlu0 %8358
      %8360 = vrot.lane.b32.xlu0 %v8349, 92
      %v8361 = vpop.permute.xlu0 %8360
      %v8362 = vsel %vm1580, %v8355, %v8357
      %v8363 = vsel %vm1580, %v8359, %v8361
      %8366 = vst [vmem:[#allocation10 + $0x120] sm:$0xff] %v8362
      %8367 = vst [vmem:[#allocation10 + $0x128] sm:$0xff] %v8363
      %v8368 = vld [vmem:[#allocation9] sm:$0xff]
      %v8369 = vld [vmem:[#allocation9 + $0x8] sm:$0xff]
      %v8370 = vld [vmem:[#allocation9 + $0x10] sm:$0xff]
      %v8371 = vld [vmem:[#allocation9 + $0x18] sm:$0xff]
      %8376 = vrot.lane.b32.xlu0 %v8368, 91
      %v8377 = vpop.permute.xlu0 %8376
      %8378 = vrot.lane.b32.xlu0 %v8369, 91
      %v8379 = vpop.permute.xlu0 %8378
      %8380 = vrot.lane.b32.xlu0 %v8370, 91
      %v8381 = vpop.permute.xlu0 %8380
      %8382 = vrot.lane.b32.xlu0 %v8371, 91
      %v8383 = vpop.permute.xlu0 %8382
      %v8384 = vsel %vm5377, %v8377, %v8379
      %v8385 = vsel %vm5377, %v8381, %v8383
      %8388 = vst [vmem:[#allocation10 + $0x130] sm:$0xff] %v8384
      %8389 = vst [vmem:[#allocation10 + $0x138] sm:$0xff] %v8385
      %v8390 = vld [vmem:[#allocation9] sm:$0xff]
      %v8391 = vld [vmem:[#allocation9 + $0x8] sm:$0xff]
      %v8392 = vld [vmem:[#allocation9 + $0x10] sm:$0xff]
      %v8393 = vld [vmem:[#allocation9 + $0x18] sm:$0xff]
      %8398 = vrot.lane.b32.xlu0 %v8390, 84
      %v8399 = vpop.permute.xlu0 %8398
      %8400 = vrot.lane.b32.xlu0 %v8391, 84
      %v8401 = vpop.permute.xlu0 %8400
      %8402 = vrot.lane.b32.xlu0 %v8392, 84
      %v8403 = vpop.permute.xlu0 %8402
      %8404 = vrot.lane.b32.xlu0 %v8393, 84
      %v8405 = vpop.permute.xlu0 %8404
      %vm8406 = vcmask 687104
      %v8407 = vsel %vm8406, %v8399, %v8401
      %v8408 = vsel %vm8406, %v8403, %v8405
      %8411 = vst [vmem:[#allocation10 + $0x140] sm:$0xff] %v8407
      %8412 = vst [vmem:[#allocation10 + $0x148] sm:$0xff] %v8408
      %v8413 = vld [vmem:[#allocation9] sm:$0xff]
      %v8414 = vld [vmem:[#allocation9 + $0x8] sm:$0xff]
      %v8415 = vld [vmem:[#allocation9 + $0x10] sm:$0xff]
      %v8416 = vld [vmem:[#allocation9 + $0x18] sm:$0xff]
      %8421 = vrot.lane.b32.xlu0 %v8413, 83
      %v8422 = vpop.permute.xlu0 %8421
      %8423 = vrot.lane.b32.xlu0 %v8414, 83
      %v8424 = vpop.permute.xlu0 %8423
      %8425 = vrot.lane.b32.xlu0 %v8415, 83
      %v8426 = vpop.permute.xlu0 %8425
      %8427 = vrot.lane.b32.xlu0 %v8416, 83
      %v8428 = vpop.permute.xlu0 %8427
      %vm8429 = vcmask 678912
      %v8430 = vsel %vm8429, %v8422, %v8424
      %v8431 = vsel %vm8429, %v8426, %v8428
      %8434 = vst [vmem:[#allocation10 + $0x150] sm:$0xff] %v8430
      %8435 = vst [vmem:[#allocation10 + $0x158] sm:$0xff] %v8431
      %v8436 = vld [vmem:[#allocation9] sm:$0xff]
      %v8437 = vld [vmem:[#allocation9 + $0x8] sm:$0xff]
      %v8438 = vld [vmem:[#allocation9 + $0x10] sm:$0xff]
      %v8439 = vld [vmem:[#allocation9 + $0x18] sm:$0xff]
      %8444 = vrot.lane.b32.xlu0 %v8436, 82
      %v8445 = vpop.permute.xlu0 %8444
      %8446 = vrot.lane.b32.xlu0 %v8437, 82
      %v8447 = vpop.permute.xlu0 %8446
      %8448 = vrot.lane.b32.xlu0 %v8438, 82
      %v8449 = vpop.permute.xlu0 %8448
      %8450 = vrot.lane.b32.xlu0 %v8439, 82
      %v8451 = vpop.permute.xlu0 %8450
      %vm8452 = vcmask 670720
      %v8453 = vsel %vm8452, %v8445, %v8447
      %v8454 = vsel %vm8452, %v8449, %v8451
      %8457 = vst [vmem:[#allocation10 + $0x160] sm:$0xff] %v8453
      %8458 = vst [vmem:[#allocation10 + $0x168] sm:$0xff] %v8454
      %v8459 = vld [vmem:[#allocation9] sm:$0xff]
      %v8460 = vld [vmem:[#allocation9 + $0x8] sm:$0xff]
      %v8461 = vld [vmem:[#allocation9 + $0x10] sm:$0xff]
      %v8462 = vld [vmem:[#allocation9 + $0x18] sm:$0xff]
      %8467 = vrot.lane.b32.xlu0 %v8459, 81
      %v8468 = vpop.permute.xlu0 %8467
      %8469 = vrot.lane.b32.xlu0 %v8460, 81
      %v8470 = vpop.permute.xlu0 %8469
      %8471 = vrot.lane.b32.xlu0 %v8461, 81
      %v8472 = vpop.permute.xlu0 %8471
      %8473 = vrot.lane.b32.xlu0 %v8462, 81
      %v8474 = vpop.permute.xlu0 %8473
      %vm8475 = vcmask 662528
      %v8476 = vsel %vm8475, %v8468, %v8470
      %v8477 = vsel %vm8475, %v8472, %v8474
      %8480 = vst [vmem:[#allocation10 + $0x170] sm:$0xff] %v8476
      %8481 = vst [vmem:[#allocation10 + $0x178] sm:$0xff] %v8477
      %v8482 = vld [vmem:[#allocation9] sm:$0xff]
      %v8483 = vld [vmem:[#allocation9 + $0x8] sm:$0xff]
      %v8484 = vld [vmem:[#allocation9 + $0x10] sm:$0xff]
      %v8485 = vld [vmem:[#allocation9 + $0x18] sm:$0xff]
      %8490 = vrot.lane.b32.xlu0 %v8482, 80
      %v8491 = vpop.permute.xlu0 %8490
      %8492 = vrot.lane.b32.xlu0 %v8483, 80
      %v8493 = vpop.permute.xlu0 %8492
      %8494 = vrot.lane.b32.xlu0 %v8484, 80
      %v8495 = vpop.permute.xlu0 %8494
      %8496 = vrot.lane.b32.xlu0 %v8485, 80
      %v8497 = vpop.permute.xlu0 %8496
      %vm8498 = vcmask 654336
      %v8499 = vsel %vm8498, %v8491, %v8493
      %v8500 = vsel %vm8498, %v8495, %v8497
      %8503 = vst [vmem:[#allocation10 + $0x180] sm:$0xff] %v8499
      %8504 = vst [vmem:[#allocation10 + $0x188] sm:$0xff] %v8500
      %v8505 = vld [vmem:[%s10] sm:$0xff]
      %v8506 = vld [vmem:[%s10 + $0x8] sm:$0xff]
      %v8507 = vld [vmem:[%s10 + $0x10] sm:$0xff]
      %v8508 = vld [vmem:[%s10 + $0x18] sm:$0xf]
      %v8509 = vld [vmem:[%s10 + $0x1c] sm:$0xff]
      %v8510 = vld [vmem:[%s10 + $0x24] sm:$0xff]
      %v8511 = vld [vmem:[%s10 + $0x2c] sm:$0xff]
      %v8512 = vld [vmem:[%s10 + $0x34] sm:$0xf]
      %v8513 = vld [vmem:[%s10 + $0x38] sm:$0xff]
      %v8514 = vld [vmem:[%s10 + $0x40] sm:$0xff]
      %v8515 = vld [vmem:[%s10 + $0x48] sm:$0xff]
      %v8516 = vld [vmem:[%s10 + $0x50] sm:$0xf]
      %v8517 = vld [vmem:[%s10 + $0x54] sm:$0xff]
      %v8518 = vld [vmem:[%s10 + $0x5c] sm:$0xff]
      %v8519 = vld [vmem:[%s10 + $0x64] sm:$0xff]
      %v8520 = vld [vmem:[%s10 + $0x6c] sm:$0xf]
      %v8521 = vld [vmem:[%s10 + $0x70] sm:$0xff]
      %v8522 = vld [vmem:[%s10 + $0x78] sm:$0xff]
      %v8523 = vld [vmem:[%s10 + $0x80] sm:$0xff]
      %v8524 = vld [vmem:[%s10 + $0x88] sm:$0xf]
      %v8525 = vld [vmem:[%s10 + $0x8c] sm:$0xff]
      %v8526 = vld [vmem:[%s10 + $0x94] sm:$0xff]
      %v8527 = vld [vmem:[%s10 + $0x9c] sm:$0xff]
      %v8528 = vld [vmem:[%s10 + $0xa4] sm:$0xf]
      %v8529 = vld [vmem:[%s10 + $0xa8] sm:$0xff]
      %v8530 = vld [vmem:[%s10 + $0xb0] sm:$0xff]
      %v8531 = vld [vmem:[%s10 + $0xb8] sm:$0xff]
      %v8532 = vld [vmem:[%s10 + $0xc0] sm:$0xf]
      %v8533 = vld [vmem:[%s10 + $0xc4] sm:$0xff]
      %v8534 = vld [vmem:[%s10 + $0xcc] sm:$0xff]
      %v8535 = vld [vmem:[%s10 + $0xd4] sm:$0xff]
      %v8536 = vld [vmem:[%s10 + $0xdc] sm:$0xf]
      %v8537 = vld [vmem:[#allocation10] sm:$0xff]
      %v8538 = vld [vmem:[#allocation10 + $0x8] sm:$0xff]
      %v8539 = vld [vmem:[#allocation10 + $0x10] sm:$0xff]
      %v8540 = vld [vmem:[#allocation10 + $0x18] sm:$0xff]
      %v8541 = vld [vmem:[#allocation10 + $0x20] sm:$0xff]
      %v8542 = vld [vmem:[#allocation10 + $0x28] sm:$0xff]
      %v8543 = vld [vmem:[#allocation10 + $0x30] sm:$0xff]
      %v8544 = vld [vmem:[#allocation10 + $0x38] sm:$0xff]
      %v8545 = vld [vmem:[#allocation10 + $0x40] sm:$0xff]
      %v8546 = vld [vmem:[#allocation10 + $0x48] sm:$0xff]
      %v8547 = vld [vmem:[#allocation10 + $0x50] sm:$0xff]
      %v8548 = vld [vmem:[#allocation10 + $0x58] sm:$0xff]
      %v8549 = vld [vmem:[#allocation10 + $0x60] sm:$0xff]
      %v8550 = vld [vmem:[#allocation10 + $0x68] sm:$0xff]
      %v8551 = vld [vmem:[#allocation10 + $0x70] sm:$0xff]
      %v8552 = vld [vmem:[#allocation10 + $0x78] sm:$0xff]
      %v8553 = vld [vmem:[#allocation10 + $0x80] sm:$0xff]
      %v8554 = vld [vmem:[#allocation10 + $0x88] sm:$0xff]
      %v8555 = vld [vmem:[#allocation10 + $0x90] sm:$0xff]
      %v8556 = vld [vmem:[#allocation10 + $0x98] sm:$0xff]
      %v8557 = vld [vmem:[#allocation10 + $0xa0] sm:$0xff]
      %v8558 = vld [vmem:[#allocation10 + $0xa8] sm:$0xff]
      %v8559 = vld [vmem:[#allocation10 + $0xb0] sm:$0xff]
      %v8560 = vld [vmem:[#allocation10 + $0xb8] sm:$0xff]
      %v8561 = vld [vmem:[#allocation10 + $0xc0] sm:$0xff]
      %v8562 = vld [vmem:[#allocation10 + $0xc8] sm:$0xff]
      %v8563 = vld [vmem:[#allocation10 + $0xd0] sm:$0xff]
      %v8564 = vld [vmem:[#allocation10 + $0xd8] sm:$0xff]
      %v8565 = vld [vmem:[#allocation10 + $0xe0] sm:$0xff]
      %v8566 = vld [vmem:[#allocation10 + $0xe8] sm:$0xff]
      %v8567 = vld [vmem:[#allocation10 + $0xf0] sm:$0xff]
      %v8568 = vld [vmem:[#allocation10 + $0xf8] sm:$0xff]
      %v8569 = vld [vmem:[#allocation10 + $0x100] sm:$0xff]
      %v8570 = vld [vmem:[#allocation10 + $0x108] sm:$0xff]
      %v8571 = vld [vmem:[#allocation10 + $0x110] sm:$0xff]
      %v8572 = vld [vmem:[#allocation10 + $0x118] sm:$0xff]
      %v8573 = vld [vmem:[#allocation10 + $0x120] sm:$0xff]
      %v8574 = vld [vmem:[#allocation10 + $0x128] sm:$0xff]
      %v8575 = vld [vmem:[#allocation10 + $0x130] sm:$0xff]
      %v8576 = vld [vmem:[#allocation10 + $0x138] sm:$0xff]
      %v8577 = vld [vmem:[#allocation10 + $0x140] sm:$0xff]
      %v8578 = vld [vmem:[#allocation10 + $0x148] sm:$0xff]
      %v8579 = vld [vmem:[#allocation10 + $0x150] sm:$0xff]
      %v8580 = vld [vmem:[#allocation10 + $0x158] sm:$0xff]
      %v8581 = vld [vmem:[#allocation10 + $0x160] sm:$0xff]
      %v8582 = vld [vmem:[#allocation10 + $0x168] sm:$0xff]
      %v8583 = vld [vmem:[#allocation10 + $0x170] sm:$0xff]
      %v8584 = vld [vmem:[#allocation10 + $0x178] sm:$0xff]
      %v8585 = vld [vmem:[#allocation10 + $0x180] sm:$0xff]
      %v8586 = vld [vmem:[#allocation10 + $0x188] sm:$0xff]
      %v8587 = vld [vmem:[%s11] sm:$0xff]
      %v8588 = vld [vmem:[%s11 + $0x8] sm:$0xff]
      %v8589 = vld [vmem:[%s11 + $0x10] sm:$0xff]
      %v8590 = vld [vmem:[%s11 + $0x18] sm:$0xff]
      %v8591 = vld [vmem:[%s11 + $0x20] sm:$0xff]
      %v8592 = vld [vmem:[%s11 + $0x28] sm:$0xff]
      %v8593 = vld [vmem:[%s11 + $0x30] sm:$0xff]
      %v8594 = vld [vmem:[%s11 + $0x38] sm:$0xff]
      %8596 = vset.pattern.permute.xlu0 0
      %8597 = vperm.xlu0 %8596, %v8587
      %v8598 = vpop.permute.xlu0 %8597
      %8601 = vset.pattern.permute.xlu0 0
      %8602 = vperm.xlu0 %8601, %v8588
      %v8603 = vpop.permute.xlu0 %8602
      %8606 = vset.pattern.permute.xlu0 0
      %8607 = vperm.xlu0 %8606, %v8589
      %v8608 = vpop.permute.xlu0 %8607
      %8611 = vset.pattern.permute.xlu0 0
      %8612 = vperm.xlu0 %8611, %v8590
      %v8613 = vpop.permute.xlu0 %8612
      %8616 = vset.pattern.permute.xlu0 0
      %8617 = vperm.xlu0 %8616, %v8591
      %v8618 = vpop.permute.xlu0 %8617
      %8621 = vset.pattern.permute.xlu0 0
      %8622 = vperm.xlu0 %8621, %v8592
      %v8623 = vpop.permute.xlu0 %8622
      %8626 = vset.pattern.permute.xlu0 0
      %8627 = vperm.xlu0 %8626, %v8593
      %v8628 = vpop.permute.xlu0 %8627
      %8631 = vset.pattern.permute.xlu0 0
      %8632 = vperm.xlu0 %8631, %v8594
      %v8633 = vpop.permute.xlu0 %8632
      %v8667 = vunpack.c.l.b16 %v8505
      %v8668 = vunpack.c.h.b16 %v8505
      %v8669 = vunpack.c.l.b16 %v8506
      %v8670 = vunpack.c.h.b16 %v8506
      %v8671 = vunpack.c.l.b16 %v8507
      %v8672 = vunpack.c.h.b16 %v8507
      %v8673 = vunpack.c.l.b16 %v8508
      %v8674 = vunpack.c.l.b16 %v8509
      %v8675 = vunpack.c.h.b16 %v8509
      %v8676 = vunpack.c.l.b16 %v8510
      %v8677 = vunpack.c.h.b16 %v8510
      %v8678 = vunpack.c.l.b16 %v8511
      %v8679 = vunpack.c.h.b16 %v8511
      %v8680 = vunpack.c.l.b16 %v8512
      %v8681 = vunpack.c.l.b16 %v8513
      %v8682 = vunpack.c.h.b16 %v8513
      %v8683 = vunpack.c.l.b16 %v8514
      %v8684 = vunpack.c.h.b16 %v8514
      %v8685 = vunpack.c.l.b16 %v8515
      %v8686 = vunpack.c.h.b16 %v8515
      %v8687 = vunpack.c.l.b16 %v8516
      %v8688 = vunpack.c.l.b16 %v8517
      %v8689 = vunpack.c.h.b16 %v8517
      %v8690 = vunpack.c.l.b16 %v8518
      %v8691 = vunpack.c.h.b16 %v8518
      %v8692 = vunpack.c.l.b16 %v8519
      %v8693 = vunpack.c.h.b16 %v8519
      %v8694 = vunpack.c.l.b16 %v8520
      %v8695 = vunpack.c.l.b16 %v8521
      %v8696 = vunpack.c.h.b16 %v8521
      %v8697 = vunpack.c.l.b16 %v8522
      %v8698 = vunpack.c.h.b16 %v8522
      %v8699 = vunpack.c.l.b16 %v8523
      %v8700 = vunpack.c.h.b16 %v8523
      %v8701 = vunpack.c.l.b16 %v8524
      %v8702 = vunpack.c.l.b16 %v8525
      %v8703 = vunpack.c.h.b16 %v8525
      %v8704 = vunpack.c.l.b16 %v8526
      %v8705 = vunpack.c.h.b16 %v8526
      %v8706 = vunpack.c.l.b16 %v8527
      %v8707 = vunpack.c.h.b16 %v8527
      %v8708 = vunpack.c.l.b16 %v8528
      %v8709 = vunpack.c.l.b16 %v8529
      %v8710 = vunpack.c.h.b16 %v8529
      %v8711 = vunpack.c.l.b16 %v8530
      %v8712 = vunpack.c.h.b16 %v8530
      %v8713 = vunpack.c.l.b16 %v8531
      %v8714 = vunpack.c.h.b16 %v8531
      %v8715 = vunpack.c.l.b16 %v8532
      %v8716 = vunpack.c.l.b16 %v8533
      %v8717 = vunpack.c.h.b16 %v8533
      %v8718 = vunpack.c.l.b16 %v8534
      %v8719 = vunpack.c.h.b16 %v8534
      %v8720 = vunpack.c.l.b16 %v8535
      %v8721 = vunpack.c.h.b16 %v8535
      %v8722 = vunpack.c.l.b16 %v8536
      %v8723 = vpack.c.b16 %v8674, %v8667
      %v8724 = vpack.c.b16 %v8675, %v8668
      %v8725 = vpack.c.b16 %v8676, %v8669
      %v8726 = vpack.c.b16 %v8677, %v8670
      %v8727 = vpack.c.b16 %v8678, %v8671
      %v8728 = vpack.c.b16 %v8679, %v8672
      %v8729 = vpack.c.b16 %v8680, %v8673
      %v8730 = vpack.c.b16 %v8688, %v8681
      %v8731 = vpack.c.b16 %v8689, %v8682
      %v8732 = vpack.c.b16 %v8690, %v8683
      %v8733 = vpack.c.b16 %v8691, %v8684
      %v8734 = vpack.c.b16 %v8692, %v8685
      %v8735 = vpack.c.b16 %v8693, %v8686
      %v8736 = vpack.c.b16 %v8694, %v8687
      %v8737 = vpack.c.b16 %v8702, %v8695
      %v8738 = vpack.c.b16 %v8703, %v8696
      %v8739 = vpack.c.b16 %v8704, %v8697
      %v8740 = vpack.c.b16 %v8705, %v8698
      %v8741 = vpack.c.b16 %v8706, %v8699
      %v8742 = vpack.c.b16 %v8707, %v8700
      %v8743 = vpack.c.b16 %v8708, %v8701
      %v8744 = vpack.c.b16 %v8716, %v8709
      %v8745 = vpack.c.b16 %v8717, %v8710
      %v8746 = vpack.c.b16 %v8718, %v8711
      %v8747 = vpack.c.b16 %v8719, %v8712
      %v8748 = vpack.c.b16 %v8720, %v8713
      %v8749 = vpack.c.b16 %v8721, %v8714
      %v8750 = vpack.c.b16 %v8722, %v8715
      %v8776 = vsel %vm3397, %v8729, 0
      %v8779 = vsel %vm3397, %v8736, 0
      %v8782 = vsel %vm3397, %v8743, 0
      %v8785 = vsel %vm3397, %v8750, 0
      %8787 = vmatprep.subr.bf16.mxu0 0
      %8788 = vmatpush1.bf16.msra.mxu0 %v8537
      %8789 = vmatprep.subr.bf16.mxu0 0
      %8790 = vmatpush1.bf16.msra.mxu0 %v8538
      %8791 = vmatprep.subr.bf16.mxu0 0
      %8792 = vmatpush1.bf16.msra.mxu0 %v8539
      %8793 = vmatprep.subr.bf16.mxu0 0
      %8794 = vmatpush1.bf16.msra.mxu0 %v8540
      %8795 = vmatprep.subr.bf16.mxu0 0
      %8796 = vmatpush1.bf16.msra.mxu0 %v8541
      %8797 = vmatprep.subr.bf16.mxu0 0
      %8798 = vmatpush1.bf16.msra.mxu0 %v8542
      %8799 = vmatprep.subr.bf16.mxu0 0
      %8800 = vmatpush1.bf16.msra.mxu0 %v8543
      %8801 = vmatprep.subr.bf16.mxu0 0
      %8802 = vmatpush1.bf16.msra.mxu0 %v8544
      %8803 = vmatprep.subr.bf16.mxu0 0
      %8804 = vmatpush1.bf16.msra.mxu0 %v8545
      %8805 = vmatprep.subr.bf16.mxu0 0
      %8806 = vmatpush1.bf16.msra.mxu0 %v8546
      %8807 = vmatprep.subr.bf16.mxu0 0
      %8808 = vmatpush1.bf16.msra.mxu0 %v8547
      %8809 = vmatprep.subr.bf16.mxu0 0
      %8810 = vmatpush1.bf16.msra.mxu0 %v8548
      %8811 = vmatprep.subr.bf16.mxu0 0
      %8812 = vmatpush1.bf16.msra.mxu0 %v8549
      %8813 = vmatprep.subr.bf16.mxu0 0
      %8814 = vmatpush1.bf16.msra.mxu0 %v8550
      %8815 = vmatprep.subr.bf16.mxu0 0
      %8816 = vmatpush1.bf16.msra.mxu0 %v8551
      %8817 = vmatprep.subr.bf16.mxu0 0
      %8818 = vmatpush1.bf16.msra.mxu0 %v8552
      %8819 = vmatprep.mubr.bf16.mxu0 %v8724
      %8820 = vmatmul.mubr.bf16.gmra.mrb[0].mxu0 %v8723
      %v8821 = vpop.f32.mrb[0].mxu0
      %v8822 = vadd.f32 %v8598, %v8821
      %v8823 = vpop.f32.mrb[0].mxu0
      %v8824 = vpop.f32.mrb[0].mxu0
      %v8825 = vadd.f32 %v8603, %v8824
      %v8826 = vpop.f32.mrb[0].mxu0
      %8827 = vmatprep.mubr.bf16.mxu0 %v8731
      %8828 = vmatmul.mubr.bf16.gmra.mrb[0].mxu0 %v8730
      %v8829 = vpop.f32.mrb[0].mxu0
      %v8830 = vadd.f32 %v8608, %v8829
      %v8831 = vpop.f32.mrb[0].mxu0
      %v8832 = vpop.f32.mrb[0].mxu0
      %v8833 = vadd.f32 %v8613, %v8832
      %v8834 = vpop.f32.mrb[0].mxu0
      %8835 = vmatprep.mubr.bf16.mxu0 %v8738
      %8836 = vmatmul.mubr.bf16.gmra.mrb[0].mxu0 %v8737
      %v8837 = vpop.f32.mrb[0].mxu0
      %v8838 = vadd.f32 %v8618, %v8837
      %v8839 = vpop.f32.mrb[0].mxu0
      %v8840 = vpop.f32.mrb[0].mxu0
      %v8841 = vadd.f32 %v8623, %v8840
      %v8842 = vpop.f32.mrb[0].mxu0
      %8843 = vmatprep.mubr.bf16.mxu0 %v8745
      %8844 = vmatmul.mubr.bf16.gmra.mrb[0].mxu0 %v8744
      %v8845 = vpop.f32.mrb[0].mxu0
      %v8846 = vadd.f32 %v8628, %v8845
      %v8847 = vpop.f32.mrb[0].mxu0
      %v8848 = vpop.f32.mrb[0].mxu0
      %v8849 = vadd.f32 %v8633, %v8848
      %v8850 = vpop.f32.mrb[0].mxu0
      %8851 = vdwg.mxu0
      %8852 = vmatprep.subr.bf16.mxu0 0
      %8853 = vmatpush1.bf16.msra.mxu0 %v8553
      %8854 = vmatprep.subr.bf16.mxu0 0
      %8855 = vmatpush1.bf16.msra.mxu0 %v8554
      %8856 = vmatprep.subr.bf16.mxu0 0
      %8857 = vmatpush1.bf16.msra.mxu0 %v8555
      %8858 = vmatprep.subr.bf16.mxu0 0
      %8859 = vmatpush1.bf16.msra.mxu0 %v8556
      %8860 = vmatprep.subr.bf16.mxu0 0
      %8861 = vmatpush1.bf16.msra.mxu0 %v8557
      %8862 = vmatprep.subr.bf16.mxu0 0
      %8863 = vmatpush1.bf16.msra.mxu0 %v8558
      %8864 = vmatprep.subr.bf16.mxu0 0
      %8865 = vmatpush1.bf16.msra.mxu0 %v8559
      %8866 = vmatprep.subr.bf16.mxu0 0
      %8867 = vmatpush1.bf16.msra.mxu0 %v8560
      %8868 = vmatprep.subr.bf16.mxu0 0
      %8869 = vmatpush1.bf16.msra.mxu0 %v8561
      %8870 = vmatprep.subr.bf16.mxu0 0
      %8871 = vmatpush1.bf16.msra.mxu0 %v8562
      %8872 = vmatprep.subr.bf16.mxu0 0
      %8873 = vmatpush1.bf16.msra.mxu0 %v8563
      %8874 = vmatprep.subr.bf16.mxu0 0
      %8875 = vmatpush1.bf16.msra.mxu0 %v8564
      %8876 = vmatprep.subr.bf16.mxu0 0
      %8877 = vmatpush1.bf16.msra.mxu0 %v8565
      %8878 = vmatprep.subr.bf16.mxu0 0
      %8879 = vmatpush1.bf16.msra.mxu0 %v8566
      %8880 = vmatprep.subr.bf16.mxu0 0
      %8881 = vmatpush1.bf16.msra.mxu0 %v8567
      %8882 = vmatprep.subr.bf16.mxu0 0
      %8883 = vmatpush1.bf16.msra.mxu0 %v8568
      %8884 = vmatprep.mubr.bf16.mxu0 %v8726
      %8885 = vmatmul.mubr.bf16.gmra.mrb[0].mxu0 %v8725
      %v8886 = vpop.f32.mrb[0].mxu0
      %v8887 = vadd.f32 %v8822, %v8886
      %v8888 = vpop.f32.mrb[0].mxu0
      %v8889 = vpop.f32.mrb[0].mxu0
      %v8890 = vadd.f32 %v8825, %v8889
      %v8891 = vpop.f32.mrb[0].mxu0
      %8892 = vmatprep.mubr.bf16.mxu0 %v8733
      %8893 = vmatmul.mubr.bf16.gmra.mrb[0].mxu0 %v8732
      %v8894 = vpop.f32.mrb[0].mxu0
      %v8895 = vadd.f32 %v8830, %v8894
      %v8896 = vpop.f32.mrb[0].mxu0
      %v8897 = vpop.f32.mrb[0].mxu0
      %v8898 = vadd.f32 %v8833, %v8897
      %v8899 = vpop.f32.mrb[0].mxu0
      %8900 = vmatprep.mubr.bf16.mxu0 %v8740
      %8901 = vmatmul.mubr.bf16.gmra.mrb[0].mxu0 %v8739
      %v8902 = vpop.f32.mrb[0].mxu0
      %v8903 = vadd.f32 %v8838, %v8902
      %v8904 = vpop.f32.mrb[0].mxu0
      %v8905 = vpop.f32.mrb[0].mxu0
      %v8906 = vadd.f32 %v8841, %v8905
      %v8907 = vpop.f32.mrb[0].mxu0
      %8908 = vmatprep.mubr.bf16.mxu0 %v8747
      %8909 = vmatmul.mubr.bf16.gmra.mrb[0].mxu0 %v8746
      %v8910 = vpop.f32.mrb[0].mxu0
      %v8911 = vadd.f32 %v8846, %v8910
      %v8912 = vpop.f32.mrb[0].mxu0
      %v8913 = vpop.f32.mrb[0].mxu0
      %v8914 = vadd.f32 %v8849, %v8913
      %v8915 = vpop.f32.mrb[0].mxu0
      %8916 = vdwg.mxu0
      %8917 = vmatprep.subr.bf16.mxu0 0
      %8918 = vmatpush1.bf16.msra.mxu0 %v8569
      %8919 = vmatprep.subr.bf16.mxu0 0
      %8920 = vmatpush1.bf16.msra.mxu0 %v8570
      %8921 = vmatprep.subr.bf16.mxu0 0
      %8922 = vmatpush1.bf16.msra.mxu0 %v8571
      %8923 = vmatprep.subr.bf16.mxu0 0
      %8924 = vmatpush1.bf16.msra.mxu0 %v8572
      %8925 = vmatprep.subr.bf16.mxu0 0
      %8926 = vmatpush1.bf16.msra.mxu0 %v8573
      %8927 = vmatprep.subr.bf16.mxu0 0
      %8928 = vmatpush1.bf16.msra.mxu0 %v8574
      %8929 = vmatprep.subr.bf16.mxu0 0
      %8930 = vmatpush1.bf16.msra.mxu0 %v8575
      %8931 = vmatprep.subr.bf16.mxu0 0
      %8932 = vmatpush1.bf16.msra.mxu0 %v8576
      %8933 = vmatprep.subr.bf16.mxu0 0
      %8934 = vmatpush1.bf16.msra.mxu0 %v8577
      %8935 = vmatprep.subr.bf16.mxu0 0
      %8936 = vmatpush1.bf16.msra.mxu0 %v8578
      %8937 = vmatprep.subr.bf16.mxu0 0
      %8938 = vmatpush1.bf16.msra.mxu0 %v8579
      %8939 = vmatprep.subr.bf16.mxu0 0
      %8940 = vmatpush1.bf16.msra.mxu0 %v8580
      %8941 = vmatprep.subr.bf16.mxu0 0
      %8942 = vmatpush1.bf16.msra.mxu0 %v8581
      %8943 = vmatprep.subr.bf16.mxu0 0
      %8944 = vmatpush1.bf16.msra.mxu0 %v8582
      %8945 = vmatprep.subr.bf16.mxu0 0
      %8946 = vmatpush1.bf16.msra.mxu0 %v8583
      %8947 = vmatprep.subr.bf16.mxu0 0
      %8948 = vmatpush1.bf16.msra.mxu0 %v8584
      %8949 = vmatprep.mubr.bf16.mxu0 %v8728
      %8950 = vmatmul.mubr.bf16.gmra.mrb[0].mxu0 %v8727
      %v8951 = vpop.f32.mrb[0].mxu0
      %v8952 = vadd.f32 %v8887, %v8951
      %v8953 = vpop.f32.mrb[0].mxu0
      %v8954 = vpop.f32.mrb[0].mxu0
      %v8955 = vadd.f32 %v8890, %v8954
      %v8956 = vpop.f32.mrb[0].mxu0
      %8957 = vmatprep.mubr.bf16.mxu0 %v8735
      %8958 = vmatmul.mubr.bf16.gmra.mrb[0].mxu0 %v8734
      %v8959 = vpop.f32.mrb[0].mxu0
      %v8960 = vadd.f32 %v8895, %v8959
      %v8961 = vpop.f32.mrb[0].mxu0
      %v8962 = vpop.f32.mrb[0].mxu0
      %v8963 = vadd.f32 %v8898, %v8962
      %v8964 = vpop.f32.mrb[0].mxu0
      %8965 = vmatprep.mubr.bf16.mxu0 %v8742
      %8966 = vmatmul.mubr.bf16.gmra.mrb[0].mxu0 %v8741
      %v8967 = vpop.f32.mrb[0].mxu0
      %v8968 = vadd.f32 %v8903, %v8967
      %v8969 = vpop.f32.mrb[0].mxu0
      %v8970 = vpop.f32.mrb[0].mxu0
      %v8971 = vadd.f32 %v8906, %v8970
      %v8972 = vpop.f32.mrb[0].mxu0
      %8973 = vmatprep.mubr.bf16.mxu0 %v8749
      %8974 = vmatmul.mubr.bf16.gmra.mrb[0].mxu0 %v8748
      %v8975 = vpop.f32.mrb[0].mxu0
      %v8976 = vadd.f32 %v8911, %v8975
      %v8977 = vpop.f32.mrb[0].mxu0
      %v8978 = vpop.f32.mrb[0].mxu0
      %v8979 = vadd.f32 %v8914, %v8978
      %v8980 = vpop.f32.mrb[0].mxu0
      %8981 = vdwg.mxu0
      %8982 = vmatprep.subr.bf16.mxu0 0
      %8983 = vmatpush1.bf16.msra.mxu0 %v8585
      %8984 = vmatprep.subr.bf16.mxu0 0
      %8985 = vmatpush1.bf16.msra.mxu0 %v8586
      %8986 = vmatprep.subr.bf16.mxu0 0
      %8987 = vmatpush1.bf16.msra.mxu0 0
      %8988 = vmatprep.subr.bf16.mxu0 0
      %8989 = vmatpush1.bf16.msra.mxu0 0
      %8990 = vmatprep.subr.bf16.mxu0 0
      %8991 = vmatpush1.bf16.msra.mxu0 0
      %8992 = vmatprep.subr.bf16.mxu0 0
      %8993 = vmatpush1.bf16.msra.mxu0 0
      %8994 = vmatprep.subr.bf16.mxu0 0
      %8995 = vmatpush1.bf16.msra.mxu0 0
      %8996 = vmatprep.subr.bf16.mxu0 0
      %8997 = vmatpush1.bf16.msra.mxu0 0
      %8998 = vmatprep.subr.bf16.mxu0 0
      %8999 = vmatpush1.bf16.msra.mxu0 0
      %9000 = vmatprep.subr.bf16.mxu0 0
      %9001 = vmatpush1.bf16.msra.mxu0 0
      %9002 = vmatprep.subr.bf16.mxu0 0
      %9003 = vmatpush1.bf16.msra.mxu0 0
      %9004 = vmatprep.subr.bf16.mxu0 0
      %9005 = vmatpush1.bf16.msra.mxu0 0
      %9006 = vmatprep.subr.bf16.mxu0 0
      %9007 = vmatpush1.bf16.msra.mxu0 0
      %9008 = vmatprep.subr.bf16.mxu0 0
      %9009 = vmatpush1.bf16.msra.mxu0 0
      %9010 = vmatprep.subr.bf16.mxu0 0
      %9011 = vmatpush1.bf16.msra.mxu0 0
      %9012 = vmatprep.subr.bf16.mxu0 0
      %9013 = vmatpush1.bf16.msra.mxu0 0
      %9014 = vmatprep.mubr.bf16.mxu0 0
      %9015 = vmatmul.mubr.bf16.gmra.mrb[0].mxu0 %v8776
      %v9016 = vpop.f32.mrb[0].mxu0
      %v9017 = vadd.f32 %v8952, %v9016
      %v9018 = vpop.f32.mrb[0].mxu0
      %v9019 = vpop.f32.mrb[0].mxu0
      %v9020 = vadd.f32 %v8955, %v9019
      %v9021 = vpop.f32.mrb[0].mxu0
      %9022 = vmatprep.mubr.bf16.mxu0 0
      %9023 = vmatmul.mubr.bf16.gmra.mrb[0].mxu0 %v8779
      %v9024 = vpop.f32.mrb[0].mxu0
      %v9025 = vadd.f32 %v8960, %v9024
      %v9026 = vpop.f32.mrb[0].mxu0
      %v9027 = vpop.f32.mrb[0].mxu0
      %v9028 = vadd.f32 %v8963, %v9027
      %v9029 = vpop.f32.mrb[0].mxu0
      %9030 = vmatprep.mubr.bf16.mxu0 0
      %9031 = vmatmul.mubr.bf16.gmra.mrb[0].mxu0 %v8782
      %v9032 = vpop.f32.mrb[0].mxu0
      %v9033 = vadd.f32 %v8968, %v9032
      %v9034 = vpop.f32.mrb[0].mxu0
      %v9035 = vpop.f32.mrb[0].mxu0
      %v9036 = vadd.f32 %v8971, %v9035
      %v9037 = vpop.f32.mrb[0].mxu0
      %9038 = vmatprep.mubr.bf16.mxu0 0
      %9039 = vmatmul.mubr.bf16.gmra.mrb[0].mxu0 %v8785
      %v9040 = vpop.f32.mrb[0].mxu0
      %v9041 = vadd.f32 %v8976, %v9040
      %v9042 = vpop.f32.mrb[0].mxu0
      %v9043 = vpop.f32.mrb[0].mxu0
      %v9044 = vadd.f32 %v8979, %v9043
      %v9045 = vpop.f32.mrb[0].mxu0
      %9046 = vdwg.mxu0
      %v9047 = vmax.f32 %v9017, 0.0
      %v9048 = vmax.f32 %v9020, 0.0
      %v9049 = vmax.f32 %v9025, 0.0
      %v9050 = vmax.f32 %v9028, 0.0
      %v9051 = vmax.f32 %v9033, 0.0
      %v9052 = vmax.f32 %v9036, 0.0
      %v9053 = vmax.f32 %v9041, 0.0
      %v9054 = vmax.f32 %v9044, 0.0
      %9055 = vst [vmem:[%s410] sm:$0xff] %v9047
      %9056 = vst [vmem:[%s410 + $0x8] sm:$0xff] %v9048
      %9057 = vst [vmem:[%s410 + $0x10] sm:$0xff] %v9049
      %9058 = vst [vmem:[%s410 + $0x18] sm:$0xff] %v9050
      %9059 = vst [vmem:[%s410 + $0x20] sm:$0xff] %v9051
      %9060 = vst [vmem:[%s410 + $0x28] sm:$0xff] %v9052
      %9061 = vst [vmem:[%s410 + $0x30] sm:$0xff] %v9053
      %9062 = vst [vmem:[%s410 + $0x38] sm:$0xff] %v9054
      %p9063 = scmp.lt.s32.totalorder %s23, 1
      %s9064 = scalar_select %p9063, %s23, 1
      %s9065 = smul.addr %s9064, 8
      %s9066 = smul.addr %s9065, 8
      %s9067 = scalar_lea.vmem %s12, %s9066
      // Predicated region
      $region69: #{net_forward.1} parent=67 // pred_check
        %p9068 = pneg %p298
      $region70: #{net_forward.1} parent=67 // pred_check_branch
        %9070 = sbr.rel (%p9068) target = $region72
      $region71: #{net_forward.1} parent=67 // pred_region
        _
      $region72: #{net_forward.1} parent=67 // pred_fallthru
        _
    $region68: #{net_forward.1} parent=5 // pred_fallthru
      _
    %p9071 = scmp.le.s32.totalorder 2, %s18
    // Predicated region
    $region73: #{net_forward.1} parent=5 // pred_check
      %p9072 = pneg %p9071
    $region74: #{net_forward.1} parent=5 // pred_check_branch
      %9074 = sbr.rel (%p9072) target = $region76
    $region75: #{net_forward.1} parent=5 // pred_region
      %s9075 = ssub.s32 %s18, 2
      // Predicated region
      $region77: #{net_forward.1} parent=75 // pred_check
        %p9076 = pneg %p304
      $region78: #{net_forward.1} parent=75 // pred_check_branch
        %9078 = sbr.rel (%p9076) target = $region80
      $region79: #{net_forward.1} parent=75 // pred_region
        %p9079 = scmp.lt.s32.totalorder %s24, 1
        %s9080 = scalar_select %p9079, %s24, 1
        %s9081 = smul.addr %s9080, 8
        %s9082 = smul.addr %s9081, 8
        %s9083 = scalar_lea.vmem %s12, %s9082
      $region80: #{net_forward.1} parent=75 // pred_fallthru
        _
    $region76: #{net_forward.1} parent=5 // pred_fallthru
      _
  $region6: #{net_forward.1} parent=0 // loop_footer
    %s22 = sadd.s32 1, %s18
  $region7: #{net_forward.1} parent=0 // loop_footer_branch
    %17 = sbr.rel target = $region3
  $region8: #{net_forward.1} parent=0 // loop_exit
    _

</llo_original>
